<compile_context>
chip_gen: v7x
topology: tpu7x:2x2x1
jax: 0.10.0
libtpu: 0.0.40
codegen_flags: <defaults>
</compile_context>

<pallas_src>
import functools

import numpy as np
import jax
import jax.numpy as jnp
from jax import lax
from jax.experimental import pallas as pl
from jax.experimental.pallas import tpu as pltpu


# ----------------------------------------------------------------------------
# Fused kernel: conv1 + LReLU + conv2 + LReLU + MaxPool3d(2) for B samples/step
# ----------------------------------------------------------------------------
def _voxnet_fused_kernel(a1_ref, w1_ref, sel_ref, w2_ref, b2_ref,
                         pr_ref, rh_ref, ql_ref, o_ref):
    f32, bf16 = jnp.float32, jnp.bfloat16
    NL = o_ref.shape[-1]            # 4 * nb_hidden   (conv2 / pool lane width)
    B = o_ref.shape[0] // 2         # samples per grid step
    R = 16 * B                      # conv2 rows per step: (b, pd, ph)

    # ---- conv1 (+bias via ones column) + LeakyReLU(0.1): ONE MXU matmul ----------------
    # rows = (b, od, oh)  [36B],  lanes = (ow, c1)  [192]
    y1 = jnp.dot(a1_ref[...], w1_ref[...], preferred_element_type=f32)
    y1 = jnp.where(y1 >= 0.0, y1, 0.1 * y1).astype(bf16)                    # [36B, 192]

    # ---- batched row gather for all 9 (kd,kh) taps of conv2 in ONE matmul --------------
    # sel is block-diagonal over the B samples; rows of g are ordered (tap, b, pd, ph)
    # so every tap slice starts at a multiple of 16B (sublane aligned -> free slices).
    g = jnp.dot(sel_ref[...], y1, preferred_element_type=f32).astype(bf16)  # [144B, 192]

    # ---- conv2 + bias + LeakyReLU(0.1): 9 tap contractions [16B,192]@[192,NL] ----------
    acc = jnp.broadcast_to(b2_ref[...], (R, NL))                            # seed with bias
    for t in range(9):
        acc = acc + jnp.dot(g[R * t:R * (t + 1)], w2_ref[t],
                            preferred_element_type=f32)
    y2 = jnp.where(acc >= 0.0, acc, 0.1 * acc).astype(bf16)   # rows (b,pd,ph), lanes (pw,co)

    # ---- MaxPool3d(2) epilogue: 0/1 selection matmuls + VPU max tree -------------------
    # Produces a lane-dense [2B, NL] block: rows = (b, qd), lanes = (qh, qw, co).
    r = jnp.dot(pr_ref[0], y2, preferred_element_type=f32)
    for k in range(1, 4):
        r = jnp.maximum(r, jnp.dot(pr_ref[k], y2, preferred_element_type=f32))
    r = r.astype(bf16)                                        # [4B, NL], rows (b, qd, qh)

    out = None
    for h in range(2):
        rhh = jnp.dot(rh_ref[h], r, preferred_element_type=f32).astype(bf16)   # [2B, NL]
        half = jnp.maximum(
            jnp.dot(rhh, ql_ref[2 * h], preferred_element_type=f32),
            jnp.dot(rhh, ql_ref[2 * h + 1], preferred_element_type=f32))
        out = half if out is None else out + half             # halves are zero off their lanes
    o_ref[...] = out.astype(o_ref.dtype)


# ----------------------------------------------------------------------------
# Wrapper-side operand preparation (plain JAX + trace-time numpy constants)
# ----------------------------------------------------------------------------
def _conv1_operands(x_ncdhw, w1, b1):
    """bf16 lane-dense conv1 im2col (bias folded, K padded) + block-diag conv1 weight."""
    N, C, D = x_ncdhw.shape[0], x_ncdhw.shape[1], x_ncdhw.shape[2]
    K, S = 5, 2
    Do = (D - K) // S + 1                                            # 6
    C1 = w1.shape[0]                                                 # 32

    # One XLA op instead of 125 strided slices; patch channel order = (c, kd, kh, kw).
    p = lax.conv_general_dilated_patches(
        x_ncdhw.astype(jnp.bfloat16), filter_shape=(K, K, K),
        window_strides=(S, S, S), padding='VALID')                   # [N, C*125, 6, 6, 6]
    p = jnp.transpose(p, (0, 2, 3, 4, 1))                            # [N, od, oh, ow, C*125]

    K1 = C * K ** 3 + 1                                              # +1 ones column (bias)
    K1p = ((K1 + 127) // 128) * 128                                  # 128 for C=1
    a1 = jnp.concatenate(
        [p,
         jnp.ones((N, Do, Do, Do, 1), jnp.bfloat16),
         jnp.zeros((N, Do, Do, Do, K1p - K1), jnp.bfloat16)], axis=-1)
    a1 = a1.reshape(N * Do * Do, Do * K1p)                           # rows (n,od,oh); K=(ow,k)

    w1m = jnp.transpose(w1, (1, 2, 3, 4, 0)).reshape(C * K ** 3, C1)  # (c,kd,kh,kw) major->minor
    w1p = jnp.concatenate(
        [w1m, b1[None, :], jnp.zeros((K1p - K1, C1), jnp.float32)], axis=0)   # [K1p, 32]
    # block-diagonal replication over the 6 `ow` positions -> y1 lanes = ow*32 + c1
    w1bd = jnp.einsum('ab,kc->akbc', jnp.eye(Do, dtype=jnp.float32), w1p)
    w1bd = w1bd.reshape(Do * K1p, Do * C1).astype(jnp.bfloat16)      # [6*K1p, 192]
    return a1, w1bd


def _conv2_operands(w2, b2, B):
    """Batched 9-tap row-gather matrix, banded block-Toeplitz conv2 weights, tiled bias."""
    H2, C1 = w2.shape[0], w2.shape[1]                                # nb_hidden, 32
    NL = 4 * H2

    w2t = jnp.transpose(w2, (2, 3, 4, 1, 0))                         # [kd, kh, kw, ci, co]
    band = (np.arange(6)[None, :, None] ==
            np.arange(3)[:, None, None] + np.arange(4)[None, None, :]).astype(np.float32)
    w2band = jnp.einsum('kop,dhkic->dhoipc', jnp.asarray(band), w2t)
    w2band = w2band.reshape(9, 6 * C1, NL).astype(jnp.bfloat16)      # [9, 192, 4*H2]

    # Block-diagonal (over the B samples) row gather for ALL 9 taps in one matrix.
    # Row order = (tap, b, pd, ph) so each tap slice is a 16B-row aligned block.
    sel = np.zeros((9 * 16 * B, 36 * B), np.float32)
    for kd in range(3):
        for kh in range(3):
            t = kd * 3 + kh
            for b in range(B):
                for pd in range(4):
                    for ph in range(4):
                        sel[(t * B + b) * 16 + pd * 4 + ph,
                            b * 36 + (pd + kd) * 6 + (ph + kh)] = 1.0

    b2big = jnp.tile(b2, 4)[None, :].astype(jnp.float32)             # [1, 4*H2], lanes=(pw,co)
    return jnp.asarray(sel, jnp.bfloat16), w2band, b2big


def _pool_operands(H2, B):
    """0/1 selection matrices for the fused MaxPool3d(2) epilogue (lane-dense output)."""
    NL = 4 * H2
    # rows (b, pd, ph) -> (b, qd, qh), one matrix per (i, j) position of the 2x2 window
    pr = np.zeros((4, 4 * B, 16 * B), np.float32)
    for i in range(2):
        for j in range(2):
            for b in range(B):
                for qd in range(2):
                    for qh in range(2):
                        pr[i * 2 + j, b * 4 + qd * 2 + qh,
                           b * 16 + (2 * qd + i) * 4 + (2 * qh + j)] = 1.0
    # rows (b, qd, qh) -> (b, qd) for fixed qh = h
    rh = np.zeros((2, 2 * B, 4 * B), np.float32)
    for h in range(2):
        for b in range(B):
            for qd in range(2):
                rh[h, b * 2 + qd, b * 4 + qd * 2 + h] = 1.0
    # lanes (pw, co) -> (qh, qw, co): pw = 2*qw + s placed into lane half qh = h
    ql = np.zeros((4, NL, NL), np.float32)
    for h in range(2):
        for s in range(2):
            for qw in range(2):
                ql[2 * h + s,
                   (2 * qw + s) * H2:(2 * qw + s + 1) * H2,
                   (h * 2 + qw) * H2:(h * 2 + qw + 1) * H2] = np.eye(H2)
    return (jnp.asarray(pr, jnp.bfloat16), jnp.asarray(rh, jnp.bfloat16),
            jnp.asarray(ql, jnp.bfloat16))


# ----------------------------------------------------------------------------
# Public forward: NCDHW in -> NCDHW out
# ----------------------------------------------------------------------------
@functools.partial(jax.jit, static_argnames=("batch_tile",))
def voxnet_forward(x_ncdhw, w1, b1, w2, b2, *, batch_tile=8):
    N = x_ncdhw.shape[0]
    H2 = w2.shape[0]                                                 # nb_hidden
    B = batch_tile
    assert B % 4 == 0, "batch_tile must be a multiple of 4 (sublane alignment)"
    # NOTE: lane-dense stores assume 4*nb_hidden % 128 == 0 (true for nb_hidden=32);
    # other values still compute correctly, stores just become masked.

    # Pad batch to a multiple of the tile (padded samples are discarded at the end).
    Np = ((N + B - 1) // B) * B
    if Np != N:
        x_ncdhw = jnp.concatenate(
            [x_ncdhw, jnp.zeros((Np - N,) + x_ncdhw.shape[1:], x_ncdhw.dtype)], axis=0)

    a1, w1bd = _conv1_operands(x_ncdhw, w1, b1)
    sel, w2band, b2big = _conv2_operands(w2, b2, B)
    pr, rh, ql = _pool_operands(H2, B)

    KB = a1.shape[1]                                                 # 6 * K1p (768 for C=1)
    C6 = w1bd.shape[1]                                               # 192
    NL = 4 * H2                                                      # 128 for nb_hidden=32
    steps = Np // B                                                  # even for N >= 2*B

    flops = steps * (2 * 36 * B * KB * C6                            # conv1
                     + 2 * (144 * B) * (36 * B) * C6                 # batched tap gather
                     + 9 * 2 * (16 * B) * C6 * NL                    # conv2 tap contractions
                     + 4 * 2 * (4 * B) * (16 * B) * NL               # pool row selections
                     + 2 * 2 * (2 * B) * (4 * B) * NL                # pool qh split
                     + 4 * 2 * (2 * B) * NL * NL)                    # pool lane selections
    bytes_accessed = (2 * (a1.size + w1bd.size + sel.size + w2band.size
                           + pr.size + rh.size + ql.size)
                      + 4 * b2big.size + 4 * 2 * Np * NL)

    out = pl.pallas_call(
        _voxnet_fused_kernel,
        out_shape=jax.ShapeDtypeStruct((2 * Np, NL), jnp.float32),
        grid_spec=pltpu.PrefetchScalarGridSpec(
            num_scalar_prefetch=0,
            grid=(steps,),
            in_specs=[
                pl.BlockSpec((36 * B, KB), lambda n: (n, 0)),          # per-step im2col slab
                pl.BlockSpec((KB, C6), lambda n: (0, 0)),              # conv1 block-diag weight
                pl.BlockSpec((144 * B, 36 * B), lambda n: (0, 0)),     # batched tap row gather
                pl.BlockSpec((9, C6, NL), lambda n: (0, 0, 0)),        # conv2 banded weights
                pl.BlockSpec((1, NL), lambda n: (0, 0)),               # conv2 bias (pw-tiled)
                pl.BlockSpec((4, 4 * B, 16 * B), lambda n: (0, 0, 0)),  # pool row selections
                pl.BlockSpec((2, 2 * B, 4 * B), lambda n: (0, 0, 0)),   # pool qh split
                pl.BlockSpec((4, NL, NL), lambda n: (0, 0, 0)),         # pool lane selections
            ],
            out_specs=pl.BlockSpec((2 * B, NL), lambda n: (n, 0)),     # rows (n,qd); 128 lanes
        ),
        compiler_params=pltpu.CompilerParams(dimension_semantics=("parallel",)),
        cost_estimate=pl.CostEstimate(flops=flops, transcendentals=0,
                                      bytes_accessed=bytes_accessed),
    )(a1, w1bd, sel, w2band, b2big, pr, rh, ql)

    out = out[:2 * N].reshape(N, 2, 2, 2, H2)                        # (n, qd, qh, qw, c)
    return jnp.transpose(out, (0, 4, 1, 2, 3))                       # -> NCDHW


# ----------------------------------------------------------------------------
# Pure-JAX reference
# ----------------------------------------------------------------------------
def voxnet_reference(x, w1, b1, w2, b2):
    dn1 = lax.conv_dimension_numbers(x.shape, w1.shape, ("NCDHW", "OIDHW", "NCDHW"))
    y = lax.conv_general_dilated(x, w1, (2, 2, 2), "VALID", dimension_numbers=dn1)
    y = y + b1.reshape(1, -1, 1, 1, 1)
    y = jnp.where(y >= 0.0, y, 0.1 * y)
    dn2 = lax.conv_dimension_numbers(y.shape, w2.shape, ("NCDHW", "OIDHW", "NCDHW"))
    y = lax.conv_general_dilated(y, w2, (1, 1, 1), "VALID", dimension_numbers=dn2)
    y = y + b2.reshape(1, -1, 1, 1, 1)
    y = jnp.where(y >= 0.0, y, 0.1 * y)
    y = lax.reduce_window(y, -jnp.inf, lax.max,
                          (1, 1, 2, 2, 2), (1, 1, 2, 2, 2), "VALID")
    return y


# ----------------------------------------------------------------------------
# Main
# ----------------------------------------------------------------------------
if __name__ == "__main__":
    nb_channels, nb_hidden = 1, 32
    N, D = 16, 16                                                    # input [N, 1, 16, 16, 16]

    key = jax.random.PRNGKey(0)
    k_x, k_w1, k_b1, k_w2, k_b2 = jax.random.split(key, 5)

    x = jax.random.normal(k_x, (N, nb_channels, D, D, D), dtype=jnp.float32)
    w1 = 0.10 * jax.random.normal(k_w1, (32, nb_channels, 5, 5, 5), dtype=jnp.float32)
    b1 = 0.10 * jax.random.normal(k_b1, (32,), dtype=jnp.float32)
    w2 = 0.05 * jax.random.normal(k_w2, (nb_hidden, 32, 3, 3, 3), dtype=jnp.float32)
    b2 = 0.10 * jax.random.normal(k_b2, (nb_hidden,), dtype=jnp.float32)

    out = jax.block_until_ready(voxnet_forward(x, w1, b1, w2, b2, batch_tile=8))
    ref = jax.block_until_ready(voxnet_reference(x, w1, b1, w2, b2))

    assert out.shape == ref.shape == (N, nb_hidden, 2, 2, 2), out.shape
    # Kernel matmuls use single-pass bf16 operands with f32 accumulation (per the perf
    # review), so compare with a tolerance appropriate for bf16-rounded products.
    max_err = float(jnp.max(jnp.abs(out - ref)))
    assert jnp.allclose(out, ref, atol=3e-2, rtol=3e-2), max_err

    print("KERNEL_OK")
</pallas_src>

<mosaic_0001>
module attributes {stable_mosaic.version = 11 : i64} {
  func.func @_voxnet_fused_kernel(%arg0: i32, %arg1: memref<288x768xbf16, #tpu.memory_space<vmem>>, %arg2: memref<768x192xbf16, #tpu.memory_space<vmem>>, %arg3: memref<1152x288xbf16, #tpu.memory_space<vmem>>, %arg4: memref<9x192x128xbf16, #tpu.memory_space<vmem>>, %arg5: memref<1x128xf32, #tpu.memory_space<vmem>>, %arg6: memref<4x32x128xbf16, #tpu.memory_space<vmem>>, %arg7: memref<2x16x32xbf16, #tpu.memory_space<vmem>>, %arg8: memref<4x128x128xbf16, #tpu.memory_space<vmem>>, %arg9: memref<16x128xf32, #tpu.memory_space<vmem>>) attributes {dimension_semantics = [#tpu.dimension_semantics<parallel>], iteration_bounds = array<i64: 2>, scalar_prefetch = 0 : i64, scratch_operands = 0 : i64, tpu.core_type = #tpu.core_type<tc>, window_params = [{transform_indices = @transform_0, window_bounds = array<i64: 288, 768>}, {pipeline_mode = #tpu.pipeline_mode<synchronous>, transform_indices = @transform_1, window_bounds = array<i64: 768, 192>}, {pipeline_mode = #tpu.pipeline_mode<synchronous>, transform_indices = @transform_2, window_bounds = array<i64: 1152, 288>}, {pipeline_mode = #tpu.pipeline_mode<synchronous>, transform_indices = @transform_3, window_bounds = array<i64: 9, 192, 128>}, {pipeline_mode = #tpu.pipeline_mode<synchronous>, transform_indices = @transform_4, window_bounds = array<i64: 1, 128>}, {pipeline_mode = #tpu.pipeline_mode<synchronous>, transform_indices = @transform_5, window_bounds = array<i64: 4, 32, 128>}, {pipeline_mode = #tpu.pipeline_mode<synchronous>, transform_indices = @transform_6, window_bounds = array<i64: 2, 16, 32>}, {pipeline_mode = #tpu.pipeline_mode<synchronous>, transform_indices = @transform_7, window_bounds = array<i64: 4, 128, 128>}, {transform_indices = @transform_8, window_bounds = array<i64: 16, 128>}]} {
    %c0 = arith.constant 0 : index
    %c0_0 = arith.constant 0 : index
    %0 = vector.load %arg1[%c0, %c0_0] : memref<288x768xbf16, #tpu.memory_space<vmem>>, vector<288x768xbf16>
    %c0_1 = arith.constant 0 : index
    %c0_2 = arith.constant 0 : index
    %1 = vector.load %arg2[%c0_1, %c0_2] : memref<768x192xbf16, #tpu.memory_space<vmem>>, vector<768x192xbf16>
    %cst = arith.constant dense<0.000000e+00> : vector<288x192xf32>
    %2 = tpu.matmul %0, %1, %cst {dimension_numbers = #tpu.dot_dimension_numbers<[1], [0], [0], [1], [0, 0, 1, 1], [], []>} : vector<288x768xbf16>, vector<768x192xbf16>, vector<288x192xf32> -> vector<288x192xf32>
    %cst_3 = arith.constant 0.000000e+00 : f32
    %3 = vector.broadcast %cst_3 : f32 to vector<288x192xf32>
    %4 = arith.cmpf oge, %2, %3 : vector<288x192xf32>
    %cst_4 = arith.constant 1.000000e-01 : f32
    %5 = vector.broadcast %cst_4 : f32 to vector<288x192xf32>
    %6 = arith.mulf %5, %2 : vector<288x192xf32>
    %7 = arith.select %4, %2, %6 : vector<288x192xi1>, vector<288x192xf32>
    %8 = arith.truncf %7 : vector<288x192xf32> to vector<288x192xbf16>
    %c0_5 = arith.constant 0 : index
    %c0_6 = arith.constant 0 : index
    %9 = vector.load %arg3[%c0_5, %c0_6] : memref<1152x288xbf16, #tpu.memory_space<vmem>>, vector<1152x288xbf16>
    %cst_7 = arith.constant dense<0.000000e+00> : vector<1152x192xf32>
    %10 = tpu.matmul %9, %8, %cst_7 {dimension_numbers = #tpu.dot_dimension_numbers<[1], [0], [0], [1], [0, 0, 1, 1], [], []>} : vector<1152x288xbf16>, vector<288x192xbf16>, vector<1152x192xf32> -> vector<1152x192xf32>
    %11 = arith.truncf %10 : vector<1152x192xf32> to vector<1152x192xbf16>
    %c0_8 = arith.constant 0 : index
    %c0_9 = arith.constant 0 : index
    %12 = vector.load %arg5[%c0_8, %c0_9] : memref<1x128xf32, #tpu.memory_space<vmem>>, vector<1x128xf32>
    %13 = vector.shape_cast %12 : vector<1x128xf32> to vector<1x128xf32>
    %14 = vector.broadcast %13 : vector<1x128xf32> to vector<128x128xf32>
    %15 = vector.extract_strided_slice %11 {offsets = [0, 0], sizes = [128, 192], strides = [1, 1]} : vector<1152x192xbf16> to vector<128x192xbf16>
    %c0_10 = arith.constant 0 : index
    %c0_11 = arith.constant 0 : index
    %c0_12 = arith.constant 0 : index
    %16 = vector.load %arg4[%c0_10, %c0_11, %c0_12] : memref<9x192x128xbf16, #tpu.memory_space<vmem>>, vector<1x192x128xbf16>
    %17 = vector.shape_cast %16 : vector<1x192x128xbf16> to vector<192x128xbf16>
    %cst_13 = arith.constant dense<0.000000e+00> : vector<128x128xf32>
    %18 = tpu.matmul %15, %17, %cst_13 {dimension_numbers = #tpu.dot_dimension_numbers<[1], [0], [0], [1], [0, 0, 1, 1], [], []>} : vector<128x192xbf16>, vector<192x128xbf16>, vector<128x128xf32> -> vector<128x128xf32>
    %19 = arith.addf %14, %18 : vector<128x128xf32>
    %20 = vector.extract_strided_slice %11 {offsets = [128, 0], sizes = [128, 192], strides = [1, 1]} : vector<1152x192xbf16> to vector<128x192xbf16>
    %c1 = arith.constant 1 : index
    %c0_14 = arith.constant 0 : index
    %c0_15 = arith.constant 0 : index
    %21 = vector.load %arg4[%c1, %c0_14, %c0_15] : memref<9x192x128xbf16, #tpu.memory_space<vmem>>, vector<1x192x128xbf16>
    %22 = vector.shape_cast %21 : vector<1x192x128xbf16> to vector<192x128xbf16>
    %cst_16 = arith.constant dense<0.000000e+00> : vector<128x128xf32>
    %23 = tpu.matmul %20, %22, %cst_16 {dimension_numbers = #tpu.dot_dimension_numbers<[1], [0], [0], [1], [0, 0, 1, 1], [], []>} : vector<128x192xbf16>, vector<192x128xbf16>, vector<128x128xf32> -> vector<128x128xf32>
    %24 = arith.addf %19, %23 : vector<128x128xf32>
    %25 = vector.extract_strided_slice %11 {offsets = [256, 0], sizes = [128, 192], strides = [1, 1]} : vector<1152x192xbf16> to vector<128x192xbf16>
    %c2 = arith.constant 2 : index
    %c0_17 = arith.constant 0 : index
    %c0_18 = arith.constant 0 : index
    %26 = vector.load %arg4[%c2, %c0_17, %c0_18] : memref<9x192x128xbf16, #tpu.memory_space<vmem>>, vector<1x192x128xbf16>
    %27 = vector.shape_cast %26 : vector<1x192x128xbf16> to vector<192x128xbf16>
    %cst_19 = arith.constant dense<0.000000e+00> : vector<128x128xf32>
    %28 = tpu.matmul %25, %27, %cst_19 {dimension_numbers = #tpu.dot_dimension_numbers<[1], [0], [0], [1], [0, 0, 1, 1], [], []>} : vector<128x192xbf16>, vector<192x128xbf16>, vector<128x128xf32> -> vector<128x128xf32>
    %29 = arith.addf %24, %28 : vector<128x128xf32>
    %30 = vector.extract_strided_slice %11 {offsets = [384, 0], sizes = [128, 192], strides = [1, 1]} : vector<1152x192xbf16> to vector<128x192xbf16>
    %c3 = arith.constant 3 : index
    %c0_20 = arith.constant 0 : index
    %c0_21 = arith.constant 0 : index
    %31 = vector.load %arg4[%c3, %c0_20, %c0_21] : memref<9x192x128xbf16, #tpu.memory_space<vmem>>, vector<1x192x128xbf16>
    %32 = vector.shape_cast %31 : vector<1x192x128xbf16> to vector<192x128xbf16>
    %cst_22 = arith.constant dense<0.000000e+00> : vector<128x128xf32>
    %33 = tpu.matmul %30, %32, %cst_22 {dimension_numbers = #tpu.dot_dimension_numbers<[1], [0], [0], [1], [0, 0, 1, 1], [], []>} : vector<128x192xbf16>, vector<192x128xbf16>, vector<128x128xf32> -> vector<128x128xf32>
    %34 = arith.addf %29, %33 : vector<128x128xf32>
    %35 = vector.extract_strided_slice %11 {offsets = [512, 0], sizes = [128, 192], strides = [1, 1]} : vector<1152x192xbf16> to vector<128x192xbf16>
    %c4 = arith.constant 4 : index
    %c0_23 = arith.constant 0 : index
    %c0_24 = arith.constant 0 : index
    %36 = vector.load %arg4[%c4, %c0_23, %c0_24] : memref<9x192x128xbf16, #tpu.memory_space<vmem>>, vector<1x192x128xbf16>
    %37 = vector.shape_cast %36 : vector<1x192x128xbf16> to vector<192x128xbf16>
    %cst_25 = arith.constant dense<0.000000e+00> : vector<128x128xf32>
    %38 = tpu.matmul %35, %37, %cst_25 {dimension_numbers = #tpu.dot_dimension_numbers<[1], [0], [0], [1], [0, 0, 1, 1], [], []>} : vector<128x192xbf16>, vector<192x128xbf16>, vector<128x128xf32> -> vector<128x128xf32>
    %39 = arith.addf %34, %38 : vector<128x128xf32>
    %40 = vector.extract_strided_slice %11 {offsets = [640, 0], sizes = [128, 192], strides = [1, 1]} : vector<1152x192xbf16> to vector<128x192xbf16>
    %c5 = arith.constant 5 : index
    %c0_26 = arith.constant 0 : index
    %c0_27 = arith.constant 0 : index
    %41 = vector.load %arg4[%c5, %c0_26, %c0_27] : memref<9x192x128xbf16, #tpu.memory_space<vmem>>, vector<1x192x128xbf16>
    %42 = vector.shape_cast %41 : vector<1x192x128xbf16> to vector<192x128xbf16>
    %cst_28 = arith.constant dense<0.000000e+00> : vector<128x128xf32>
    %43 = tpu.matmul %40, %42, %cst_28 {dimension_numbers = #tpu.dot_dimension_numbers<[1], [0], [0], [1], [0, 0, 1, 1], [], []>} : vector<128x192xbf16>, vector<192x128xbf16>, vector<128x128xf32> -> vector<128x128xf32>
    %44 = arith.addf %39, %43 : vector<128x128xf32>
    %45 = vector.extract_strided_slice %11 {offsets = [768, 0], sizes = [128, 192], strides = [1, 1]} : vector<1152x192xbf16> to vector<128x192xbf16>
    %c6 = arith.constant 6 : index
    %c0_29 = arith.constant 0 : index
    %c0_30 = arith.constant 0 : index
    %46 = vector.load %arg4[%c6, %c0_29, %c0_30] : memref<9x192x128xbf16, #tpu.memory_space<vmem>>, vector<1x192x128xbf16>
    %47 = vector.shape_cast %46 : vector<1x192x128xbf16> to vector<192x128xbf16>
    %cst_31 = arith.constant dense<0.000000e+00> : vector<128x128xf32>
    %48 = tpu.matmul %45, %47, %cst_31 {dimension_numbers = #tpu.dot_dimension_numbers<[1], [0], [0], [1], [0, 0, 1, 1], [], []>} : vector<128x192xbf16>, vector<192x128xbf16>, vector<128x128xf32> -> vector<128x128xf32>
    %49 = arith.addf %44, %48 : vector<128x128xf32>
    %50 = vector.extract_strided_slice %11 {offsets = [896, 0], sizes = [128, 192], strides = [1, 1]} : vector<1152x192xbf16> to vector<128x192xbf16>
    %c7 = arith.constant 7 : index
    %c0_32 = arith.constant 0 : index
    %c0_33 = arith.constant 0 : index
    %51 = vector.load %arg4[%c7, %c0_32, %c0_33] : memref<9x192x128xbf16, #tpu.memory_space<vmem>>, vector<1x192x128xbf16>
    %52 = vector.shape_cast %51 : vector<1x192x128xbf16> to vector<192x128xbf16>
    %cst_34 = arith.constant dense<0.000000e+00> : vector<128x128xf32>
    %53 = tpu.matmul %50, %52, %cst_34 {dimension_numbers = #tpu.dot_dimension_numbers<[1], [0], [0], [1], [0, 0, 1, 1], [], []>} : vector<128x192xbf16>, vector<192x128xbf16>, vector<128x128xf32> -> vector<128x128xf32>
    %54 = arith.addf %49, %53 : vector<128x128xf32>
    %55 = vector.extract_strided_slice %11 {offsets = [1024, 0], sizes = [128, 192], strides = [1, 1]} : vector<1152x192xbf16> to vector<128x192xbf16>
    %c8 = arith.constant 8 : index
    %c0_35 = arith.constant 0 : index
    %c0_36 = arith.constant 0 : index
    %56 = vector.load %arg4[%c8, %c0_35, %c0_36] : memref<9x192x128xbf16, #tpu.memory_space<vmem>>, vector<1x192x128xbf16>
    %57 = vector.shape_cast %56 : vector<1x192x128xbf16> to vector<192x128xbf16>
    %cst_37 = arith.constant dense<0.000000e+00> : vector<128x128xf32>
    %58 = tpu.matmul %55, %57, %cst_37 {dimension_numbers = #tpu.dot_dimension_numbers<[1], [0], [0], [1], [0, 0, 1, 1], [], []>} : vector<128x192xbf16>, vector<192x128xbf16>, vector<128x128xf32> -> vector<128x128xf32>
    %59 = arith.addf %54, %58 : vector<128x128xf32>
    %cst_38 = arith.constant 0.000000e+00 : f32
    %60 = vector.broadcast %cst_38 : f32 to vector<128x128xf32>
    %61 = arith.cmpf oge, %59, %60 : vector<128x128xf32>
    %cst_39 = arith.constant 1.000000e-01 : f32
    %62 = vector.broadcast %cst_39 : f32 to vector<128x128xf32>
    %63 = arith.mulf %62, %59 : vector<128x128xf32>
    %64 = arith.select %61, %59, %63 : vector<128x128xi1>, vector<128x128xf32>
    %65 = arith.truncf %64 : vector<128x128xf32> to vector<128x128xbf16>
    %c0_40 = arith.constant 0 : index
    %c0_41 = arith.constant 0 : index
    %c0_42 = arith.constant 0 : index
    %66 = vector.load %arg6[%c0_40, %c0_41, %c0_42] : memref<4x32x128xbf16, #tpu.memory_space<vmem>>, vector<1x32x128xbf16>
    %67 = vector.shape_cast %66 : vector<1x32x128xbf16> to vector<32x128xbf16>
    %cst_43 = arith.constant dense<0.000000e+00> : vector<32x128xf32>
    %68 = tpu.matmul %67, %65, %cst_43 {dimension_numbers = #tpu.dot_dimension_numbers<[1], [0], [0], [1], [0, 0, 1, 1], [], []>} : vector<32x128xbf16>, vector<128x128xbf16>, vector<32x128xf32> -> vector<32x128xf32>
    %c1_44 = arith.constant 1 : index
    %c0_45 = arith.constant 0 : index
    %c0_46 = arith.constant 0 : index
    %69 = vector.load %arg6[%c1_44, %c0_45, %c0_46] : memref<4x32x128xbf16, #tpu.memory_space<vmem>>, vector<1x32x128xbf16>
    %70 = vector.shape_cast %69 : vector<1x32x128xbf16> to vector<32x128xbf16>
    %cst_47 = arith.constant dense<0.000000e+00> : vector<32x128xf32>
    %71 = tpu.matmul %70, %65, %cst_47 {dimension_numbers = #tpu.dot_dimension_numbers<[1], [0], [0], [1], [0, 0, 1, 1], [], []>} : vector<32x128xbf16>, vector<128x128xbf16>, vector<32x128xf32> -> vector<32x128xf32>
    %72 = arith.maximumf %68, %71 : vector<32x128xf32>
    %c2_48 = arith.constant 2 : index
    %c0_49 = arith.constant 0 : index
    %c0_50 = arith.constant 0 : index
    %73 = vector.load %arg6[%c2_48, %c0_49, %c0_50] : memref<4x32x128xbf16, #tpu.memory_space<vmem>>, vector<1x32x128xbf16>
    %74 = vector.shape_cast %73 : vector<1x32x128xbf16> to vector<32x128xbf16>
    %cst_51 = arith.constant dense<0.000000e+00> : vector<32x128xf32>
    %75 = tpu.matmul %74, %65, %cst_51 {dimension_numbers = #tpu.dot_dimension_numbers<[1], [0], [0], [1], [0, 0, 1, 1], [], []>} : vector<32x128xbf16>, vector<128x128xbf16>, vector<32x128xf32> -> vector<32x128xf32>
    %76 = arith.maximumf %72, %75 : vector<32x128xf32>
    %c3_52 = arith.constant 3 : index
    %c0_53 = arith.constant 0 : index
    %c0_54 = arith.constant 0 : index
    %77 = vector.load %arg6[%c3_52, %c0_53, %c0_54] : memref<4x32x128xbf16, #tpu.memory_space<vmem>>, vector<1x32x128xbf16>
    %78 = vector.shape_cast %77 : vector<1x32x128xbf16> to vector<32x128xbf16>
    %cst_55 = arith.constant dense<0.000000e+00> : vector<32x128xf32>
    %79 = tpu.matmul %78, %65, %cst_55 {dimension_numbers = #tpu.dot_dimension_numbers<[1], [0], [0], [1], [0, 0, 1, 1], [], []>} : vector<32x128xbf16>, vector<128x128xbf16>, vector<32x128xf32> -> vector<32x128xf32>
    %80 = arith.maximumf %76, %79 : vector<32x128xf32>
    %81 = arith.truncf %80 : vector<32x128xf32> to vector<32x128xbf16>
    %c0_56 = arith.constant 0 : index
    %c0_57 = arith.constant 0 : index
    %c0_58 = arith.constant 0 : index
    %82 = vector.load %arg7[%c0_56, %c0_57, %c0_58] : memref<2x16x32xbf16, #tpu.memory_space<vmem>>, vector<1x16x32xbf16>
    %83 = vector.shape_cast %82 : vector<1x16x32xbf16> to vector<16x32xbf16>
    %cst_59 = arith.constant dense<0.000000e+00> : vector<16x128xf32>
    %84 = tpu.matmul %83, %81, %cst_59 {dimension_numbers = #tpu.dot_dimension_numbers<[1], [0], [0], [1], [0, 0, 1, 1], [], []>} : vector<16x32xbf16>, vector<32x128xbf16>, vector<16x128xf32> -> vector<16x128xf32>
    %85 = arith.truncf %84 : vector<16x128xf32> to vector<16x128xbf16>
    %c0_60 = arith.constant 0 : index
    %c0_61 = arith.constant 0 : index
    %c0_62 = arith.constant 0 : index
    %86 = vector.load %arg8[%c0_60, %c0_61, %c0_62] : memref<4x128x128xbf16, #tpu.memory_space<vmem>>, vector<1x128x128xbf16>
    %87 = vector.shape_cast %86 : vector<1x128x128xbf16> to vector<128x128xbf16>
    %cst_63 = arith.constant dense<0.000000e+00> : vector<16x128xf32>
    %88 = tpu.matmul %85, %87, %cst_63 {dimension_numbers = #tpu.dot_dimension_numbers<[1], [0], [0], [1], [0, 0, 1, 1], [], []>} : vector<16x128xbf16>, vector<128x128xbf16>, vector<16x128xf32> -> vector<16x128xf32>
    %c1_64 = arith.constant 1 : index
    %c0_65 = arith.constant 0 : index
    %c0_66 = arith.constant 0 : index
    %89 = vector.load %arg8[%c1_64, %c0_65, %c0_66] : memref<4x128x128xbf16, #tpu.memory_space<vmem>>, vector<1x128x128xbf16>
    %90 = vector.shape_cast %89 : vector<1x128x128xbf16> to vector<128x128xbf16>
    %cst_67 = arith.constant dense<0.000000e+00> : vector<16x128xf32>
    %91 = tpu.matmul %85, %90, %cst_67 {dimension_numbers = #tpu.dot_dimension_numbers<[1], [0], [0], [1], [0, 0, 1, 1], [], []>} : vector<16x128xbf16>, vector<128x128xbf16>, vector<16x128xf32> -> vector<16x128xf32>
    %92 = arith.maximumf %88, %91 : vector<16x128xf32>
    %c1_68 = arith.constant 1 : index
    %c0_69 = arith.constant 0 : index
    %c0_70 = arith.constant 0 : index
    %93 = vector.load %arg7[%c1_68, %c0_69, %c0_70] : memref<2x16x32xbf16, #tpu.memory_space<vmem>>, vector<1x16x32xbf16>
    %94 = vector.shape_cast %93 : vector<1x16x32xbf16> to vector<16x32xbf16>
    %cst_71 = arith.constant dense<0.000000e+00> : vector<16x128xf32>
    %95 = tpu.matmul %94, %81, %cst_71 {dimension_numbers = #tpu.dot_dimension_numbers<[1], [0], [0], [1], [0, 0, 1, 1], [], []>} : vector<16x32xbf16>, vector<32x128xbf16>, vector<16x128xf32> -> vector<16x128xf32>
    %96 = arith.truncf %95 : vector<16x128xf32> to vector<16x128xbf16>
    %c2_72 = arith.constant 2 : index
    %c0_73 = arith.constant 0 : index
    %c0_74 = arith.constant 0 : index
    %97 = vector.load %arg8[%c2_72, %c0_73, %c0_74] : memref<4x128x128xbf16, #tpu.memory_space<vmem>>, vector<1x128x128xbf16>
    %98 = vector.shape_cast %97 : vector<1x128x128xbf16> to vector<128x128xbf16>
    %cst_75 = arith.constant dense<0.000000e+00> : vector<16x128xf32>
    %99 = tpu.matmul %96, %98, %cst_75 {dimension_numbers = #tpu.dot_dimension_numbers<[1], [0], [0], [1], [0, 0, 1, 1], [], []>} : vector<16x128xbf16>, vector<128x128xbf16>, vector<16x128xf32> -> vector<16x128xf32>
    %c3_76 = arith.constant 3 : index
    %c0_77 = arith.constant 0 : index
    %c0_78 = arith.constant 0 : index
    %100 = vector.load %arg8[%c3_76, %c0_77, %c0_78] : memref<4x128x128xbf16, #tpu.memory_space<vmem>>, vector<1x128x128xbf16>
    %101 = vector.shape_cast %100 : vector<1x128x128xbf16> to vector<128x128xbf16>
    %cst_79 = arith.constant dense<0.000000e+00> : vector<16x128xf32>
    %102 = tpu.matmul %96, %101, %cst_79 {dimension_numbers = #tpu.dot_dimension_numbers<[1], [0], [0], [1], [0, 0, 1, 1], [], []>} : vector<16x128xbf16>, vector<128x128xbf16>, vector<16x128xf32> -> vector<16x128xf32>
    %103 = arith.maximumf %99, %102 : vector<16x128xf32>
    %104 = arith.addf %92, %103 : vector<16x128xf32>
    %c0_80 = arith.constant 0 : index
    %c0_81 = arith.constant 0 : index
    %105 = vector.load %arg9[%c0_80, %c0_81] : memref<16x128xf32, #tpu.memory_space<vmem>>, vector<16x128xf32>
    tpu.vector_store %arg9[%c0_80, %c0_81], %104 {strides = array<i32>} : memref<16x128xf32, #tpu.memory_space<vmem>>, vector<16x128xf32>,
    return
  }
  func.func @transform_0(%arg0: i32) -> (i32, i32) {
    %c0_i32 = arith.constant 0 : i32
    %c0_i32_0 = arith.constant 0 : i32
    return %arg0, %c0_i32 : i32, i32
  }
  func.func @transform_1(%arg0: i32) -> (i32, i32) {
    %c0_i32 = arith.constant 0 : i32
    %c0_i32_0 = arith.constant 0 : i32
    %c0_i32_1 = arith.constant 0 : i32
    return %c0_i32, %c0_i32_0 : i32, i32
  }
  func.func @transform_2(%arg0: i32) -> (i32, i32) {
    %c0_i32 = arith.constant 0 : i32
    %c0_i32_0 = arith.constant 0 : i32
    %c0_i32_1 = arith.constant 0 : i32
    return %c0_i32, %c0_i32_0 : i32, i32
  }
  func.func @transform_3(%arg0: i32) -> (i32, i32, i32) {
    %c0_i32 = arith.constant 0 : i32
    %c0_i32_0 = arith.constant 0 : i32
    %c0_i32_1 = arith.constant 0 : i32
    %c0_i32_2 = arith.constant 0 : i32
    return %c0_i32, %c0_i32_0, %c0_i32_1 : i32, i32, i32
  }
  func.func @transform_4(%arg0: i32) -> (i32, i32) {
    %c0_i32 = arith.constant 0 : i32
    %c0_i32_0 = arith.constant 0 : i32
    %c0_i32_1 = arith.constant 0 : i32
    return %c0_i32, %c0_i32_0 : i32, i32
  }
  func.func @transform_5(%arg0: i32) -> (i32, i32, i32) {
    %c0_i32 = arith.constant 0 : i32
    %c0_i32_0 = arith.constant 0 : i32
    %c0_i32_1 = arith.constant 0 : i32
    %c0_i32_2 = arith.constant 0 : i32
    return %c0_i32, %c0_i32_0, %c0_i32_1 : i32, i32, i32
  }
  func.func @transform_6(%arg0: i32) -> (i32, i32, i32) {
    %c0_i32 = arith.constant 0 : i32
    %c0_i32_0 = arith.constant 0 : i32
    %c0_i32_1 = arith.constant 0 : i32
    %c0_i32_2 = arith.constant 0 : i32
    return %c0_i32, %c0_i32_0, %c0_i32_1 : i32, i32, i32
  }
  func.func @transform_7(%arg0: i32) -> (i32, i32, i32) {
    %c0_i32 = arith.constant 0 : i32
    %c0_i32_0 = arith.constant 0 : i32
    %c0_i32_1 = arith.constant 0 : i32
    %c0_i32_2 = arith.constant 0 : i32
    return %c0_i32, %c0_i32_0, %c0_i32_1 : i32, i32, i32
  }
  func.func @transform_8(%arg0: i32) -> (i32, i32) {
    %c0_i32 = arith.constant 0 : i32
    %c0_i32_0 = arith.constant 0 : i32
    return %arg0, %c0_i32 : i32, i32
  }
}

</mosaic_0001>

<llo_original>
// kernel: tile.8
$region0: #{tile.8}
  #allocation0 [shape = 's32[1]{0}', space=sflag, size = 0x4, scoped, tag = 'scoped memory for tile.8']
  %s0 = inlined_call_operand.vmem [shape: f32[32], index: 0, kind: input, shape index: {}]
  %s1 = inlined_call_operand.vmem [shape: f32[4,32], index: 1, kind: output, shape index: {}]
  // Predicated region
  $region2: #{tile.8} parent=0 // pred_check
    _
  $region3: #{tile.8} parent=0 // pred_check_branch
    %3 = sbr.rel (0) target = $region5
  $region4: #{tile.8} parent=0 // pred_region
    _
  $region5: #{tile.8} parent=0 // pred_fallthru
    _
  %v4 = vld [vmem:[%s0] ss:$0 sm:$0xff]
  %5 = vst [vmem:[%s1] sm:$0xf] %v4

// kernel: tile.9
$region0: #{tile.9}
  %s0 = inlined_call_operand.vmem [shape: f32[4,32], index: 0, kind: input, shape index: {}]
  %s1 = inlined_call_operand.vmem [shape: f32[1,128], index: 1, kind: output, shape index: {}]
  $region1: #{tile.9} parent=0
    #allocation0 [shape = 'u8[4096]{0}', space=vmem, size = 0x1000, scoped, tag = 'scoped mem for output reshape']
    #allocation1 [shape = 'u8[4096]{0}', space=vmem, size = 0x1000, scoped, tag = 'scoped mem for input reshape']
    %s3 = sshllo.u32 0, 4
    %v4 = vld [vmem:[%s0] sm:%s3]
    %5 = vst [vmem:[#allocation1] sm:%s3] %v4
    %v6 = vld [vmem:[#allocation1] sm:$0x1]
    %vm7 = vcmask 261120
    %8 = vst.msk [vmem:[#allocation0] sm:$0x1] %vm7, %v6
    %s9 = scalar_lea.vmem [#allocation1], 3
    %v10 = vld [vmem:[%s9] sm:$0x1]
    %11 = vrot.lane.b32.xlu0 %v10, 96
    %v12 = vpop.permute.xlu0 %11
    %vm13 = vcmask 1048320
    %14 = vst.msk [vmem:[#allocation0] sm:$0x1] %vm13, %v12
    %s15 = scalar_lea.vmem [#allocation1], 2
    %v16 = vld [vmem:[%s15] sm:$0x1]
    %17 = vrot.lane.b32.xlu0 %v16, 64
    %v18 = vpop.permute.xlu0 %17
    %vm19 = vcmask 785920
    %20 = vst.msk [vmem:[#allocation0] sm:$0x1] %vm19, %v18
    %s21 = scalar_lea.vmem [#allocation1], 1
    %v22 = vld [vmem:[%s21] sm:$0x1]
    %23 = vrot.lane.b32.xlu0 %v22, 32
    %v24 = vpop.permute.xlu0 %23
    %vm25 = vcmask 523520
    %26 = vst.msk [vmem:[#allocation0] sm:$0x1] %vm25, %v24
    %s28 = sshllo.u32 0, 1
    %v30 = vld [vmem:[#allocation0] sm:%s28]
    %s31 = sshllo.u32 0, 1
    %32 = vst [vmem:[%s1] sm:%s31] %v30

// kernel: voxnet_forward.1
$region0: #{voxnet_forward.1}
  #allocation0 [shape = 'u32[]', space=smem, size = 0x4, offset = 0x4, fixed_abs, tag = 'smem constant byte address 0x4 - core index']
  #allocation1 [shape = 'u32[144,128]{1,0:T(1,128)}', space=vmem, size = 0x12000, scoped, tag = 'internal scratch']
  %s0 = inlined_call_operand.vmem [shape: bf16[576,768], index: 0, kind: input, shape index: {}]
  %s1 = inlined_call_operand.vmem [shape: bf16[768,192], index: 1, kind: input, shape index: {}]
  %s2 = inlined_call_operand.vmem [shape: bf16[1152,288], index: 2, kind: input, shape index: {}]
  %s3 = inlined_call_operand.vmem [shape: bf16[9,192,128], index: 3, kind: input, shape index: {}]
  %s4 = inlined_call_operand.vmem [shape: f32[1,128], index: 4, kind: input, shape index: {}]
  %s5 = inlined_call_operand.vmem [shape: bf16[4,32,128], index: 5, kind: input, shape index: {}]
  %s6 = inlined_call_operand.vmem [shape: bf16[2,16,32], index: 6, kind: input, shape index: {}]
  %s7 = inlined_call_operand.vmem [shape: bf16[4,128,128], index: 7, kind: input, shape index: {}]
  %s8 = inlined_call_operand.vmem [shape: f32[32,128], index: 8, kind: output, shape index: {}]
  %s9 = sld [smem:[#allocation0]]
  $region65: #{voxnet_forward.1} parent=0
    _
  %s11 = ssub.s32 1, %s9
  %s12 = scalar_select 0, %s11, %s9
  loop: start=0, step=1, limit=4
  $region2: #{voxnet_forward.1} parent=0 // loop_pre_header
    _
  $region3: #{voxnet_forward.1} parent=0 // loop_header
    %s14 = sphi 0, %s18
    %p15 = scmp.ge.s32.totalorder %s14, 4
    %s24 = sphi 0, %s26
    %s27 = sphi 0, %s24
    %s28 = sphi 0, %s27
    %s44 = sphi 0, %s28
    %s48 = sphi 0, %s48
    %s50 = sphi 0, %s48
    %s51 = sphi 0, %s50
    %s65 = sphi 0, %s51
    %s69 = sphi 0, %s69
    %s71 = sphi 0, %s69
    %s72 = sphi 0, %s71
    %s86 = sphi 0, %s72
    %s90 = sphi 0, %s90
    %s92 = sphi 0, %s90
    %s93 = sphi 0, %s92
    %s107 = sphi 0, %s93
    %s111 = sphi 0, %s111
    %s113 = sphi 0, %s111
    %s114 = sphi 0, %s113
    %s128 = sphi 0, %s114
    %s132 = sphi 0, %s132
    %s134 = sphi 0, %s132
    %s135 = sphi 0, %s134
    %s149 = sphi 0, %s135
    %s153 = sphi 0, %s153
    %s155 = sphi 0, %s153
    %s156 = sphi 0, %s155
    %s170 = sphi 0, %s156
    %s174 = sphi 0, %s174
    %s176 = sphi 0, %s174
    %s177 = sphi 0, %s176
    %s191 = sphi 0, %s177
    %s197 = sphi 0, %s199
    %s200 = sphi 0, %s197
    %s201 = sphi 0, %s200
    %s217 = sphi 0, %s201
  $region4: #{voxnet_forward.1} parent=0 // loop_header_branch
    %17 = sbr.rel (%p15) target = $region8
  $region5: #{voxnet_forward.1} parent=0 // loop_body
    %s19 = ssub.s32 %s14, 1
    %s20 = ssub.s32 %s14, 2
    %s21 = sadd.s32 %s14, 1
    %s22 = ssub.s32 %s14, %s21
    %p23 = scmp.eq.s32.totalorder %s22, 0
    %s25 = sadd.s32 %s24, 1
    %s26 = scalar_select %p23, %s24, %s25
    %p29 = pneg %p23
    %p30 = scmp.eq.s32.totalorder %s14, 1
    %p31 = por %p29, %p30
    %p32 = scmp.ne.s32.totalorder %s24, %s27
    %p33 = scmp.eq.s32.totalorder %s14, 0
    %p34 = por %p32, %p33
    %p35 = scmp.ne.s32.totalorder %s24, %s27
    %p36 = scmp.eq.s32.totalorder %s19, 1
    %p37 = por %p35, %p36
    %p38 = scmp.ne.s32.totalorder %s27, %s28
    %p39 = scmp.eq.s32.totalorder %s19, 0
    %p40 = por %p38, %p39
    %p41 = scmp.ne.s32.totalorder %s27, %s28
    %p42 = scmp.eq.s32.totalorder %s20, 1
    %p43 = por %p41, %p42
    %p45 = scmp.ne.s32.totalorder %s28, %s44
    %p46 = scmp.eq.s32.totalorder %s20, 0
    %p47 = por %p45, %p46
    %s49 = sadd.s32 %s48, 1
    %p52 = scmp.eq.s32.totalorder %s14, 1
    %p53 = scmp.ne.s32.totalorder %s48, %s50
    %p54 = scmp.eq.s32.totalorder %s14, 0
    %p55 = por %p53, %p54
    %p56 = scmp.ne.s32.totalorder %s48, %s50
    %p57 = scmp.eq.s32.totalorder %s19, 1
    %p58 = por %p56, %p57
    %p59 = scmp.ne.s32.totalorder %s50, %s51
    %p60 = scmp.eq.s32.totalorder %s19, 0
    %p61 = por %p59, %p60
    %p62 = scmp.ne.s32.totalorder %s50, %s51
    %p63 = scmp.eq.s32.totalorder %s20, 1
    %p64 = por %p62, %p63
    %p66 = scmp.ne.s32.totalorder %s51, %s65
    %p67 = scmp.eq.s32.totalorder %s20, 0
    %p68 = por %p66, %p67
    %s70 = sadd.s32 %s69, 1
    %p73 = scmp.eq.s32.totalorder %s14, 1
    %p74 = scmp.ne.s32.totalorder %s69, %s71
    %p75 = scmp.eq.s32.totalorder %s14, 0
    %p76 = por %p74, %p75
    %p77 = scmp.ne.s32.totalorder %s69, %s71
    %p78 = scmp.eq.s32.totalorder %s19, 1
    %p79 = por %p77, %p78
    %p80 = scmp.ne.s32.totalorder %s71, %s72
    %p81 = scmp.eq.s32.totalorder %s19, 0
    %p82 = por %p80, %p81
    %p83 = scmp.ne.s32.totalorder %s71, %s72
    %p84 = scmp.eq.s32.totalorder %s20, 1
    %p85 = por %p83, %p84
    %p87 = scmp.ne.s32.totalorder %s72, %s86
    %p88 = scmp.eq.s32.totalorder %s20, 0
    %p89 = por %p87, %p88
    %s91 = sadd.s32 %s90, 1
    %p94 = scmp.eq.s32.totalorder %s14, 1
    %p95 = scmp.ne.s32.totalorder %s90, %s92
    %p96 = scmp.eq.s32.totalorder %s14, 0
    %p97 = por %p95, %p96
    %p98 = scmp.ne.s32.totalorder %s90, %s92
    %p99 = scmp.eq.s32.totalorder %s19, 1
    %p100 = por %p98, %p99
    %p101 = scmp.ne.s32.totalorder %s92, %s93
    %p102 = scmp.eq.s32.totalorder %s19, 0
    %p103 = por %p101, %p102
    %p104 = scmp.ne.s32.totalorder %s92, %s93
    %p105 = scmp.eq.s32.totalorder %s20, 1
    %p106 = por %p104, %p105
    %p108 = scmp.ne.s32.totalorder %s93, %s107
    %p109 = scmp.eq.s32.totalorder %s20, 0
    %p110 = por %p108, %p109
    %s112 = sadd.s32 %s111, 1
    %p115 = scmp.eq.s32.totalorder %s14, 1
    %p116 = scmp.ne.s32.totalorder %s111, %s113
    %p117 = scmp.eq.s32.totalorder %s14, 0
    %p118 = por %p116, %p117
    %p119 = scmp.ne.s32.totalorder %s111, %s113
    %p120 = scmp.eq.s32.totalorder %s19, 1
    %p121 = por %p119, %p120
    %p122 = scmp.ne.s32.totalorder %s113, %s114
    %p123 = scmp.eq.s32.totalorder %s19, 0
    %p124 = por %p122, %p123
    %p125 = scmp.ne.s32.totalorder %s113, %s114
    %p126 = scmp.eq.s32.totalorder %s20, 1
    %p127 = por %p125, %p126
    %p129 = scmp.ne.s32.totalorder %s114, %s128
    %p130 = scmp.eq.s32.totalorder %s20, 0
    %p131 = por %p129, %p130
    %s133 = sadd.s32 %s132, 1
    %p136 = scmp.eq.s32.totalorder %s14, 1
    %p137 = scmp.ne.s32.totalorder %s132, %s134
    %p138 = scmp.eq.s32.totalorder %s14, 0
    %p139 = por %p137, %p138
    %p140 = scmp.ne.s32.totalorder %s132, %s134
    %p141 = scmp.eq.s32.totalorder %s19, 1
    %p142 = por %p140, %p141
    %p143 = scmp.ne.s32.totalorder %s134, %s135
    %p144 = scmp.eq.s32.totalorder %s19, 0
    %p145 = por %p143, %p144
    %p146 = scmp.ne.s32.totalorder %s134, %s135
    %p147 = scmp.eq.s32.totalorder %s20, 1
    %p148 = por %p146, %p147
    %p150 = scmp.ne.s32.totalorder %s135, %s149
    %p151 = scmp.eq.s32.totalorder %s20, 0
    %p152 = por %p150, %p151
    %s154 = sadd.s32 %s153, 1
    %p157 = scmp.eq.s32.totalorder %s14, 1
    %p158 = scmp.ne.s32.totalorder %s153, %s155
    %p159 = scmp.eq.s32.totalorder %s14, 0
    %p160 = por %p158, %p159
    %p161 = scmp.ne.s32.totalorder %s153, %s155
    %p162 = scmp.eq.s32.totalorder %s19, 1
    %p163 = por %p161, %p162
    %p164 = scmp.ne.s32.totalorder %s155, %s156
    %p165 = scmp.eq.s32.totalorder %s19, 0
    %p166 = por %p164, %p165
    %p167 = scmp.ne.s32.totalorder %s155, %s156
    %p168 = scmp.eq.s32.totalorder %s20, 1
    %p169 = por %p167, %p168
    %p171 = scmp.ne.s32.totalorder %s156, %s170
    %p172 = scmp.eq.s32.totalorder %s20, 0
    %p173 = por %p171, %p172
    %s175 = sadd.s32 %s174, 1
    %p178 = scmp.eq.s32.totalorder %s14, 1
    %p179 = scmp.ne.s32.totalorder %s174, %s176
    %p180 = scmp.eq.s32.totalorder %s14, 0
    %p181 = por %p179, %p180
    %p182 = scmp.ne.s32.totalorder %s174, %s176
    %p183 = scmp.eq.s32.totalorder %s19, 1
    %p184 = por %p182, %p183
    %p185 = scmp.ne.s32.totalorder %s176, %s177
    %p186 = scmp.eq.s32.totalorder %s19, 0
    %p187 = por %p185, %p186
    %p188 = scmp.ne.s32.totalorder %s176, %s177
    %p189 = scmp.eq.s32.totalorder %s20, 1
    %p190 = por %p188, %p189
    %p192 = scmp.ne.s32.totalorder %s177, %s191
    %p193 = scmp.eq.s32.totalorder %s20, 0
    %p194 = por %p192, %p193
    %s195 = ssub.s32 %s14, %s21
    %p196 = scmp.eq.s32.totalorder %s195, 0
    %s198 = sadd.s32 %s197, 1
    %s199 = scalar_select %p196, %s197, %s198
    %p202 = pneg %p196
    %p203 = scmp.eq.s32.totalorder %s14, 1
    %p204 = por %p202, %p203
    %p205 = scmp.ne.s32.totalorder %s197, %s200
    %p206 = scmp.eq.s32.totalorder %s14, 0
    %p207 = por %p205, %p206
    %p208 = scmp.ne.s32.totalorder %s197, %s200
    %p209 = scmp.eq.s32.totalorder %s19, 1
    %p210 = por %p208, %p209
    %p211 = scmp.ne.s32.totalorder %s200, %s201
    %p212 = scmp.eq.s32.totalorder %s19, 0
    %p213 = por %p211, %p212
    %p214 = scmp.ne.s32.totalorder %s200, %s201
    %p215 = scmp.eq.s32.totalorder %s20, 1
    %p216 = por %p214, %p215
    %p218 = scmp.ne.s32.totalorder %s201, %s217
    %p219 = scmp.eq.s32.totalorder %s20, 0
    %p220 = por %p218, %p219
    %p221 = scmp.le.s32.totalorder 1, %s14
    %p222 = scmp.lt.s32.totalorder %s14, 3
    %p223 = pnand %p221, %p222
    %p224 = pneg %p223
    // Predicated region
    $region9: #{voxnet_forward.1} parent=5 // pred_check
      _
    $region10: #{voxnet_forward.1} parent=5 // pred_check_branch
      %226 = sbr.rel (%p223) target = $region12
    $region11: #{voxnet_forward.1} parent=5 // pred_region
      %s227 = ssub.s32 %s14, 1
      // Predicated region
      $region13: #{voxnet_forward.1} parent=11 // pred_check
        %p228 = pneg %p61
      $region14: #{voxnet_forward.1} parent=11 // pred_check_branch
        %230 = sbr.rel (%p228) target = $region16
      $region15: #{voxnet_forward.1} parent=11 // pred_region
        _
      $region16: #{voxnet_forward.1} parent=11 // pred_fallthru
        _
      // Predicated region
      $region17: #{voxnet_forward.1} parent=11 // pred_check
        %p231 = pneg %p82
      $region18: #{voxnet_forward.1} parent=11 // pred_check_branch
        %233 = sbr.rel (%p231) target = $region20
      $region19: #{voxnet_forward.1} parent=11 // pred_region
        _
      $region20: #{voxnet_forward.1} parent=11 // pred_fallthru
        _
      // Predicated region
      $region21: #{voxnet_forward.1} parent=11 // pred_check
        %p234 = pneg %p103
      $region22: #{voxnet_forward.1} parent=11 // pred_check_branch
        %236 = sbr.rel (%p234) target = $region24
      $region23: #{voxnet_forward.1} parent=11 // pred_region
        _
      $region24: #{voxnet_forward.1} parent=11 // pred_fallthru
        _
      // Predicated region
      $region25: #{voxnet_forward.1} parent=11 // pred_check
        %p237 = pneg %p124
      $region26: #{voxnet_forward.1} parent=11 // pred_check_branch
        %239 = sbr.rel (%p237) target = $region28
      $region27: #{voxnet_forward.1} parent=11 // pred_region
        _
      $region28: #{voxnet_forward.1} parent=11 // pred_fallthru
        _
      // Predicated region
      $region29: #{voxnet_forward.1} parent=11 // pred_check
        %p240 = pneg %p145
      $region30: #{voxnet_forward.1} parent=11 // pred_check_branch
        %242 = sbr.rel (%p240) target = $region32
      $region31: #{voxnet_forward.1} parent=11 // pred_region
        _
      $region32: #{voxnet_forward.1} parent=11 // pred_fallthru
        _
      // Predicated region
      $region33: #{voxnet_forward.1} parent=11 // pred_check
        %p243 = pneg %p166
      $region34: #{voxnet_forward.1} parent=11 // pred_check_branch
        %245 = sbr.rel (%p243) target = $region36
      $region35: #{voxnet_forward.1} parent=11 // pred_region
        _
      $region36: #{voxnet_forward.1} parent=11 // pred_fallthru
        _
      // Predicated region
      $region37: #{voxnet_forward.1} parent=11 // pred_check
        %p246 = pneg %p187
      $region38: #{voxnet_forward.1} parent=11 // pred_check_branch
        %248 = sbr.rel (%p246) target = $region40
      $region39: #{voxnet_forward.1} parent=11 // pred_region
        _
      $region40: #{voxnet_forward.1} parent=11 // pred_fallthru
        _
    $region12: #{voxnet_forward.1} parent=5 // pred_fallthru
      _
    %p249 = scmp.lt.s32.totalorder %s14, 2
    // Predicated region
    $region41: #{voxnet_forward.1} parent=5 // pred_check
      %p250 = pneg %p249
    $region42: #{voxnet_forward.1} parent=5 // pred_check_branch
      %252 = sbr.rel (%p250) target = $region44
    $region43: #{voxnet_forward.1} parent=5 // pred_region
      // Predicated region
      $region45: #{voxnet_forward.1} parent=43 // pred_check
        %p253 = pneg %p34
      $region46: #{voxnet_forward.1} parent=43 // pred_check_branch
        %255 = sbr.rel (%p253) target = $region48
      $region47: #{voxnet_forward.1} parent=43 // pred_region
        %s256 = smul.u32 36, %s14
        %p257 = scmp.lt.s32.totalorder %s256, 71
        %s258 = scalar_select %p257, %s256, 71
        %s259 = smul.addr %s258, 6
        %s260 = smul.addr %s259, 4
        %s261 = scalar_lea.vmem %s0, %s260
        %s262 = smul.u32 36, %s14
      $region48: #{voxnet_forward.1} parent=43 // pred_fallthru
        _
    $region44: #{voxnet_forward.1} parent=5 // pred_fallthru
      _
    %p263 = scmp.le.s32.totalorder 1, %s14
    %p264 = scmp.lt.s32.totalorder %s14, 3
    %p265 = pnand %p263, %p264
    %p266 = pneg %p265
    // Predicated region
    $region49: #{voxnet_forward.1} parent=5 // pred_check
      _
    $region50: #{voxnet_forward.1} parent=5 // pred_check_branch
      %268 = sbr.rel (%p265) target = $region52
    $region51: #{voxnet_forward.1} parent=5 // pred_region
      %s269 = ssub.s32 %s14, 1
      %s270 = smul.u32 36, %s19
      %p271 = scmp.lt.s32.totalorder %s270, 71
      %s272 = scalar_select %p271, %s270, 71
      %s273 = smul.addr %s272, 6
      %s274 = smul.addr %s273, 4
      %s275 = scalar_lea.vmem %s0, %s274
      %p276 = pneg %p40
      %p277 = pneg %p37
      %p278 = pneg %p61
      %p279 = pneg %p58
      %p280 = pneg %p82
      %p281 = pneg %p79
      %p282 = pneg %p103
      %p283 = pneg %p100
      %p284 = pneg %p124
      %p285 = pneg %p121
      %p286 = pneg %p145
      %p287 = pneg %p142
      %p288 = pneg %p166
      %p289 = pneg %p163
      %p290 = pneg %p187
      %p291 = pneg %p184
      %p292 = pneg %p213
      %p293 = pneg %p210
      %s294 = smul.u32 2, %s19
      %p295 = scmp.lt.s32.totalorder %s294, 3
      %s296 = scalar_select %p295, %s294, 3
      %s297 = smul.addr %s296, 8
      %s298 = scalar_lea.vmem %s8, %s297
      %s299 = smul.u32 36, %s19
      %p300 = scmp.lt.s32.totalorder %s299, 71
      %s301 = scalar_select %p300, %s299, 71
      %s302 = smul.addr %s301, 6
      %s303 = smul.addr %s302, 4
      %s304 = scalar_lea.vmem %s0, %s303
      %s305 = smul.u32 36, %s19
      %s306 = smul.u32 2, %s19
      %p307 = scmp.lt.s32.totalorder %s306, 3
      %s308 = scalar_select %p307, %s306, 3
      %s309 = smul.addr %s308, 8
      %s310 = scalar_lea.vmem %s8, %s309
      %s311 = smul.u32 2, %s19
      %v313 = vld [vmem:[%s304] sm:$0xff]
      %v314 = vld [vmem:[%s304 + $0x8] sm:$0xff]
      %v315 = vld [vmem:[%s304 + $0x10] sm:$0xff]
      %v316 = vld [vmem:[%s304 + $0x18] sm:$0xff]
      %v317 = vld [vmem:[%s304 + $0x20] sm:$0xff]
      %v318 = vld [vmem:[%s304 + $0x28] sm:$0xff]
      %v319 = vld [vmem:[%s304 + $0x30] sm:$0xff]
      %v320 = vld [vmem:[%s304 + $0x38] sm:$0xff]
      %v321 = vld [vmem:[%s304 + $0x40] sm:$0xff]
      %v322 = vld [vmem:[%s304 + $0x48] sm:$0xff]
      %v323 = vld [vmem:[%s304 + $0x50] sm:$0xff]
      %v324 = vld [vmem:[%s304 + $0x58] sm:$0xff]
      %v325 = vld [vmem:[%s304 + $0x60] sm:$0xff]
      %v326 = vld [vmem:[%s304 + $0x68] sm:$0xff]
      %v327 = vld [vmem:[%s304 + $0x70] sm:$0xff]
      %v328 = vld [vmem:[%s304 + $0x78] sm:$0xff]
      %v329 = vld [vmem:[%s304 + $0x80] sm:$0xff]
      %v330 = vld [vmem:[%s304 + $0x88] sm:$0xff]
      %v331 = vld [vmem:[%s304 + $0x90] sm:$0xff]
      %v332 = vld [vmem:[%s304 + $0x98] sm:$0xff]
      %v333 = vld [vmem:[%s304 + $0xa0] sm:$0xff]
      %v334 = vld [vmem:[%s304 + $0xa8] sm:$0xff]
      %v335 = vld [vmem:[%s304 + $0xb0] sm:$0xff]
      %v336 = vld [vmem:[%s304 + $0xb8] sm:$0xff]
      %v337 = vld [vmem:[%s304 + $0xc0] sm:$0xff]
      %v338 = vld [vmem:[%s304 + $0xc8] sm:$0xff]
      %v339 = vld [vmem:[%s304 + $0xd0] sm:$0xff]
      %v340 = vld [vmem:[%s304 + $0xd8] sm:$0xff]
      %v341 = vld [vmem:[%s304 + $0xe0] sm:$0xff]
      %v342 = vld [vmem:[%s304 + $0xe8] sm:$0xff]
      %v343 = vld [vmem:[%s304 + $0xf0] sm:$0xff]
      %v344 = vld [vmem:[%s304 + $0xf8] sm:$0xff]
      %v345 = vld [vmem:[%s304 + $0x100] sm:$0xff]
      %v346 = vld [vmem:[%s304 + $0x108] sm:$0xff]
      %v347 = vld [vmem:[%s304 + $0x110] sm:$0xff]
      %v348 = vld [vmem:[%s304 + $0x118] sm:$0xff]
      %v349 = vld [vmem:[%s304 + $0x120] sm:$0xff]
      %v350 = vld [vmem:[%s304 + $0x128] sm:$0xff]
      %v351 = vld [vmem:[%s304 + $0x130] sm:$0xff]
      %v352 = vld [vmem:[%s304 + $0x138] sm:$0xff]
      %v353 = vld [vmem:[%s304 + $0x140] sm:$0xff]
      %v354 = vld [vmem:[%s304 + $0x148] sm:$0xff]
      %v355 = vld [vmem:[%s304 + $0x150] sm:$0xff]
      %v356 = vld [vmem:[%s304 + $0x158] sm:$0xff]
      %v357 = vld [vmem:[%s304 + $0x160] sm:$0xff]
      %v358 = vld [vmem:[%s304 + $0x168] sm:$0xff]
      %v359 = vld [vmem:[%s304 + $0x170] sm:$0xff]
      %v360 = vld [vmem:[%s304 + $0x178] sm:$0xff]
      %v361 = vld [vmem:[%s304 + $0x180] sm:$0xff]
      %v362 = vld [vmem:[%s304 + $0x188] sm:$0xff]
      %v363 = vld [vmem:[%s304 + $0x190] sm:$0xff]
      %v364 = vld [vmem:[%s304 + $0x198] sm:$0xff]
      %v365 = vld [vmem:[%s304 + $0x1a0] sm:$0xff]
      %v366 = vld [vmem:[%s304 + $0x1a8] sm:$0xff]
      %v367 = vld [vmem:[%s304 + $0x1b0] sm:$0xff]
      %v368 = vld [vmem:[%s304 + $0x1b8] sm:$0xff]
      %v369 = vld [vmem:[%s304 + $0x1c0] sm:$0xff]
      %v370 = vld [vmem:[%s304 + $0x1c8] sm:$0xff]
      %v371 = vld [vmem:[%s304 + $0x1d0] sm:$0xff]
      %v372 = vld [vmem:[%s304 + $0x1d8] sm:$0xff]
      %v373 = vld [vmem:[%s304 + $0x1e0] sm:$0xff]
      %v374 = vld [vmem:[%s304 + $0x1e8] sm:$0xff]
      %v375 = vld [vmem:[%s304 + $0x1f0] sm:$0xff]
      %v376 = vld [vmem:[%s304 + $0x1f8] sm:$0xff]
      %v377 = vld [vmem:[%s304 + $0x200] sm:$0xff]
      %v378 = vld [vmem:[%s304 + $0x208] sm:$0xff]
      %v379 = vld [vmem:[%s304 + $0x210] sm:$0xff]
      %v380 = vld [vmem:[%s304 + $0x218] sm:$0xff]
      %v381 = vld [vmem:[%s304 + $0x220] sm:$0xff]
      %v382 = vld [vmem:[%s304 + $0x228] sm:$0xff]
      %v383 = vld [vmem:[%s304 + $0x230] sm:$0xff]
      %v384 = vld [vmem:[%s304 + $0x238] sm:$0xff]
      %v385 = vld [vmem:[%s304 + $0x240] sm:$0xff]
      %v386 = vld [vmem:[%s304 + $0x248] sm:$0xff]
      %v387 = vld [vmem:[%s304 + $0x250] sm:$0xff]
      %v388 = vld [vmem:[%s304 + $0x258] sm:$0xff]
      %v389 = vld [vmem:[%s304 + $0x260] sm:$0xff]
      %v390 = vld [vmem:[%s304 + $0x268] sm:$0xff]
      %v391 = vld [vmem:[%s304 + $0x270] sm:$0xff]
      %v392 = vld [vmem:[%s304 + $0x278] sm:$0xff]
      %v393 = vld [vmem:[%s304 + $0x280] sm:$0xff]
      %v394 = vld [vmem:[%s304 + $0x288] sm:$0xff]
      %v395 = vld [vmem:[%s304 + $0x290] sm:$0xff]
      %v396 = vld [vmem:[%s304 + $0x298] sm:$0xff]
      %v397 = vld [vmem:[%s304 + $0x2a0] sm:$0xff]
      %v398 = vld [vmem:[%s304 + $0x2a8] sm:$0xff]
      %v399 = vld [vmem:[%s304 + $0x2b0] sm:$0xff]
      %v400 = vld [vmem:[%s304 + $0x2b8] sm:$0xff]
      %v401 = vld [vmem:[%s304 + $0x2c0] sm:$0xff]
      %v402 = vld [vmem:[%s304 + $0x2c8] sm:$0xff]
      %v403 = vld [vmem:[%s304 + $0x2d0] sm:$0xff]
      %v404 = vld [vmem:[%s304 + $0x2d8] sm:$0xff]
      %v405 = vld [vmem:[%s304 + $0x2e0] sm:$0xff]
      %v406 = vld [vmem:[%s304 + $0x2e8] sm:$0xff]
      %v407 = vld [vmem:[%s304 + $0x2f0] sm:$0xff]
      %v408 = vld [vmem:[%s304 + $0x2f8] sm:$0xff]
      %v409 = vld [vmem:[%s304 + $0x300] sm:$0xff]
      %v410 = vld [vmem:[%s304 + $0x308] sm:$0xff]
      %v411 = vld [vmem:[%s304 + $0x310] sm:$0xff]
      %v412 = vld [vmem:[%s304 + $0x318] sm:$0xff]
      %v413 = vld [vmem:[%s304 + $0x320] sm:$0xff]
      %v414 = vld [vmem:[%s304 + $0x328] sm:$0xff]
      %v415 = vld [vmem:[%s304 + $0x330] sm:$0xff]
      %v416 = vld [vmem:[%s304 + $0x338] sm:$0xff]
      %v417 = vld [vmem:[%s304 + $0x340] sm:$0xff]
      %v418 = vld [vmem:[%s304 + $0x348] sm:$0xff]
      %v419 = vld [vmem:[%s304 + $0x350] sm:$0xff]
      %v420 = vld [vmem:[%s304 + $0x358] sm:$0xff]
      %v421 = vld [vmem:[%s1] sm:$0xff]
      %v422 = vld [vmem:[%s1 + $0x8] sm:$0xff]
      %v423 = vld [vmem:[%s1 + $0x10] sm:$0xff]
      %v424 = vld [vmem:[%s1 + $0x18] sm:$0xff]
      %v425 = vld [vmem:[%s1 + $0x20] sm:$0xff]
      %v426 = vld [vmem:[%s1 + $0x28] sm:$0xff]
      %v427 = vld [vmem:[%s1 + $0x30] sm:$0xff]
      %v428 = vld [vmem:[%s1 + $0x38] sm:$0xff]
      %v429 = vld [vmem:[%s1 + $0x40] sm:$0xff]
      %v430 = vld [vmem:[%s1 + $0x48] sm:$0xff]
      %v431 = vld [vmem:[%s1 + $0x50] sm:$0xff]
      %v432 = vld [vmem:[%s1 + $0x58] sm:$0xff]
      %v433 = vld [vmem:[%s1 + $0x60] sm:$0xff]
      %v434 = vld [vmem:[%s1 + $0x68] sm:$0xff]
      %v435 = vld [vmem:[%s1 + $0x70] sm:$0xff]
      %v436 = vld [vmem:[%s1 + $0x78] sm:$0xff]
      %v437 = vld [vmem:[%s1 + $0x80] sm:$0xff]
      %v438 = vld [vmem:[%s1 + $0x88] sm:$0xff]
      %v439 = vld [vmem:[%s1 + $0x90] sm:$0xff]
      %v440 = vld [vmem:[%s1 + $0x98] sm:$0xff]
      %v441 = vld [vmem:[%s1 + $0xa0] sm:$0xff]
      %v442 = vld [vmem:[%s1 + $0xa8] sm:$0xff]
      %v443 = vld [vmem:[%s1 + $0xb0] sm:$0xff]
      %v444 = vld [vmem:[%s1 + $0xb8] sm:$0xff]
      %v445 = vld [vmem:[%s1 + $0xc0] sm:$0xff]
      %v446 = vld [vmem:[%s1 + $0xc8] sm:$0xff]
      %v447 = vld [vmem:[%s1 + $0xd0] sm:$0xff]
      %v448 = vld [vmem:[%s1 + $0xd8] sm:$0xff]
      %v449 = vld [vmem:[%s1 + $0xe0] sm:$0xff]
      %v450 = vld [vmem:[%s1 + $0xe8] sm:$0xff]
      %v451 = vld [vmem:[%s1 + $0xf0] sm:$0xff]
      %v452 = vld [vmem:[%s1 + $0xf8] sm:$0xff]
      %v453 = vld [vmem:[%s1 + $0x100] sm:$0xff]
      %v454 = vld [vmem:[%s1 + $0x108] sm:$0xff]
      %v455 = vld [vmem:[%s1 + $0x110] sm:$0xff]
      %v456 = vld [vmem:[%s1 + $0x118] sm:$0xff]
      %v457 = vld [vmem:[%s1 + $0x120] sm:$0xff]
      %v458 = vld [vmem:[%s1 + $0x128] sm:$0xff]
      %v459 = vld [vmem:[%s1 + $0x130] sm:$0xff]
      %v460 = vld [vmem:[%s1 + $0x138] sm:$0xff]
      %v461 = vld [vmem:[%s1 + $0x140] sm:$0xff]
      %v462 = vld [vmem:[%s1 + $0x148] sm:$0xff]
      %v463 = vld [vmem:[%s1 + $0x150] sm:$0xff]
      %v464 = vld [vmem:[%s1 + $0x158] sm:$0xff]
      %v465 = vld [vmem:[%s1 + $0x160] sm:$0xff]
      %v466 = vld [vmem:[%s1 + $0x168] sm:$0xff]
      %v467 = vld [vmem:[%s1 + $0x170] sm:$0xff]
      %v468 = vld [vmem:[%s1 + $0x178] sm:$0xff]
      %v469 = vld [vmem:[%s1 + $0x180] sm:$0xff]
      %v470 = vld [vmem:[%s1 + $0x188] sm:$0xff]
      %v471 = vld [vmem:[%s1 + $0x190] sm:$0xff]
      %v472 = vld [vmem:[%s1 + $0x198] sm:$0xff]
      %v473 = vld [vmem:[%s1 + $0x1a0] sm:$0xff]
      %v474 = vld [vmem:[%s1 + $0x1a8] sm:$0xff]
      %v475 = vld [vmem:[%s1 + $0x1b0] sm:$0xff]
      %v476 = vld [vmem:[%s1 + $0x1b8] sm:$0xff]
      %v477 = vld [vmem:[%s1 + $0x1c0] sm:$0xff]
      %v478 = vld [vmem:[%s1 + $0x1c8] sm:$0xff]
      %v479 = vld [vmem:[%s1 + $0x1d0] sm:$0xff]
      %v480 = vld [vmem:[%s1 + $0x1d8] sm:$0xff]
      %v481 = vld [vmem:[%s1 + $0x1e0] sm:$0xff]
      %v482 = vld [vmem:[%s1 + $0x1e8] sm:$0xff]
      %v483 = vld [vmem:[%s1 + $0x1f0] sm:$0xff]
      %v484 = vld [vmem:[%s1 + $0x1f8] sm:$0xff]
      %v485 = vld [vmem:[%s1 + $0x200] sm:$0xff]
      %v486 = vld [vmem:[%s1 + $0x208] sm:$0xff]
      %v487 = vld [vmem:[%s1 + $0x210] sm:$0xff]
      %v488 = vld [vmem:[%s1 + $0x218] sm:$0xff]
      %v489 = vld [vmem:[%s1 + $0x220] sm:$0xff]
      %v490 = vld [vmem:[%s1 + $0x228] sm:$0xff]
      %v491 = vld [vmem:[%s1 + $0x230] sm:$0xff]
      %v492 = vld [vmem:[%s1 + $0x238] sm:$0xff]
      %v493 = vld [vmem:[%s1 + $0x240] sm:$0xff]
      %v494 = vld [vmem:[%s1 + $0x248] sm:$0xff]
      %v495 = vld [vmem:[%s1 + $0x250] sm:$0xff]
      %v496 = vld [vmem:[%s1 + $0x258] sm:$0xff]
      %v497 = vld [vmem:[%s1 + $0x260] sm:$0xff]
      %v498 = vld [vmem:[%s1 + $0x268] sm:$0xff]
      %v499 = vld [vmem:[%s1 + $0x270] sm:$0xff]
      %v500 = vld [vmem:[%s1 + $0x278] sm:$0xff]
      %v501 = vld [vmem:[%s1 + $0x280] sm:$0xff]
      %v502 = vld [vmem:[%s1 + $0x288] sm:$0xff]
      %v503 = vld [vmem:[%s1 + $0x290] sm:$0xff]
      %v504 = vld [vmem:[%s1 + $0x298] sm:$0xff]
      %v505 = vld [vmem:[%s1 + $0x2a0] sm:$0xff]
      %v506 = vld [vmem:[%s1 + $0x2a8] sm:$0xff]
      %v507 = vld [vmem:[%s1 + $0x2b0] sm:$0xff]
      %v508 = vld [vmem:[%s1 + $0x2b8] sm:$0xff]
      %v509 = vld [vmem:[%s1 + $0x2c0] sm:$0xff]
      %v510 = vld [vmem:[%s1 + $0x2c8] sm:$0xff]
      %v511 = vld [vmem:[%s1 + $0x2d0] sm:$0xff]
      %v512 = vld [vmem:[%s1 + $0x2d8] sm:$0xff]
      %v513 = vld [vmem:[%s1 + $0x2e0] sm:$0xff]
      %v514 = vld [vmem:[%s1 + $0x2e8] sm:$0xff]
      %v515 = vld [vmem:[%s1 + $0x2f0] sm:$0xff]
      %v516 = vld [vmem:[%s1 + $0x2f8] sm:$0xff]
      %v625 = vunpack.c.l.b16 %v313
      %v626 = vunpack.c.h.b16 %v313
      %v627 = vunpack.c.l.b16 %v314
      %v628 = vunpack.c.h.b16 %v314
      %v629 = vunpack.c.l.b16 %v315
      %v630 = vunpack.c.h.b16 %v315
      %v631 = vunpack.c.l.b16 %v316
      %v632 = vunpack.c.h.b16 %v316
      %v633 = vunpack.c.l.b16 %v317
      %v634 = vunpack.c.h.b16 %v317
      %v635 = vunpack.c.l.b16 %v318
      %v636 = vunpack.c.h.b16 %v318
      %v637 = vunpack.c.l.b16 %v319
      %v638 = vunpack.c.h.b16 %v319
      %v639 = vunpack.c.l.b16 %v320
      %v640 = vunpack.c.h.b16 %v320
      %v641 = vunpack.c.l.b16 %v321
      %v642 = vunpack.c.h.b16 %v321
      %v643 = vunpack.c.l.b16 %v322
      %v644 = vunpack.c.h.b16 %v322
      %v645 = vunpack.c.l.b16 %v323
      %v646 = vunpack.c.h.b16 %v323
      %v647 = vunpack.c.l.b16 %v324
      %v648 = vunpack.c.h.b16 %v324
      %v649 = vunpack.c.l.b16 %v325
      %v650 = vunpack.c.h.b16 %v325
      %v651 = vunpack.c.l.b16 %v326
      %v652 = vunpack.c.h.b16 %v326
      %v653 = vunpack.c.l.b16 %v327
      %v654 = vunpack.c.h.b16 %v327
      %v655 = vunpack.c.l.b16 %v328
      %v656 = vunpack.c.h.b16 %v328
      %v657 = vunpack.c.l.b16 %v329
      %v658 = vunpack.c.h.b16 %v329
      %v659 = vunpack.c.l.b16 %v330
      %v660 = vunpack.c.h.b16 %v330
      %v661 = vunpack.c.l.b16 %v331
      %v662 = vunpack.c.h.b16 %v331
      %v663 = vunpack.c.l.b16 %v332
      %v664 = vunpack.c.h.b16 %v332
      %v665 = vunpack.c.l.b16 %v333
      %v666 = vunpack.c.h.b16 %v333
      %v667 = vunpack.c.l.b16 %v334
      %v668 = vunpack.c.h.b16 %v334
      %v669 = vunpack.c.l.b16 %v335
      %v670 = vunpack.c.h.b16 %v335
      %v671 = vunpack.c.l.b16 %v336
      %v672 = vunpack.c.h.b16 %v336
      %v673 = vunpack.c.l.b16 %v337
      %v674 = vunpack.c.h.b16 %v337
      %v675 = vunpack.c.l.b16 %v338
      %v676 = vunpack.c.h.b16 %v338
      %v677 = vunpack.c.l.b16 %v339
      %v678 = vunpack.c.h.b16 %v339
      %v679 = vunpack.c.l.b16 %v340
      %v680 = vunpack.c.h.b16 %v340
      %v681 = vunpack.c.l.b16 %v341
      %v682 = vunpack.c.h.b16 %v341
      %v683 = vunpack.c.l.b16 %v342
      %v684 = vunpack.c.h.b16 %v342
      %v685 = vunpack.c.l.b16 %v343
      %v686 = vunpack.c.h.b16 %v343
      %v687 = vunpack.c.l.b16 %v344
      %v688 = vunpack.c.h.b16 %v344
      %v689 = vunpack.c.l.b16 %v345
      %v690 = vunpack.c.h.b16 %v345
      %v691 = vunpack.c.l.b16 %v346
      %v692 = vunpack.c.h.b16 %v346
      %v693 = vunpack.c.l.b16 %v347
      %v694 = vunpack.c.h.b16 %v347
      %v695 = vunpack.c.l.b16 %v348
      %v696 = vunpack.c.h.b16 %v348
      %v697 = vunpack.c.l.b16 %v349
      %v698 = vunpack.c.h.b16 %v349
      %v699 = vunpack.c.l.b16 %v350
      %v700 = vunpack.c.h.b16 %v350
      %v701 = vunpack.c.l.b16 %v351
      %v702 = vunpack.c.h.b16 %v351
      %v703 = vunpack.c.l.b16 %v352
      %v704 = vunpack.c.h.b16 %v352
      %v705 = vunpack.c.l.b16 %v353
      %v706 = vunpack.c.h.b16 %v353
      %v707 = vunpack.c.l.b16 %v354
      %v708 = vunpack.c.h.b16 %v354
      %v709 = vunpack.c.l.b16 %v355
      %v710 = vunpack.c.h.b16 %v355
      %v711 = vunpack.c.l.b16 %v356
      %v712 = vunpack.c.h.b16 %v356
      %v713 = vunpack.c.l.b16 %v357
      %v714 = vunpack.c.h.b16 %v357
      %v715 = vunpack.c.l.b16 %v358
      %v716 = vunpack.c.h.b16 %v358
      %v717 = vunpack.c.l.b16 %v359
      %v718 = vunpack.c.h.b16 %v359
      %v719 = vunpack.c.l.b16 %v360
      %v720 = vunpack.c.h.b16 %v360
      %v721 = vunpack.c.l.b16 %v361
      %v722 = vunpack.c.h.b16 %v361
      %v723 = vunpack.c.l.b16 %v362
      %v724 = vunpack.c.h.b16 %v362
      %v725 = vunpack.c.l.b16 %v363
      %v726 = vunpack.c.h.b16 %v363
      %v727 = vunpack.c.l.b16 %v364
      %v728 = vunpack.c.h.b16 %v364
      %v729 = vunpack.c.l.b16 %v365
      %v730 = vunpack.c.h.b16 %v365
      %v731 = vunpack.c.l.b16 %v366
      %v732 = vunpack.c.h.b16 %v366
      %v733 = vunpack.c.l.b16 %v367
      %v734 = vunpack.c.h.b16 %v367
      %v735 = vunpack.c.l.b16 %v368
      %v736 = vunpack.c.h.b16 %v368
      %v737 = vunpack.c.l.b16 %v369
      %v738 = vunpack.c.h.b16 %v369
      %v739 = vunpack.c.l.b16 %v370
      %v740 = vunpack.c.h.b16 %v370
      %v741 = vunpack.c.l.b16 %v371
      %v742 = vunpack.c.h.b16 %v371
      %v743 = vunpack.c.l.b16 %v372
      %v744 = vunpack.c.h.b16 %v372
      %v745 = vunpack.c.l.b16 %v373
      %v746 = vunpack.c.h.b16 %v373
      %v747 = vunpack.c.l.b16 %v374
      %v748 = vunpack.c.h.b16 %v374
      %v749 = vunpack.c.l.b16 %v375
      %v750 = vunpack.c.h.b16 %v375
      %v751 = vunpack.c.l.b16 %v376
      %v752 = vunpack.c.h.b16 %v376
      %v753 = vunpack.c.l.b16 %v377
      %v754 = vunpack.c.h.b16 %v377
      %v755 = vunpack.c.l.b16 %v378
      %v756 = vunpack.c.h.b16 %v378
      %v757 = vunpack.c.l.b16 %v379
      %v758 = vunpack.c.h.b16 %v379
      %v759 = vunpack.c.l.b16 %v380
      %v760 = vunpack.c.h.b16 %v380
      %v761 = vunpack.c.l.b16 %v381
      %v762 = vunpack.c.h.b16 %v381
      %v763 = vunpack.c.l.b16 %v382
      %v764 = vunpack.c.h.b16 %v382
      %v765 = vunpack.c.l.b16 %v383
      %v766 = vunpack.c.h.b16 %v383
      %v767 = vunpack.c.l.b16 %v384
      %v768 = vunpack.c.h.b16 %v384
      %v769 = vunpack.c.l.b16 %v385
      %v770 = vunpack.c.h.b16 %v385
      %v771 = vunpack.c.l.b16 %v386
      %v772 = vunpack.c.h.b16 %v386
      %v773 = vunpack.c.l.b16 %v387
      %v774 = vunpack.c.h.b16 %v387
      %v775 = vunpack.c.l.b16 %v388
      %v776 = vunpack.c.h.b16 %v388
      %v777 = vunpack.c.l.b16 %v389
      %v778 = vunpack.c.h.b16 %v389
      %v779 = vunpack.c.l.b16 %v390
      %v780 = vunpack.c.h.b16 %v390
      %v781 = vunpack.c.l.b16 %v391
      %v782 = vunpack.c.h.b16 %v391
      %v783 = vunpack.c.l.b16 %v392
      %v784 = vunpack.c.h.b16 %v392
      %v785 = vunpack.c.l.b16 %v393
      %v786 = vunpack.c.h.b16 %v393
      %v787 = vunpack.c.l.b16 %v394
      %v788 = vunpack.c.h.b16 %v394
      %v789 = vunpack.c.l.b16 %v395
      %v790 = vunpack.c.h.b16 %v395
      %v791 = vunpack.c.l.b16 %v396
      %v792 = vunpack.c.h.b16 %v396
      %v793 = vunpack.c.l.b16 %v397
      %v794 = vunpack.c.h.b16 %v397
      %v795 = vunpack.c.l.b16 %v398
      %v796 = vunpack.c.h.b16 %v398
      %v797 = vunpack.c.l.b16 %v399
      %v798 = vunpack.c.h.b16 %v399
      %v799 = vunpack.c.l.b16 %v400
      %v800 = vunpack.c.h.b16 %v400
      %v801 = vunpack.c.l.b16 %v401
      %v802 = vunpack.c.h.b16 %v401
      %v803 = vunpack.c.l.b16 %v402
      %v804 = vunpack.c.h.b16 %v402
      %v805 = vunpack.c.l.b16 %v403
      %v806 = vunpack.c.h.b16 %v403
      %v807 = vunpack.c.l.b16 %v404
      %v808 = vunpack.c.h.b16 %v404
      %v809 = vunpack.c.l.b16 %v405
      %v810 = vunpack.c.h.b16 %v405
      %v811 = vunpack.c.l.b16 %v406
      %v812 = vunpack.c.h.b16 %v406
      %v813 = vunpack.c.l.b16 %v407
      %v814 = vunpack.c.h.b16 %v407
      %v815 = vunpack.c.l.b16 %v408
      %v816 = vunpack.c.h.b16 %v408
      %v817 = vunpack.c.l.b16 %v409
      %v818 = vunpack.c.h.b16 %v409
      %v819 = vunpack.c.l.b16 %v410
      %v820 = vunpack.c.h.b16 %v410
      %v821 = vunpack.c.l.b16 %v411
      %v822 = vunpack.c.h.b16 %v411
      %v823 = vunpack.c.l.b16 %v412
      %v824 = vunpack.c.h.b16 %v412
      %v825 = vunpack.c.l.b16 %v413
      %v826 = vunpack.c.h.b16 %v413
      %v827 = vunpack.c.l.b16 %v414
      %v828 = vunpack.c.h.b16 %v414
      %v829 = vunpack.c.l.b16 %v415
      %v830 = vunpack.c.h.b16 %v415
      %v831 = vunpack.c.l.b16 %v416
      %v832 = vunpack.c.h.b16 %v416
      %v833 = vunpack.c.l.b16 %v417
      %v834 = vunpack.c.h.b16 %v417
      %v835 = vunpack.c.l.b16 %v418
      %v836 = vunpack.c.h.b16 %v418
      %v837 = vunpack.c.l.b16 %v419
      %v838 = vunpack.c.h.b16 %v419
      %v839 = vunpack.c.l.b16 %v420
      %v840 = vunpack.c.h.b16 %v420
      %v841 = vpack.c.b16 %v631, %v625
      %v842 = vpack.c.b16 %v632, %v626
      %v843 = vpack.c.b16 %v633, %v627
      %v844 = vpack.c.b16 %v634, %v628
      %v845 = vpack.c.b16 %v635, %v629
      %v846 = vpack.c.b16 %v636, %v630
      %v847 = vpack.c.b16 %v643, %v637
      %v848 = vpack.c.b16 %v644, %v638
      %v849 = vpack.c.b16 %v645, %v639
      %v850 = vpack.c.b16 %v646, %v640
      %v851 = vpack.c.b16 %v647, %v641
      %v852 = vpack.c.b16 %v648, %v642
      %v853 = vpack.c.b16 %v655, %v649
      %v854 = vpack.c.b16 %v656, %v650
      %v855 = vpack.c.b16 %v657, %v651
      %v856 = vpack.c.b16 %v658, %v652
      %v857 = vpack.c.b16 %v659, %v653
      %v858 = vpack.c.b16 %v660, %v654
      %v859 = vpack.c.b16 %v667, %v661
      %v860 = vpack.c.b16 %v668, %v662
      %v861 = vpack.c.b16 %v669, %v663
      %v862 = vpack.c.b16 %v670, %v664
      %v863 = vpack.c.b16 %v671, %v665
      %v864 = vpack.c.b16 %v672, %v666
      %v865 = vpack.c.b16 %v679, %v673
      %v866 = vpack.c.b16 %v680, %v674
      %v867 = vpack.c.b16 %v681, %v675
      %v868 = vpack.c.b16 %v682, %v676
      %v869 = vpack.c.b16 %v683, %v677
      %v870 = vpack.c.b16 %v684, %v678
      %v871 = vpack.c.b16 %v691, %v685
      %v872 = vpack.c.b16 %v692, %v686
      %v873 = vpack.c.b16 %v693, %v687
      %v874 = vpack.c.b16 %v694, %v688
      %v875 = vpack.c.b16 %v695, %v689
      %v876 = vpack.c.b16 %v696, %v690
      %v877 = vpack.c.b16 %v703, %v697
      %v878 = vpack.c.b16 %v704, %v698
      %v879 = vpack.c.b16 %v705, %v699
      %v880 = vpack.c.b16 %v706, %v700
      %v881 = vpack.c.b16 %v707, %v701
      %v882 = vpack.c.b16 %v708, %v702
      %v883 = vpack.c.b16 %v715, %v709
      %v884 = vpack.c.b16 %v716, %v710
      %v885 = vpack.c.b16 %v717, %v711
      %v886 = vpack.c.b16 %v718, %v712
      %v887 = vpack.c.b16 %v719, %v713
      %v888 = vpack.c.b16 %v720, %v714
      %v889 = vpack.c.b16 %v727, %v721
      %v890 = vpack.c.b16 %v728, %v722
      %v891 = vpack.c.b16 %v729, %v723
      %v892 = vpack.c.b16 %v730, %v724
      %v893 = vpack.c.b16 %v731, %v725
      %v894 = vpack.c.b16 %v732, %v726
      %v895 = vpack.c.b16 %v739, %v733
      %v896 = vpack.c.b16 %v740, %v734
      %v897 = vpack.c.b16 %v741, %v735
      %v898 = vpack.c.b16 %v742, %v736
      %v899 = vpack.c.b16 %v743, %v737
      %v900 = vpack.c.b16 %v744, %v738
      %v901 = vpack.c.b16 %v751, %v745
      %v902 = vpack.c.b16 %v752, %v746
      %v903 = vpack.c.b16 %v753, %v747
      %v904 = vpack.c.b16 %v754, %v748
      %v905 = vpack.c.b16 %v755, %v749
      %v906 = vpack.c.b16 %v756, %v750
      %v907 = vpack.c.b16 %v763, %v757
      %v908 = vpack.c.b16 %v764, %v758
      %v909 = vpack.c.b16 %v765, %v759
      %v910 = vpack.c.b16 %v766, %v760
      %v911 = vpack.c.b16 %v767, %v761
      %v912 = vpack.c.b16 %v768, %v762
      %v913 = vpack.c.b16 %v775, %v769
      %v914 = vpack.c.b16 %v776, %v770
      %v915 = vpack.c.b16 %v777, %v771
      %v916 = vpack.c.b16 %v778, %v772
      %v917 = vpack.c.b16 %v779, %v773
      %v918 = vpack.c.b16 %v780, %v774
      %v919 = vpack.c.b16 %v787, %v781
      %v920 = vpack.c.b16 %v788, %v782
      %v921 = vpack.c.b16 %v789, %v783
      %v922 = vpack.c.b16 %v790, %v784
      %v923 = vpack.c.b16 %v791, %v785
      %v924 = vpack.c.b16 %v792, %v786
      %v925 = vpack.c.b16 %v799, %v793
      %v926 = vpack.c.b16 %v800, %v794
      %v927 = vpack.c.b16 %v801, %v795
      %v928 = vpack.c.b16 %v802, %v796
      %v929 = vpack.c.b16 %v803, %v797
      %v930 = vpack.c.b16 %v804, %v798
      %v931 = vpack.c.b16 %v811, %v805
      %v932 = vpack.c.b16 %v812, %v806
      %v933 = vpack.c.b16 %v813, %v807
      %v934 = vpack.c.b16 %v814, %v808
      %v935 = vpack.c.b16 %v815, %v809
      %v936 = vpack.c.b16 %v816, %v810
      %v937 = vpack.c.b16 %v823, %v817
      %v938 = vpack.c.b16 %v824, %v818
      %v939 = vpack.c.b16 %v825, %v819
      %v940 = vpack.c.b16 %v826, %v820
      %v941 = vpack.c.b16 %v827, %v821
      %v942 = vpack.c.b16 %v828, %v822
      %v943 = vpack.c.b16 %v835, %v829
      %v944 = vpack.c.b16 %v836, %v830
      %v945 = vpack.c.b16 %v837, %v831
      %v946 = vpack.c.b16 %v838, %v832
      %v947 = vpack.c.b16 %v839, %v833
      %v948 = vpack.c.b16 %v840, %v834
      %v1153 = vunpack.c.l.b16 %v421
      %v1154 = vunpack.c.h.b16 %v421
      %v1155 = vunpack.c.l.b16 %v422
      %v1156 = vunpack.c.h.b16 %v422
      %v1157 = vunpack.c.l.b16 %v423
      %v1158 = vunpack.c.h.b16 %v423
      %v1159 = vunpack.c.l.b16 %v424
      %v1160 = vunpack.c.h.b16 %v424
      %v1161 = vunpack.c.l.b16 %v425
      %v1162 = vunpack.c.h.b16 %v425
      %v1163 = vunpack.c.l.b16 %v426
      %v1164 = vunpack.c.h.b16 %v426
      %v1165 = vunpack.c.l.b16 %v427
      %v1166 = vunpack.c.h.b16 %v427
      %v1167 = vunpack.c.l.b16 %v428
      %v1168 = vunpack.c.h.b16 %v428
      %v1169 = vunpack.c.l.b16 %v429
      %v1170 = vunpack.c.h.b16 %v429
      %v1171 = vunpack.c.l.b16 %v430
      %v1172 = vunpack.c.h.b16 %v430
      %v1173 = vunpack.c.l.b16 %v431
      %v1174 = vunpack.c.h.b16 %v431
      %v1175 = vunpack.c.l.b16 %v432
      %v1176 = vunpack.c.h.b16 %v432
      %v1177 = vunpack.c.l.b16 %v433
      %v1178 = vunpack.c.h.b16 %v433
      %v1179 = vunpack.c.l.b16 %v434
      %v1180 = vunpack.c.h.b16 %v434
      %v1181 = vunpack.c.l.b16 %v435
      %v1182 = vunpack.c.h.b16 %v435
      %v1183 = vunpack.c.l.b16 %v436
      %v1184 = vunpack.c.h.b16 %v436
      %v1185 = vunpack.c.l.b16 %v437
      %v1186 = vunpack.c.h.b16 %v437
      %v1187 = vunpack.c.l.b16 %v438
      %v1188 = vunpack.c.h.b16 %v438
      %v1189 = vunpack.c.l.b16 %v439
      %v1190 = vunpack.c.h.b16 %v439
      %v1191 = vunpack.c.l.b16 %v440
      %v1192 = vunpack.c.h.b16 %v440
      %v1193 = vunpack.c.l.b16 %v441
      %v1194 = vunpack.c.h.b16 %v441
      %v1195 = vunpack.c.l.b16 %v442
      %v1196 = vunpack.c.h.b16 %v442
      %v1197 = vunpack.c.l.b16 %v443
      %v1198 = vunpack.c.h.b16 %v443
      %v1199 = vunpack.c.l.b16 %v444
      %v1200 = vunpack.c.h.b16 %v444
      %v1201 = vunpack.c.l.b16 %v445
      %v1202 = vunpack.c.h.b16 %v445
      %v1203 = vunpack.c.l.b16 %v446
      %v1204 = vunpack.c.h.b16 %v446
      %v1205 = vunpack.c.l.b16 %v447
      %v1206 = vunpack.c.h.b16 %v447
      %v1207 = vunpack.c.l.b16 %v448
      %v1208 = vunpack.c.h.b16 %v448
      %v1209 = vunpack.c.l.b16 %v449
      %v1210 = vunpack.c.h.b16 %v449
      %v1211 = vunpack.c.l.b16 %v450
      %v1212 = vunpack.c.h.b16 %v450
      %v1213 = vunpack.c.l.b16 %v451
      %v1214 = vunpack.c.h.b16 %v451
      %v1215 = vunpack.c.l.b16 %v452
      %v1216 = vunpack.c.h.b16 %v452
      %v1217 = vunpack.c.l.b16 %v453
      %v1218 = vunpack.c.h.b16 %v453
      %v1219 = vunpack.c.l.b16 %v454
      %v1220 = vunpack.c.h.b16 %v454
      %v1221 = vunpack.c.l.b16 %v455
      %v1222 = vunpack.c.h.b16 %v455
      %v1223 = vunpack.c.l.b16 %v456
      %v1224 = vunpack.c.h.b16 %v456
      %v1225 = vunpack.c.l.b16 %v457
      %v1226 = vunpack.c.h.b16 %v457
      %v1227 = vunpack.c.l.b16 %v458
      %v1228 = vunpack.c.h.b16 %v458
      %v1229 = vunpack.c.l.b16 %v459
      %v1230 = vunpack.c.h.b16 %v459
      %v1231 = vunpack.c.l.b16 %v460
      %v1232 = vunpack.c.h.b16 %v460
      %v1233 = vunpack.c.l.b16 %v461
      %v1234 = vunpack.c.h.b16 %v461
      %v1235 = vunpack.c.l.b16 %v462
      %v1236 = vunpack.c.h.b16 %v462
      %v1237 = vunpack.c.l.b16 %v463
      %v1238 = vunpack.c.h.b16 %v463
      %v1239 = vunpack.c.l.b16 %v464
      %v1240 = vunpack.c.h.b16 %v464
      %v1241 = vunpack.c.l.b16 %v465
      %v1242 = vunpack.c.h.b16 %v465
      %v1243 = vunpack.c.l.b16 %v466
      %v1244 = vunpack.c.h.b16 %v466
      %v1245 = vunpack.c.l.b16 %v467
      %v1246 = vunpack.c.h.b16 %v467
      %v1247 = vunpack.c.l.b16 %v468
      %v1248 = vunpack.c.h.b16 %v468
      %v1249 = vunpack.c.l.b16 %v469
      %v1250 = vunpack.c.h.b16 %v469
      %v1251 = vunpack.c.l.b16 %v470
      %v1252 = vunpack.c.h.b16 %v470
      %v1253 = vunpack.c.l.b16 %v471
      %v1254 = vunpack.c.h.b16 %v471
      %v1255 = vunpack.c.l.b16 %v472
      %v1256 = vunpack.c.h.b16 %v472
      %v1257 = vunpack.c.l.b16 %v473
      %v1258 = vunpack.c.h.b16 %v473
      %v1259 = vunpack.c.l.b16 %v474
      %v1260 = vunpack.c.h.b16 %v474
      %v1261 = vunpack.c.l.b16 %v475
      %v1262 = vunpack.c.h.b16 %v475
      %v1263 = vunpack.c.l.b16 %v476
      %v1264 = vunpack.c.h.b16 %v476
      %v1265 = vunpack.c.l.b16 %v477
      %v1266 = vunpack.c.h.b16 %v477
      %v1267 = vunpack.c.l.b16 %v478
      %v1268 = vunpack.c.h.b16 %v478
      %v1269 = vunpack.c.l.b16 %v479
      %v1270 = vunpack.c.h.b16 %v479
      %v1271 = vunpack.c.l.b16 %v480
      %v1272 = vunpack.c.h.b16 %v480
      %v1273 = vunpack.c.l.b16 %v481
      %v1274 = vunpack.c.h.b16 %v481
      %v1275 = vunpack.c.l.b16 %v482
      %v1276 = vunpack.c.h.b16 %v482
      %v1277 = vunpack.c.l.b16 %v483
      %v1278 = vunpack.c.h.b16 %v483
      %v1279 = vunpack.c.l.b16 %v484
      %v1280 = vunpack.c.h.b16 %v484
      %v1281 = vunpack.c.l.b16 %v485
      %v1282 = vunpack.c.h.b16 %v485
      %v1283 = vunpack.c.l.b16 %v486
      %v1284 = vunpack.c.h.b16 %v486
      %v1285 = vunpack.c.l.b16 %v487
      %v1286 = vunpack.c.h.b16 %v487
      %v1287 = vunpack.c.l.b16 %v488
      %v1288 = vunpack.c.h.b16 %v488
      %v1289 = vunpack.c.l.b16 %v489
      %v1290 = vunpack.c.h.b16 %v489
      %v1291 = vunpack.c.l.b16 %v490
      %v1292 = vunpack.c.h.b16 %v490
      %v1293 = vunpack.c.l.b16 %v491
      %v1294 = vunpack.c.h.b16 %v491
      %v1295 = vunpack.c.l.b16 %v492
      %v1296 = vunpack.c.h.b16 %v492
      %v1297 = vunpack.c.l.b16 %v493
      %v1298 = vunpack.c.h.b16 %v493
      %v1299 = vunpack.c.l.b16 %v494
      %v1300 = vunpack.c.h.b16 %v494
      %v1301 = vunpack.c.l.b16 %v495
      %v1302 = vunpack.c.h.b16 %v495
      %v1303 = vunpack.c.l.b16 %v496
      %v1304 = vunpack.c.h.b16 %v496
      %v1305 = vunpack.c.l.b16 %v497
      %v1306 = vunpack.c.h.b16 %v497
      %v1307 = vunpack.c.l.b16 %v498
      %v1308 = vunpack.c.h.b16 %v498
      %v1309 = vunpack.c.l.b16 %v499
      %v1310 = vunpack.c.h.b16 %v499
      %v1311 = vunpack.c.l.b16 %v500
      %v1312 = vunpack.c.h.b16 %v500
      %v1313 = vunpack.c.l.b16 %v501
      %v1314 = vunpack.c.h.b16 %v501
      %v1315 = vunpack.c.l.b16 %v502
      %v1316 = vunpack.c.h.b16 %v502
      %v1317 = vunpack.c.l.b16 %v503
      %v1318 = vunpack.c.h.b16 %v503
      %v1319 = vunpack.c.l.b16 %v504
      %v1320 = vunpack.c.h.b16 %v504
      %v1321 = vunpack.c.l.b16 %v505
      %v1322 = vunpack.c.h.b16 %v505
      %v1323 = vunpack.c.l.b16 %v506
      %v1324 = vunpack.c.h.b16 %v506
      %v1325 = vunpack.c.l.b16 %v507
      %v1326 = vunpack.c.h.b16 %v507
      %v1327 = vunpack.c.l.b16 %v508
      %v1328 = vunpack.c.h.b16 %v508
      %v1329 = vunpack.c.l.b16 %v509
      %v1330 = vunpack.c.h.b16 %v509
      %v1331 = vunpack.c.l.b16 %v510
      %v1332 = vunpack.c.h.b16 %v510
      %v1333 = vunpack.c.l.b16 %v511
      %v1334 = vunpack.c.h.b16 %v511
      %v1335 = vunpack.c.l.b16 %v512
      %v1336 = vunpack.c.h.b16 %v512
      %v1337 = vunpack.c.l.b16 %v513
      %v1338 = vunpack.c.h.b16 %v513
      %v1339 = vunpack.c.l.b16 %v514
      %v1340 = vunpack.c.h.b16 %v514
      %v1341 = vunpack.c.l.b16 %v515
      %v1342 = vunpack.c.h.b16 %v515
      %v1343 = vunpack.c.l.b16 %v516
      %v1344 = vunpack.c.h.b16 %v516
      %v1345 = vpack.c.b16 %v1155, %v1153
      %v1346 = vpack.c.b16 %v1156, %v1154
      %v1347 = vpack.c.b16 %v1159, %v1157
      %v1348 = vpack.c.b16 %v1160, %v1158
      %v1349 = vpack.c.b16 %v1163, %v1161
      %v1350 = vpack.c.b16 %v1164, %v1162
      %v1351 = vpack.c.b16 %v1167, %v1165
      %v1352 = vpack.c.b16 %v1168, %v1166
      %v1353 = vpack.c.b16 %v1171, %v1169
      %v1354 = vpack.c.b16 %v1172, %v1170
      %v1355 = vpack.c.b16 %v1175, %v1173
      %v1356 = vpack.c.b16 %v1176, %v1174
      %v1357 = vpack.c.b16 %v1179, %v1177
      %v1358 = vpack.c.b16 %v1180, %v1178
      %v1359 = vpack.c.b16 %v1183, %v1181
      %v1360 = vpack.c.b16 %v1184, %v1182
      %v1361 = vpack.c.b16 %v1187, %v1185
      %v1362 = vpack.c.b16 %v1188, %v1186
      %v1363 = vpack.c.b16 %v1191, %v1189
      %v1364 = vpack.c.b16 %v1192, %v1190
      %v1365 = vpack.c.b16 %v1195, %v1193
      %v1366 = vpack.c.b16 %v1196, %v1194
      %v1367 = vpack.c.b16 %v1199, %v1197
      %v1368 = vpack.c.b16 %v1200, %v1198
      %v1369 = vpack.c.b16 %v1203, %v1201
      %v1370 = vpack.c.b16 %v1204, %v1202
      %v1371 = vpack.c.b16 %v1207, %v1205
      %v1372 = vpack.c.b16 %v1208, %v1206
      %v1373 = vpack.c.b16 %v1211, %v1209
      %v1374 = vpack.c.b16 %v1212, %v1210
      %v1375 = vpack.c.b16 %v1215, %v1213
      %v1376 = vpack.c.b16 %v1216, %v1214
      %v1377 = vpack.c.b16 %v1219, %v1217
      %v1378 = vpack.c.b16 %v1220, %v1218
      %v1379 = vpack.c.b16 %v1223, %v1221
      %v1380 = vpack.c.b16 %v1224, %v1222
      %v1381 = vpack.c.b16 %v1227, %v1225
      %v1382 = vpack.c.b16 %v1228, %v1226
      %v1383 = vpack.c.b16 %v1231, %v1229
      %v1384 = vpack.c.b16 %v1232, %v1230
      %v1385 = vpack.c.b16 %v1235, %v1233
      %v1386 = vpack.c.b16 %v1236, %v1234
      %v1387 = vpack.c.b16 %v1239, %v1237
      %v1388 = vpack.c.b16 %v1240, %v1238
      %v1389 = vpack.c.b16 %v1243, %v1241
      %v1390 = vpack.c.b16 %v1244, %v1242
      %v1391 = vpack.c.b16 %v1247, %v1245
      %v1392 = vpack.c.b16 %v1248, %v1246
      %v1393 = vpack.c.b16 %v1251, %v1249
      %v1394 = vpack.c.b16 %v1252, %v1250
      %v1395 = vpack.c.b16 %v1255, %v1253
      %v1396 = vpack.c.b16 %v1256, %v1254
      %v1397 = vpack.c.b16 %v1259, %v1257
      %v1398 = vpack.c.b16 %v1260, %v1258
      %v1399 = vpack.c.b16 %v1263, %v1261
      %v1400 = vpack.c.b16 %v1264, %v1262
      %v1401 = vpack.c.b16 %v1267, %v1265
      %v1402 = vpack.c.b16 %v1268, %v1266
      %v1403 = vpack.c.b16 %v1271, %v1269
      %v1404 = vpack.c.b16 %v1272, %v1270
      %v1405 = vpack.c.b16 %v1275, %v1273
      %v1406 = vpack.c.b16 %v1276, %v1274
      %v1407 = vpack.c.b16 %v1279, %v1277
      %v1408 = vpack.c.b16 %v1280, %v1278
      %v1409 = vpack.c.b16 %v1283, %v1281
      %v1410 = vpack.c.b16 %v1284, %v1282
      %v1411 = vpack.c.b16 %v1287, %v1285
      %v1412 = vpack.c.b16 %v1288, %v1286
      %v1413 = vpack.c.b16 %v1291, %v1289
      %v1414 = vpack.c.b16 %v1292, %v1290
      %v1415 = vpack.c.b16 %v1295, %v1293
      %v1416 = vpack.c.b16 %v1296, %v1294
      %v1417 = vpack.c.b16 %v1299, %v1297
      %v1418 = vpack.c.b16 %v1300, %v1298
      %v1419 = vpack.c.b16 %v1303, %v1301
      %v1420 = vpack.c.b16 %v1304, %v1302
      %v1421 = vpack.c.b16 %v1307, %v1305
      %v1422 = vpack.c.b16 %v1308, %v1306
      %v1423 = vpack.c.b16 %v1311, %v1309
      %v1424 = vpack.c.b16 %v1312, %v1310
      %v1425 = vpack.c.b16 %v1315, %v1313
      %v1426 = vpack.c.b16 %v1316, %v1314
      %v1427 = vpack.c.b16 %v1319, %v1317
      %v1428 = vpack.c.b16 %v1320, %v1318
      %v1429 = vpack.c.b16 %v1323, %v1321
      %v1430 = vpack.c.b16 %v1324, %v1322
      %v1431 = vpack.c.b16 %v1327, %v1325
      %v1432 = vpack.c.b16 %v1328, %v1326
      %v1433 = vpack.c.b16 %v1331, %v1329
      %v1434 = vpack.c.b16 %v1332, %v1330
      %v1435 = vpack.c.b16 %v1335, %v1333
      %v1436 = vpack.c.b16 %v1336, %v1334
      %v1437 = vpack.c.b16 %v1339, %v1337
      %v1438 = vpack.c.b16 %v1340, %v1338
      %v1439 = vpack.c.b16 %v1343, %v1341
      %v1440 = vpack.c.b16 %v1344, %v1342
      %1537 = vmatprep.subr.bf16.mxu0 %v1346
      %1538 = vmatpush1.bf16.msra.mxu0 %v1345
      %1539 = vmatprep.subr.bf16.mxu0 %v1348
      %1540 = vmatpush1.bf16.msra.mxu0 %v1347
      %1541 = vmatprep.subr.bf16.mxu0 %v1350
      %1542 = vmatpush1.bf16.msra.mxu0 %v1349
      %1543 = vmatprep.subr.bf16.mxu0 %v1352
      %1544 = vmatpush1.bf16.msra.mxu0 %v1351
      %1545 = vmatprep.subr.bf16.mxu0 %v1354
      %1546 = vmatpush1.bf16.msra.mxu0 %v1353
      %1547 = vmatprep.subr.bf16.mxu0 %v1356
      %1548 = vmatpush1.bf16.msra.mxu0 %v1355
      %1549 = vmatprep.subr.bf16.mxu0 %v1358
      %1550 = vmatpush1.bf16.msra.mxu0 %v1357
      %1551 = vmatprep.subr.bf16.mxu0 %v1360
      %1552 = vmatpush1.bf16.msra.mxu0 %v1359
      %1553 = vmatprep.subr.bf16.mxu0 %v1362
      %1554 = vmatpush1.bf16.msra.mxu0 %v1361
      %1555 = vmatprep.subr.bf16.mxu0 %v1364
      %1556 = vmatpush1.bf16.msra.mxu0 %v1363
      %1557 = vmatprep.subr.bf16.mxu0 %v1366
      %1558 = vmatpush1.bf16.msra.mxu0 %v1365
      %1559 = vmatprep.subr.bf16.mxu0 %v1368
      %1560 = vmatpush1.bf16.msra.mxu0 %v1367
      %1561 = vmatprep.subr.bf16.mxu0 %v1370
      %1562 = vmatpush1.bf16.msra.mxu0 %v1369
      %1563 = vmatprep.subr.bf16.mxu0 %v1372
      %1564 = vmatpush1.bf16.msra.mxu0 %v1371
      %1565 = vmatprep.subr.bf16.mxu0 %v1374
      %1566 = vmatpush1.bf16.msra.mxu0 %v1373
      %1567 = vmatprep.subr.bf16.mxu0 %v1376
      %1568 = vmatpush1.bf16.msra.mxu0 %v1375
      %1569 = vmatprep.mubr.bf16.mxu0 %v842
      %1570 = vmatmul.mubr.bf16.gmra.mrb[0].mxu0 %v841
      %v1571 = vpop.f32.mrb[0].mxu0
      %v1572 = vadd.f32 0.0, %v1571
      %v1573 = vpop.f32.mrb[0].mxu0
      %v1574 = vadd.f32 0.0, %v1573
      %v1575 = vpop.f32.mrb[0].mxu0
      %v1576 = vadd.f32 0.0, %v1575
      %v1577 = vpop.f32.mrb[0].mxu0
      %v1578 = vadd.f32 0.0, %v1577
      %1579 = vmatprep.mubr.bf16.mxu0 %v848
      %1580 = vmatmul.mubr.bf16.gmra.mrb[0].mxu0 %v847
      %v1581 = vpop.f32.mrb[0].mxu0
      %v1582 = vadd.f32 0.0, %v1581
      %v1583 = vpop.f32.mrb[0].mxu0
      %v1584 = vadd.f32 0.0, %v1583
      %v1585 = vpop.f32.mrb[0].mxu0
      %v1586 = vadd.f32 0.0, %v1585
      %v1587 = vpop.f32.mrb[0].mxu0
      %v1588 = vadd.f32 0.0, %v1587
      %1589 = vmatprep.mubr.bf16.mxu0 %v854
      %1590 = vmatmul.mubr.bf16.gmra.mrb[0].mxu0 %v853
      %v1591 = vpop.f32.mrb[0].mxu0
      %v1592 = vadd.f32 0.0, %v1591
      %v1593 = vpop.f32.mrb[0].mxu0
      %v1594 = vadd.f32 0.0, %v1593
      %v1595 = vpop.f32.mrb[0].mxu0
      %v1596 = vadd.f32 0.0, %v1595
      %v1597 = vpop.f32.mrb[0].mxu0
      %v1598 = vadd.f32 0.0, %v1597
      %1599 = vmatprep.mubr.bf16.mxu0 %v860
      %1600 = vmatmul.mubr.bf16.gmra.mrb[0].mxu0 %v859
      %v1601 = vpop.f32.mrb[0].mxu0
      %v1602 = vadd.f32 0.0, %v1601
      %v1603 = vpop.f32.mrb[0].mxu0
      %v1604 = vadd.f32 0.0, %v1603
      %v1605 = vpop.f32.mrb[0].mxu0
      %v1606 = vadd.f32 0.0, %v1605
      %v1607 = vpop.f32.mrb[0].mxu0
      %v1608 = vadd.f32 0.0, %v1607
      %1609 = vmatprep.mubr.bf16.mxu0 %v866
      %1610 = vmatmul.mubr.bf16.gmra.mrb[0].mxu0 %v865
      %v1611 = vpop.f32.mrb[0].mxu0
      %v1612 = vadd.f32 0.0, %v1611
      %v1613 = vpop.f32.mrb[0].mxu0
      %v1614 = vadd.f32 0.0, %v1613
      %v1615 = vpop.f32.mrb[0].mxu0
      %v1616 = vadd.f32 0.0, %v1615
      %v1617 = vpop.f32.mrb[0].mxu0
      %v1618 = vadd.f32 0.0, %v1617
      %1619 = vmatprep.mubr.bf16.mxu0 %v872
      %1620 = vmatmul.mubr.bf16.gmra.mrb[0].mxu0 %v871
      %v1621 = vpop.f32.mrb[0].mxu0
      %v1622 = vadd.f32 0.0, %v1621
      %v1623 = vpop.f32.mrb[0].mxu0
      %v1624 = vadd.f32 0.0, %v1623
      %v1625 = vpop.f32.mrb[0].mxu0
      %v1626 = vadd.f32 0.0, %v1625
      %v1627 = vpop.f32.mrb[0].mxu0
      %v1628 = vadd.f32 0.0, %v1627
      %1629 = vmatprep.mubr.bf16.mxu0 %v878
      %1630 = vmatmul.mubr.bf16.gmra.mrb[0].mxu0 %v877
      %v1631 = vpop.f32.mrb[0].mxu0
      %v1632 = vadd.f32 0.0, %v1631
      %v1633 = vpop.f32.mrb[0].mxu0
      %v1634 = vadd.f32 0.0, %v1633
      %v1635 = vpop.f32.mrb[0].mxu0
      %v1636 = vadd.f32 0.0, %v1635
      %v1637 = vpop.f32.mrb[0].mxu0
      %v1638 = vadd.f32 0.0, %v1637
      %1639 = vmatprep.mubr.bf16.mxu0 %v884
      %1640 = vmatmul.mubr.bf16.gmra.mrb[0].mxu0 %v883
      %v1641 = vpop.f32.mrb[0].mxu0
      %v1642 = vadd.f32 0.0, %v1641
      %v1643 = vpop.f32.mrb[0].mxu0
      %v1644 = vadd.f32 0.0, %v1643
      %v1645 = vpop.f32.mrb[0].mxu0
      %v1646 = vadd.f32 0.0, %v1645
      %v1647 = vpop.f32.mrb[0].mxu0
      %v1648 = vadd.f32 0.0, %v1647
      %1649 = vmatprep.mubr.bf16.mxu0 %v890
      %1650 = vmatmul.mubr.bf16.gmra.mrb[0].mxu0 %v889
      %v1651 = vpop.f32.mrb[0].mxu0
      %v1652 = vadd.f32 0.0, %v1651
      %v1653 = vpop.f32.mrb[0].mxu0
      %v1654 = vadd.f32 0.0, %v1653
      %v1655 = vpop.f32.mrb[0].mxu0
      %v1656 = vadd.f32 0.0, %v1655
      %v1657 = vpop.f32.mrb[0].mxu0
      %v1658 = vadd.f32 0.0, %v1657
      %1659 = vmatprep.mubr.bf16.mxu0 %v896
      %1660 = vmatmul.mubr.bf16.gmra.mrb[0].mxu0 %v895
      %v1661 = vpop.f32.mrb[0].mxu0
      %v1662 = vadd.f32 0.0, %v1661
      %v1663 = vpop.f32.mrb[0].mxu0
      %v1664 = vadd.f32 0.0, %v1663
      %v1665 = vpop.f32.mrb[0].mxu0
      %v1666 = vadd.f32 0.0, %v1665
      %v1667 = vpop.f32.mrb[0].mxu0
      %v1668 = vadd.f32 0.0, %v1667
      %1669 = vmatprep.mubr.bf16.mxu0 %v902
      %1670 = vmatmul.mubr.bf16.gmra.mrb[0].mxu0 %v901
      %v1671 = vpop.f32.mrb[0].mxu0
      %v1672 = vadd.f32 0.0, %v1671
      %v1673 = vpop.f32.mrb[0].mxu0
      %v1674 = vadd.f32 0.0, %v1673
      %v1675 = vpop.f32.mrb[0].mxu0
      %v1676 = vadd.f32 0.0, %v1675
      %v1677 = vpop.f32.mrb[0].mxu0
      %v1678 = vadd.f32 0.0, %v1677
      %1679 = vmatprep.mubr.bf16.mxu0 %v908
      %1680 = vmatmul.mubr.bf16.gmra.mrb[0].mxu0 %v907
      %v1681 = vpop.f32.mrb[0].mxu0
      %v1682 = vadd.f32 0.0, %v1681
      %v1683 = vpop.f32.mrb[0].mxu0
      %v1684 = vadd.f32 0.0, %v1683
      %v1685 = vpop.f32.mrb[0].mxu0
      %v1686 = vadd.f32 0.0, %v1685
      %v1687 = vpop.f32.mrb[0].mxu0
      %v1688 = vadd.f32 0.0, %v1687
      %1689 = vmatprep.mubr.bf16.mxu0 %v914
      %1690 = vmatmul.mubr.bf16.gmra.mrb[0].mxu0 %v913
      %v1691 = vpop.f32.mrb[0].mxu0
      %v1692 = vadd.f32 0.0, %v1691
      %v1693 = vpop.f32.mrb[0].mxu0
      %v1694 = vadd.f32 0.0, %v1693
      %v1695 = vpop.f32.mrb[0].mxu0
      %v1696 = vadd.f32 0.0, %v1695
      %v1697 = vpop.f32.mrb[0].mxu0
      %v1698 = vadd.f32 0.0, %v1697
      %1699 = vmatprep.mubr.bf16.mxu0 %v920
      %1700 = vmatmul.mubr.bf16.gmra.mrb[0].mxu0 %v919
      %v1701 = vpop.f32.mrb[0].mxu0
      %v1702 = vadd.f32 0.0, %v1701
      %v1703 = vpop.f32.mrb[0].mxu0
      %v1704 = vadd.f32 0.0, %v1703
      %v1705 = vpop.f32.mrb[0].mxu0
      %v1706 = vadd.f32 0.0, %v1705
      %v1707 = vpop.f32.mrb[0].mxu0
      %v1708 = vadd.f32 0.0, %v1707
      %1709 = vmatprep.mubr.bf16.mxu0 %v926
      %1710 = vmatmul.mubr.bf16.gmra.mrb[0].mxu0 %v925
      %v1711 = vpop.f32.mrb[0].mxu0
      %v1712 = vadd.f32 0.0, %v1711
      %v1713 = vpop.f32.mrb[0].mxu0
      %v1714 = vadd.f32 0.0, %v1713
      %v1715 = vpop.f32.mrb[0].mxu0
      %v1716 = vadd.f32 0.0, %v1715
      %v1717 = vpop.f32.mrb[0].mxu0
      %v1718 = vadd.f32 0.0, %v1717
      %1719 = vmatprep.mubr.bf16.mxu0 %v932
      %1720 = vmatmul.mubr.bf16.gmra.mrb[0].mxu0 %v931
      %v1721 = vpop.f32.mrb[0].mxu0
      %v1722 = vadd.f32 0.0, %v1721
      %v1723 = vpop.f32.mrb[0].mxu0
      %v1724 = vadd.f32 0.0, %v1723
      %v1725 = vpop.f32.mrb[0].mxu0
      %v1726 = vadd.f32 0.0, %v1725
      %v1727 = vpop.f32.mrb[0].mxu0
      %v1728 = vadd.f32 0.0, %v1727
      %1729 = vmatprep.mubr.bf16.mxu0 %v938
      %1730 = vmatmul.mubr.bf16.gmra.mrb[0].mxu0 %v937
      %v1731 = vpop.f32.mrb[0].mxu0
      %v1732 = vadd.f32 0.0, %v1731
      %v1733 = vpop.f32.mrb[0].mxu0
      %v1734 = vadd.f32 0.0, %v1733
      %v1735 = vpop.f32.mrb[0].mxu0
      %v1736 = vadd.f32 0.0, %v1735
      %v1737 = vpop.f32.mrb[0].mxu0
      %v1738 = vadd.f32 0.0, %v1737
      %1739 = vmatprep.mubr.bf16.mxu0 %v944
      %1740 = vmatmul.mubr.bf16.gmra.mrb[0].mxu0 %v943
      %v1741 = vpop.f32.mrb[0].mxu0
      %v1742 = vadd.f32 0.0, %v1741
      %v1743 = vpop.f32.mrb[0].mxu0
      %v1744 = vadd.f32 0.0, %v1743
      %v1745 = vpop.f32.mrb[0].mxu0
      %v1746 = vadd.f32 0.0, %v1745
      %v1747 = vpop.f32.mrb[0].mxu0
      %v1748 = vadd.f32 0.0, %v1747
      %1749 = vdwg.mxu0
      %1750 = vmatprep.subr.bf16.mxu0 %v1378
      %1751 = vmatpush1.bf16.msra.mxu0 %v1377
      %1752 = vmatprep.subr.bf16.mxu0 %v1380
      %1753 = vmatpush1.bf16.msra.mxu0 %v1379
      %1754 = vmatprep.subr.bf16.mxu0 %v1382
      %1755 = vmatpush1.bf16.msra.mxu0 %v1381
      %1756 = vmatprep.subr.bf16.mxu0 %v1384
      %1757 = vmatpush1.bf16.msra.mxu0 %v1383
      %1758 = vmatprep.subr.bf16.mxu0 %v1386
      %1759 = vmatpush1.bf16.msra.mxu0 %v1385
      %1760 = vmatprep.subr.bf16.mxu0 %v1388
      %1761 = vmatpush1.bf16.msra.mxu0 %v1387
      %1762 = vmatprep.subr.bf16.mxu0 %v1390
      %1763 = vmatpush1.bf16.msra.mxu0 %v1389
      %1764 = vmatprep.subr.bf16.mxu0 %v1392
      %1765 = vmatpush1.bf16.msra.mxu0 %v1391
      %1766 = vmatprep.subr.bf16.mxu0 %v1394
      %1767 = vmatpush1.bf16.msra.mxu0 %v1393
      %1768 = vmatprep.subr.bf16.mxu0 %v1396
      %1769 = vmatpush1.bf16.msra.mxu0 %v1395
      %1770 = vmatprep.subr.bf16.mxu0 %v1398
      %1771 = vmatpush1.bf16.msra.mxu0 %v1397
      %1772 = vmatprep.subr.bf16.mxu0 %v1400
      %1773 = vmatpush1.bf16.msra.mxu0 %v1399
      %1774 = vmatprep.subr.bf16.mxu0 %v1402
      %1775 = vmatpush1.bf16.msra.mxu0 %v1401
      %1776 = vmatprep.subr.bf16.mxu0 %v1404
      %1777 = vmatpush1.bf16.msra.mxu0 %v1403
      %1778 = vmatprep.subr.bf16.mxu0 %v1406
      %1779 = vmatpush1.bf16.msra.mxu0 %v1405
      %1780 = vmatprep.subr.bf16.mxu0 %v1408
      %1781 = vmatpush1.bf16.msra.mxu0 %v1407
      %1782 = vmatprep.mubr.bf16.mxu0 %v844
      %1783 = vmatmul.mubr.bf16.gmra.mrb[0].mxu0 %v843
      %v1784 = vpop.f32.mrb[0].mxu0
      %v1785 = vadd.f32 %v1572, %v1784
      %v1786 = vpop.f32.mrb[0].mxu0
      %v1787 = vadd.f32 %v1574, %v1786
      %v1788 = vpop.f32.mrb[0].mxu0
      %v1789 = vadd.f32 %v1576, %v1788
      %v1790 = vpop.f32.mrb[0].mxu0
      %v1791 = vadd.f32 %v1578, %v1790
      %1792 = vmatprep.mubr.bf16.mxu0 %v850
      %1793 = vmatmul.mubr.bf16.gmra.mrb[0].mxu0 %v849
      %v1794 = vpop.f32.mrb[0].mxu0
      %v1795 = vadd.f32 %v1582, %v1794
      %v1796 = vpop.f32.mrb[0].mxu0
      %v1797 = vadd.f32 %v1584, %v1796
      %v1798 = vpop.f32.mrb[0].mxu0
      %v1799 = vadd.f32 %v1586, %v1798
      %v1800 = vpop.f32.mrb[0].mxu0
      %v1801 = vadd.f32 %v1588, %v1800
      %1802 = vmatprep.mubr.bf16.mxu0 %v856
      %1803 = vmatmul.mubr.bf16.gmra.mrb[0].mxu0 %v855
      %v1804 = vpop.f32.mrb[0].mxu0
      %v1805 = vadd.f32 %v1592, %v1804
      %v1806 = vpop.f32.mrb[0].mxu0
      %v1807 = vadd.f32 %v1594, %v1806
      %v1808 = vpop.f32.mrb[0].mxu0
      %v1809 = vadd.f32 %v1596, %v1808
      %v1810 = vpop.f32.mrb[0].mxu0
      %v1811 = vadd.f32 %v1598, %v1810
      %1812 = vmatprep.mubr.bf16.mxu0 %v862
      %1813 = vmatmul.mubr.bf16.gmra.mrb[0].mxu0 %v861
      %v1814 = vpop.f32.mrb[0].mxu0
      %v1815 = vadd.f32 %v1602, %v1814
      %v1816 = vpop.f32.mrb[0].mxu0
      %v1817 = vadd.f32 %v1604, %v1816
      %v1818 = vpop.f32.mrb[0].mxu0
      %v1819 = vadd.f32 %v1606, %v1818
      %v1820 = vpop.f32.mrb[0].mxu0
      %v1821 = vadd.f32 %v1608, %v1820
      %1822 = vmatprep.mubr.bf16.mxu0 %v868
      %1823 = vmatmul.mubr.bf16.gmra.mrb[0].mxu0 %v867
      %v1824 = vpop.f32.mrb[0].mxu0
      %v1825 = vadd.f32 %v1612, %v1824
      %v1826 = vpop.f32.mrb[0].mxu0
      %v1827 = vadd.f32 %v1614, %v1826
      %v1828 = vpop.f32.mrb[0].mxu0
      %v1829 = vadd.f32 %v1616, %v1828
      %v1830 = vpop.f32.mrb[0].mxu0
      %v1831 = vadd.f32 %v1618, %v1830
      %1832 = vmatprep.mubr.bf16.mxu0 %v874
      %1833 = vmatmul.mubr.bf16.gmra.mrb[0].mxu0 %v873
      %v1834 = vpop.f32.mrb[0].mxu0
      %v1835 = vadd.f32 %v1622, %v1834
      %v1836 = vpop.f32.mrb[0].mxu0
      %v1837 = vadd.f32 %v1624, %v1836
      %v1838 = vpop.f32.mrb[0].mxu0
      %v1839 = vadd.f32 %v1626, %v1838
      %v1840 = vpop.f32.mrb[0].mxu0
      %v1841 = vadd.f32 %v1628, %v1840
      %1842 = vmatprep.mubr.bf16.mxu0 %v880
      %1843 = vmatmul.mubr.bf16.gmra.mrb[0].mxu0 %v879
      %v1844 = vpop.f32.mrb[0].mxu0
      %v1845 = vadd.f32 %v1632, %v1844
      %v1846 = vpop.f32.mrb[0].mxu0
      %v1847 = vadd.f32 %v1634, %v1846
      %v1848 = vpop.f32.mrb[0].mxu0
      %v1849 = vadd.f32 %v1636, %v1848
      %v1850 = vpop.f32.mrb[0].mxu0
      %v1851 = vadd.f32 %v1638, %v1850
      %1852 = vmatprep.mubr.bf16.mxu0 %v886
      %1853 = vmatmul.mubr.bf16.gmra.mrb[0].mxu0 %v885
      %v1854 = vpop.f32.mrb[0].mxu0
      %v1855 = vadd.f32 %v1642, %v1854
      %v1856 = vpop.f32.mrb[0].mxu0
      %v1857 = vadd.f32 %v1644, %v1856
      %v1858 = vpop.f32.mrb[0].mxu0
      %v1859 = vadd.f32 %v1646, %v1858
      %v1860 = vpop.f32.mrb[0].mxu0
      %v1861 = vadd.f32 %v1648, %v1860
      %1862 = vmatprep.mubr.bf16.mxu0 %v892
      %1863 = vmatmul.mubr.bf16.gmra.mrb[0].mxu0 %v891
      %v1864 = vpop.f32.mrb[0].mxu0
      %v1865 = vadd.f32 %v1652, %v1864
      %v1866 = vpop.f32.mrb[0].mxu0
      %v1867 = vadd.f32 %v1654, %v1866
      %v1868 = vpop.f32.mrb[0].mxu0
      %v1869 = vadd.f32 %v1656, %v1868
      %v1870 = vpop.f32.mrb[0].mxu0
      %v1871 = vadd.f32 %v1658, %v1870
      %1872 = vmatprep.mubr.bf16.mxu0 %v898
      %1873 = vmatmul.mubr.bf16.gmra.mrb[0].mxu0 %v897
      %v1874 = vpop.f32.mrb[0].mxu0
      %v1875 = vadd.f32 %v1662, %v1874
      %v1876 = vpop.f32.mrb[0].mxu0
      %v1877 = vadd.f32 %v1664, %v1876
      %v1878 = vpop.f32.mrb[0].mxu0
      %v1879 = vadd.f32 %v1666, %v1878
      %v1880 = vpop.f32.mrb[0].mxu0
      %v1881 = vadd.f32 %v1668, %v1880
      %1882 = vmatprep.mubr.bf16.mxu0 %v904
      %1883 = vmatmul.mubr.bf16.gmra.mrb[0].mxu0 %v903
      %v1884 = vpop.f32.mrb[0].mxu0
      %v1885 = vadd.f32 %v1672, %v1884
      %v1886 = vpop.f32.mrb[0].mxu0
      %v1887 = vadd.f32 %v1674, %v1886
      %v1888 = vpop.f32.mrb[0].mxu0
      %v1889 = vadd.f32 %v1676, %v1888
      %v1890 = vpop.f32.mrb[0].mxu0
      %v1891 = vadd.f32 %v1678, %v1890
      %1892 = vmatprep.mubr.bf16.mxu0 %v910
      %1893 = vmatmul.mubr.bf16.gmra.mrb[0].mxu0 %v909
      %v1894 = vpop.f32.mrb[0].mxu0
      %v1895 = vadd.f32 %v1682, %v1894
      %v1896 = vpop.f32.mrb[0].mxu0
      %v1897 = vadd.f32 %v1684, %v1896
      %v1898 = vpop.f32.mrb[0].mxu0
      %v1899 = vadd.f32 %v1686, %v1898
      %v1900 = vpop.f32.mrb[0].mxu0
      %v1901 = vadd.f32 %v1688, %v1900
      %1902 = vmatprep.mubr.bf16.mxu0 %v916
      %1903 = vmatmul.mubr.bf16.gmra.mrb[0].mxu0 %v915
      %v1904 = vpop.f32.mrb[0].mxu0
      %v1905 = vadd.f32 %v1692, %v1904
      %v1906 = vpop.f32.mrb[0].mxu0
      %v1907 = vadd.f32 %v1694, %v1906
      %v1908 = vpop.f32.mrb[0].mxu0
      %v1909 = vadd.f32 %v1696, %v1908
      %v1910 = vpop.f32.mrb[0].mxu0
      %v1911 = vadd.f32 %v1698, %v1910
      %1912 = vmatprep.mubr.bf16.mxu0 %v922
      %1913 = vmatmul.mubr.bf16.gmra.mrb[0].mxu0 %v921
      %v1914 = vpop.f32.mrb[0].mxu0
      %v1915 = vadd.f32 %v1702, %v1914
      %v1916 = vpop.f32.mrb[0].mxu0
      %v1917 = vadd.f32 %v1704, %v1916
      %v1918 = vpop.f32.mrb[0].mxu0
      %v1919 = vadd.f32 %v1706, %v1918
      %v1920 = vpop.f32.mrb[0].mxu0
      %v1921 = vadd.f32 %v1708, %v1920
      %1922 = vmatprep.mubr.bf16.mxu0 %v928
      %1923 = vmatmul.mubr.bf16.gmra.mrb[0].mxu0 %v927
      %v1924 = vpop.f32.mrb[0].mxu0
      %v1925 = vadd.f32 %v1712, %v1924
      %v1926 = vpop.f32.mrb[0].mxu0
      %v1927 = vadd.f32 %v1714, %v1926
      %v1928 = vpop.f32.mrb[0].mxu0
      %v1929 = vadd.f32 %v1716, %v1928
      %v1930 = vpop.f32.mrb[0].mxu0
      %v1931 = vadd.f32 %v1718, %v1930
      %1932 = vmatprep.mubr.bf16.mxu0 %v934
      %1933 = vmatmul.mubr.bf16.gmra.mrb[0].mxu0 %v933
      %v1934 = vpop.f32.mrb[0].mxu0
      %v1935 = vadd.f32 %v1722, %v1934
      %v1936 = vpop.f32.mrb[0].mxu0
      %v1937 = vadd.f32 %v1724, %v1936
      %v1938 = vpop.f32.mrb[0].mxu0
      %v1939 = vadd.f32 %v1726, %v1938
      %v1940 = vpop.f32.mrb[0].mxu0
      %v1941 = vadd.f32 %v1728, %v1940
      %1942 = vmatprep.mubr.bf16.mxu0 %v940
      %1943 = vmatmul.mubr.bf16.gmra.mrb[0].mxu0 %v939
      %v1944 = vpop.f32.mrb[0].mxu0
      %v1945 = vadd.f32 %v1732, %v1944
      %v1946 = vpop.f32.mrb[0].mxu0
      %v1947 = vadd.f32 %v1734, %v1946
      %v1948 = vpop.f32.mrb[0].mxu0
      %v1949 = vadd.f32 %v1736, %v1948
      %v1950 = vpop.f32.mrb[0].mxu0
      %v1951 = vadd.f32 %v1738, %v1950
      %1952 = vmatprep.mubr.bf16.mxu0 %v946
      %1953 = vmatmul.mubr.bf16.gmra.mrb[0].mxu0 %v945
      %v1954 = vpop.f32.mrb[0].mxu0
      %v1955 = vadd.f32 %v1742, %v1954
      %v1956 = vpop.f32.mrb[0].mxu0
      %v1957 = vadd.f32 %v1744, %v1956
      %v1958 = vpop.f32.mrb[0].mxu0
      %v1959 = vadd.f32 %v1746, %v1958
      %v1960 = vpop.f32.mrb[0].mxu0
      %v1961 = vadd.f32 %v1748, %v1960
      %1962 = vdwg.mxu0
      %1963 = vmatprep.subr.bf16.mxu0 %v1410
      %1964 = vmatpush1.bf16.msra.mxu0 %v1409
      %1965 = vmatprep.subr.bf16.mxu0 %v1412
      %1966 = vmatpush1.bf16.msra.mxu0 %v1411
      %1967 = vmatprep.subr.bf16.mxu0 %v1414
      %1968 = vmatpush1.bf16.msra.mxu0 %v1413
      %1969 = vmatprep.subr.bf16.mxu0 %v1416
      %1970 = vmatpush1.bf16.msra.mxu0 %v1415
      %1971 = vmatprep.subr.bf16.mxu0 %v1418
      %1972 = vmatpush1.bf16.msra.mxu0 %v1417
      %1973 = vmatprep.subr.bf16.mxu0 %v1420
      %1974 = vmatpush1.bf16.msra.mxu0 %v1419
      %1975 = vmatprep.subr.bf16.mxu0 %v1422
      %1976 = vmatpush1.bf16.msra.mxu0 %v1421
      %1977 = vmatprep.subr.bf16.mxu0 %v1424
      %1978 = vmatpush1.bf16.msra.mxu0 %v1423
      %1979 = vmatprep.subr.bf16.mxu0 %v1426
      %1980 = vmatpush1.bf16.msra.mxu0 %v1425
      %1981 = vmatprep.subr.bf16.mxu0 %v1428
      %1982 = vmatpush1.bf16.msra.mxu0 %v1427
      %1983 = vmatprep.subr.bf16.mxu0 %v1430
      %1984 = vmatpush1.bf16.msra.mxu0 %v1429
      %1985 = vmatprep.subr.bf16.mxu0 %v1432
      %1986 = vmatpush1.bf16.msra.mxu0 %v1431
      %1987 = vmatprep.subr.bf16.mxu0 %v1434
      %1988 = vmatpush1.bf16.msra.mxu0 %v1433
      %1989 = vmatprep.subr.bf16.mxu0 %v1436
      %1990 = vmatpush1.bf16.msra.mxu0 %v1435
      %1991 = vmatprep.subr.bf16.mxu0 %v1438
      %1992 = vmatpush1.bf16.msra.mxu0 %v1437
      %1993 = vmatprep.subr.bf16.mxu0 %v1440
      %1994 = vmatpush1.bf16.msra.mxu0 %v1439
      %1995 = vmatprep.mubr.bf16.mxu0 %v846
      %1996 = vmatmul.mubr.bf16.gmra.mrb[0].mxu0 %v845
      %v1997 = vpop.f32.mrb[0].mxu0
      %v1998 = vadd.f32 %v1785, %v1997
      %v1999 = vpop.f32.mrb[0].mxu0
      %v2000 = vadd.f32 %v1787, %v1999
      %v2001 = vpop.f32.mrb[0].mxu0
      %v2002 = vadd.f32 %v1789, %v2001
      %v2003 = vpop.f32.mrb[0].mxu0
      %v2004 = vadd.f32 %v1791, %v2003
      %2005 = vmatprep.mubr.bf16.mxu0 %v852
      %2006 = vmatmul.mubr.bf16.gmra.mrb[0].mxu0 %v851
      %v2007 = vpop.f32.mrb[0].mxu0
      %v2008 = vadd.f32 %v1795, %v2007
      %v2009 = vpop.f32.mrb[0].mxu0
      %v2010 = vadd.f32 %v1797, %v2009
      %v2011 = vpop.f32.mrb[0].mxu0
      %v2012 = vadd.f32 %v1799, %v2011
      %v2013 = vpop.f32.mrb[0].mxu0
      %v2014 = vadd.f32 %v1801, %v2013
      %2015 = vmatprep.mubr.bf16.mxu0 %v858
      %2016 = vmatmul.mubr.bf16.gmra.mrb[0].mxu0 %v857
      %v2017 = vpop.f32.mrb[0].mxu0
      %v2018 = vadd.f32 %v1805, %v2017
      %v2019 = vpop.f32.mrb[0].mxu0
      %v2020 = vadd.f32 %v1807, %v2019
      %v2021 = vpop.f32.mrb[0].mxu0
      %v2022 = vadd.f32 %v1809, %v2021
      %v2023 = vpop.f32.mrb[0].mxu0
      %v2024 = vadd.f32 %v1811, %v2023
      %2025 = vmatprep.mubr.bf16.mxu0 %v864
      %2026 = vmatmul.mubr.bf16.gmra.mrb[0].mxu0 %v863
      %v2027 = vpop.f32.mrb[0].mxu0
      %v2028 = vadd.f32 %v1815, %v2027
      %v2029 = vpop.f32.mrb[0].mxu0
      %v2030 = vadd.f32 %v1817, %v2029
      %v2031 = vpop.f32.mrb[0].mxu0
      %v2032 = vadd.f32 %v1819, %v2031
      %v2033 = vpop.f32.mrb[0].mxu0
      %v2034 = vadd.f32 %v1821, %v2033
      %2035 = vmatprep.mubr.bf16.mxu0 %v870
      %2036 = vmatmul.mubr.bf16.gmra.mrb[0].mxu0 %v869
      %v2037 = vpop.f32.mrb[0].mxu0
      %v2038 = vadd.f32 %v1825, %v2037
      %v2039 = vpop.f32.mrb[0].mxu0
      %v2040 = vadd.f32 %v1827, %v2039
      %v2041 = vpop.f32.mrb[0].mxu0
      %v2042 = vadd.f32 %v1829, %v2041
      %v2043 = vpop.f32.mrb[0].mxu0
      %v2044 = vadd.f32 %v1831, %v2043
      %2045 = vmatprep.mubr.bf16.mxu0 %v876
      %2046 = vmatmul.mubr.bf16.gmra.mrb[0].mxu0 %v875
      %v2047 = vpop.f32.mrb[0].mxu0
      %v2048 = vadd.f32 %v1835, %v2047
      %v2049 = vpop.f32.mrb[0].mxu0
      %v2050 = vadd.f32 %v1837, %v2049
      %v2051 = vpop.f32.mrb[0].mxu0
      %v2052 = vadd.f32 %v1839, %v2051
      %v2053 = vpop.f32.mrb[0].mxu0
      %v2054 = vadd.f32 %v1841, %v2053
      %2055 = vmatprep.mubr.bf16.mxu0 %v882
      %2056 = vmatmul.mubr.bf16.gmra.mrb[0].mxu0 %v881
      %v2057 = vpop.f32.mrb[0].mxu0
      %v2058 = vadd.f32 %v1845, %v2057
      %v2059 = vpop.f32.mrb[0].mxu0
      %v2060 = vadd.f32 %v1847, %v2059
      %v2061 = vpop.f32.mrb[0].mxu0
      %v2062 = vadd.f32 %v1849, %v2061
      %v2063 = vpop.f32.mrb[0].mxu0
      %v2064 = vadd.f32 %v1851, %v2063
      %2065 = vmatprep.mubr.bf16.mxu0 %v888
      %2066 = vmatmul.mubr.bf16.gmra.mrb[0].mxu0 %v887
      %v2067 = vpop.f32.mrb[0].mxu0
      %v2068 = vadd.f32 %v1855, %v2067
      %v2069 = vpop.f32.mrb[0].mxu0
      %v2070 = vadd.f32 %v1857, %v2069
      %v2071 = vpop.f32.mrb[0].mxu0
      %v2072 = vadd.f32 %v1859, %v2071
      %v2073 = vpop.f32.mrb[0].mxu0
      %v2074 = vadd.f32 %v1861, %v2073
      %2075 = vmatprep.mubr.bf16.mxu0 %v894
      %2076 = vmatmul.mubr.bf16.gmra.mrb[0].mxu0 %v893
      %v2077 = vpop.f32.mrb[0].mxu0
      %v2078 = vadd.f32 %v1865, %v2077
      %v2079 = vpop.f32.mrb[0].mxu0
      %v2080 = vadd.f32 %v1867, %v2079
      %v2081 = vpop.f32.mrb[0].mxu0
      %v2082 = vadd.f32 %v1869, %v2081
      %v2083 = vpop.f32.mrb[0].mxu0
      %v2084 = vadd.f32 %v1871, %v2083
      %2085 = vmatprep.mubr.bf16.mxu0 %v900
      %2086 = vmatmul.mubr.bf16.gmra.mrb[0].mxu0 %v899
      %v2087 = vpop.f32.mrb[0].mxu0
      %v2088 = vadd.f32 %v1875, %v2087
      %v2089 = vpop.f32.mrb[0].mxu0
      %v2090 = vadd.f32 %v1877, %v2089
      %v2091 = vpop.f32.mrb[0].mxu0
      %v2092 = vadd.f32 %v1879, %v2091
      %v2093 = vpop.f32.mrb[0].mxu0
      %v2094 = vadd.f32 %v1881, %v2093
      %2095 = vmatprep.mubr.bf16.mxu0 %v906
      %2096 = vmatmul.mubr.bf16.gmra.mrb[0].mxu0 %v905
      %v2097 = vpop.f32.mrb[0].mxu0
      %v2098 = vadd.f32 %v1885, %v2097
      %v2099 = vpop.f32.mrb[0].mxu0
      %v2100 = vadd.f32 %v1887, %v2099
      %v2101 = vpop.f32.mrb[0].mxu0
      %v2102 = vadd.f32 %v1889, %v2101
      %v2103 = vpop.f32.mrb[0].mxu0
      %v2104 = vadd.f32 %v1891, %v2103
      %2105 = vmatprep.mubr.bf16.mxu0 %v912
      %2106 = vmatmul.mubr.bf16.gmra.mrb[0].mxu0 %v911
      %v2107 = vpop.f32.mrb[0].mxu0
      %v2108 = vadd.f32 %v1895, %v2107
      %v2109 = vpop.f32.mrb[0].mxu0
      %v2110 = vadd.f32 %v1897, %v2109
      %v2111 = vpop.f32.mrb[0].mxu0
      %v2112 = vadd.f32 %v1899, %v2111
      %v2113 = vpop.f32.mrb[0].mxu0
      %v2114 = vadd.f32 %v1901, %v2113
      %2115 = vmatprep.mubr.bf16.mxu0 %v918
      %2116 = vmatmul.mubr.bf16.gmra.mrb[0].mxu0 %v917
      %v2117 = vpop.f32.mrb[0].mxu0
      %v2118 = vadd.f32 %v1905, %v2117
      %v2119 = vpop.f32.mrb[0].mxu0
      %v2120 = vadd.f32 %v1907, %v2119
      %v2121 = vpop.f32.mrb[0].mxu0
      %v2122 = vadd.f32 %v1909, %v2121
      %v2123 = vpop.f32.mrb[0].mxu0
      %v2124 = vadd.f32 %v1911, %v2123
      %2125 = vmatprep.mubr.bf16.mxu0 %v924
      %2126 = vmatmul.mubr.bf16.gmra.mrb[0].mxu0 %v923
      %v2127 = vpop.f32.mrb[0].mxu0
      %v2128 = vadd.f32 %v1915, %v2127
      %v2129 = vpop.f32.mrb[0].mxu0
      %v2130 = vadd.f32 %v1917, %v2129
      %v2131 = vpop.f32.mrb[0].mxu0
      %v2132 = vadd.f32 %v1919, %v2131
      %v2133 = vpop.f32.mrb[0].mxu0
      %v2134 = vadd.f32 %v1921, %v2133
      %2135 = vmatprep.mubr.bf16.mxu0 %v930
      %2136 = vmatmul.mubr.bf16.gmra.mrb[0].mxu0 %v929
      %v2137 = vpop.f32.mrb[0].mxu0
      %v2138 = vadd.f32 %v1925, %v2137
      %v2139 = vpop.f32.mrb[0].mxu0
      %v2140 = vadd.f32 %v1927, %v2139
      %v2141 = vpop.f32.mrb[0].mxu0
      %v2142 = vadd.f32 %v1929, %v2141
      %v2143 = vpop.f32.mrb[0].mxu0
      %v2144 = vadd.f32 %v1931, %v2143
      %2145 = vmatprep.mubr.bf16.mxu0 %v936
      %2146 = vmatmul.mubr.bf16.gmra.mrb[0].mxu0 %v935
      %v2147 = vpop.f32.mrb[0].mxu0
      %v2148 = vadd.f32 %v1935, %v2147
      %v2149 = vpop.f32.mrb[0].mxu0
      %v2150 = vadd.f32 %v1937, %v2149
      %v2151 = vpop.f32.mrb[0].mxu0
      %v2152 = vadd.f32 %v1939, %v2151
      %v2153 = vpop.f32.mrb[0].mxu0
      %v2154 = vadd.f32 %v1941, %v2153
      %2155 = vmatprep.mubr.bf16.mxu0 %v942
      %2156 = vmatmul.mubr.bf16.gmra.mrb[0].mxu0 %v941
      %v2157 = vpop.f32.mrb[0].mxu0
      %v2158 = vadd.f32 %v1945, %v2157
      %v2159 = vpop.f32.mrb[0].mxu0
      %v2160 = vadd.f32 %v1947, %v2159
      %v2161 = vpop.f32.mrb[0].mxu0
      %v2162 = vadd.f32 %v1949, %v2161
      %v2163 = vpop.f32.mrb[0].mxu0
      %v2164 = vadd.f32 %v1951, %v2163
      %2165 = vmatprep.mubr.bf16.mxu0 %v948
      %2166 = vmatmul.mubr.bf16.gmra.mrb[0].mxu0 %v947
      %v2167 = vpop.f32.mrb[0].mxu0
      %v2168 = vadd.f32 %v1955, %v2167
      %v2169 = vpop.f32.mrb[0].mxu0
      %v2170 = vadd.f32 %v1957, %v2169
      %v2171 = vpop.f32.mrb[0].mxu0
      %v2172 = vadd.f32 %v1959, %v2171
      %v2173 = vpop.f32.mrb[0].mxu0
      %v2174 = vadd.f32 %v1961, %v2173
      %2175 = vdwg.mxu0
      %vm2176 = vcmp.ge.f32.partialorder %v1998, 0.0
      %vm2177 = vcmp.ge.f32.partialorder %v2000, 0.0
      %vm2178 = vcmp.ge.f32.partialorder %v2002, 0.0
      %vm2179 = vcmp.ge.f32.partialorder %v2004, 0.0
      %vm2180 = vcmp.ge.f32.partialorder %v2008, 0.0
      %vm2181 = vcmp.ge.f32.partialorder %v2010, 0.0
      %vm2182 = vcmp.ge.f32.partialorder %v2012, 0.0
      %vm2183 = vcmp.ge.f32.partialorder %v2014, 0.0
      %vm2184 = vcmp.ge.f32.partialorder %v2018, 0.0
      %vm2185 = vcmp.ge.f32.partialorder %v2020, 0.0
      %vm2186 = vcmp.ge.f32.partialorder %v2022, 0.0
      %vm2187 = vcmp.ge.f32.partialorder %v2024, 0.0
      %vm2188 = vcmp.ge.f32.partialorder %v2028, 0.0
      %vm2189 = vcmp.ge.f32.partialorder %v2030, 0.0
      %vm2190 = vcmp.ge.f32.partialorder %v2032, 0.0
      %vm2191 = vcmp.ge.f32.partialorder %v2034, 0.0
      %vm2192 = vcmp.ge.f32.partialorder %v2038, 0.0
      %vm2193 = vcmp.ge.f32.partialorder %v2040, 0.0
      %vm2194 = vcmp.ge.f32.partialorder %v2042, 0.0
      %vm2195 = vcmp.ge.f32.partialorder %v2044, 0.0
      %vm2196 = vcmp.ge.f32.partialorder %v2048, 0.0
      %vm2197 = vcmp.ge.f32.partialorder %v2050, 0.0
      %vm2198 = vcmp.ge.f32.partialorder %v2052, 0.0
      %vm2199 = vcmp.ge.f32.partialorder %v2054, 0.0
      %vm2200 = vcmp.ge.f32.partialorder %v2058, 0.0
      %vm2201 = vcmp.ge.f32.partialorder %v2060, 0.0
      %vm2202 = vcmp.ge.f32.partialorder %v2062, 0.0
      %vm2203 = vcmp.ge.f32.partialorder %v2064, 0.0
      %vm2204 = vcmp.ge.f32.partialorder %v2068, 0.0
      %vm2205 = vcmp.ge.f32.partialorder %v2070, 0.0
      %vm2206 = vcmp.ge.f32.partialorder %v2072, 0.0
      %vm2207 = vcmp.ge.f32.partialorder %v2074, 0.0
      %vm2208 = vcmp.ge.f32.partialorder %v2078, 0.0
      %vm2209 = vcmp.ge.f32.partialorder %v2080, 0.0
      %vm2210 = vcmp.ge.f32.partialorder %v2082, 0.0
      %vm2211 = vcmp.ge.f32.partialorder %v2084, 0.0
      %vm2212 = vcmp.ge.f32.partialorder %v2088, 0.0
      %vm2213 = vcmp.ge.f32.partialorder %v2090, 0.0
      %vm2214 = vcmp.ge.f32.partialorder %v2092, 0.0
      %vm2215 = vcmp.ge.f32.partialorder %v2094, 0.0
      %vm2216 = vcmp.ge.f32.partialorder %v2098, 0.0
      %vm2217 = vcmp.ge.f32.partialorder %v2100, 0.0
      %vm2218 = vcmp.ge.f32.partialorder %v2102, 0.0
      %vm2219 = vcmp.ge.f32.partialorder %v2104, 0.0
      %vm2220 = vcmp.ge.f32.partialorder %v2108, 0.0
      %vm2221 = vcmp.ge.f32.partialorder %v2110, 0.0
      %vm2222 = vcmp.ge.f32.partialorder %v2112, 0.0
      %vm2223 = vcmp.ge.f32.partialorder %v2114, 0.0
      %vm2224 = vcmp.ge.f32.partialorder %v2118, 0.0
      %vm2225 = vcmp.ge.f32.partialorder %v2120, 0.0
      %vm2226 = vcmp.ge.f32.partialorder %v2122, 0.0
      %vm2227 = vcmp.ge.f32.partialorder %v2124, 0.0
      %vm2228 = vcmp.ge.f32.partialorder %v2128, 0.0
      %vm2229 = vcmp.ge.f32.partialorder %v2130, 0.0
      %vm2230 = vcmp.ge.f32.partialorder %v2132, 0.0
      %vm2231 = vcmp.ge.f32.partialorder %v2134, 0.0
      %vm2232 = vcmp.ge.f32.partialorder %v2138, 0.0
      %vm2233 = vcmp.ge.f32.partialorder %v2140, 0.0
      %vm2234 = vcmp.ge.f32.partialorder %v2142, 0.0
      %vm2235 = vcmp.ge.f32.partialorder %v2144, 0.0
      %vm2236 = vcmp.ge.f32.partialorder %v2148, 0.0
      %vm2237 = vcmp.ge.f32.partialorder %v2150, 0.0
      %vm2238 = vcmp.ge.f32.partialorder %v2152, 0.0
      %vm2239 = vcmp.ge.f32.partialorder %v2154, 0.0
      %vm2240 = vcmp.ge.f32.partialorder %v2158, 0.0
      %vm2241 = vcmp.ge.f32.partialorder %v2160, 0.0
      %vm2242 = vcmp.ge.f32.partialorder %v2162, 0.0
      %vm2243 = vcmp.ge.f32.partialorder %v2164, 0.0
      %vm2244 = vcmp.ge.f32.partialorder %v2168, 0.0
      %vm2245 = vcmp.ge.f32.partialorder %v2170, 0.0
      %vm2246 = vcmp.ge.f32.partialorder %v2172, 0.0
      %vm2247 = vcmp.ge.f32.partialorder %v2174, 0.0
      %v2248 = vmul.f32 %v1998, 0.1
      %v2249 = vmul.f32 %v2000, 0.1
      %v2250 = vmul.f32 %v2002, 0.1
      %v2251 = vmul.f32 %v2004, 0.1
      %v2252 = vmul.f32 %v2008, 0.1
      %v2253 = vmul.f32 %v2010, 0.1
      %v2254 = vmul.f32 %v2012, 0.1
      %v2255 = vmul.f32 %v2014, 0.1
      %v2256 = vmul.f32 %v2018, 0.1
      %v2257 = vmul.f32 %v2020, 0.1
      %v2258 = vmul.f32 %v2022, 0.1
      %v2259 = vmul.f32 %v2024, 0.1
      %v2260 = vmul.f32 %v2028, 0.1
      %v2261 = vmul.f32 %v2030, 0.1
      %v2262 = vmul.f32 %v2032, 0.1
      %v2263 = vmul.f32 %v2034, 0.1
      %v2264 = vmul.f32 %v2038, 0.1
      %v2265 = vmul.f32 %v2040, 0.1
      %v2266 = vmul.f32 %v2042, 0.1
      %v2267 = vmul.f32 %v2044, 0.1
      %v2268 = vmul.f32 %v2048, 0.1
      %v2269 = vmul.f32 %v2050, 0.1
      %v2270 = vmul.f32 %v2052, 0.1
      %v2271 = vmul.f32 %v2054, 0.1
      %v2272 = vmul.f32 %v2058, 0.1
      %v2273 = vmul.f32 %v2060, 0.1
      %v2274 = vmul.f32 %v2062, 0.1
      %v2275 = vmul.f32 %v2064, 0.1
      %v2276 = vmul.f32 %v2068, 0.1
      %v2277 = vmul.f32 %v2070, 0.1
      %v2278 = vmul.f32 %v2072, 0.1
      %v2279 = vmul.f32 %v2074, 0.1
      %v2280 = vmul.f32 %v2078, 0.1
      %v2281 = vmul.f32 %v2080, 0.1
      %v2282 = vmul.f32 %v2082, 0.1
      %v2283 = vmul.f32 %v2084, 0.1
      %v2284 = vmul.f32 %v2088, 0.1
      %v2285 = vmul.f32 %v2090, 0.1
      %v2286 = vmul.f32 %v2092, 0.1
      %v2287 = vmul.f32 %v2094, 0.1
      %v2288 = vmul.f32 %v2098, 0.1
      %v2289 = vmul.f32 %v2100, 0.1
      %v2290 = vmul.f32 %v2102, 0.1
      %v2291 = vmul.f32 %v2104, 0.1
      %v2292 = vmul.f32 %v2108, 0.1
      %v2293 = vmul.f32 %v2110, 0.1
      %v2294 = vmul.f32 %v2112, 0.1
      %v2295 = vmul.f32 %v2114, 0.1
      %v2296 = vmul.f32 %v2118, 0.1
      %v2297 = vmul.f32 %v2120, 0.1
      %v2298 = vmul.f32 %v2122, 0.1
      %v2299 = vmul.f32 %v2124, 0.1
      %v2300 = vmul.f32 %v2128, 0.1
      %v2301 = vmul.f32 %v2130, 0.1
      %v2302 = vmul.f32 %v2132, 0.1
      %v2303 = vmul.f32 %v2134, 0.1
      %v2304 = vmul.f32 %v2138, 0.1
      %v2305 = vmul.f32 %v2140, 0.1
      %v2306 = vmul.f32 %v2142, 0.1
      %v2307 = vmul.f32 %v2144, 0.1
      %v2308 = vmul.f32 %v2148, 0.1
      %v2309 = vmul.f32 %v2150, 0.1
      %v2310 = vmul.f32 %v2152, 0.1
      %v2311 = vmul.f32 %v2154, 0.1
      %v2312 = vmul.f32 %v2158, 0.1
      %v2313 = vmul.f32 %v2160, 0.1
      %v2314 = vmul.f32 %v2162, 0.1
      %v2315 = vmul.f32 %v2164, 0.1
      %v2316 = vmul.f32 %v2168, 0.1
      %v2317 = vmul.f32 %v2170, 0.1
      %v2318 = vmul.f32 %v2172, 0.1
      %v2319 = vmul.f32 %v2174, 0.1
      %v2320 = vsel %vm2176, %v1998, %v2248
      %v2321 = vsel %vm2177, %v2000, %v2249
      %v2322 = vsel %vm2178, %v2002, %v2250
      %v2323 = vsel %vm2179, %v2004, %v2251
      %v2324 = vsel %vm2180, %v2008, %v2252
      %v2325 = vsel %vm2181, %v2010, %v2253
      %v2326 = vsel %vm2182, %v2012, %v2254
      %v2327 = vsel %vm2183, %v2014, %v2255
      %v2328 = vsel %vm2184, %v2018, %v2256
      %v2329 = vsel %vm2185, %v2020, %v2257
      %v2330 = vsel %vm2186, %v2022, %v2258
      %v2331 = vsel %vm2187, %v2024, %v2259
      %v2332 = vsel %vm2188, %v2028, %v2260
      %v2333 = vsel %vm2189, %v2030, %v2261
      %v2334 = vsel %vm2190, %v2032, %v2262
      %v2335 = vsel %vm2191, %v2034, %v2263
      %v2336 = vsel %vm2192, %v2038, %v2264
      %v2337 = vsel %vm2193, %v2040, %v2265
      %v2338 = vsel %vm2194, %v2042, %v2266
      %v2339 = vsel %vm2195, %v2044, %v2267
      %v2340 = vsel %vm2196, %v2048, %v2268
      %v2341 = vsel %vm2197, %v2050, %v2269
      %v2342 = vsel %vm2198, %v2052, %v2270
      %v2343 = vsel %vm2199, %v2054, %v2271
      %v2344 = vsel %vm2200, %v2058, %v2272
      %v2345 = vsel %vm2201, %v2060, %v2273
      %v2346 = vsel %vm2202, %v2062, %v2274
      %v2347 = vsel %vm2203, %v2064, %v2275
      %v2348 = vsel %vm2204, %v2068, %v2276
      %v2349 = vsel %vm2205, %v2070, %v2277
      %v2350 = vsel %vm2206, %v2072, %v2278
      %v2351 = vsel %vm2207, %v2074, %v2279
      %v2352 = vsel %vm2208, %v2078, %v2280
      %v2353 = vsel %vm2209, %v2080, %v2281
      %v2354 = vsel %vm2210, %v2082, %v2282
      %v2355 = vsel %vm2211, %v2084, %v2283
      %v2356 = vsel %vm2212, %v2088, %v2284
      %v2357 = vsel %vm2213, %v2090, %v2285
      %v2358 = vsel %vm2214, %v2092, %v2286
      %v2359 = vsel %vm2215, %v2094, %v2287
      %v2360 = vsel %vm2216, %v2098, %v2288
      %v2361 = vsel %vm2217, %v2100, %v2289
      %v2362 = vsel %vm2218, %v2102, %v2290
      %v2363 = vsel %vm2219, %v2104, %v2291
      %v2364 = vsel %vm2220, %v2108, %v2292
      %v2365 = vsel %vm2221, %v2110, %v2293
      %v2366 = vsel %vm2222, %v2112, %v2294
      %v2367 = vsel %vm2223, %v2114, %v2295
      %v2368 = vsel %vm2224, %v2118, %v2296
      %v2369 = vsel %vm2225, %v2120, %v2297
      %v2370 = vsel %vm2226, %v2122, %v2298
      %v2371 = vsel %vm2227, %v2124, %v2299
      %v2372 = vsel %vm2228, %v2128, %v2300
      %v2373 = vsel %vm2229, %v2130, %v2301
      %v2374 = vsel %vm2230, %v2132, %v2302
      %v2375 = vsel %vm2231, %v2134, %v2303
      %v2376 = vsel %vm2232, %v2138, %v2304
      %v2377 = vsel %vm2233, %v2140, %v2305
      %v2378 = vsel %vm2234, %v2142, %v2306
      %v2379 = vsel %vm2235, %v2144, %v2307
      %v2380 = vsel %vm2236, %v2148, %v2308
      %v2381 = vsel %vm2237, %v2150, %v2309
      %v2382 = vsel %vm2238, %v2152, %v2310
      %v2383 = vsel %vm2239, %v2154, %v2311
      %v2384 = vsel %vm2240, %v2158, %v2312
      %v2385 = vsel %vm2241, %v2160, %v2313
      %v2386 = vsel %vm2242, %v2162, %v2314
      %v2387 = vsel %vm2243, %v2164, %v2315
      %v2388 = vsel %vm2244, %v2168, %v2316
      %v2389 = vsel %vm2245, %v2170, %v2317
      %v2390 = vsel %vm2246, %v2172, %v2318
      %v2391 = vsel %vm2247, %v2174, %v2319
      %v2392 = vpack.c.bf16 %v2322, %v2320
      %v2393 = vpack.c.bf16 %v2323, %v2321
      %v2394 = vpack.c.bf16 %v2326, %v2324
      %v2395 = vpack.c.bf16 %v2327, %v2325
      %v2396 = vpack.c.bf16 %v2330, %v2328
      %v2397 = vpack.c.bf16 %v2331, %v2329
      %v2398 = vpack.c.bf16 %v2334, %v2332
      %v2399 = vpack.c.bf16 %v2335, %v2333
      %v2400 = vpack.c.bf16 %v2338, %v2336
      %v2401 = vpack.c.bf16 %v2339, %v2337
      %v2402 = vpack.c.bf16 %v2342, %v2340
      %v2403 = vpack.c.bf16 %v2343, %v2341
      %v2404 = vpack.c.bf16 %v2346, %v2344
      %v2405 = vpack.c.bf16 %v2347, %v2345
      %v2406 = vpack.c.bf16 %v2350, %v2348
      %v2407 = vpack.c.bf16 %v2351, %v2349
      %v2408 = vpack.c.bf16 %v2354, %v2352
      %v2409 = vpack.c.bf16 %v2355, %v2353
      %v2410 = vpack.c.bf16 %v2358, %v2356
      %v2411 = vpack.c.bf16 %v2359, %v2357
      %v2412 = vpack.c.bf16 %v2362, %v2360
      %v2413 = vpack.c.bf16 %v2363, %v2361
      %v2414 = vpack.c.bf16 %v2366, %v2364
      %v2415 = vpack.c.bf16 %v2367, %v2365
      %v2416 = vpack.c.bf16 %v2370, %v2368
      %v2417 = vpack.c.bf16 %v2371, %v2369
      %v2418 = vpack.c.bf16 %v2374, %v2372
      %v2419 = vpack.c.bf16 %v2375, %v2373
      %v2420 = vpack.c.bf16 %v2378, %v2376
      %v2421 = vpack.c.bf16 %v2379, %v2377
      %v2422 = vpack.c.bf16 %v2382, %v2380
      %v2423 = vpack.c.bf16 %v2383, %v2381
      %v2424 = vpack.c.bf16 %v2386, %v2384
      %v2425 = vpack.c.bf16 %v2387, %v2385
      %v2426 = vpack.c.bf16 %v2390, %v2388
      %v2427 = vpack.c.bf16 %v2391, %v2389
      %v2428 = vld [vmem:[%s2] sm:$0xff]
      %v2429 = vld [vmem:[%s2 + $0x8] sm:$0xf]
      %v2430 = vld [vmem:[%s2 + $0xc] sm:$0xff]
      %v2431 = vld [vmem:[%s2 + $0x14] sm:$0xf]
      %v2432 = vld [vmem:[%s2 + $0x18] sm:$0xff]
      %v2433 = vld [vmem:[%s2 + $0x20] sm:$0xf]
      %v2434 = vld [vmem:[%s2 + $0x24] sm:$0xff]
      %v2435 = vld [vmem:[%s2 + $0x2c] sm:$0xf]
      %v2436 = vld [vmem:[%s2 + $0x30] sm:$0xff]
      %v2437 = vld [vmem:[%s2 + $0x38] sm:$0xf]
      %v2438 = vld [vmem:[%s2 + $0x3c] sm:$0xff]
      %v2439 = vld [vmem:[%s2 + $0x44] sm:$0xf]
      %v2440 = vld [vmem:[%s2 + $0x48] sm:$0xff]
      %v2441 = vld [vmem:[%s2 + $0x50] sm:$0xf]
      %v2442 = vld [vmem:[%s2 + $0x54] sm:$0xff]
      %v2443 = vld [vmem:[%s2 + $0x5c] sm:$0xf]
      %v2444 = vld [vmem:[%s2 + $0x60] sm:$0xff]
      %v2445 = vld [vmem:[%s2 + $0x68] sm:$0xf]
      %v2446 = vld [vmem:[%s2 + $0x6c] sm:$0xff]
      %v2447 = vld [vmem:[%s2 + $0x74] sm:$0xf]
      %v2448 = vld [vmem:[%s2 + $0x78] sm:$0xff]
      %v2449 = vld [vmem:[%s2 + $0x80] sm:$0xf]
      %v2450 = vld [vmem:[%s2 + $0x84] sm:$0xff]
      %v2451 = vld [vmem:[%s2 + $0x8c] sm:$0xf]
      %v2452 = vld [vmem:[%s2 + $0x90] sm:$0xff]
      %v2453 = vld [vmem:[%s2 + $0x98] sm:$0xf]
      %v2454 = vld [vmem:[%s2 + $0x9c] sm:$0xff]
      %v2455 = vld [vmem:[%s2 + $0xa4] sm:$0xf]
      %v2456 = vld [vmem:[%s2 + $0xa8] sm:$0xff]
      %v2457 = vld [vmem:[%s2 + $0xb0] sm:$0xf]
      %v2458 = vld [vmem:[%s2 + $0xb4] sm:$0xff]
      %v2459 = vld [vmem:[%s2 + $0xbc] sm:$0xf]
      %v2460 = vld [vmem:[%s2 + $0xc0] sm:$0xff]
      %v2461 = vld [vmem:[%s2 + $0xc8] sm:$0xf]
      %v2462 = vld [vmem:[%s2 + $0xcc] sm:$0xff]
      %v2463 = vld [vmem:[%s2 + $0xd4] sm:$0xf]
      %v2464 = vld [vmem:[%s2 + $0xd8] sm:$0xff]
      %v2465 = vld [vmem:[%s2 + $0xe0] sm:$0xf]
      %v2466 = vld [vmem:[%s2 + $0xe4] sm:$0xff]
      %v2467 = vld [vmem:[%s2 + $0xec] sm:$0xf]
      %v2468 = vld [vmem:[%s2 + $0xf0] sm:$0xff]
      %v2469 = vld [vmem:[%s2 + $0xf8] sm:$0xf]
      %v2470 = vld [vmem:[%s2 + $0xfc] sm:$0xff]
      %v2471 = vld [vmem:[%s2 + $0x104] sm:$0xf]
      %v2472 = vld [vmem:[%s2 + $0x108] sm:$0xff]
      %v2473 = vld [vmem:[%s2 + $0x110] sm:$0xf]
      %v2474 = vld [vmem:[%s2 + $0x114] sm:$0xff]
      %v2475 = vld [vmem:[%s2 + $0x11c] sm:$0xf]
      %v2476 = vld [vmem:[%s2 + $0x120] sm:$0xff]
      %v2477 = vld [vmem:[%s2 + $0x128] sm:$0xf]
      %v2478 = vld [vmem:[%s2 + $0x12c] sm:$0xff]
      %v2479 = vld [vmem:[%s2 + $0x134] sm:$0xf]
      %v2480 = vld [vmem:[%s2 + $0x138] sm:$0xff]
      %v2481 = vld [vmem:[%s2 + $0x140] sm:$0xf]
      %v2482 = vld [vmem:[%s2 + $0x144] sm:$0xff]
      %v2483 = vld [vmem:[%s2 + $0x14c] sm:$0xf]
      %v2484 = vld [vmem:[%s2 + $0x150] sm:$0xff]
      %v2485 = vld [vmem:[%s2 + $0x158] sm:$0xf]
      %v2486 = vld [vmem:[%s2 + $0x15c] sm:$0xff]
      %v2487 = vld [vmem:[%s2 + $0x164] sm:$0xf]
      %v2488 = vld [vmem:[%s2 + $0x168] sm:$0xff]
      %v2489 = vld [vmem:[%s2 + $0x170] sm:$0xf]
      %v2490 = vld [vmem:[%s2 + $0x174] sm:$0xff]
      %v2491 = vld [vmem:[%s2 + $0x17c] sm:$0xf]
      %v2492 = vld [vmem:[%s2 + $0x180] sm:$0xff]
      %v2493 = vld [vmem:[%s2 + $0x188] sm:$0xf]
      %v2494 = vld [vmem:[%s2 + $0x18c] sm:$0xff]
      %v2495 = vld [vmem:[%s2 + $0x194] sm:$0xf]
      %v2496 = vld [vmem:[%s2 + $0x198] sm:$0xff]
      %v2497 = vld [vmem:[%s2 + $0x1a0] sm:$0xf]
      %v2498 = vld [vmem:[%s2 + $0x1a4] sm:$0xff]
      %v2499 = vld [vmem:[%s2 + $0x1ac] sm:$0xf]
      %v2500 = vld [vmem:[%s2 + $0x1b0] sm:$0xff]
      %v2501 = vld [vmem:[%s2 + $0x1b8] sm:$0xf]
      %v2502 = vld [vmem:[%s2 + $0x1bc] sm:$0xff]
      %v2503 = vld [vmem:[%s2 + $0x1c4] sm:$0xf]
      %v2504 = vld [vmem:[%s2 + $0x1c8] sm:$0xff]
      %v2505 = vld [vmem:[%s2 + $0x1d0] sm:$0xf]
      %v2506 = vld [vmem:[%s2 + $0x1d4] sm:$0xff]
      %v2507 = vld [vmem:[%s2 + $0x1dc] sm:$0xf]
      %v2508 = vld [vmem:[%s2 + $0x1e0] sm:$0xff]
      %v2509 = vld [vmem:[%s2 + $0x1e8] sm:$0xf]
      %v2510 = vld [vmem:[%s2 + $0x1ec] sm:$0xff]
      %v2511 = vld [vmem:[%s2 + $0x1f4] sm:$0xf]
      %v2512 = vld [vmem:[%s2 + $0x1f8] sm:$0xff]
      %v2513 = vld [vmem:[%s2 + $0x200] sm:$0xf]
      %v2514 = vld [vmem:[%s2 + $0x204] sm:$0xff]
      %v2515 = vld [vmem:[%s2 + $0x20c] sm:$0xf]
      %v2516 = vld [vmem:[%s2 + $0x210] sm:$0xff]
      %v2517 = vld [vmem:[%s2 + $0x218] sm:$0xf]
      %v2518 = vld [vmem:[%s2 + $0x21c] sm:$0xff]
      %v2519 = vld [vmem:[%s2 + $0x224] sm:$0xf]
      %v2520 = vld [vmem:[%s2 + $0x228] sm:$0xff]
      %v2521 = vld [vmem:[%s2 + $0x230] sm:$0xf]
      %v2522 = vld [vmem:[%s2 + $0x234] sm:$0xff]
      %v2523 = vld [vmem:[%s2 + $0x23c] sm:$0xf]
      %v2524 = vld [vmem:[%s2 + $0x240] sm:$0xff]
      %v2525 = vld [vmem:[%s2 + $0x248] sm:$0xf]
      %v2526 = vld [vmem:[%s2 + $0x24c] sm:$0xff]
      %v2527 = vld [vmem:[%s2 + $0x254] sm:$0xf]
      %v2528 = vld [vmem:[%s2 + $0x258] sm:$0xff]
      %v2529 = vld [vmem:[%s2 + $0x260] sm:$0xf]
      %v2530 = vld [vmem:[%s2 + $0x264] sm:$0xff]
      %v2531 = vld [vmem:[%s2 + $0x26c] sm:$0xf]
      %v2532 = vld [vmem:[%s2 + $0x270] sm:$0xff]
      %v2533 = vld [vmem:[%s2 + $0x278] sm:$0xf]
      %v2534 = vld [vmem:[%s2 + $0x27c] sm:$0xff]
      %v2535 = vld [vmem:[%s2 + $0x284] sm:$0xf]
      %v2536 = vld [vmem:[%s2 + $0x288] sm:$0xff]
      %v2537 = vld [vmem:[%s2 + $0x290] sm:$0xf]
      %v2538 = vld [vmem:[%s2 + $0x294] sm:$0xff]
      %v2539 = vld [vmem:[%s2 + $0x29c] sm:$0xf]
      %v2540 = vld [vmem:[%s2 + $0x2a0] sm:$0xff]
      %v2541 = vld [vmem:[%s2 + $0x2a8] sm:$0xf]
      %v2542 = vld [vmem:[%s2 + $0x2ac] sm:$0xff]
      %v2543 = vld [vmem:[%s2 + $0x2b4] sm:$0xf]
      %v2544 = vld [vmem:[%s2 + $0x2b8] sm:$0xff]
      %v2545 = vld [vmem:[%s2 + $0x2c0] sm:$0xf]
      %v2546 = vld [vmem:[%s2 + $0x2c4] sm:$0xff]
      %v2547 = vld [vmem:[%s2 + $0x2cc] sm:$0xf]
      %v2548 = vld [vmem:[%s2 + $0x2d0] sm:$0xff]
      %v2549 = vld [vmem:[%s2 + $0x2d8] sm:$0xf]
      %v2550 = vld [vmem:[%s2 + $0x2dc] sm:$0xff]
      %v2551 = vld [vmem:[%s2 + $0x2e4] sm:$0xf]
      %v2552 = vld [vmem:[%s2 + $0x2e8] sm:$0xff]
      %v2553 = vld [vmem:[%s2 + $0x2f0] sm:$0xf]
      %v2554 = vld [vmem:[%s2 + $0x2f4] sm:$0xff]
      %v2555 = vld [vmem:[%s2 + $0x2fc] sm:$0xf]
      %v2556 = vld [vmem:[%s2 + $0x300] sm:$0xff]
      %v2557 = vld [vmem:[%s2 + $0x308] sm:$0xf]
      %v2558 = vld [vmem:[%s2 + $0x30c] sm:$0xff]
      %v2559 = vld [vmem:[%s2 + $0x314] sm:$0xf]
      %v2560 = vld [vmem:[%s2 + $0x318] sm:$0xff]
      %v2561 = vld [vmem:[%s2 + $0x320] sm:$0xf]
      %v2562 = vld [vmem:[%s2 + $0x324] sm:$0xff]
      %v2563 = vld [vmem:[%s2 + $0x32c] sm:$0xf]
      %v2564 = vld [vmem:[%s2 + $0x330] sm:$0xff]
      %v2565 = vld [vmem:[%s2 + $0x338] sm:$0xf]
      %v2566 = vld [vmem:[%s2 + $0x33c] sm:$0xff]
      %v2567 = vld [vmem:[%s2 + $0x344] sm:$0xf]
      %v2568 = vld [vmem:[%s2 + $0x348] sm:$0xff]
      %v2569 = vld [vmem:[%s2 + $0x350] sm:$0xf]
      %v2570 = vld [vmem:[%s2 + $0x354] sm:$0xff]
      %v2571 = vld [vmem:[%s2 + $0x35c] sm:$0xf]
      %v2572 = vld [vmem:[%s2 + $0x360] sm:$0xff]
      %v2573 = vld [vmem:[%s2 + $0x368] sm:$0xf]
      %v2574 = vld [vmem:[%s2 + $0x36c] sm:$0xff]
      %v2575 = vld [vmem:[%s2 + $0x374] sm:$0xf]
      %v2576 = vld [vmem:[%s2 + $0x378] sm:$0xff]
      %v2577 = vld [vmem:[%s2 + $0x380] sm:$0xf]
      %v2578 = vld [vmem:[%s2 + $0x384] sm:$0xff]
      %v2579 = vld [vmem:[%s2 + $0x38c] sm:$0xf]
      %v2580 = vld [vmem:[%s2 + $0x390] sm:$0xff]
      %v2581 = vld [vmem:[%s2 + $0x398] sm:$0xf]
      %v2582 = vld [vmem:[%s2 + $0x39c] sm:$0xff]
      %v2583 = vld [vmem:[%s2 + $0x3a4] sm:$0xf]
      %v2584 = vld [vmem:[%s2 + $0x3a8] sm:$0xff]
      %v2585 = vld [vmem:[%s2 + $0x3b0] sm:$0xf]
      %v2586 = vld [vmem:[%s2 + $0x3b4] sm:$0xff]
      %v2587 = vld [vmem:[%s2 + $0x3bc] sm:$0xf]
      %v2588 = vld [vmem:[%s2 + $0x3c0] sm:$0xff]
      %v2589 = vld [vmem:[%s2 + $0x3c8] sm:$0xf]
      %v2590 = vld [vmem:[%s2 + $0x3cc] sm:$0xff]
      %v2591 = vld [vmem:[%s2 + $0x3d4] sm:$0xf]
      %v2592 = vld [vmem:[%s2 + $0x3d8] sm:$0xff]
      %v2593 = vld [vmem:[%s2 + $0x3e0] sm:$0xf]
      %v2594 = vld [vmem:[%s2 + $0x3e4] sm:$0xff]
      %v2595 = vld [vmem:[%s2 + $0x3ec] sm:$0xf]
      %v2596 = vld [vmem:[%s2 + $0x3f0] sm:$0xff]
      %v2597 = vld [vmem:[%s2 + $0x3f8] sm:$0xf]
      %v2598 = vld [vmem:[%s2 + $0x3fc] sm:$0xff]
      %v2599 = vld [vmem:[%s2 + $0x404] sm:$0xf]
      %v2600 = vld [vmem:[%s2 + $0x408] sm:$0xff]
      %v2601 = vld [vmem:[%s2 + $0x410] sm:$0xf]
      %v2602 = vld [vmem:[%s2 + $0x414] sm:$0xff]
      %v2603 = vld [vmem:[%s2 + $0x41c] sm:$0xf]
      %v2604 = vld [vmem:[%s2 + $0x420] sm:$0xff]
      %v2605 = vld [vmem:[%s2 + $0x428] sm:$0xf]
      %v2606 = vld [vmem:[%s2 + $0x42c] sm:$0xff]
      %v2607 = vld [vmem:[%s2 + $0x434] sm:$0xf]
      %v2608 = vld [vmem:[%s2 + $0x438] sm:$0xff]
      %v2609 = vld [vmem:[%s2 + $0x440] sm:$0xf]
      %v2610 = vld [vmem:[%s2 + $0x444] sm:$0xff]
      %v2611 = vld [vmem:[%s2 + $0x44c] sm:$0xf]
      %v2612 = vld [vmem:[%s2 + $0x450] sm:$0xff]
      %v2613 = vld [vmem:[%s2 + $0x458] sm:$0xf]
      %v2614 = vld [vmem:[%s2 + $0x45c] sm:$0xff]
      %v2615 = vld [vmem:[%s2 + $0x464] sm:$0xf]
      %v2616 = vld [vmem:[%s2 + $0x468] sm:$0xff]
      %v2617 = vld [vmem:[%s2 + $0x470] sm:$0xf]
      %v2618 = vld [vmem:[%s2 + $0x474] sm:$0xff]
      %v2619 = vld [vmem:[%s2 + $0x47c] sm:$0xf]
      %v2620 = vld [vmem:[%s2 + $0x480] sm:$0xff]
      %v2621 = vld [vmem:[%s2 + $0x488] sm:$0xf]
      %v2622 = vld [vmem:[%s2 + $0x48c] sm:$0xff]
      %v2623 = vld [vmem:[%s2 + $0x494] sm:$0xf]
      %v2624 = vld [vmem:[%s2 + $0x498] sm:$0xff]
      %v2625 = vld [vmem:[%s2 + $0x4a0] sm:$0xf]
      %v2626 = vld [vmem:[%s2 + $0x4a4] sm:$0xff]
      %v2627 = vld [vmem:[%s2 + $0x4ac] sm:$0xf]
      %v2628 = vld [vmem:[%s2 + $0x4b0] sm:$0xff]
      %v2629 = vld [vmem:[%s2 + $0x4b8] sm:$0xf]
      %v2630 = vld [vmem:[%s2 + $0x4bc] sm:$0xff]
      %v2631 = vld [vmem:[%s2 + $0x4c4] sm:$0xf]
      %v2632 = vld [vmem:[%s2 + $0x4c8] sm:$0xff]
      %v2633 = vld [vmem:[%s2 + $0x4d0] sm:$0xf]
      %v2634 = vld [vmem:[%s2 + $0x4d4] sm:$0xff]
      %v2635 = vld [vmem:[%s2 + $0x4dc] sm:$0xf]
      %v2636 = vld [vmem:[%s2 + $0x4e0] sm:$0xff]
      %v2637 = vld [vmem:[%s2 + $0x4e8] sm:$0xf]
      %v2638 = vld [vmem:[%s2 + $0x4ec] sm:$0xff]
      %v2639 = vld [vmem:[%s2 + $0x4f4] sm:$0xf]
      %v2640 = vld [vmem:[%s2 + $0x4f8] sm:$0xff]
      %v2641 = vld [vmem:[%s2 + $0x500] sm:$0xf]
      %v2642 = vld [vmem:[%s2 + $0x504] sm:$0xff]
      %v2643 = vld [vmem:[%s2 + $0x50c] sm:$0xf]
      %v2644 = vld [vmem:[%s2 + $0x510] sm:$0xff]
      %v2645 = vld [vmem:[%s2 + $0x518] sm:$0xf]
      %v2646 = vld [vmem:[%s2 + $0x51c] sm:$0xff]
      %v2647 = vld [vmem:[%s2 + $0x524] sm:$0xf]
      %v2648 = vld [vmem:[%s2 + $0x528] sm:$0xff]
      %v2649 = vld [vmem:[%s2 + $0x530] sm:$0xf]
      %v2650 = vld [vmem:[%s2 + $0x534] sm:$0xff]
      %v2651 = vld [vmem:[%s2 + $0x53c] sm:$0xf]
      %v2652 = vld [vmem:[%s2 + $0x540] sm:$0xff]
      %v2653 = vld [vmem:[%s2 + $0x548] sm:$0xf]
      %v2654 = vld [vmem:[%s2 + $0x54c] sm:$0xff]
      %v2655 = vld [vmem:[%s2 + $0x554] sm:$0xf]
      %v2656 = vld [vmem:[%s2 + $0x558] sm:$0xff]
      %v2657 = vld [vmem:[%s2 + $0x560] sm:$0xf]
      %v2658 = vld [vmem:[%s2 + $0x564] sm:$0xff]
      %v2659 = vld [vmem:[%s2 + $0x56c] sm:$0xf]
      %v2660 = vld [vmem:[%s2 + $0x570] sm:$0xff]
      %v2661 = vld [vmem:[%s2 + $0x578] sm:$0xf]
      %v2662 = vld [vmem:[%s2 + $0x57c] sm:$0xff]
      %v2663 = vld [vmem:[%s2 + $0x584] sm:$0xf]
      %v2664 = vld [vmem:[%s2 + $0x588] sm:$0xff]
      %v2665 = vld [vmem:[%s2 + $0x590] sm:$0xf]
      %v2666 = vld [vmem:[%s2 + $0x594] sm:$0xff]
      %v2667 = vld [vmem:[%s2 + $0x59c] sm:$0xf]
      %v2668 = vld [vmem:[%s2 + $0x5a0] sm:$0xff]
      %v2669 = vld [vmem:[%s2 + $0x5a8] sm:$0xf]
      %v2670 = vld [vmem:[%s2 + $0x5ac] sm:$0xff]
      %v2671 = vld [vmem:[%s2 + $0x5b4] sm:$0xf]
      %v2672 = vld [vmem:[%s2 + $0x5b8] sm:$0xff]
      %v2673 = vld [vmem:[%s2 + $0x5c0] sm:$0xf]
      %v2674 = vld [vmem:[%s2 + $0x5c4] sm:$0xff]
      %v2675 = vld [vmem:[%s2 + $0x5cc] sm:$0xf]
      %v2676 = vld [vmem:[%s2 + $0x5d0] sm:$0xff]
      %v2677 = vld [vmem:[%s2 + $0x5d8] sm:$0xf]
      %v2678 = vld [vmem:[%s2 + $0x5dc] sm:$0xff]
      %v2679 = vld [vmem:[%s2 + $0x5e4] sm:$0xf]
      %v2680 = vld [vmem:[%s2 + $0x5e8] sm:$0xff]
      %v2681 = vld [vmem:[%s2 + $0x5f0] sm:$0xf]
      %v2682 = vld [vmem:[%s2 + $0x5f4] sm:$0xff]
      %v2683 = vld [vmem:[%s2 + $0x5fc] sm:$0xf]
      %v2684 = vld [vmem:[%s2 + $0x600] sm:$0xff]
      %v2685 = vld [vmem:[%s2 + $0x608] sm:$0xf]
      %v2686 = vld [vmem:[%s2 + $0x60c] sm:$0xff]
      %v2687 = vld [vmem:[%s2 + $0x614] sm:$0xf]
      %v2688 = vld [vmem:[%s2 + $0x618] sm:$0xff]
      %v2689 = vld [vmem:[%s2 + $0x620] sm:$0xf]
      %v2690 = vld [vmem:[%s2 + $0x624] sm:$0xff]
      %v2691 = vld [vmem:[%s2 + $0x62c] sm:$0xf]
      %v2692 = vld [vmem:[%s2 + $0x630] sm:$0xff]
      %v2693 = vld [vmem:[%s2 + $0x638] sm:$0xf]
      %v2694 = vld [vmem:[%s2 + $0x63c] sm:$0xff]
      %v2695 = vld [vmem:[%s2 + $0x644] sm:$0xf]
      %v2696 = vld [vmem:[%s2 + $0x648] sm:$0xff]
      %v2697 = vld [vmem:[%s2 + $0x650] sm:$0xf]
      %v2698 = vld [vmem:[%s2 + $0x654] sm:$0xff]
      %v2699 = vld [vmem:[%s2 + $0x65c] sm:$0xf]
      %v2700 = vld [vmem:[%s2 + $0x660] sm:$0xff]
      %v2701 = vld [vmem:[%s2 + $0x668] sm:$0xf]
      %v2702 = vld [vmem:[%s2 + $0x66c] sm:$0xff]
      %v2703 = vld [vmem:[%s2 + $0x674] sm:$0xf]
      %v2704 = vld [vmem:[%s2 + $0x678] sm:$0xff]
      %v2705 = vld [vmem:[%s2 + $0x680] sm:$0xf]
      %v2706 = vld [vmem:[%s2 + $0x684] sm:$0xff]
      %v2707 = vld [vmem:[%s2 + $0x68c] sm:$0xf]
      %v2708 = vld [vmem:[%s2 + $0x690] sm:$0xff]
      %v2709 = vld [vmem:[%s2 + $0x698] sm:$0xf]
      %v2710 = vld [vmem:[%s2 + $0x69c] sm:$0xff]
      %v2711 = vld [vmem:[%s2 + $0x6a4] sm:$0xf]
      %v2712 = vld [vmem:[%s2 + $0x6a8] sm:$0xff]
      %v2713 = vld [vmem:[%s2 + $0x6b0] sm:$0xf]
      %v2714 = vld [vmem:[%s2 + $0x6b4] sm:$0xff]
      %v2715 = vld [vmem:[%s2 + $0x6bc] sm:$0xf]
      %v3004 = vunpack.c.l.b16 %v2428
      %v3005 = vunpack.c.h.b16 %v2428
      %v3006 = vunpack.c.l.b16 %v2429
      %v3007 = vunpack.c.l.b16 %v2430
      %v3008 = vunpack.c.h.b16 %v2430
      %v3009 = vunpack.c.l.b16 %v2431
      %v3010 = vunpack.c.l.b16 %v2432
      %v3011 = vunpack.c.h.b16 %v2432
      %v3012 = vunpack.c.l.b16 %v2433
      %v3013 = vunpack.c.l.b16 %v2434
      %v3014 = vunpack.c.h.b16 %v2434
      %v3015 = vunpack.c.l.b16 %v2435
      %v3016 = vunpack.c.l.b16 %v2436
      %v3017 = vunpack.c.h.b16 %v2436
      %v3018 = vunpack.c.l.b16 %v2437
      %v3019 = vunpack.c.l.b16 %v2438
      %v3020 = vunpack.c.h.b16 %v2438
      %v3021 = vunpack.c.l.b16 %v2439
      %v3022 = vunpack.c.l.b16 %v2440
      %v3023 = vunpack.c.h.b16 %v2440
      %v3024 = vunpack.c.l.b16 %v2441
      %v3025 = vunpack.c.l.b16 %v2442
      %v3026 = vunpack.c.h.b16 %v2442
      %v3027 = vunpack.c.l.b16 %v2443
      %v3028 = vunpack.c.l.b16 %v2444
      %v3029 = vunpack.c.h.b16 %v2444
      %v3030 = vunpack.c.l.b16 %v2445
      %v3031 = vunpack.c.l.b16 %v2446
      %v3032 = vunpack.c.h.b16 %v2446
      %v3033 = vunpack.c.l.b16 %v2447
      %v3034 = vunpack.c.l.b16 %v2448
      %v3035 = vunpack.c.h.b16 %v2448
      %v3036 = vunpack.c.l.b16 %v2449
      %v3037 = vunpack.c.l.b16 %v2450
      %v3038 = vunpack.c.h.b16 %v2450
      %v3039 = vunpack.c.l.b16 %v2451
      %v3040 = vunpack.c.l.b16 %v2452
      %v3041 = vunpack.c.h.b16 %v2452
      %v3042 = vunpack.c.l.b16 %v2453
      %v3043 = vunpack.c.l.b16 %v2454
      %v3044 = vunpack.c.h.b16 %v2454
      %v3045 = vunpack.c.l.b16 %v2455
      %v3046 = vunpack.c.l.b16 %v2456
      %v3047 = vunpack.c.h.b16 %v2456
      %v3048 = vunpack.c.l.b16 %v2457
      %v3049 = vunpack.c.l.b16 %v2458
      %v3050 = vunpack.c.h.b16 %v2458
      %v3051 = vunpack.c.l.b16 %v2459
      %v3052 = vunpack.c.l.b16 %v2460
      %v3053 = vunpack.c.h.b16 %v2460
      %v3054 = vunpack.c.l.b16 %v2461
      %v3055 = vunpack.c.l.b16 %v2462
      %v3056 = vunpack.c.h.b16 %v2462
      %v3057 = vunpack.c.l.b16 %v2463
      %v3058 = vunpack.c.l.b16 %v2464
      %v3059 = vunpack.c.h.b16 %v2464
      %v3060 = vunpack.c.l.b16 %v2465
      %v3061 = vunpack.c.l.b16 %v2466
      %v3062 = vunpack.c.h.b16 %v2466
      %v3063 = vunpack.c.l.b16 %v2467
      %v3064 = vunpack.c.l.b16 %v2468
      %v3065 = vunpack.c.h.b16 %v2468
      %v3066 = vunpack.c.l.b16 %v2469
      %v3067 = vunpack.c.l.b16 %v2470
      %v3068 = vunpack.c.h.b16 %v2470
      %v3069 = vunpack.c.l.b16 %v2471
      %v3070 = vunpack.c.l.b16 %v2472
      %v3071 = vunpack.c.h.b16 %v2472
      %v3072 = vunpack.c.l.b16 %v2473
      %v3073 = vunpack.c.l.b16 %v2474
      %v3074 = vunpack.c.h.b16 %v2474
      %v3075 = vunpack.c.l.b16 %v2475
      %v3076 = vunpack.c.l.b16 %v2476
      %v3077 = vunpack.c.h.b16 %v2476
      %v3078 = vunpack.c.l.b16 %v2477
      %v3079 = vunpack.c.l.b16 %v2478
      %v3080 = vunpack.c.h.b16 %v2478
      %v3081 = vunpack.c.l.b16 %v2479
      %v3082 = vunpack.c.l.b16 %v2480
      %v3083 = vunpack.c.h.b16 %v2480
      %v3084 = vunpack.c.l.b16 %v2481
      %v3085 = vunpack.c.l.b16 %v2482
      %v3086 = vunpack.c.h.b16 %v2482
      %v3087 = vunpack.c.l.b16 %v2483
      %v3088 = vunpack.c.l.b16 %v2484
      %v3089 = vunpack.c.h.b16 %v2484
      %v3090 = vunpack.c.l.b16 %v2485
      %v3091 = vunpack.c.l.b16 %v2486
      %v3092 = vunpack.c.h.b16 %v2486
      %v3093 = vunpack.c.l.b16 %v2487
      %v3094 = vunpack.c.l.b16 %v2488
      %v3095 = vunpack.c.h.b16 %v2488
      %v3096 = vunpack.c.l.b16 %v2489
      %v3097 = vunpack.c.l.b16 %v2490
      %v3098 = vunpack.c.h.b16 %v2490
      %v3099 = vunpack.c.l.b16 %v2491
      %v3100 = vunpack.c.l.b16 %v2492
      %v3101 = vunpack.c.h.b16 %v2492
      %v3102 = vunpack.c.l.b16 %v2493
      %v3103 = vunpack.c.l.b16 %v2494
      %v3104 = vunpack.c.h.b16 %v2494
      %v3105 = vunpack.c.l.b16 %v2495
      %v3106 = vunpack.c.l.b16 %v2496
      %v3107 = vunpack.c.h.b16 %v2496
      %v3108 = vunpack.c.l.b16 %v2497
      %v3109 = vunpack.c.l.b16 %v2498
      %v3110 = vunpack.c.h.b16 %v2498
      %v3111 = vunpack.c.l.b16 %v2499
      %v3112 = vunpack.c.l.b16 %v2500
      %v3113 = vunpack.c.h.b16 %v2500
      %v3114 = vunpack.c.l.b16 %v2501
      %v3115 = vunpack.c.l.b16 %v2502
      %v3116 = vunpack.c.h.b16 %v2502
      %v3117 = vunpack.c.l.b16 %v2503
      %v3118 = vunpack.c.l.b16 %v2504
      %v3119 = vunpack.c.h.b16 %v2504
      %v3120 = vunpack.c.l.b16 %v2505
      %v3121 = vunpack.c.l.b16 %v2506
      %v3122 = vunpack.c.h.b16 %v2506
      %v3123 = vunpack.c.l.b16 %v2507
      %v3124 = vunpack.c.l.b16 %v2508
      %v3125 = vunpack.c.h.b16 %v2508
      %v3126 = vunpack.c.l.b16 %v2509
      %v3127 = vunpack.c.l.b16 %v2510
      %v3128 = vunpack.c.h.b16 %v2510
      %v3129 = vunpack.c.l.b16 %v2511
      %v3130 = vunpack.c.l.b16 %v2512
      %v3131 = vunpack.c.h.b16 %v2512
      %v3132 = vunpack.c.l.b16 %v2513
      %v3133 = vunpack.c.l.b16 %v2514
      %v3134 = vunpack.c.h.b16 %v2514
      %v3135 = vunpack.c.l.b16 %v2515
      %v3136 = vunpack.c.l.b16 %v2516
      %v3137 = vunpack.c.h.b16 %v2516
      %v3138 = vunpack.c.l.b16 %v2517
      %v3139 = vunpack.c.l.b16 %v2518
      %v3140 = vunpack.c.h.b16 %v2518
      %v3141 = vunpack.c.l.b16 %v2519
      %v3142 = vunpack.c.l.b16 %v2520
      %v3143 = vunpack.c.h.b16 %v2520
      %v3144 = vunpack.c.l.b16 %v2521
      %v3145 = vunpack.c.l.b16 %v2522
      %v3146 = vunpack.c.h.b16 %v2522
      %v3147 = vunpack.c.l.b16 %v2523
      %v3148 = vunpack.c.l.b16 %v2524
      %v3149 = vunpack.c.h.b16 %v2524
      %v3150 = vunpack.c.l.b16 %v2525
      %v3151 = vunpack.c.l.b16 %v2526
      %v3152 = vunpack.c.h.b16 %v2526
      %v3153 = vunpack.c.l.b16 %v2527
      %v3154 = vunpack.c.l.b16 %v2528
      %v3155 = vunpack.c.h.b16 %v2528
      %v3156 = vunpack.c.l.b16 %v2529
      %v3157 = vunpack.c.l.b16 %v2530
      %v3158 = vunpack.c.h.b16 %v2530
      %v3159 = vunpack.c.l.b16 %v2531
      %v3160 = vunpack.c.l.b16 %v2532
      %v3161 = vunpack.c.h.b16 %v2532
      %v3162 = vunpack.c.l.b16 %v2533
      %v3163 = vunpack.c.l.b16 %v2534
      %v3164 = vunpack.c.h.b16 %v2534
      %v3165 = vunpack.c.l.b16 %v2535
      %v3166 = vunpack.c.l.b16 %v2536
      %v3167 = vunpack.c.h.b16 %v2536
      %v3168 = vunpack.c.l.b16 %v2537
      %v3169 = vunpack.c.l.b16 %v2538
      %v3170 = vunpack.c.h.b16 %v2538
      %v3171 = vunpack.c.l.b16 %v2539
      %v3172 = vunpack.c.l.b16 %v2540
      %v3173 = vunpack.c.h.b16 %v2540
      %v3174 = vunpack.c.l.b16 %v2541
      %v3175 = vunpack.c.l.b16 %v2542
      %v3176 = vunpack.c.h.b16 %v2542
      %v3177 = vunpack.c.l.b16 %v2543
      %v3178 = vunpack.c.l.b16 %v2544
      %v3179 = vunpack.c.h.b16 %v2544
      %v3180 = vunpack.c.l.b16 %v2545
      %v3181 = vunpack.c.l.b16 %v2546
      %v3182 = vunpack.c.h.b16 %v2546
      %v3183 = vunpack.c.l.b16 %v2547
      %v3184 = vunpack.c.l.b16 %v2548
      %v3185 = vunpack.c.h.b16 %v2548
      %v3186 = vunpack.c.l.b16 %v2549
      %v3187 = vunpack.c.l.b16 %v2550
      %v3188 = vunpack.c.h.b16 %v2550
      %v3189 = vunpack.c.l.b16 %v2551
      %v3190 = vunpack.c.l.b16 %v2552
      %v3191 = vunpack.c.h.b16 %v2552
      %v3192 = vunpack.c.l.b16 %v2553
      %v3193 = vunpack.c.l.b16 %v2554
      %v3194 = vunpack.c.h.b16 %v2554
      %v3195 = vunpack.c.l.b16 %v2555
      %v3196 = vunpack.c.l.b16 %v2556
      %v3197 = vunpack.c.h.b16 %v2556
      %v3198 = vunpack.c.l.b16 %v2557
      %v3199 = vunpack.c.l.b16 %v2558
      %v3200 = vunpack.c.h.b16 %v2558
      %v3201 = vunpack.c.l.b16 %v2559
      %v3202 = vunpack.c.l.b16 %v2560
      %v3203 = vunpack.c.h.b16 %v2560
      %v3204 = vunpack.c.l.b16 %v2561
      %v3205 = vunpack.c.l.b16 %v2562
      %v3206 = vunpack.c.h.b16 %v2562
      %v3207 = vunpack.c.l.b16 %v2563
      %v3208 = vunpack.c.l.b16 %v2564
      %v3209 = vunpack.c.h.b16 %v2564
      %v3210 = vunpack.c.l.b16 %v2565
      %v3211 = vunpack.c.l.b16 %v2566
      %v3212 = vunpack.c.h.b16 %v2566
      %v3213 = vunpack.c.l.b16 %v2567
      %v3214 = vunpack.c.l.b16 %v2568
      %v3215 = vunpack.c.h.b16 %v2568
      %v3216 = vunpack.c.l.b16 %v2569
      %v3217 = vunpack.c.l.b16 %v2570
      %v3218 = vunpack.c.h.b16 %v2570
      %v3219 = vunpack.c.l.b16 %v2571
      %v3220 = vunpack.c.l.b16 %v2572
      %v3221 = vunpack.c.h.b16 %v2572
      %v3222 = vunpack.c.l.b16 %v2573
      %v3223 = vunpack.c.l.b16 %v2574
      %v3224 = vunpack.c.h.b16 %v2574
      %v3225 = vunpack.c.l.b16 %v2575
      %v3226 = vunpack.c.l.b16 %v2576
      %v3227 = vunpack.c.h.b16 %v2576
      %v3228 = vunpack.c.l.b16 %v2577
      %v3229 = vunpack.c.l.b16 %v2578
      %v3230 = vunpack.c.h.b16 %v2578
      %v3231 = vunpack.c.l.b16 %v2579
      %v3232 = vunpack.c.l.b16 %v2580
      %v3233 = vunpack.c.h.b16 %v2580
      %v3234 = vunpack.c.l.b16 %v2581
      %v3235 = vunpack.c.l.b16 %v2582
      %v3236 = vunpack.c.h.b16 %v2582
      %v3237 = vunpack.c.l.b16 %v2583
      %v3238 = vunpack.c.l.b16 %v2584
      %v3239 = vunpack.c.h.b16 %v2584
      %v3240 = vunpack.c.l.b16 %v2585
      %v3241 = vunpack.c.l.b16 %v2586
      %v3242 = vunpack.c.h.b16 %v2586
      %v3243 = vunpack.c.l.b16 %v2587
      %v3244 = vunpack.c.l.b16 %v2588
      %v3245 = vunpack.c.h.b16 %v2588
      %v3246 = vunpack.c.l.b16 %v2589
      %v3247 = vunpack.c.l.b16 %v2590
      %v3248 = vunpack.c.h.b16 %v2590
      %v3249 = vunpack.c.l.b16 %v2591
      %v3250 = vunpack.c.l.b16 %v2592
      %v3251 = vunpack.c.h.b16 %v2592
      %v3252 = vunpack.c.l.b16 %v2593
      %v3253 = vunpack.c.l.b16 %v2594
      %v3254 = vunpack.c.h.b16 %v2594
      %v3255 = vunpack.c.l.b16 %v2595
      %v3256 = vunpack.c.l.b16 %v2596
      %v3257 = vunpack.c.h.b16 %v2596
      %v3258 = vunpack.c.l.b16 %v2597
      %v3259 = vunpack.c.l.b16 %v2598
      %v3260 = vunpack.c.h.b16 %v2598
      %v3261 = vunpack.c.l.b16 %v2599
      %v3262 = vunpack.c.l.b16 %v2600
      %v3263 = vunpack.c.h.b16 %v2600
      %v3264 = vunpack.c.l.b16 %v2601
      %v3265 = vunpack.c.l.b16 %v2602
      %v3266 = vunpack.c.h.b16 %v2602
      %v3267 = vunpack.c.l.b16 %v2603
      %v3268 = vunpack.c.l.b16 %v2604
      %v3269 = vunpack.c.h.b16 %v2604
      %v3270 = vunpack.c.l.b16 %v2605
      %v3271 = vunpack.c.l.b16 %v2606
      %v3272 = vunpack.c.h.b16 %v2606
      %v3273 = vunpack.c.l.b16 %v2607
      %v3274 = vunpack.c.l.b16 %v2608
      %v3275 = vunpack.c.h.b16 %v2608
      %v3276 = vunpack.c.l.b16 %v2609
      %v3277 = vunpack.c.l.b16 %v2610
      %v3278 = vunpack.c.h.b16 %v2610
      %v3279 = vunpack.c.l.b16 %v2611
      %v3280 = vunpack.c.l.b16 %v2612
      %v3281 = vunpack.c.h.b16 %v2612
      %v3282 = vunpack.c.l.b16 %v2613
      %v3283 = vunpack.c.l.b16 %v2614
      %v3284 = vunpack.c.h.b16 %v2614
      %v3285 = vunpack.c.l.b16 %v2615
      %v3286 = vunpack.c.l.b16 %v2616
      %v3287 = vunpack.c.h.b16 %v2616
      %v3288 = vunpack.c.l.b16 %v2617
      %v3289 = vunpack.c.l.b16 %v2618
      %v3290 = vunpack.c.h.b16 %v2618
      %v3291 = vunpack.c.l.b16 %v2619
      %v3292 = vunpack.c.l.b16 %v2620
      %v3293 = vunpack.c.h.b16 %v2620
      %v3294 = vunpack.c.l.b16 %v2621
      %v3295 = vunpack.c.l.b16 %v2622
      %v3296 = vunpack.c.h.b16 %v2622
      %v3297 = vunpack.c.l.b16 %v2623
      %v3298 = vunpack.c.l.b16 %v2624
      %v3299 = vunpack.c.h.b16 %v2624
      %v3300 = vunpack.c.l.b16 %v2625
      %v3301 = vunpack.c.l.b16 %v2626
      %v3302 = vunpack.c.h.b16 %v2626
      %v3303 = vunpack.c.l.b16 %v2627
      %v3304 = vunpack.c.l.b16 %v2628
      %v3305 = vunpack.c.h.b16 %v2628
      %v3306 = vunpack.c.l.b16 %v2629
      %v3307 = vunpack.c.l.b16 %v2630
      %v3308 = vunpack.c.h.b16 %v2630
      %v3309 = vunpack.c.l.b16 %v2631
      %v3310 = vunpack.c.l.b16 %v2632
      %v3311 = vunpack.c.h.b16 %v2632
      %v3312 = vunpack.c.l.b16 %v2633
      %v3313 = vunpack.c.l.b16 %v2634
      %v3314 = vunpack.c.h.b16 %v2634
      %v3315 = vunpack.c.l.b16 %v2635
      %v3316 = vunpack.c.l.b16 %v2636
      %v3317 = vunpack.c.h.b16 %v2636
      %v3318 = vunpack.c.l.b16 %v2637
      %v3319 = vunpack.c.l.b16 %v2638
      %v3320 = vunpack.c.h.b16 %v2638
      %v3321 = vunpack.c.l.b16 %v2639
      %v3322 = vunpack.c.l.b16 %v2640
      %v3323 = vunpack.c.h.b16 %v2640
      %v3324 = vunpack.c.l.b16 %v2641
      %v3325 = vunpack.c.l.b16 %v2642
      %v3326 = vunpack.c.h.b16 %v2642
      %v3327 = vunpack.c.l.b16 %v2643
      %v3328 = vunpack.c.l.b16 %v2644
      %v3329 = vunpack.c.h.b16 %v2644
      %v3330 = vunpack.c.l.b16 %v2645
      %v3331 = vunpack.c.l.b16 %v2646
      %v3332 = vunpack.c.h.b16 %v2646
      %v3333 = vunpack.c.l.b16 %v2647
      %v3334 = vunpack.c.l.b16 %v2648
      %v3335 = vunpack.c.h.b16 %v2648
      %v3336 = vunpack.c.l.b16 %v2649
      %v3337 = vunpack.c.l.b16 %v2650
      %v3338 = vunpack.c.h.b16 %v2650
      %v3339 = vunpack.c.l.b16 %v2651
      %v3340 = vunpack.c.l.b16 %v2652
      %v3341 = vunpack.c.h.b16 %v2652
      %v3342 = vunpack.c.l.b16 %v2653
      %v3343 = vunpack.c.l.b16 %v2654
      %v3344 = vunpack.c.h.b16 %v2654
      %v3345 = vunpack.c.l.b16 %v2655
      %v3346 = vunpack.c.l.b16 %v2656
      %v3347 = vunpack.c.h.b16 %v2656
      %v3348 = vunpack.c.l.b16 %v2657
      %v3349 = vunpack.c.l.b16 %v2658
      %v3350 = vunpack.c.h.b16 %v2658
      %v3351 = vunpack.c.l.b16 %v2659
      %v3352 = vunpack.c.l.b16 %v2660
      %v3353 = vunpack.c.h.b16 %v2660
      %v3354 = vunpack.c.l.b16 %v2661
      %v3355 = vunpack.c.l.b16 %v2662
      %v3356 = vunpack.c.h.b16 %v2662
      %v3357 = vunpack.c.l.b16 %v2663
      %v3358 = vunpack.c.l.b16 %v2664
      %v3359 = vunpack.c.h.b16 %v2664
      %v3360 = vunpack.c.l.b16 %v2665
      %v3361 = vunpack.c.l.b16 %v2666
      %v3362 = vunpack.c.h.b16 %v2666
      %v3363 = vunpack.c.l.b16 %v2667
      %v3364 = vunpack.c.l.b16 %v2668
      %v3365 = vunpack.c.h.b16 %v2668
      %v3366 = vunpack.c.l.b16 %v2669
      %v3367 = vunpack.c.l.b16 %v2670
      %v3368 = vunpack.c.h.b16 %v2670
      %v3369 = vunpack.c.l.b16 %v2671
      %v3370 = vunpack.c.l.b16 %v2672
      %v3371 = vunpack.c.h.b16 %v2672
      %v3372 = vunpack.c.l.b16 %v2673
      %v3373 = vunpack.c.l.b16 %v2674
      %v3374 = vunpack.c.h.b16 %v2674
      %v3375 = vunpack.c.l.b16 %v2675
      %v3376 = vunpack.c.l.b16 %v2676
      %v3377 = vunpack.c.h.b16 %v2676
      %v3378 = vunpack.c.l.b16 %v2677
      %v3379 = vunpack.c.l.b16 %v2678
      %v3380 = vunpack.c.h.b16 %v2678
      %v3381 = vunpack.c.l.b16 %v2679
      %v3382 = vunpack.c.l.b16 %v2680
      %v3383 = vunpack.c.h.b16 %v2680
      %v3384 = vunpack.c.l.b16 %v2681
      %v3385 = vunpack.c.l.b16 %v2682
      %v3386 = vunpack.c.h.b16 %v2682
      %v3387 = vunpack.c.l.b16 %v2683
      %v3388 = vunpack.c.l.b16 %v2684
      %v3389 = vunpack.c.h.b16 %v2684
      %v3390 = vunpack.c.l.b16 %v2685
      %v3391 = vunpack.c.l.b16 %v2686
      %v3392 = vunpack.c.h.b16 %v2686
      %v3393 = vunpack.c.l.b16 %v2687
      %v3394 = vunpack.c.l.b16 %v2688
      %v3395 = vunpack.c.h.b16 %v2688
      %v3396 = vunpack.c.l.b16 %v2689
      %v3397 = vunpack.c.l.b16 %v2690
      %v3398 = vunpack.c.h.b16 %v2690
      %v3399 = vunpack.c.l.b16 %v2691
      %v3400 = vunpack.c.l.b16 %v2692
      %v3401 = vunpack.c.h.b16 %v2692
      %v3402 = vunpack.c.l.b16 %v2693
      %v3403 = vunpack.c.l.b16 %v2694
      %v3404 = vunpack.c.h.b16 %v2694
      %v3405 = vunpack.c.l.b16 %v2695
      %v3406 = vunpack.c.l.b16 %v2696
      %v3407 = vunpack.c.h.b16 %v2696
      %v3408 = vunpack.c.l.b16 %v2697
      %v3409 = vunpack.c.l.b16 %v2698
      %v3410 = vunpack.c.h.b16 %v2698
      %v3411 = vunpack.c.l.b16 %v2699
      %v3412 = vunpack.c.l.b16 %v2700
      %v3413 = vunpack.c.h.b16 %v2700
      %v3414 = vunpack.c.l.b16 %v2701
      %v3415 = vunpack.c.l.b16 %v2702
      %v3416 = vunpack.c.h.b16 %v2702
      %v3417 = vunpack.c.l.b16 %v2703
      %v3418 = vunpack.c.l.b16 %v2704
      %v3419 = vunpack.c.h.b16 %v2704
      %v3420 = vunpack.c.l.b16 %v2705
      %v3421 = vunpack.c.l.b16 %v2706
      %v3422 = vunpack.c.h.b16 %v2706
      %v3423 = vunpack.c.l.b16 %v2707
      %v3424 = vunpack.c.l.b16 %v2708
      %v3425 = vunpack.c.h.b16 %v2708
      %v3426 = vunpack.c.l.b16 %v2709
      %v3427 = vunpack.c.l.b16 %v2710
      %v3428 = vunpack.c.h.b16 %v2710
      %v3429 = vunpack.c.l.b16 %v2711
      %v3430 = vunpack.c.l.b16 %v2712
      %v3431 = vunpack.c.h.b16 %v2712
      %v3432 = vunpack.c.l.b16 %v2713
      %v3433 = vunpack.c.l.b16 %v2714
      %v3434 = vunpack.c.h.b16 %v2714
      %v3435 = vunpack.c.l.b16 %v2715
      %v3436 = vpack.c.b16 %v3007, %v3004
      %v3437 = vpack.c.b16 %v3008, %v3005
      %v3438 = vpack.c.b16 %v3009, %v3006
      %v3439 = vpack.c.b16 %v3013, %v3010
      %v3440 = vpack.c.b16 %v3014, %v3011
      %v3441 = vpack.c.b16 %v3015, %v3012
      %v3442 = vpack.c.b16 %v3019, %v3016
      %v3443 = vpack.c.b16 %v3020, %v3017
      %v3444 = vpack.c.b16 %v3021, %v3018
      %v3445 = vpack.c.b16 %v3025, %v3022
      %v3446 = vpack.c.b16 %v3026, %v3023
      %v3447 = vpack.c.b16 %v3027, %v3024
      %v3448 = vpack.c.b16 %v3031, %v3028
      %v3449 = vpack.c.b16 %v3032, %v3029
      %v3450 = vpack.c.b16 %v3033, %v3030
      %v3451 = vpack.c.b16 %v3037, %v3034
      %v3452 = vpack.c.b16 %v3038, %v3035
      %v3453 = vpack.c.b16 %v3039, %v3036
      %v3454 = vpack.c.b16 %v3043, %v3040
      %v3455 = vpack.c.b16 %v3044, %v3041
      %v3456 = vpack.c.b16 %v3045, %v3042
      %v3457 = vpack.c.b16 %v3049, %v3046
      %v3458 = vpack.c.b16 %v3050, %v3047
      %v3459 = vpack.c.b16 %v3051, %v3048
      %v3460 = vpack.c.b16 %v3055, %v3052
      %v3461 = vpack.c.b16 %v3056, %v3053
      %v3462 = vpack.c.b16 %v3057, %v3054
      %v3463 = vpack.c.b16 %v3061, %v3058
      %v3464 = vpack.c.b16 %v3062, %v3059
      %v3465 = vpack.c.b16 %v3063, %v3060
      %v3466 = vpack.c.b16 %v3067, %v3064
      %v3467 = vpack.c.b16 %v3068, %v3065
      %v3468 = vpack.c.b16 %v3069, %v3066
      %v3469 = vpack.c.b16 %v3073, %v3070
      %v3470 = vpack.c.b16 %v3074, %v3071
      %v3471 = vpack.c.b16 %v3075, %v3072
      %v3472 = vpack.c.b16 %v3079, %v3076
      %v3473 = vpack.c.b16 %v3080, %v3077
      %v3474 = vpack.c.b16 %v3081, %v3078
      %v3475 = vpack.c.b16 %v3085, %v3082
      %v3476 = vpack.c.b16 %v3086, %v3083
      %v3477 = vpack.c.b16 %v3087, %v3084
      %v3478 = vpack.c.b16 %v3091, %v3088
      %v3479 = vpack.c.b16 %v3092, %v3089
      %v3480 = vpack.c.b16 %v3093, %v3090
      %v3481 = vpack.c.b16 %v3097, %v3094
      %v3482 = vpack.c.b16 %v3098, %v3095
      %v3483 = vpack.c.b16 %v3099, %v3096
      %v3484 = vpack.c.b16 %v3103, %v3100
      %v3485 = vpack.c.b16 %v3104, %v3101
      %v3486 = vpack.c.b16 %v3105, %v3102
      %v3487 = vpack.c.b16 %v3109, %v3106
      %v3488 = vpack.c.b16 %v3110, %v3107
      %v3489 = vpack.c.b16 %v3111, %v3108
      %v3490 = vpack.c.b16 %v3115, %v3112
      %v3491 = vpack.c.b16 %v3116, %v3113
      %v3492 = vpack.c.b16 %v3117, %v3114
      %v3493 = vpack.c.b16 %v3121, %v3118
      %v3494 = vpack.c.b16 %v3122, %v3119
      %v3495 = vpack.c.b16 %v3123, %v3120
      %v3496 = vpack.c.b16 %v3127, %v3124
      %v3497 = vpack.c.b16 %v3128, %v3125
      %v3498 = vpack.c.b16 %v3129, %v3126
      %v3499 = vpack.c.b16 %v3133, %v3130
      %v3500 = vpack.c.b16 %v3134, %v3131
      %v3501 = vpack.c.b16 %v3135, %v3132
      %v3502 = vpack.c.b16 %v3139, %v3136
      %v3503 = vpack.c.b16 %v3140, %v3137
      %v3504 = vpack.c.b16 %v3141, %v3138
      %v3505 = vpack.c.b16 %v3145, %v3142
      %v3506 = vpack.c.b16 %v3146, %v3143
      %v3507 = vpack.c.b16 %v3147, %v3144
      %v3508 = vpack.c.b16 %v3151, %v3148
      %v3509 = vpack.c.b16 %v3152, %v3149
      %v3510 = vpack.c.b16 %v3153, %v3150
      %v3511 = vpack.c.b16 %v3157, %v3154
      %v3512 = vpack.c.b16 %v3158, %v3155
      %v3513 = vpack.c.b16 %v3159, %v3156
      %v3514 = vpack.c.b16 %v3163, %v3160
      %v3515 = vpack.c.b16 %v3164, %v3161
      %v3516 = vpack.c.b16 %v3165, %v3162
      %v3517 = vpack.c.b16 %v3169, %v3166
      %v3518 = vpack.c.b16 %v3170, %v3167
      %v3519 = vpack.c.b16 %v3171, %v3168
      %v3520 = vpack.c.b16 %v3175, %v3172
      %v3521 = vpack.c.b16 %v3176, %v3173
      %v3522 = vpack.c.b16 %v3177, %v3174
      %v3523 = vpack.c.b16 %v3181, %v3178
      %v3524 = vpack.c.b16 %v3182, %v3179
      %v3525 = vpack.c.b16 %v3183, %v3180
      %v3526 = vpack.c.b16 %v3187, %v3184
      %v3527 = vpack.c.b16 %v3188, %v3185
      %v3528 = vpack.c.b16 %v3189, %v3186
      %v3529 = vpack.c.b16 %v3193, %v3190
      %v3530 = vpack.c.b16 %v3194, %v3191
      %v3531 = vpack.c.b16 %v3195, %v3192
      %v3532 = vpack.c.b16 %v3199, %v3196
      %v3533 = vpack.c.b16 %v3200, %v3197
      %v3534 = vpack.c.b16 %v3201, %v3198
      %v3535 = vpack.c.b16 %v3205, %v3202
      %v3536 = vpack.c.b16 %v3206, %v3203
      %v3537 = vpack.c.b16 %v3207, %v3204
      %v3538 = vpack.c.b16 %v3211, %v3208
      %v3539 = vpack.c.b16 %v3212, %v3209
      %v3540 = vpack.c.b16 %v3213, %v3210
      %v3541 = vpack.c.b16 %v3217, %v3214
      %v3542 = vpack.c.b16 %v3218, %v3215
      %v3543 = vpack.c.b16 %v3219, %v3216
      %v3544 = vpack.c.b16 %v3223, %v3220
      %v3545 = vpack.c.b16 %v3224, %v3221
      %v3546 = vpack.c.b16 %v3225, %v3222
      %v3547 = vpack.c.b16 %v3229, %v3226
      %v3548 = vpack.c.b16 %v3230, %v3227
      %v3549 = vpack.c.b16 %v3231, %v3228
      %v3550 = vpack.c.b16 %v3235, %v3232
      %v3551 = vpack.c.b16 %v3236, %v3233
      %v3552 = vpack.c.b16 %v3237, %v3234
      %v3553 = vpack.c.b16 %v3241, %v3238
      %v3554 = vpack.c.b16 %v3242, %v3239
      %v3555 = vpack.c.b16 %v3243, %v3240
      %v3556 = vpack.c.b16 %v3247, %v3244
      %v3557 = vpack.c.b16 %v3248, %v3245
      %v3558 = vpack.c.b16 %v3249, %v3246
      %v3559 = vpack.c.b16 %v3253, %v3250
      %v3560 = vpack.c.b16 %v3254, %v3251
      %v3561 = vpack.c.b16 %v3255, %v3252
      %v3562 = vpack.c.b16 %v3259, %v3256
      %v3563 = vpack.c.b16 %v3260, %v3257
      %v3564 = vpack.c.b16 %v3261, %v3258
      %v3565 = vpack.c.b16 %v3265, %v3262
      %v3566 = vpack.c.b16 %v3266, %v3263
      %v3567 = vpack.c.b16 %v3267, %v3264
      %v3568 = vpack.c.b16 %v3271, %v3268
      %v3569 = vpack.c.b16 %v3272, %v3269
      %v3570 = vpack.c.b16 %v3273, %v3270
      %v3571 = vpack.c.b16 %v3277, %v3274
      %v3572 = vpack.c.b16 %v3278, %v3275
      %v3573 = vpack.c.b16 %v3279, %v3276
      %v3574 = vpack.c.b16 %v3283, %v3280
      %v3575 = vpack.c.b16 %v3284, %v3281
      %v3576 = vpack.c.b16 %v3285, %v3282
      %v3577 = vpack.c.b16 %v3289, %v3286
      %v3578 = vpack.c.b16 %v3290, %v3287
      %v3579 = vpack.c.b16 %v3291, %v3288
      %v3580 = vpack.c.b16 %v3295, %v3292
      %v3581 = vpack.c.b16 %v3296, %v3293
      %v3582 = vpack.c.b16 %v3297, %v3294
      %v3583 = vpack.c.b16 %v3301, %v3298
      %v3584 = vpack.c.b16 %v3302, %v3299
      %v3585 = vpack.c.b16 %v3303, %v3300
      %v3586 = vpack.c.b16 %v3307, %v3304
      %v3587 = vpack.c.b16 %v3308, %v3305
      %v3588 = vpack.c.b16 %v3309, %v3306
      %v3589 = vpack.c.b16 %v3313, %v3310
      %v3590 = vpack.c.b16 %v3314, %v3311
      %v3591 = vpack.c.b16 %v3315, %v3312
      %v3592 = vpack.c.b16 %v3319, %v3316
      %v3593 = vpack.c.b16 %v3320, %v3317
      %v3594 = vpack.c.b16 %v3321, %v3318
      %v3595 = vpack.c.b16 %v3325, %v3322
      %v3596 = vpack.c.b16 %v3326, %v3323
      %v3597 = vpack.c.b16 %v3327, %v3324
      %v3598 = vpack.c.b16 %v3331, %v3328
      %v3599 = vpack.c.b16 %v3332, %v3329
      %v3600 = vpack.c.b16 %v3333, %v3330
      %v3601 = vpack.c.b16 %v3337, %v3334
      %v3602 = vpack.c.b16 %v3338, %v3335
      %v3603 = vpack.c.b16 %v3339, %v3336
      %v3604 = vpack.c.b16 %v3343, %v3340
      %v3605 = vpack.c.b16 %v3344, %v3341
      %v3606 = vpack.c.b16 %v3345, %v3342
      %v3607 = vpack.c.b16 %v3349, %v3346
      %v3608 = vpack.c.b16 %v3350, %v3347
      %v3609 = vpack.c.b16 %v3351, %v3348
      %v3610 = vpack.c.b16 %v3355, %v3352
      %v3611 = vpack.c.b16 %v3356, %v3353
      %v3612 = vpack.c.b16 %v3357, %v3354
      %v3613 = vpack.c.b16 %v3361, %v3358
      %v3614 = vpack.c.b16 %v3362, %v3359
      %v3615 = vpack.c.b16 %v3363, %v3360
      %v3616 = vpack.c.b16 %v3367, %v3364
      %v3617 = vpack.c.b16 %v3368, %v3365
      %v3618 = vpack.c.b16 %v3369, %v3366
      %v3619 = vpack.c.b16 %v3373, %v3370
      %v3620 = vpack.c.b16 %v3374, %v3371
      %v3621 = vpack.c.b16 %v3375, %v3372
      %v3622 = vpack.c.b16 %v3379, %v3376
      %v3623 = vpack.c.b16 %v3380, %v3377
      %v3624 = vpack.c.b16 %v3381, %v3378
      %v3625 = vpack.c.b16 %v3385, %v3382
      %v3626 = vpack.c.b16 %v3386, %v3383
      %v3627 = vpack.c.b16 %v3387, %v3384
      %v3628 = vpack.c.b16 %v3391, %v3388
      %v3629 = vpack.c.b16 %v3392, %v3389
      %v3630 = vpack.c.b16 %v3393, %v3390
      %v3631 = vpack.c.b16 %v3397, %v3394
      %v3632 = vpack.c.b16 %v3398, %v3395
      %v3633 = vpack.c.b16 %v3399, %v3396
      %v3634 = vpack.c.b16 %v3403, %v3400
      %v3635 = vpack.c.b16 %v3404, %v3401
      %v3636 = vpack.c.b16 %v3405, %v3402
      %v3637 = vpack.c.b16 %v3409, %v3406
      %v3638 = vpack.c.b16 %v3410, %v3407
      %v3639 = vpack.c.b16 %v3411, %v3408
      %v3640 = vpack.c.b16 %v3415, %v3412
      %v3641 = vpack.c.b16 %v3416, %v3413
      %v3642 = vpack.c.b16 %v3417, %v3414
      %v3643 = vpack.c.b16 %v3421, %v3418
      %v3644 = vpack.c.b16 %v3422, %v3419
      %v3645 = vpack.c.b16 %v3423, %v3420
      %v3646 = vpack.c.b16 %v3427, %v3424
      %v3647 = vpack.c.b16 %v3428, %v3425
      %v3648 = vpack.c.b16 %v3429, %v3426
      %v3649 = vpack.c.b16 %v3433, %v3430
      %v3650 = vpack.c.b16 %v3434, %v3431
      %v3651 = vpack.c.b16 %v3435, %v3432
      %vm3796 = vcmask 261120
      %v3798 = vsel %vm3796, %v3438, 0
      %v3801 = vsel %vm3796, %v3441, 0
      %v3804 = vsel %vm3796, %v3444, 0
      %v3807 = vsel %vm3796, %v3447, 0
      %v3810 = vsel %vm3796, %v3450, 0
      %v3813 = vsel %vm3796, %v3453, 0
      %v3816 = vsel %vm3796, %v3456, 0
      %v3819 = vsel %vm3796, %v3459, 0
      %v3822 = vsel %vm3796, %v3462, 0
      %v3825 = vsel %vm3796, %v3465, 0
      %v3828 = vsel %vm3796, %v3468, 0
      %v3831 = vsel %vm3796, %v3471, 0
      %v3834 = vsel %vm3796, %v3474, 0
      %v3837 = vsel %vm3796, %v3477, 0
      %v3840 = vsel %vm3796, %v3480, 0
      %v3843 = vsel %vm3796, %v3483, 0
      %v3846 = vsel %vm3796, %v3486, 0
      %v3849 = vsel %vm3796, %v3489, 0
      %v3852 = vsel %vm3796, %v3492, 0
      %v3855 = vsel %vm3796, %v3495, 0
      %v3858 = vsel %vm3796, %v3498, 0
      %v3861 = vsel %vm3796, %v3501, 0
      %v3864 = vsel %vm3796, %v3504, 0
      %v3867 = vsel %vm3796, %v3507, 0
      %v3870 = vsel %vm3796, %v3510, 0
      %v3873 = vsel %vm3796, %v3513, 0
      %v3876 = vsel %vm3796, %v3516, 0
      %v3879 = vsel %vm3796, %v3519, 0
      %v3882 = vsel %vm3796, %v3522, 0
      %v3885 = vsel %vm3796, %v3525, 0
      %v3888 = vsel %vm3796, %v3528, 0
      %v3891 = vsel %vm3796, %v3531, 0
      %v3894 = vsel %vm3796, %v3534, 0
      %v3897 = vsel %vm3796, %v3537, 0
      %v3900 = vsel %vm3796, %v3540, 0
      %v3903 = vsel %vm3796, %v3543, 0
      %v3906 = vsel %vm3796, %v3546, 0
      %v3909 = vsel %vm3796, %v3549, 0
      %v3912 = vsel %vm3796, %v3552, 0
      %v3915 = vsel %vm3796, %v3555, 0
      %v3918 = vsel %vm3796, %v3558, 0
      %v3921 = vsel %vm3796, %v3561, 0
      %v3924 = vsel %vm3796, %v3564, 0
      %v3927 = vsel %vm3796, %v3567, 0
      %v3930 = vsel %vm3796, %v3570, 0
      %v3933 = vsel %vm3796, %v3573, 0
      %v3936 = vsel %vm3796, %v3576, 0
      %v3939 = vsel %vm3796, %v3579, 0
      %v3942 = vsel %vm3796, %v3582, 0
      %v3945 = vsel %vm3796, %v3585, 0
      %v3948 = vsel %vm3796, %v3588, 0
      %v3951 = vsel %vm3796, %v3591, 0
      %v3954 = vsel %vm3796, %v3594, 0
      %v3957 = vsel %vm3796, %v3597, 0
      %v3960 = vsel %vm3796, %v3600, 0
      %v3963 = vsel %vm3796, %v3603, 0
      %v3966 = vsel %vm3796, %v3606, 0
      %v3969 = vsel %vm3796, %v3609, 0
      %v3972 = vsel %vm3796, %v3612, 0
      %v3975 = vsel %vm3796, %v3615, 0
      %v3978 = vsel %vm3796, %v3618, 0
      %v3981 = vsel %vm3796, %v3621, 0
      %v3984 = vsel %vm3796, %v3624, 0
      %v3987 = vsel %vm3796, %v3627, 0
      %v3990 = vsel %vm3796, %v3630, 0
      %v3993 = vsel %vm3796, %v3633, 0
      %v3996 = vsel %vm3796, %v3636, 0
      %v3999 = vsel %vm3796, %v3639, 0
      %v4002 = vsel %vm3796, %v3642, 0
      %v4005 = vsel %vm3796, %v3645, 0
      %v4008 = vsel %vm3796, %v3648, 0
      %v4011 = vsel %vm3796, %v3651, 0
      %4013 = vmatprep.subr.bf16.mxu0 %v2393
      %4014 = vmatpush1.bf16.msra.mxu0 %v2392
      %4015 = vmatprep.subr.bf16.mxu0 %v2395
      %4016 = vmatpush1.bf16.msra.mxu0 %v2394
      %4017 = vmatprep.subr.bf16.mxu0 %v2397
      %4018 = vmatpush1.bf16.msra.mxu0 %v2396
      %4019 = vmatprep.subr.bf16.mxu0 %v2399
      %4020 = vmatpush1.bf16.msra.mxu0 %v2398
      %4021 = vmatprep.subr.bf16.mxu0 %v2401
      %4022 = vmatpush1.bf16.msra.mxu0 %v2400
      %4023 = vmatprep.subr.bf16.mxu0 %v2403
      %4024 = vmatpush1.bf16.msra.mxu0 %v2402
      %4025 = vmatprep.subr.bf16.mxu0 %v2405
      %4026 = vmatpush1.bf16.msra.mxu0 %v2404
      %4027 = vmatprep.subr.bf16.mxu0 %v2407
      %4028 = vmatpush1.bf16.msra.mxu0 %v2406
      %4029 = vmatprep.subr.bf16.mxu0 %v2409
      %4030 = vmatpush1.bf16.msra.mxu0 %v2408
      %4031 = vmatprep.subr.bf16.mxu0 %v2411
      %4032 = vmatpush1.bf16.msra.mxu0 %v2410
      %4033 = vmatprep.subr.bf16.mxu0 %v2413
      %4034 = vmatpush1.bf16.msra.mxu0 %v2412
      %4035 = vmatprep.subr.bf16.mxu0 %v2415
      %4036 = vmatpush1.bf16.msra.mxu0 %v2414
      %4037 = vmatprep.subr.bf16.mxu0 %v2417
      %4038 = vmatpush1.bf16.msra.mxu0 %v2416
      %4039 = vmatprep.subr.bf16.mxu0 %v2419
      %4040 = vmatpush1.bf16.msra.mxu0 %v2418
      %4041 = vmatprep.subr.bf16.mxu0 %v2421
      %4042 = vmatpush1.bf16.msra.mxu0 %v2420
      %4043 = vmatprep.subr.bf16.mxu0 %v2423
      %4044 = vmatpush1.bf16.msra.mxu0 %v2422
      %4045 = vmatprep.mubr.bf16.mxu0 %v3437
      %4046 = vmatmul.mubr.bf16.gmra.mrb[0].mxu0 %v3436
      %v4047 = vpop.f32.mrb[0].mxu0
      %v4048 = vadd.f32 0.0, %v4047
      %v4049 = vpop.f32.mrb[0].mxu0
      %v4050 = vadd.f32 0.0, %v4049
      %v4051 = vpop.f32.mrb[0].mxu0
      %v4052 = vadd.f32 0.0, %v4051
      %v4053 = vpop.f32.mrb[0].mxu0
      %v4054 = vadd.f32 0.0, %v4053
      %4055 = vmatprep.mubr.bf16.mxu0 %v3440
      %4056 = vmatmul.mubr.bf16.gmra.mrb[0].mxu0 %v3439
      %v4057 = vpop.f32.mrb[0].mxu0
      %v4058 = vadd.f32 0.0, %v4057
      %v4059 = vpop.f32.mrb[0].mxu0
      %v4060 = vadd.f32 0.0, %v4059
      %v4061 = vpop.f32.mrb[0].mxu0
      %v4062 = vadd.f32 0.0, %v4061
      %v4063 = vpop.f32.mrb[0].mxu0
      %v4064 = vadd.f32 0.0, %v4063
      %4065 = vmatprep.mubr.bf16.mxu0 %v3443
      %4066 = vmatmul.mubr.bf16.gmra.mrb[0].mxu0 %v3442
      %v4067 = vpop.f32.mrb[0].mxu0
      %v4068 = vadd.f32 0.0, %v4067
      %v4069 = vpop.f32.mrb[0].mxu0
      %v4070 = vadd.f32 0.0, %v4069
      %v4071 = vpop.f32.mrb[0].mxu0
      %v4072 = vadd.f32 0.0, %v4071
      %v4073 = vpop.f32.mrb[0].mxu0
      %v4074 = vadd.f32 0.0, %v4073
      %4075 = vmatprep.mubr.bf16.mxu0 %v3446
      %4076 = vmatmul.mubr.bf16.gmra.mrb[0].mxu0 %v3445
      %v4077 = vpop.f32.mrb[0].mxu0
      %v4078 = vadd.f32 0.0, %v4077
      %v4079 = vpop.f32.mrb[0].mxu0
      %v4080 = vadd.f32 0.0, %v4079
      %v4081 = vpop.f32.mrb[0].mxu0
      %v4082 = vadd.f32 0.0, %v4081
      %v4083 = vpop.f32.mrb[0].mxu0
      %v4084 = vadd.f32 0.0, %v4083
      %4085 = vmatprep.mubr.bf16.mxu0 %v3449
      %4086 = vmatmul.mubr.bf16.gmra.mrb[0].mxu0 %v3448
      %v4087 = vpop.f32.mrb[0].mxu0
      %v4088 = vadd.f32 0.0, %v4087
      %v4089 = vpop.f32.mrb[0].mxu0
      %v4090 = vadd.f32 0.0, %v4089
      %v4091 = vpop.f32.mrb[0].mxu0
      %v4092 = vadd.f32 0.0, %v4091
      %v4093 = vpop.f32.mrb[0].mxu0
      %v4094 = vadd.f32 0.0, %v4093
      %4095 = vmatprep.mubr.bf16.mxu0 %v3452
      %4096 = vmatmul.mubr.bf16.gmra.mrb[0].mxu0 %v3451
      %v4097 = vpop.f32.mrb[0].mxu0
      %v4098 = vadd.f32 0.0, %v4097
      %v4099 = vpop.f32.mrb[0].mxu0
      %v4100 = vadd.f32 0.0, %v4099
      %v4101 = vpop.f32.mrb[0].mxu0
      %v4102 = vadd.f32 0.0, %v4101
      %v4103 = vpop.f32.mrb[0].mxu0
      %v4104 = vadd.f32 0.0, %v4103
      %4105 = vmatprep.mubr.bf16.mxu0 %v3455
      %4106 = vmatmul.mubr.bf16.gmra.mrb[0].mxu0 %v3454
      %v4107 = vpop.f32.mrb[0].mxu0
      %v4108 = vadd.f32 0.0, %v4107
      %v4109 = vpop.f32.mrb[0].mxu0
      %v4110 = vadd.f32 0.0, %v4109
      %v4111 = vpop.f32.mrb[0].mxu0
      %v4112 = vadd.f32 0.0, %v4111
      %v4113 = vpop.f32.mrb[0].mxu0
      %v4114 = vadd.f32 0.0, %v4113
      %4115 = vmatprep.mubr.bf16.mxu0 %v3458
      %4116 = vmatmul.mubr.bf16.gmra.mrb[0].mxu0 %v3457
      %v4117 = vpop.f32.mrb[0].mxu0
      %v4118 = vadd.f32 0.0, %v4117
      %v4119 = vpop.f32.mrb[0].mxu0
      %v4120 = vadd.f32 0.0, %v4119
      %v4121 = vpop.f32.mrb[0].mxu0
      %v4122 = vadd.f32 0.0, %v4121
      %v4123 = vpop.f32.mrb[0].mxu0
      %v4124 = vadd.f32 0.0, %v4123
      %4125 = vmatprep.mubr.bf16.mxu0 %v3461
      %4126 = vmatmul.mubr.bf16.gmra.mrb[0].mxu0 %v3460
      %v4127 = vpop.f32.mrb[0].mxu0
      %v4128 = vadd.f32 0.0, %v4127
      %v4129 = vpop.f32.mrb[0].mxu0
      %v4130 = vadd.f32 0.0, %v4129
      %v4131 = vpop.f32.mrb[0].mxu0
      %v4132 = vadd.f32 0.0, %v4131
      %v4133 = vpop.f32.mrb[0].mxu0
      %v4134 = vadd.f32 0.0, %v4133
      %4135 = vmatprep.mubr.bf16.mxu0 %v3464
      %4136 = vmatmul.mubr.bf16.gmra.mrb[0].mxu0 %v3463
      %v4137 = vpop.f32.mrb[0].mxu0
      %v4138 = vadd.f32 0.0, %v4137
      %v4139 = vpop.f32.mrb[0].mxu0
      %v4140 = vadd.f32 0.0, %v4139
      %v4141 = vpop.f32.mrb[0].mxu0
      %v4142 = vadd.f32 0.0, %v4141
      %v4143 = vpop.f32.mrb[0].mxu0
      %v4144 = vadd.f32 0.0, %v4143
      %4145 = vmatprep.mubr.bf16.mxu0 %v3467
      %4146 = vmatmul.mubr.bf16.gmra.mrb[0].mxu0 %v3466
      %v4147 = vpop.f32.mrb[0].mxu0
      %v4148 = vadd.f32 0.0, %v4147
      %v4149 = vpop.f32.mrb[0].mxu0
      %v4150 = vadd.f32 0.0, %v4149
      %v4151 = vpop.f32.mrb[0].mxu0
      %v4152 = vadd.f32 0.0, %v4151
      %v4153 = vpop.f32.mrb[0].mxu0
      %v4154 = vadd.f32 0.0, %v4153
      %4155 = vmatprep.mubr.bf16.mxu0 %v3470
      %4156 = vmatmul.mubr.bf16.gmra.mrb[0].mxu0 %v3469
      %v4157 = vpop.f32.mrb[0].mxu0
      %v4158 = vadd.f32 0.0, %v4157
      %v4159 = vpop.f32.mrb[0].mxu0
      %v4160 = vadd.f32 0.0, %v4159
      %v4161 = vpop.f32.mrb[0].mxu0
      %v4162 = vadd.f32 0.0, %v4161
      %v4163 = vpop.f32.mrb[0].mxu0
      %v4164 = vadd.f32 0.0, %v4163
      %4165 = vmatprep.mubr.bf16.mxu0 %v3473
      %4166 = vmatmul.mubr.bf16.gmra.mrb[0].mxu0 %v3472
      %v4167 = vpop.f32.mrb[0].mxu0
      %v4168 = vadd.f32 0.0, %v4167
      %v4169 = vpop.f32.mrb[0].mxu0
      %v4170 = vadd.f32 0.0, %v4169
      %v4171 = vpop.f32.mrb[0].mxu0
      %v4172 = vadd.f32 0.0, %v4171
      %v4173 = vpop.f32.mrb[0].mxu0
      %v4174 = vadd.f32 0.0, %v4173
      %4175 = vmatprep.mubr.bf16.mxu0 %v3476
      %4176 = vmatmul.mubr.bf16.gmra.mrb[0].mxu0 %v3475
      %v4177 = vpop.f32.mrb[0].mxu0
      %v4178 = vadd.f32 0.0, %v4177
      %v4179 = vpop.f32.mrb[0].mxu0
      %v4180 = vadd.f32 0.0, %v4179
      %v4181 = vpop.f32.mrb[0].mxu0
      %v4182 = vadd.f32 0.0, %v4181
      %v4183 = vpop.f32.mrb[0].mxu0
      %v4184 = vadd.f32 0.0, %v4183
      %4185 = vmatprep.mubr.bf16.mxu0 %v3479
      %4186 = vmatmul.mubr.bf16.gmra.mrb[0].mxu0 %v3478
      %v4187 = vpop.f32.mrb[0].mxu0
      %v4188 = vadd.f32 0.0, %v4187
      %v4189 = vpop.f32.mrb[0].mxu0
      %v4190 = vadd.f32 0.0, %v4189
      %v4191 = vpop.f32.mrb[0].mxu0
      %v4192 = vadd.f32 0.0, %v4191
      %v4193 = vpop.f32.mrb[0].mxu0
      %v4194 = vadd.f32 0.0, %v4193
      %4195 = vmatprep.mubr.bf16.mxu0 %v3482
      %4196 = vmatmul.mubr.bf16.gmra.mrb[0].mxu0 %v3481
      %v4197 = vpop.f32.mrb[0].mxu0
      %v4198 = vadd.f32 0.0, %v4197
      %v4199 = vpop.f32.mrb[0].mxu0
      %v4200 = vadd.f32 0.0, %v4199
      %v4201 = vpop.f32.mrb[0].mxu0
      %v4202 = vadd.f32 0.0, %v4201
      %v4203 = vpop.f32.mrb[0].mxu0
      %v4204 = vadd.f32 0.0, %v4203
      %4205 = vmatprep.mubr.bf16.mxu0 %v3485
      %4206 = vmatmul.mubr.bf16.gmra.mrb[0].mxu0 %v3484
      %v4207 = vpop.f32.mrb[0].mxu0
      %v4208 = vadd.f32 0.0, %v4207
      %v4209 = vpop.f32.mrb[0].mxu0
      %v4210 = vadd.f32 0.0, %v4209
      %v4211 = vpop.f32.mrb[0].mxu0
      %v4212 = vadd.f32 0.0, %v4211
      %v4213 = vpop.f32.mrb[0].mxu0
      %v4214 = vadd.f32 0.0, %v4213
      %4215 = vmatprep.mubr.bf16.mxu0 %v3488
      %4216 = vmatmul.mubr.bf16.gmra.mrb[0].mxu0 %v3487
      %v4217 = vpop.f32.mrb[0].mxu0
      %v4218 = vadd.f32 0.0, %v4217
      %v4219 = vpop.f32.mrb[0].mxu0
      %v4220 = vadd.f32 0.0, %v4219
      %v4221 = vpop.f32.mrb[0].mxu0
      %v4222 = vadd.f32 0.0, %v4221
      %v4223 = vpop.f32.mrb[0].mxu0
      %v4224 = vadd.f32 0.0, %v4223
      %4225 = vmatprep.mubr.bf16.mxu0 %v3491
      %4226 = vmatmul.mubr.bf16.gmra.mrb[0].mxu0 %v3490
      %v4227 = vpop.f32.mrb[0].mxu0
      %v4228 = vadd.f32 0.0, %v4227
      %v4229 = vpop.f32.mrb[0].mxu0
      %v4230 = vadd.f32 0.0, %v4229
      %v4231 = vpop.f32.mrb[0].mxu0
      %v4232 = vadd.f32 0.0, %v4231
      %v4233 = vpop.f32.mrb[0].mxu0
      %v4234 = vadd.f32 0.0, %v4233
      %4235 = vmatprep.mubr.bf16.mxu0 %v3494
      %4236 = vmatmul.mubr.bf16.gmra.mrb[0].mxu0 %v3493
      %v4237 = vpop.f32.mrb[0].mxu0
      %v4238 = vadd.f32 0.0, %v4237
      %v4239 = vpop.f32.mrb[0].mxu0
      %v4240 = vadd.f32 0.0, %v4239
      %v4241 = vpop.f32.mrb[0].mxu0
      %v4242 = vadd.f32 0.0, %v4241
      %v4243 = vpop.f32.mrb[0].mxu0
      %v4244 = vadd.f32 0.0, %v4243
      %4245 = vmatprep.mubr.bf16.mxu0 %v3497
      %4246 = vmatmul.mubr.bf16.gmra.mrb[0].mxu0 %v3496
      %v4247 = vpop.f32.mrb[0].mxu0
      %v4248 = vadd.f32 0.0, %v4247
      %v4249 = vpop.f32.mrb[0].mxu0
      %v4250 = vadd.f32 0.0, %v4249
      %v4251 = vpop.f32.mrb[0].mxu0
      %v4252 = vadd.f32 0.0, %v4251
      %v4253 = vpop.f32.mrb[0].mxu0
      %v4254 = vadd.f32 0.0, %v4253
      %4255 = vmatprep.mubr.bf16.mxu0 %v3500
      %4256 = vmatmul.mubr.bf16.gmra.mrb[0].mxu0 %v3499
      %v4257 = vpop.f32.mrb[0].mxu0
      %v4258 = vadd.f32 0.0, %v4257
      %v4259 = vpop.f32.mrb[0].mxu0
      %v4260 = vadd.f32 0.0, %v4259
      %v4261 = vpop.f32.mrb[0].mxu0
      %v4262 = vadd.f32 0.0, %v4261
      %v4263 = vpop.f32.mrb[0].mxu0
      %v4264 = vadd.f32 0.0, %v4263
      %4265 = vmatprep.mubr.bf16.mxu0 %v3503
      %4266 = vmatmul.mubr.bf16.gmra.mrb[0].mxu0 %v3502
      %v4267 = vpop.f32.mrb[0].mxu0
      %v4268 = vadd.f32 0.0, %v4267
      %v4269 = vpop.f32.mrb[0].mxu0
      %v4270 = vadd.f32 0.0, %v4269
      %v4271 = vpop.f32.mrb[0].mxu0
      %v4272 = vadd.f32 0.0, %v4271
      %v4273 = vpop.f32.mrb[0].mxu0
      %v4274 = vadd.f32 0.0, %v4273
      %4275 = vmatprep.mubr.bf16.mxu0 %v3506
      %4276 = vmatmul.mubr.bf16.gmra.mrb[0].mxu0 %v3505
      %v4277 = vpop.f32.mrb[0].mxu0
      %v4278 = vadd.f32 0.0, %v4277
      %v4279 = vpop.f32.mrb[0].mxu0
      %v4280 = vadd.f32 0.0, %v4279
      %v4281 = vpop.f32.mrb[0].mxu0
      %v4282 = vadd.f32 0.0, %v4281
      %v4283 = vpop.f32.mrb[0].mxu0
      %v4284 = vadd.f32 0.0, %v4283
      %4285 = vmatprep.mubr.bf16.mxu0 %v3509
      %4286 = vmatmul.mubr.bf16.gmra.mrb[0].mxu0 %v3508
      %v4287 = vpop.f32.mrb[0].mxu0
      %v4288 = vadd.f32 0.0, %v4287
      %v4289 = vpop.f32.mrb[0].mxu0
      %v4290 = vadd.f32 0.0, %v4289
      %v4291 = vpop.f32.mrb[0].mxu0
      %v4292 = vadd.f32 0.0, %v4291
      %v4293 = vpop.f32.mrb[0].mxu0
      %v4294 = vadd.f32 0.0, %v4293
      %4295 = vmatprep.mubr.bf16.mxu0 %v3512
      %4296 = vmatmul.mubr.bf16.gmra.mrb[0].mxu0 %v3511
      %v4297 = vpop.f32.mrb[0].mxu0
      %v4298 = vadd.f32 0.0, %v4297
      %v4299 = vpop.f32.mrb[0].mxu0
      %v4300 = vadd.f32 0.0, %v4299
      %v4301 = vpop.f32.mrb[0].mxu0
      %v4302 = vadd.f32 0.0, %v4301
      %v4303 = vpop.f32.mrb[0].mxu0
      %v4304 = vadd.f32 0.0, %v4303
      %4305 = vmatprep.mubr.bf16.mxu0 %v3515
      %4306 = vmatmul.mubr.bf16.gmra.mrb[0].mxu0 %v3514
      %v4307 = vpop.f32.mrb[0].mxu0
      %v4308 = vadd.f32 0.0, %v4307
      %v4309 = vpop.f32.mrb[0].mxu0
      %v4310 = vadd.f32 0.0, %v4309
      %v4311 = vpop.f32.mrb[0].mxu0
      %v4312 = vadd.f32 0.0, %v4311
      %v4313 = vpop.f32.mrb[0].mxu0
      %v4314 = vadd.f32 0.0, %v4313
      %4315 = vmatprep.mubr.bf16.mxu0 %v3518
      %4316 = vmatmul.mubr.bf16.gmra.mrb[0].mxu0 %v3517
      %v4317 = vpop.f32.mrb[0].mxu0
      %v4318 = vadd.f32 0.0, %v4317
      %v4319 = vpop.f32.mrb[0].mxu0
      %v4320 = vadd.f32 0.0, %v4319
      %v4321 = vpop.f32.mrb[0].mxu0
      %v4322 = vadd.f32 0.0, %v4321
      %v4323 = vpop.f32.mrb[0].mxu0
      %v4324 = vadd.f32 0.0, %v4323
      %4325 = vmatprep.mubr.bf16.mxu0 %v3521
      %4326 = vmatmul.mubr.bf16.gmra.mrb[0].mxu0 %v3520
      %v4327 = vpop.f32.mrb[0].mxu0
      %v4328 = vadd.f32 0.0, %v4327
      %v4329 = vpop.f32.mrb[0].mxu0
      %v4330 = vadd.f32 0.0, %v4329
      %v4331 = vpop.f32.mrb[0].mxu0
      %v4332 = vadd.f32 0.0, %v4331
      %v4333 = vpop.f32.mrb[0].mxu0
      %v4334 = vadd.f32 0.0, %v4333
      %4335 = vmatprep.mubr.bf16.mxu0 %v3524
      %4336 = vmatmul.mubr.bf16.gmra.mrb[0].mxu0 %v3523
      %v4337 = vpop.f32.mrb[0].mxu0
      %v4338 = vadd.f32 0.0, %v4337
      %v4339 = vpop.f32.mrb[0].mxu0
      %v4340 = vadd.f32 0.0, %v4339
      %v4341 = vpop.f32.mrb[0].mxu0
      %v4342 = vadd.f32 0.0, %v4341
      %v4343 = vpop.f32.mrb[0].mxu0
      %v4344 = vadd.f32 0.0, %v4343
      %4345 = vmatprep.mubr.bf16.mxu0 %v3527
      %4346 = vmatmul.mubr.bf16.gmra.mrb[0].mxu0 %v3526
      %v4347 = vpop.f32.mrb[0].mxu0
      %v4348 = vadd.f32 0.0, %v4347
      %v4349 = vpop.f32.mrb[0].mxu0
      %v4350 = vadd.f32 0.0, %v4349
      %v4351 = vpop.f32.mrb[0].mxu0
      %v4352 = vadd.f32 0.0, %v4351
      %v4353 = vpop.f32.mrb[0].mxu0
      %v4354 = vadd.f32 0.0, %v4353
      %4355 = vmatprep.mubr.bf16.mxu0 %v3530
      %4356 = vmatmul.mubr.bf16.gmra.mrb[0].mxu0 %v3529
      %v4357 = vpop.f32.mrb[0].mxu0
      %v4358 = vadd.f32 0.0, %v4357
      %v4359 = vpop.f32.mrb[0].mxu0
      %v4360 = vadd.f32 0.0, %v4359
      %v4361 = vpop.f32.mrb[0].mxu0
      %v4362 = vadd.f32 0.0, %v4361
      %v4363 = vpop.f32.mrb[0].mxu0
      %v4364 = vadd.f32 0.0, %v4363
      %4365 = vmatprep.mubr.bf16.mxu0 %v3533
      %4366 = vmatmul.mubr.bf16.gmra.mrb[0].mxu0 %v3532
      %v4367 = vpop.f32.mrb[0].mxu0
      %v4368 = vadd.f32 0.0, %v4367
      %v4369 = vpop.f32.mrb[0].mxu0
      %v4370 = vadd.f32 0.0, %v4369
      %v4371 = vpop.f32.mrb[0].mxu0
      %v4372 = vadd.f32 0.0, %v4371
      %v4373 = vpop.f32.mrb[0].mxu0
      %v4374 = vadd.f32 0.0, %v4373
      %4375 = vmatprep.mubr.bf16.mxu0 %v3536
      %4376 = vmatmul.mubr.bf16.gmra.mrb[0].mxu0 %v3535
      %v4377 = vpop.f32.mrb[0].mxu0
      %v4378 = vadd.f32 0.0, %v4377
      %v4379 = vpop.f32.mrb[0].mxu0
      %v4380 = vadd.f32 0.0, %v4379
      %v4381 = vpop.f32.mrb[0].mxu0
      %v4382 = vadd.f32 0.0, %v4381
      %v4383 = vpop.f32.mrb[0].mxu0
      %v4384 = vadd.f32 0.0, %v4383
      %4385 = vmatprep.mubr.bf16.mxu0 %v3539
      %4386 = vmatmul.mubr.bf16.gmra.mrb[0].mxu0 %v3538
      %v4387 = vpop.f32.mrb[0].mxu0
      %v4388 = vadd.f32 0.0, %v4387
      %v4389 = vpop.f32.mrb[0].mxu0
      %v4390 = vadd.f32 0.0, %v4389
      %v4391 = vpop.f32.mrb[0].mxu0
      %v4392 = vadd.f32 0.0, %v4391
      %v4393 = vpop.f32.mrb[0].mxu0
      %v4394 = vadd.f32 0.0, %v4393
      %4395 = vmatprep.mubr.bf16.mxu0 %v3542
      %4396 = vmatmul.mubr.bf16.gmra.mrb[0].mxu0 %v3541
      %v4397 = vpop.f32.mrb[0].mxu0
      %v4398 = vadd.f32 0.0, %v4397
      %v4399 = vpop.f32.mrb[0].mxu0
      %v4400 = vadd.f32 0.0, %v4399
      %v4401 = vpop.f32.mrb[0].mxu0
      %v4402 = vadd.f32 0.0, %v4401
      %v4403 = vpop.f32.mrb[0].mxu0
      %v4404 = vadd.f32 0.0, %v4403
      %4405 = vmatprep.mubr.bf16.mxu0 %v3545
      %4406 = vmatmul.mubr.bf16.gmra.mrb[0].mxu0 %v3544
      %v4407 = vpop.f32.mrb[0].mxu0
      %v4408 = vadd.f32 0.0, %v4407
      %v4409 = vpop.f32.mrb[0].mxu0
      %v4410 = vadd.f32 0.0, %v4409
      %v4411 = vpop.f32.mrb[0].mxu0
      %v4412 = vadd.f32 0.0, %v4411
      %v4413 = vpop.f32.mrb[0].mxu0
      %v4414 = vadd.f32 0.0, %v4413
      %4415 = vmatprep.mubr.bf16.mxu0 %v3548
      %4416 = vmatmul.mubr.bf16.gmra.mrb[0].mxu0 %v3547
      %v4417 = vpop.f32.mrb[0].mxu0
      %v4418 = vadd.f32 0.0, %v4417
      %v4419 = vpop.f32.mrb[0].mxu0
      %v4420 = vadd.f32 0.0, %v4419
      %v4421 = vpop.f32.mrb[0].mxu0
      %v4422 = vadd.f32 0.0, %v4421
      %v4423 = vpop.f32.mrb[0].mxu0
      %v4424 = vadd.f32 0.0, %v4423
      %4425 = vmatprep.mubr.bf16.mxu0 %v3551
      %4426 = vmatmul.mubr.bf16.gmra.mrb[0].mxu0 %v3550
      %v4427 = vpop.f32.mrb[0].mxu0
      %v4428 = vadd.f32 0.0, %v4427
      %v4429 = vpop.f32.mrb[0].mxu0
      %v4430 = vadd.f32 0.0, %v4429
      %v4431 = vpop.f32.mrb[0].mxu0
      %v4432 = vadd.f32 0.0, %v4431
      %v4433 = vpop.f32.mrb[0].mxu0
      %v4434 = vadd.f32 0.0, %v4433
      %4435 = vmatprep.mubr.bf16.mxu0 %v3554
      %4436 = vmatmul.mubr.bf16.gmra.mrb[0].mxu0 %v3553
      %v4437 = vpop.f32.mrb[0].mxu0
      %v4438 = vadd.f32 0.0, %v4437
      %v4439 = vpop.f32.mrb[0].mxu0
      %v4440 = vadd.f32 0.0, %v4439
      %v4441 = vpop.f32.mrb[0].mxu0
      %v4442 = vadd.f32 0.0, %v4441
      %v4443 = vpop.f32.mrb[0].mxu0
      %v4444 = vadd.f32 0.0, %v4443
      %4445 = vmatprep.mubr.bf16.mxu0 %v3557
      %4446 = vmatmul.mubr.bf16.gmra.mrb[0].mxu0 %v3556
      %v4447 = vpop.f32.mrb[0].mxu0
      %v4448 = vadd.f32 0.0, %v4447
      %v4449 = vpop.f32.mrb[0].mxu0
      %v4450 = vadd.f32 0.0, %v4449
      %v4451 = vpop.f32.mrb[0].mxu0
      %v4452 = vadd.f32 0.0, %v4451
      %v4453 = vpop.f32.mrb[0].mxu0
      %v4454 = vadd.f32 0.0, %v4453
      %4455 = vmatprep.mubr.bf16.mxu0 %v3560
      %4456 = vmatmul.mubr.bf16.gmra.mrb[0].mxu0 %v3559
      %v4457 = vpop.f32.mrb[0].mxu0
      %v4458 = vadd.f32 0.0, %v4457
      %v4459 = vpop.f32.mrb[0].mxu0
      %v4460 = vadd.f32 0.0, %v4459
      %v4461 = vpop.f32.mrb[0].mxu0
      %v4462 = vadd.f32 0.0, %v4461
      %v4463 = vpop.f32.mrb[0].mxu0
      %v4464 = vadd.f32 0.0, %v4463
      %4465 = vmatprep.mubr.bf16.mxu0 %v3563
      %4466 = vmatmul.mubr.bf16.gmra.mrb[0].mxu0 %v3562
      %v4467 = vpop.f32.mrb[0].mxu0
      %v4468 = vadd.f32 0.0, %v4467
      %v4469 = vpop.f32.mrb[0].mxu0
      %v4470 = vadd.f32 0.0, %v4469
      %v4471 = vpop.f32.mrb[0].mxu0
      %v4472 = vadd.f32 0.0, %v4471
      %v4473 = vpop.f32.mrb[0].mxu0
      %v4474 = vadd.f32 0.0, %v4473
      %4475 = vmatprep.mubr.bf16.mxu0 %v3566
      %4476 = vmatmul.mubr.bf16.gmra.mrb[0].mxu0 %v3565
      %v4477 = vpop.f32.mrb[0].mxu0
      %v4478 = vadd.f32 0.0, %v4477
      %v4479 = vpop.f32.mrb[0].mxu0
      %v4480 = vadd.f32 0.0, %v4479
      %v4481 = vpop.f32.mrb[0].mxu0
      %v4482 = vadd.f32 0.0, %v4481
      %v4483 = vpop.f32.mrb[0].mxu0
      %v4484 = vadd.f32 0.0, %v4483
      %4485 = vmatprep.mubr.bf16.mxu0 %v3569
      %4486 = vmatmul.mubr.bf16.gmra.mrb[0].mxu0 %v3568
      %v4487 = vpop.f32.mrb[0].mxu0
      %v4488 = vadd.f32 0.0, %v4487
      %v4489 = vpop.f32.mrb[0].mxu0
      %v4490 = vadd.f32 0.0, %v4489
      %v4491 = vpop.f32.mrb[0].mxu0
      %v4492 = vadd.f32 0.0, %v4491
      %v4493 = vpop.f32.mrb[0].mxu0
      %v4494 = vadd.f32 0.0, %v4493
      %4495 = vmatprep.mubr.bf16.mxu0 %v3572
      %4496 = vmatmul.mubr.bf16.gmra.mrb[0].mxu0 %v3571
      %v4497 = vpop.f32.mrb[0].mxu0
      %v4498 = vadd.f32 0.0, %v4497
      %v4499 = vpop.f32.mrb[0].mxu0
      %v4500 = vadd.f32 0.0, %v4499
      %v4501 = vpop.f32.mrb[0].mxu0
      %v4502 = vadd.f32 0.0, %v4501
      %v4503 = vpop.f32.mrb[0].mxu0
      %v4504 = vadd.f32 0.0, %v4503
      %4505 = vmatprep.mubr.bf16.mxu0 %v3575
      %4506 = vmatmul.mubr.bf16.gmra.mrb[0].mxu0 %v3574
      %v4507 = vpop.f32.mrb[0].mxu0
      %v4508 = vadd.f32 0.0, %v4507
      %v4509 = vpop.f32.mrb[0].mxu0
      %v4510 = vadd.f32 0.0, %v4509
      %v4511 = vpop.f32.mrb[0].mxu0
      %v4512 = vadd.f32 0.0, %v4511
      %v4513 = vpop.f32.mrb[0].mxu0
      %v4514 = vadd.f32 0.0, %v4513
      %4515 = vmatprep.mubr.bf16.mxu0 %v3578
      %4516 = vmatmul.mubr.bf16.gmra.mrb[0].mxu0 %v3577
      %v4517 = vpop.f32.mrb[0].mxu0
      %v4518 = vadd.f32 0.0, %v4517
      %v4519 = vpop.f32.mrb[0].mxu0
      %v4520 = vadd.f32 0.0, %v4519
      %v4521 = vpop.f32.mrb[0].mxu0
      %v4522 = vadd.f32 0.0, %v4521
      %v4523 = vpop.f32.mrb[0].mxu0
      %v4524 = vadd.f32 0.0, %v4523
      %4525 = vmatprep.mubr.bf16.mxu0 %v3581
      %4526 = vmatmul.mubr.bf16.gmra.mrb[0].mxu0 %v3580
      %v4527 = vpop.f32.mrb[0].mxu0
      %v4528 = vadd.f32 0.0, %v4527
      %v4529 = vpop.f32.mrb[0].mxu0
      %v4530 = vadd.f32 0.0, %v4529
      %v4531 = vpop.f32.mrb[0].mxu0
      %v4532 = vadd.f32 0.0, %v4531
      %v4533 = vpop.f32.mrb[0].mxu0
      %v4534 = vadd.f32 0.0, %v4533
      %4535 = vmatprep.mubr.bf16.mxu0 %v3584
      %4536 = vmatmul.mubr.bf16.gmra.mrb[0].mxu0 %v3583
      %v4537 = vpop.f32.mrb[0].mxu0
      %v4538 = vadd.f32 0.0, %v4537
      %v4539 = vpop.f32.mrb[0].mxu0
      %v4540 = vadd.f32 0.0, %v4539
      %v4541 = vpop.f32.mrb[0].mxu0
      %v4542 = vadd.f32 0.0, %v4541
      %v4543 = vpop.f32.mrb[0].mxu0
      %v4544 = vadd.f32 0.0, %v4543
      %4545 = vmatprep.mubr.bf16.mxu0 %v3587
      %4546 = vmatmul.mubr.bf16.gmra.mrb[0].mxu0 %v3586
      %v4547 = vpop.f32.mrb[0].mxu0
      %v4548 = vadd.f32 0.0, %v4547
      %v4549 = vpop.f32.mrb[0].mxu0
      %v4550 = vadd.f32 0.0, %v4549
      %v4551 = vpop.f32.mrb[0].mxu0
      %v4552 = vadd.f32 0.0, %v4551
      %v4553 = vpop.f32.mrb[0].mxu0
      %v4554 = vadd.f32 0.0, %v4553
      %4555 = vmatprep.mubr.bf16.mxu0 %v3590
      %4556 = vmatmul.mubr.bf16.gmra.mrb[0].mxu0 %v3589
      %v4557 = vpop.f32.mrb[0].mxu0
      %v4558 = vadd.f32 0.0, %v4557
      %v4559 = vpop.f32.mrb[0].mxu0
      %v4560 = vadd.f32 0.0, %v4559
      %v4561 = vpop.f32.mrb[0].mxu0
      %v4562 = vadd.f32 0.0, %v4561
      %v4563 = vpop.f32.mrb[0].mxu0
      %v4564 = vadd.f32 0.0, %v4563
      %4565 = vmatprep.mubr.bf16.mxu0 %v3593
      %4566 = vmatmul.mubr.bf16.gmra.mrb[0].mxu0 %v3592
      %v4567 = vpop.f32.mrb[0].mxu0
      %v4568 = vadd.f32 0.0, %v4567
      %v4569 = vpop.f32.mrb[0].mxu0
      %v4570 = vadd.f32 0.0, %v4569
      %v4571 = vpop.f32.mrb[0].mxu0
      %v4572 = vadd.f32 0.0, %v4571
      %v4573 = vpop.f32.mrb[0].mxu0
      %v4574 = vadd.f32 0.0, %v4573
      %4575 = vmatprep.mubr.bf16.mxu0 %v3596
      %4576 = vmatmul.mubr.bf16.gmra.mrb[0].mxu0 %v3595
      %v4577 = vpop.f32.mrb[0].mxu0
      %v4578 = vadd.f32 0.0, %v4577
      %v4579 = vpop.f32.mrb[0].mxu0
      %v4580 = vadd.f32 0.0, %v4579
      %v4581 = vpop.f32.mrb[0].mxu0
      %v4582 = vadd.f32 0.0, %v4581
      %v4583 = vpop.f32.mrb[0].mxu0
      %v4584 = vadd.f32 0.0, %v4583
      %4585 = vmatprep.mubr.bf16.mxu0 %v3599
      %4586 = vmatmul.mubr.bf16.gmra.mrb[0].mxu0 %v3598
      %v4587 = vpop.f32.mrb[0].mxu0
      %v4588 = vadd.f32 0.0, %v4587
      %v4589 = vpop.f32.mrb[0].mxu0
      %v4590 = vadd.f32 0.0, %v4589
      %v4591 = vpop.f32.mrb[0].mxu0
      %v4592 = vadd.f32 0.0, %v4591
      %v4593 = vpop.f32.mrb[0].mxu0
      %v4594 = vadd.f32 0.0, %v4593
      %4595 = vmatprep.mubr.bf16.mxu0 %v3602
      %4596 = vmatmul.mubr.bf16.gmra.mrb[0].mxu0 %v3601
      %v4597 = vpop.f32.mrb[0].mxu0
      %v4598 = vadd.f32 0.0, %v4597
      %v4599 = vpop.f32.mrb[0].mxu0
      %v4600 = vadd.f32 0.0, %v4599
      %v4601 = vpop.f32.mrb[0].mxu0
      %v4602 = vadd.f32 0.0, %v4601
      %v4603 = vpop.f32.mrb[0].mxu0
      %v4604 = vadd.f32 0.0, %v4603
      %4605 = vmatprep.mubr.bf16.mxu0 %v3605
      %4606 = vmatmul.mubr.bf16.gmra.mrb[0].mxu0 %v3604
      %v4607 = vpop.f32.mrb[0].mxu0
      %v4608 = vadd.f32 0.0, %v4607
      %v4609 = vpop.f32.mrb[0].mxu0
      %v4610 = vadd.f32 0.0, %v4609
      %v4611 = vpop.f32.mrb[0].mxu0
      %v4612 = vadd.f32 0.0, %v4611
      %v4613 = vpop.f32.mrb[0].mxu0
      %v4614 = vadd.f32 0.0, %v4613
      %4615 = vmatprep.mubr.bf16.mxu0 %v3608
      %4616 = vmatmul.mubr.bf16.gmra.mrb[0].mxu0 %v3607
      %v4617 = vpop.f32.mrb[0].mxu0
      %v4618 = vadd.f32 0.0, %v4617
      %v4619 = vpop.f32.mrb[0].mxu0
      %v4620 = vadd.f32 0.0, %v4619
      %v4621 = vpop.f32.mrb[0].mxu0
      %v4622 = vadd.f32 0.0, %v4621
      %v4623 = vpop.f32.mrb[0].mxu0
      %v4624 = vadd.f32 0.0, %v4623
      %4625 = vmatprep.mubr.bf16.mxu0 %v3611
      %4626 = vmatmul.mubr.bf16.gmra.mrb[0].mxu0 %v3610
      %v4627 = vpop.f32.mrb[0].mxu0
      %v4628 = vadd.f32 0.0, %v4627
      %v4629 = vpop.f32.mrb[0].mxu0
      %v4630 = vadd.f32 0.0, %v4629
      %v4631 = vpop.f32.mrb[0].mxu0
      %v4632 = vadd.f32 0.0, %v4631
      %v4633 = vpop.f32.mrb[0].mxu0
      %v4634 = vadd.f32 0.0, %v4633
      %4635 = vmatprep.mubr.bf16.mxu0 %v3614
      %4636 = vmatmul.mubr.bf16.gmra.mrb[0].mxu0 %v3613
      %v4637 = vpop.f32.mrb[0].mxu0
      %v4638 = vadd.f32 0.0, %v4637
      %v4639 = vpop.f32.mrb[0].mxu0
      %v4640 = vadd.f32 0.0, %v4639
      %v4641 = vpop.f32.mrb[0].mxu0
      %v4642 = vadd.f32 0.0, %v4641
      %v4643 = vpop.f32.mrb[0].mxu0
      %v4644 = vadd.f32 0.0, %v4643
      %4645 = vmatprep.mubr.bf16.mxu0 %v3617
      %4646 = vmatmul.mubr.bf16.gmra.mrb[0].mxu0 %v3616
      %v4647 = vpop.f32.mrb[0].mxu0
      %v4648 = vadd.f32 0.0, %v4647
      %v4649 = vpop.f32.mrb[0].mxu0
      %v4650 = vadd.f32 0.0, %v4649
      %v4651 = vpop.f32.mrb[0].mxu0
      %v4652 = vadd.f32 0.0, %v4651
      %v4653 = vpop.f32.mrb[0].mxu0
      %v4654 = vadd.f32 0.0, %v4653
      %4655 = vmatprep.mubr.bf16.mxu0 %v3620
      %4656 = vmatmul.mubr.bf16.gmra.mrb[0].mxu0 %v3619
      %v4657 = vpop.f32.mrb[0].mxu0
      %v4658 = vadd.f32 0.0, %v4657
      %v4659 = vpop.f32.mrb[0].mxu0
      %v4660 = vadd.f32 0.0, %v4659
      %v4661 = vpop.f32.mrb[0].mxu0
      %v4662 = vadd.f32 0.0, %v4661
      %v4663 = vpop.f32.mrb[0].mxu0
      %v4664 = vadd.f32 0.0, %v4663
      %4665 = vmatprep.mubr.bf16.mxu0 %v3623
      %4666 = vmatmul.mubr.bf16.gmra.mrb[0].mxu0 %v3622
      %v4667 = vpop.f32.mrb[0].mxu0
      %v4668 = vadd.f32 0.0, %v4667
      %v4669 = vpop.f32.mrb[0].mxu0
      %v4670 = vadd.f32 0.0, %v4669
      %v4671 = vpop.f32.mrb[0].mxu0
      %v4672 = vadd.f32 0.0, %v4671
      %v4673 = vpop.f32.mrb[0].mxu0
      %v4674 = vadd.f32 0.0, %v4673
      %4675 = vmatprep.mubr.bf16.mxu0 %v3626
      %4676 = vmatmul.mubr.bf16.gmra.mrb[0].mxu0 %v3625
      %v4677 = vpop.f32.mrb[0].mxu0
      %v4678 = vadd.f32 0.0, %v4677
      %v4679 = vpop.f32.mrb[0].mxu0
      %v4680 = vadd.f32 0.0, %v4679
      %v4681 = vpop.f32.mrb[0].mxu0
      %v4682 = vadd.f32 0.0, %v4681
      %v4683 = vpop.f32.mrb[0].mxu0
      %v4684 = vadd.f32 0.0, %v4683
      %4685 = vmatprep.mubr.bf16.mxu0 %v3629
      %4686 = vmatmul.mubr.bf16.gmra.mrb[0].mxu0 %v3628
      %v4687 = vpop.f32.mrb[0].mxu0
      %v4688 = vadd.f32 0.0, %v4687
      %v4689 = vpop.f32.mrb[0].mxu0
      %v4690 = vadd.f32 0.0, %v4689
      %v4691 = vpop.f32.mrb[0].mxu0
      %v4692 = vadd.f32 0.0, %v4691
      %v4693 = vpop.f32.mrb[0].mxu0
      %v4694 = vadd.f32 0.0, %v4693
      %4695 = vmatprep.mubr.bf16.mxu0 %v3632
      %4696 = vmatmul.mubr.bf16.gmra.mrb[0].mxu0 %v3631
      %v4697 = vpop.f32.mrb[0].mxu0
      %v4698 = vadd.f32 0.0, %v4697
      %v4699 = vpop.f32.mrb[0].mxu0
      %v4700 = vadd.f32 0.0, %v4699
      %v4701 = vpop.f32.mrb[0].mxu0
      %v4702 = vadd.f32 0.0, %v4701
      %v4703 = vpop.f32.mrb[0].mxu0
      %v4704 = vadd.f32 0.0, %v4703
      %4705 = vmatprep.mubr.bf16.mxu0 %v3635
      %4706 = vmatmul.mubr.bf16.gmra.mrb[0].mxu0 %v3634
      %v4707 = vpop.f32.mrb[0].mxu0
      %v4708 = vadd.f32 0.0, %v4707
      %v4709 = vpop.f32.mrb[0].mxu0
      %v4710 = vadd.f32 0.0, %v4709
      %v4711 = vpop.f32.mrb[0].mxu0
      %v4712 = vadd.f32 0.0, %v4711
      %v4713 = vpop.f32.mrb[0].mxu0
      %v4714 = vadd.f32 0.0, %v4713
      %4715 = vmatprep.mubr.bf16.mxu0 %v3638
      %4716 = vmatmul.mubr.bf16.gmra.mrb[0].mxu0 %v3637
      %v4717 = vpop.f32.mrb[0].mxu0
      %v4718 = vadd.f32 0.0, %v4717
      %v4719 = vpop.f32.mrb[0].mxu0
      %v4720 = vadd.f32 0.0, %v4719
      %v4721 = vpop.f32.mrb[0].mxu0
      %v4722 = vadd.f32 0.0, %v4721
      %v4723 = vpop.f32.mrb[0].mxu0
      %v4724 = vadd.f32 0.0, %v4723
      %4725 = vmatprep.mubr.bf16.mxu0 %v3641
      %4726 = vmatmul.mubr.bf16.gmra.mrb[0].mxu0 %v3640
      %v4727 = vpop.f32.mrb[0].mxu0
      %v4728 = vadd.f32 0.0, %v4727
      %v4729 = vpop.f32.mrb[0].mxu0
      %v4730 = vadd.f32 0.0, %v4729
      %v4731 = vpop.f32.mrb[0].mxu0
      %v4732 = vadd.f32 0.0, %v4731
      %v4733 = vpop.f32.mrb[0].mxu0
      %v4734 = vadd.f32 0.0, %v4733
      %4735 = vmatprep.mubr.bf16.mxu0 %v3644
      %4736 = vmatmul.mubr.bf16.gmra.mrb[0].mxu0 %v3643
      %v4737 = vpop.f32.mrb[0].mxu0
      %v4738 = vadd.f32 0.0, %v4737
      %v4739 = vpop.f32.mrb[0].mxu0
      %v4740 = vadd.f32 0.0, %v4739
      %v4741 = vpop.f32.mrb[0].mxu0
      %v4742 = vadd.f32 0.0, %v4741
      %v4743 = vpop.f32.mrb[0].mxu0
      %v4744 = vadd.f32 0.0, %v4743
      %4745 = vmatprep.mubr.bf16.mxu0 %v3647
      %4746 = vmatmul.mubr.bf16.gmra.mrb[0].mxu0 %v3646
      %v4747 = vpop.f32.mrb[0].mxu0
      %v4748 = vadd.f32 0.0, %v4747
      %v4749 = vpop.f32.mrb[0].mxu0
      %v4750 = vadd.f32 0.0, %v4749
      %v4751 = vpop.f32.mrb[0].mxu0
      %v4752 = vadd.f32 0.0, %v4751
      %v4753 = vpop.f32.mrb[0].mxu0
      %v4754 = vadd.f32 0.0, %v4753
      %4755 = vmatprep.mubr.bf16.mxu0 %v3650
      %4756 = vmatmul.mubr.bf16.gmra.mrb[0].mxu0 %v3649
      %v4757 = vpop.f32.mrb[0].mxu0
      %v4758 = vadd.f32 0.0, %v4757
      %v4759 = vpop.f32.mrb[0].mxu0
      %v4760 = vadd.f32 0.0, %v4759
      %v4761 = vpop.f32.mrb[0].mxu0
      %v4762 = vadd.f32 0.0, %v4761
      %v4763 = vpop.f32.mrb[0].mxu0
      %v4764 = vadd.f32 0.0, %v4763
      %4765 = vdwg.mxu0
      %4766 = vmatprep.subr.bf16.mxu0 %v2425
      %4767 = vmatpush1.bf16.msra.mxu0 %v2424
      %4768 = vmatprep.subr.bf16.mxu0 %v2427
      %4769 = vmatpush1.bf16.msra.mxu0 %v2426
      %4770 = vmatprep.subr.bf16.mxu0 0
      %4771 = vmatpush1.bf16.msra.mxu0 0
      %4772 = vmatprep.subr.bf16.mxu0 0
      %4773 = vmatpush1.bf16.msra.mxu0 0
      %4774 = vmatprep.subr.bf16.mxu0 0
      %4775 = vmatpush1.bf16.msra.mxu0 0
      %4776 = vmatprep.subr.bf16.mxu0 0
      %4777 = vmatpush1.bf16.msra.mxu0 0
      %4778 = vmatprep.subr.bf16.mxu0 0
      %4779 = vmatpush1.bf16.msra.mxu0 0
      %4780 = vmatprep.subr.bf16.mxu0 0
      %4781 = vmatpush1.bf16.msra.mxu0 0
      %4782 = vmatprep.subr.bf16.mxu0 0
      %4783 = vmatpush1.bf16.msra.mxu0 0
      %4784 = vmatprep.subr.bf16.mxu0 0
      %4785 = vmatpush1.bf16.msra.mxu0 0
      %4786 = vmatprep.subr.bf16.mxu0 0
      %4787 = vmatpush1.bf16.msra.mxu0 0
      %4788 = vmatprep.subr.bf16.mxu0 0
      %4789 = vmatpush1.bf16.msra.mxu0 0
      %4790 = vmatprep.subr.bf16.mxu0 0
      %4791 = vmatpush1.bf16.msra.mxu0 0
      %4792 = vmatprep.subr.bf16.mxu0 0
      %4793 = vmatpush1.bf16.msra.mxu0 0
      %4794 = vmatprep.subr.bf16.mxu0 0
      %4795 = vmatpush1.bf16.msra.mxu0 0
      %4796 = vmatprep.subr.bf16.mxu0 0
      %4797 = vmatpush1.bf16.msra.mxu0 0
      %4798 = vmatprep.mubr.bf16.mxu0 0
      %4799 = vmatmul.mubr.bf16.gmra.mrb[0].mxu0 %v3798
      %v4800 = vpop.f32.mrb[0].mxu0
      %v4801 = vadd.f32 %v4048, %v4800
      %v4802 = vpop.f32.mrb[0].mxu0
      %v4803 = vadd.f32 %v4050, %v4802
      %v4804 = vpop.f32.mrb[0].mxu0
      %v4805 = vadd.f32 %v4052, %v4804
      %v4806 = vpop.f32.mrb[0].mxu0
      %v4807 = vadd.f32 %v4054, %v4806
      %4808 = vmatprep.mubr.bf16.mxu0 0
      %4809 = vmatmul.mubr.bf16.gmra.mrb[0].mxu0 %v3801
      %v4810 = vpop.f32.mrb[0].mxu0
      %v4811 = vadd.f32 %v4058, %v4810
      %v4812 = vpop.f32.mrb[0].mxu0
      %v4813 = vadd.f32 %v4060, %v4812
      %v4814 = vpop.f32.mrb[0].mxu0
      %v4815 = vadd.f32 %v4062, %v4814
      %v4816 = vpop.f32.mrb[0].mxu0
      %v4817 = vadd.f32 %v4064, %v4816
      %4818 = vmatprep.mubr.bf16.mxu0 0
      %4819 = vmatmul.mubr.bf16.gmra.mrb[0].mxu0 %v3804
      %v4820 = vpop.f32.mrb[0].mxu0
      %v4821 = vadd.f32 %v4068, %v4820
      %v4822 = vpop.f32.mrb[0].mxu0
      %v4823 = vadd.f32 %v4070, %v4822
      %v4824 = vpop.f32.mrb[0].mxu0
      %v4825 = vadd.f32 %v4072, %v4824
      %v4826 = vpop.f32.mrb[0].mxu0
      %v4827 = vadd.f32 %v4074, %v4826
      %4828 = vmatprep.mubr.bf16.mxu0 0
      %4829 = vmatmul.mubr.bf16.gmra.mrb[0].mxu0 %v3807
      %v4830 = vpop.f32.mrb[0].mxu0
      %v4831 = vadd.f32 %v4078, %v4830
      %v4832 = vpop.f32.mrb[0].mxu0
      %v4833 = vadd.f32 %v4080, %v4832
      %v4834 = vpop.f32.mrb[0].mxu0
      %v4835 = vadd.f32 %v4082, %v4834
      %v4836 = vpop.f32.mrb[0].mxu0
      %v4837 = vadd.f32 %v4084, %v4836
      %4838 = vmatprep.mubr.bf16.mxu0 0
      %4839 = vmatmul.mubr.bf16.gmra.mrb[0].mxu0 %v3810
      %v4840 = vpop.f32.mrb[0].mxu0
      %v4841 = vadd.f32 %v4088, %v4840
      %v4842 = vpop.f32.mrb[0].mxu0
      %v4843 = vadd.f32 %v4090, %v4842
      %v4844 = vpop.f32.mrb[0].mxu0
      %v4845 = vadd.f32 %v4092, %v4844
      %v4846 = vpop.f32.mrb[0].mxu0
      %v4847 = vadd.f32 %v4094, %v4846
      %4848 = vmatprep.mubr.bf16.mxu0 0
      %4849 = vmatmul.mubr.bf16.gmra.mrb[0].mxu0 %v3813
      %v4850 = vpop.f32.mrb[0].mxu0
      %v4851 = vadd.f32 %v4098, %v4850
      %v4852 = vpop.f32.mrb[0].mxu0
      %v4853 = vadd.f32 %v4100, %v4852
      %v4854 = vpop.f32.mrb[0].mxu0
      %v4855 = vadd.f32 %v4102, %v4854
      %v4856 = vpop.f32.mrb[0].mxu0
      %v4857 = vadd.f32 %v4104, %v4856
      %4858 = vmatprep.mubr.bf16.mxu0 0
      %4859 = vmatmul.mubr.bf16.gmra.mrb[0].mxu0 %v3816
      %v4860 = vpop.f32.mrb[0].mxu0
      %v4861 = vadd.f32 %v4108, %v4860
      %v4862 = vpop.f32.mrb[0].mxu0
      %v4863 = vadd.f32 %v4110, %v4862
      %v4864 = vpop.f32.mrb[0].mxu0
      %v4865 = vadd.f32 %v4112, %v4864
      %v4866 = vpop.f32.mrb[0].mxu0
      %v4867 = vadd.f32 %v4114, %v4866
      %4868 = vmatprep.mubr.bf16.mxu0 0
      %4869 = vmatmul.mubr.bf16.gmra.mrb[0].mxu0 %v3819
      %v4870 = vpop.f32.mrb[0].mxu0
      %v4871 = vadd.f32 %v4118, %v4870
      %v4872 = vpop.f32.mrb[0].mxu0
      %v4873 = vadd.f32 %v4120, %v4872
      %v4874 = vpop.f32.mrb[0].mxu0
      %v4875 = vadd.f32 %v4122, %v4874
      %v4876 = vpop.f32.mrb[0].mxu0
      %v4877 = vadd.f32 %v4124, %v4876
      %4878 = vmatprep.mubr.bf16.mxu0 0
      %4879 = vmatmul.mubr.bf16.gmra.mrb[0].mxu0 %v3822
      %v4880 = vpop.f32.mrb[0].mxu0
      %v4881 = vadd.f32 %v4128, %v4880
      %v4882 = vpop.f32.mrb[0].mxu0
      %v4883 = vadd.f32 %v4130, %v4882
      %v4884 = vpop.f32.mrb[0].mxu0
      %v4885 = vadd.f32 %v4132, %v4884
      %v4886 = vpop.f32.mrb[0].mxu0
      %v4887 = vadd.f32 %v4134, %v4886
      %4888 = vmatprep.mubr.bf16.mxu0 0
      %4889 = vmatmul.mubr.bf16.gmra.mrb[0].mxu0 %v3825
      %v4890 = vpop.f32.mrb[0].mxu0
      %v4891 = vadd.f32 %v4138, %v4890
      %v4892 = vpop.f32.mrb[0].mxu0
      %v4893 = vadd.f32 %v4140, %v4892
      %v4894 = vpop.f32.mrb[0].mxu0
      %v4895 = vadd.f32 %v4142, %v4894
      %v4896 = vpop.f32.mrb[0].mxu0
      %v4897 = vadd.f32 %v4144, %v4896
      %4898 = vmatprep.mubr.bf16.mxu0 0
      %4899 = vmatmul.mubr.bf16.gmra.mrb[0].mxu0 %v3828
      %v4900 = vpop.f32.mrb[0].mxu0
      %v4901 = vadd.f32 %v4148, %v4900
      %v4902 = vpop.f32.mrb[0].mxu0
      %v4903 = vadd.f32 %v4150, %v4902
      %v4904 = vpop.f32.mrb[0].mxu0
      %v4905 = vadd.f32 %v4152, %v4904
      %v4906 = vpop.f32.mrb[0].mxu0
      %v4907 = vadd.f32 %v4154, %v4906
      %4908 = vmatprep.mubr.bf16.mxu0 0
      %4909 = vmatmul.mubr.bf16.gmra.mrb[0].mxu0 %v3831
      %v4910 = vpop.f32.mrb[0].mxu0
      %v4911 = vadd.f32 %v4158, %v4910
      %v4912 = vpop.f32.mrb[0].mxu0
      %v4913 = vadd.f32 %v4160, %v4912
      %v4914 = vpop.f32.mrb[0].mxu0
      %v4915 = vadd.f32 %v4162, %v4914
      %v4916 = vpop.f32.mrb[0].mxu0
      %v4917 = vadd.f32 %v4164, %v4916
      %4918 = vmatprep.mubr.bf16.mxu0 0
      %4919 = vmatmul.mubr.bf16.gmra.mrb[0].mxu0 %v3834
      %v4920 = vpop.f32.mrb[0].mxu0
      %v4921 = vadd.f32 %v4168, %v4920
      %v4922 = vpop.f32.mrb[0].mxu0
      %v4923 = vadd.f32 %v4170, %v4922
      %v4924 = vpop.f32.mrb[0].mxu0
      %v4925 = vadd.f32 %v4172, %v4924
      %v4926 = vpop.f32.mrb[0].mxu0
      %v4927 = vadd.f32 %v4174, %v4926
      %4928 = vmatprep.mubr.bf16.mxu0 0
      %4929 = vmatmul.mubr.bf16.gmra.mrb[0].mxu0 %v3837
      %v4930 = vpop.f32.mrb[0].mxu0
      %v4931 = vadd.f32 %v4178, %v4930
      %v4932 = vpop.f32.mrb[0].mxu0
      %v4933 = vadd.f32 %v4180, %v4932
      %v4934 = vpop.f32.mrb[0].mxu0
      %v4935 = vadd.f32 %v4182, %v4934
      %v4936 = vpop.f32.mrb[0].mxu0
      %v4937 = vadd.f32 %v4184, %v4936
      %4938 = vmatprep.mubr.bf16.mxu0 0
      %4939 = vmatmul.mubr.bf16.gmra.mrb[0].mxu0 %v3840
      %v4940 = vpop.f32.mrb[0].mxu0
      %v4941 = vadd.f32 %v4188, %v4940
      %v4942 = vpop.f32.mrb[0].mxu0
      %v4943 = vadd.f32 %v4190, %v4942
      %v4944 = vpop.f32.mrb[0].mxu0
      %v4945 = vadd.f32 %v4192, %v4944
      %v4946 = vpop.f32.mrb[0].mxu0
      %v4947 = vadd.f32 %v4194, %v4946
      %4948 = vmatprep.mubr.bf16.mxu0 0
      %4949 = vmatmul.mubr.bf16.gmra.mrb[0].mxu0 %v3843
      %v4950 = vpop.f32.mrb[0].mxu0
      %v4951 = vadd.f32 %v4198, %v4950
      %v4952 = vpop.f32.mrb[0].mxu0
      %v4953 = vadd.f32 %v4200, %v4952
      %v4954 = vpop.f32.mrb[0].mxu0
      %v4955 = vadd.f32 %v4202, %v4954
      %v4956 = vpop.f32.mrb[0].mxu0
      %v4957 = vadd.f32 %v4204, %v4956
      %4958 = vmatprep.mubr.bf16.mxu0 0
      %4959 = vmatmul.mubr.bf16.gmra.mrb[0].mxu0 %v3846
      %v4960 = vpop.f32.mrb[0].mxu0
      %v4961 = vadd.f32 %v4208, %v4960
      %v4962 = vpop.f32.mrb[0].mxu0
      %v4963 = vadd.f32 %v4210, %v4962
      %v4964 = vpop.f32.mrb[0].mxu0
      %v4965 = vadd.f32 %v4212, %v4964
      %v4966 = vpop.f32.mrb[0].mxu0
      %v4967 = vadd.f32 %v4214, %v4966
      %4968 = vmatprep.mubr.bf16.mxu0 0
      %4969 = vmatmul.mubr.bf16.gmra.mrb[0].mxu0 %v3849
      %v4970 = vpop.f32.mrb[0].mxu0
      %v4971 = vadd.f32 %v4218, %v4970
      %v4972 = vpop.f32.mrb[0].mxu0
      %v4973 = vadd.f32 %v4220, %v4972
      %v4974 = vpop.f32.mrb[0].mxu0
      %v4975 = vadd.f32 %v4222, %v4974
      %v4976 = vpop.f32.mrb[0].mxu0
      %v4977 = vadd.f32 %v4224, %v4976
      %4978 = vmatprep.mubr.bf16.mxu0 0
      %4979 = vmatmul.mubr.bf16.gmra.mrb[0].mxu0 %v3852
      %v4980 = vpop.f32.mrb[0].mxu0
      %v4981 = vadd.f32 %v4228, %v4980
      %v4982 = vpop.f32.mrb[0].mxu0
      %v4983 = vadd.f32 %v4230, %v4982
      %v4984 = vpop.f32.mrb[0].mxu0
      %v4985 = vadd.f32 %v4232, %v4984
      %v4986 = vpop.f32.mrb[0].mxu0
      %v4987 = vadd.f32 %v4234, %v4986
      %4988 = vmatprep.mubr.bf16.mxu0 0
      %4989 = vmatmul.mubr.bf16.gmra.mrb[0].mxu0 %v3855
      %v4990 = vpop.f32.mrb[0].mxu0
      %v4991 = vadd.f32 %v4238, %v4990
      %v4992 = vpop.f32.mrb[0].mxu0
      %v4993 = vadd.f32 %v4240, %v4992
      %v4994 = vpop.f32.mrb[0].mxu0
      %v4995 = vadd.f32 %v4242, %v4994
      %v4996 = vpop.f32.mrb[0].mxu0
      %v4997 = vadd.f32 %v4244, %v4996
      %4998 = vmatprep.mubr.bf16.mxu0 0
      %4999 = vmatmul.mubr.bf16.gmra.mrb[0].mxu0 %v3858
      %v5000 = vpop.f32.mrb[0].mxu0
      %v5001 = vadd.f32 %v4248, %v5000
      %v5002 = vpop.f32.mrb[0].mxu0
      %v5003 = vadd.f32 %v4250, %v5002
      %v5004 = vpop.f32.mrb[0].mxu0
      %v5005 = vadd.f32 %v4252, %v5004
      %v5006 = vpop.f32.mrb[0].mxu0
      %v5007 = vadd.f32 %v4254, %v5006
      %5008 = vmatprep.mubr.bf16.mxu0 0
      %5009 = vmatmul.mubr.bf16.gmra.mrb[0].mxu0 %v3861
      %v5010 = vpop.f32.mrb[0].mxu0
      %v5011 = vadd.f32 %v4258, %v5010
      %v5012 = vpop.f32.mrb[0].mxu0
      %v5013 = vadd.f32 %v4260, %v5012
      %v5014 = vpop.f32.mrb[0].mxu0
      %v5015 = vadd.f32 %v4262, %v5014
      %v5016 = vpop.f32.mrb[0].mxu0
      %v5017 = vadd.f32 %v4264, %v5016
      %5018 = vmatprep.mubr.bf16.mxu0 0
      %5019 = vmatmul.mubr.bf16.gmra.mrb[0].mxu0 %v3864
      %v5020 = vpop.f32.mrb[0].mxu0
      %v5021 = vadd.f32 %v4268, %v5020
      %v5022 = vpop.f32.mrb[0].mxu0
      %v5023 = vadd.f32 %v4270, %v5022
      %v5024 = vpop.f32.mrb[0].mxu0
      %v5025 = vadd.f32 %v4272, %v5024
      %v5026 = vpop.f32.mrb[0].mxu0
      %v5027 = vadd.f32 %v4274, %v5026
      %5028 = vmatprep.mubr.bf16.mxu0 0
      %5029 = vmatmul.mubr.bf16.gmra.mrb[0].mxu0 %v3867
      %v5030 = vpop.f32.mrb[0].mxu0
      %v5031 = vadd.f32 %v4278, %v5030
      %v5032 = vpop.f32.mrb[0].mxu0
      %v5033 = vadd.f32 %v4280, %v5032
      %v5034 = vpop.f32.mrb[0].mxu0
      %v5035 = vadd.f32 %v4282, %v5034
      %v5036 = vpop.f32.mrb[0].mxu0
      %v5037 = vadd.f32 %v4284, %v5036
      %5038 = vmatprep.mubr.bf16.mxu0 0
      %5039 = vmatmul.mubr.bf16.gmra.mrb[0].mxu0 %v3870
      %v5040 = vpop.f32.mrb[0].mxu0
      %v5041 = vadd.f32 %v4288, %v5040
      %v5042 = vpop.f32.mrb[0].mxu0
      %v5043 = vadd.f32 %v4290, %v5042
      %v5044 = vpop.f32.mrb[0].mxu0
      %v5045 = vadd.f32 %v4292, %v5044
      %v5046 = vpop.f32.mrb[0].mxu0
      %v5047 = vadd.f32 %v4294, %v5046
      %5048 = vmatprep.mubr.bf16.mxu0 0
      %5049 = vmatmul.mubr.bf16.gmra.mrb[0].mxu0 %v3873
      %v5050 = vpop.f32.mrb[0].mxu0
      %v5051 = vadd.f32 %v4298, %v5050
      %v5052 = vpop.f32.mrb[0].mxu0
      %v5053 = vadd.f32 %v4300, %v5052
      %v5054 = vpop.f32.mrb[0].mxu0
      %v5055 = vadd.f32 %v4302, %v5054
      %v5056 = vpop.f32.mrb[0].mxu0
      %v5057 = vadd.f32 %v4304, %v5056
      %5058 = vmatprep.mubr.bf16.mxu0 0
      %5059 = vmatmul.mubr.bf16.gmra.mrb[0].mxu0 %v3876
      %v5060 = vpop.f32.mrb[0].mxu0
      %v5061 = vadd.f32 %v4308, %v5060
      %v5062 = vpop.f32.mrb[0].mxu0
      %v5063 = vadd.f32 %v4310, %v5062
      %v5064 = vpop.f32.mrb[0].mxu0
      %v5065 = vadd.f32 %v4312, %v5064
      %v5066 = vpop.f32.mrb[0].mxu0
      %v5067 = vadd.f32 %v4314, %v5066
      %5068 = vmatprep.mubr.bf16.mxu0 0
      %5069 = vmatmul.mubr.bf16.gmra.mrb[0].mxu0 %v3879
      %v5070 = vpop.f32.mrb[0].mxu0
      %v5071 = vadd.f32 %v4318, %v5070
      %v5072 = vpop.f32.mrb[0].mxu0
      %v5073 = vadd.f32 %v4320, %v5072
      %v5074 = vpop.f32.mrb[0].mxu0
      %v5075 = vadd.f32 %v4322, %v5074
      %v5076 = vpop.f32.mrb[0].mxu0
      %v5077 = vadd.f32 %v4324, %v5076
      %5078 = vmatprep.mubr.bf16.mxu0 0
      %5079 = vmatmul.mubr.bf16.gmra.mrb[0].mxu0 %v3882
      %v5080 = vpop.f32.mrb[0].mxu0
      %v5081 = vadd.f32 %v4328, %v5080
      %v5082 = vpop.f32.mrb[0].mxu0
      %v5083 = vadd.f32 %v4330, %v5082
      %v5084 = vpop.f32.mrb[0].mxu0
      %v5085 = vadd.f32 %v4332, %v5084
      %v5086 = vpop.f32.mrb[0].mxu0
      %v5087 = vadd.f32 %v4334, %v5086
      %5088 = vmatprep.mubr.bf16.mxu0 0
      %5089 = vmatmul.mubr.bf16.gmra.mrb[0].mxu0 %v3885
      %v5090 = vpop.f32.mrb[0].mxu0
      %v5091 = vadd.f32 %v4338, %v5090
      %v5092 = vpop.f32.mrb[0].mxu0
      %v5093 = vadd.f32 %v4340, %v5092
      %v5094 = vpop.f32.mrb[0].mxu0
      %v5095 = vadd.f32 %v4342, %v5094
      %v5096 = vpop.f32.mrb[0].mxu0
      %v5097 = vadd.f32 %v4344, %v5096
      %5098 = vmatprep.mubr.bf16.mxu0 0
      %5099 = vmatmul.mubr.bf16.gmra.mrb[0].mxu0 %v3888
      %v5100 = vpop.f32.mrb[0].mxu0
      %v5101 = vadd.f32 %v4348, %v5100
      %v5102 = vpop.f32.mrb[0].mxu0
      %v5103 = vadd.f32 %v4350, %v5102
      %v5104 = vpop.f32.mrb[0].mxu0
      %v5105 = vadd.f32 %v4352, %v5104
      %v5106 = vpop.f32.mrb[0].mxu0
      %v5107 = vadd.f32 %v4354, %v5106
      %5108 = vmatprep.mubr.bf16.mxu0 0
      %5109 = vmatmul.mubr.bf16.gmra.mrb[0].mxu0 %v3891
      %v5110 = vpop.f32.mrb[0].mxu0
      %v5111 = vadd.f32 %v4358, %v5110
      %v5112 = vpop.f32.mrb[0].mxu0
      %v5113 = vadd.f32 %v4360, %v5112
      %v5114 = vpop.f32.mrb[0].mxu0
      %v5115 = vadd.f32 %v4362, %v5114
      %v5116 = vpop.f32.mrb[0].mxu0
      %v5117 = vadd.f32 %v4364, %v5116
      %5118 = vmatprep.mubr.bf16.mxu0 0
      %5119 = vmatmul.mubr.bf16.gmra.mrb[0].mxu0 %v3894
      %v5120 = vpop.f32.mrb[0].mxu0
      %v5121 = vadd.f32 %v4368, %v5120
      %v5122 = vpop.f32.mrb[0].mxu0
      %v5123 = vadd.f32 %v4370, %v5122
      %v5124 = vpop.f32.mrb[0].mxu0
      %v5125 = vadd.f32 %v4372, %v5124
      %v5126 = vpop.f32.mrb[0].mxu0
      %v5127 = vadd.f32 %v4374, %v5126
      %5128 = vmatprep.mubr.bf16.mxu0 0
      %5129 = vmatmul.mubr.bf16.gmra.mrb[0].mxu0 %v3897
      %v5130 = vpop.f32.mrb[0].mxu0
      %v5131 = vadd.f32 %v4378, %v5130
      %v5132 = vpop.f32.mrb[0].mxu0
      %v5133 = vadd.f32 %v4380, %v5132
      %v5134 = vpop.f32.mrb[0].mxu0
      %v5135 = vadd.f32 %v4382, %v5134
      %v5136 = vpop.f32.mrb[0].mxu0
      %v5137 = vadd.f32 %v4384, %v5136
      %5138 = vmatprep.mubr.bf16.mxu0 0
      %5139 = vmatmul.mubr.bf16.gmra.mrb[0].mxu0 %v3900
      %v5140 = vpop.f32.mrb[0].mxu0
      %v5141 = vadd.f32 %v4388, %v5140
      %v5142 = vpop.f32.mrb[0].mxu0
      %v5143 = vadd.f32 %v4390, %v5142
      %v5144 = vpop.f32.mrb[0].mxu0
      %v5145 = vadd.f32 %v4392, %v5144
      %v5146 = vpop.f32.mrb[0].mxu0
      %v5147 = vadd.f32 %v4394, %v5146
      %5148 = vmatprep.mubr.bf16.mxu0 0
      %5149 = vmatmul.mubr.bf16.gmra.mrb[0].mxu0 %v3903
      %v5150 = vpop.f32.mrb[0].mxu0
      %v5151 = vadd.f32 %v4398, %v5150
      %v5152 = vpop.f32.mrb[0].mxu0
      %v5153 = vadd.f32 %v4400, %v5152
      %v5154 = vpop.f32.mrb[0].mxu0
      %v5155 = vadd.f32 %v4402, %v5154
      %v5156 = vpop.f32.mrb[0].mxu0
      %v5157 = vadd.f32 %v4404, %v5156
      %5158 = vmatprep.mubr.bf16.mxu0 0
      %5159 = vmatmul.mubr.bf16.gmra.mrb[0].mxu0 %v3906
      %v5160 = vpop.f32.mrb[0].mxu0
      %v5161 = vadd.f32 %v4408, %v5160
      %v5162 = vpop.f32.mrb[0].mxu0
      %v5163 = vadd.f32 %v4410, %v5162
      %v5164 = vpop.f32.mrb[0].mxu0
      %v5165 = vadd.f32 %v4412, %v5164
      %v5166 = vpop.f32.mrb[0].mxu0
      %v5167 = vadd.f32 %v4414, %v5166
      %5168 = vmatprep.mubr.bf16.mxu0 0
      %5169 = vmatmul.mubr.bf16.gmra.mrb[0].mxu0 %v3909
      %v5170 = vpop.f32.mrb[0].mxu0
      %v5171 = vadd.f32 %v4418, %v5170
      %v5172 = vpop.f32.mrb[0].mxu0
      %v5173 = vadd.f32 %v4420, %v5172
      %v5174 = vpop.f32.mrb[0].mxu0
      %v5175 = vadd.f32 %v4422, %v5174
      %v5176 = vpop.f32.mrb[0].mxu0
      %v5177 = vadd.f32 %v4424, %v5176
      %5178 = vmatprep.mubr.bf16.mxu0 0
      %5179 = vmatmul.mubr.bf16.gmra.mrb[0].mxu0 %v3912
      %v5180 = vpop.f32.mrb[0].mxu0
      %v5181 = vadd.f32 %v4428, %v5180
      %v5182 = vpop.f32.mrb[0].mxu0
      %v5183 = vadd.f32 %v4430, %v5182
      %v5184 = vpop.f32.mrb[0].mxu0
      %v5185 = vadd.f32 %v4432, %v5184
      %v5186 = vpop.f32.mrb[0].mxu0
      %v5187 = vadd.f32 %v4434, %v5186
      %5188 = vmatprep.mubr.bf16.mxu0 0
      %5189 = vmatmul.mubr.bf16.gmra.mrb[0].mxu0 %v3915
      %v5190 = vpop.f32.mrb[0].mxu0
      %v5191 = vadd.f32 %v4438, %v5190
      %v5192 = vpop.f32.mrb[0].mxu0
      %v5193 = vadd.f32 %v4440, %v5192
      %v5194 = vpop.f32.mrb[0].mxu0
      %v5195 = vadd.f32 %v4442, %v5194
      %v5196 = vpop.f32.mrb[0].mxu0
      %v5197 = vadd.f32 %v4444, %v5196
      %5198 = vmatprep.mubr.bf16.mxu0 0
      %5199 = vmatmul.mubr.bf16.gmra.mrb[0].mxu0 %v3918
      %v5200 = vpop.f32.mrb[0].mxu0
      %v5201 = vadd.f32 %v4448, %v5200
      %v5202 = vpop.f32.mrb[0].mxu0
      %v5203 = vadd.f32 %v4450, %v5202
      %v5204 = vpop.f32.mrb[0].mxu0
      %v5205 = vadd.f32 %v4452, %v5204
      %v5206 = vpop.f32.mrb[0].mxu0
      %v5207 = vadd.f32 %v4454, %v5206
      %5208 = vmatprep.mubr.bf16.mxu0 0
      %5209 = vmatmul.mubr.bf16.gmra.mrb[0].mxu0 %v3921
      %v5210 = vpop.f32.mrb[0].mxu0
      %v5211 = vadd.f32 %v4458, %v5210
      %v5212 = vpop.f32.mrb[0].mxu0
      %v5213 = vadd.f32 %v4460, %v5212
      %v5214 = vpop.f32.mrb[0].mxu0
      %v5215 = vadd.f32 %v4462, %v5214
      %v5216 = vpop.f32.mrb[0].mxu0
      %v5217 = vadd.f32 %v4464, %v5216
      %5218 = vmatprep.mubr.bf16.mxu0 0
      %5219 = vmatmul.mubr.bf16.gmra.mrb[0].mxu0 %v3924
      %v5220 = vpop.f32.mrb[0].mxu0
      %v5221 = vadd.f32 %v4468, %v5220
      %v5222 = vpop.f32.mrb[0].mxu0
      %v5223 = vadd.f32 %v4470, %v5222
      %v5224 = vpop.f32.mrb[0].mxu0
      %v5225 = vadd.f32 %v4472, %v5224
      %v5226 = vpop.f32.mrb[0].mxu0
      %v5227 = vadd.f32 %v4474, %v5226
      %5228 = vmatprep.mubr.bf16.mxu0 0
      %5229 = vmatmul.mubr.bf16.gmra.mrb[0].mxu0 %v3927
      %v5230 = vpop.f32.mrb[0].mxu0
      %v5231 = vadd.f32 %v4478, %v5230
      %v5232 = vpop.f32.mrb[0].mxu0
      %v5233 = vadd.f32 %v4480, %v5232
      %v5234 = vpop.f32.mrb[0].mxu0
      %v5235 = vadd.f32 %v4482, %v5234
      %v5236 = vpop.f32.mrb[0].mxu0
      %v5237 = vadd.f32 %v4484, %v5236
      %5238 = vmatprep.mubr.bf16.mxu0 0
      %5239 = vmatmul.mubr.bf16.gmra.mrb[0].mxu0 %v3930
      %v5240 = vpop.f32.mrb[0].mxu0
      %v5241 = vadd.f32 %v4488, %v5240
      %v5242 = vpop.f32.mrb[0].mxu0
      %v5243 = vadd.f32 %v4490, %v5242
      %v5244 = vpop.f32.mrb[0].mxu0
      %v5245 = vadd.f32 %v4492, %v5244
      %v5246 = vpop.f32.mrb[0].mxu0
      %v5247 = vadd.f32 %v4494, %v5246
      %5248 = vmatprep.mubr.bf16.mxu0 0
      %5249 = vmatmul.mubr.bf16.gmra.mrb[0].mxu0 %v3933
      %v5250 = vpop.f32.mrb[0].mxu0
      %v5251 = vadd.f32 %v4498, %v5250
      %v5252 = vpop.f32.mrb[0].mxu0
      %v5253 = vadd.f32 %v4500, %v5252
      %v5254 = vpop.f32.mrb[0].mxu0
      %v5255 = vadd.f32 %v4502, %v5254
      %v5256 = vpop.f32.mrb[0].mxu0
      %v5257 = vadd.f32 %v4504, %v5256
      %5258 = vmatprep.mubr.bf16.mxu0 0
      %5259 = vmatmul.mubr.bf16.gmra.mrb[0].mxu0 %v3936
      %v5260 = vpop.f32.mrb[0].mxu0
      %v5261 = vadd.f32 %v4508, %v5260
      %v5262 = vpop.f32.mrb[0].mxu0
      %v5263 = vadd.f32 %v4510, %v5262
      %v5264 = vpop.f32.mrb[0].mxu0
      %v5265 = vadd.f32 %v4512, %v5264
      %v5266 = vpop.f32.mrb[0].mxu0
      %v5267 = vadd.f32 %v4514, %v5266
      %5268 = vmatprep.mubr.bf16.mxu0 0
      %5269 = vmatmul.mubr.bf16.gmra.mrb[0].mxu0 %v3939
      %v5270 = vpop.f32.mrb[0].mxu0
      %v5271 = vadd.f32 %v4518, %v5270
      %v5272 = vpop.f32.mrb[0].mxu0
      %v5273 = vadd.f32 %v4520, %v5272
      %v5274 = vpop.f32.mrb[0].mxu0
      %v5275 = vadd.f32 %v4522, %v5274
      %v5276 = vpop.f32.mrb[0].mxu0
      %v5277 = vadd.f32 %v4524, %v5276
      %5278 = vmatprep.mubr.bf16.mxu0 0
      %5279 = vmatmul.mubr.bf16.gmra.mrb[0].mxu0 %v3942
      %v5280 = vpop.f32.mrb[0].mxu0
      %v5281 = vadd.f32 %v4528, %v5280
      %v5282 = vpop.f32.mrb[0].mxu0
      %v5283 = vadd.f32 %v4530, %v5282
      %v5284 = vpop.f32.mrb[0].mxu0
      %v5285 = vadd.f32 %v4532, %v5284
      %v5286 = vpop.f32.mrb[0].mxu0
      %v5287 = vadd.f32 %v4534, %v5286
      %5288 = vmatprep.mubr.bf16.mxu0 0
      %5289 = vmatmul.mubr.bf16.gmra.mrb[0].mxu0 %v3945
      %v5290 = vpop.f32.mrb[0].mxu0
      %v5291 = vadd.f32 %v4538, %v5290
      %v5292 = vpop.f32.mrb[0].mxu0
      %v5293 = vadd.f32 %v4540, %v5292
      %v5294 = vpop.f32.mrb[0].mxu0
      %v5295 = vadd.f32 %v4542, %v5294
      %v5296 = vpop.f32.mrb[0].mxu0
      %v5297 = vadd.f32 %v4544, %v5296
      %5298 = vmatprep.mubr.bf16.mxu0 0
      %5299 = vmatmul.mubr.bf16.gmra.mrb[0].mxu0 %v3948
      %v5300 = vpop.f32.mrb[0].mxu0
      %v5301 = vadd.f32 %v4548, %v5300
      %v5302 = vpop.f32.mrb[0].mxu0
      %v5303 = vadd.f32 %v4550, %v5302
      %v5304 = vpop.f32.mrb[0].mxu0
      %v5305 = vadd.f32 %v4552, %v5304
      %v5306 = vpop.f32.mrb[0].mxu0
      %v5307 = vadd.f32 %v4554, %v5306
      %5308 = vmatprep.mubr.bf16.mxu0 0
      %5309 = vmatmul.mubr.bf16.gmra.mrb[0].mxu0 %v3951
      %v5310 = vpop.f32.mrb[0].mxu0
      %v5311 = vadd.f32 %v4558, %v5310
      %v5312 = vpop.f32.mrb[0].mxu0
      %v5313 = vadd.f32 %v4560, %v5312
      %v5314 = vpop.f32.mrb[0].mxu0
      %v5315 = vadd.f32 %v4562, %v5314
      %v5316 = vpop.f32.mrb[0].mxu0
      %v5317 = vadd.f32 %v4564, %v5316
      %5318 = vmatprep.mubr.bf16.mxu0 0
      %5319 = vmatmul.mubr.bf16.gmra.mrb[0].mxu0 %v3954
      %v5320 = vpop.f32.mrb[0].mxu0
      %v5321 = vadd.f32 %v4568, %v5320
      %v5322 = vpop.f32.mrb[0].mxu0
      %v5323 = vadd.f32 %v4570, %v5322
      %v5324 = vpop.f32.mrb[0].mxu0
      %v5325 = vadd.f32 %v4572, %v5324
      %v5326 = vpop.f32.mrb[0].mxu0
      %v5327 = vadd.f32 %v4574, %v5326
      %5328 = vmatprep.mubr.bf16.mxu0 0
      %5329 = vmatmul.mubr.bf16.gmra.mrb[0].mxu0 %v3957
      %v5330 = vpop.f32.mrb[0].mxu0
      %v5331 = vadd.f32 %v4578, %v5330
      %v5332 = vpop.f32.mrb[0].mxu0
      %v5333 = vadd.f32 %v4580, %v5332
      %v5334 = vpop.f32.mrb[0].mxu0
      %v5335 = vadd.f32 %v4582, %v5334
      %v5336 = vpop.f32.mrb[0].mxu0
      %v5337 = vadd.f32 %v4584, %v5336
      %5338 = vmatprep.mubr.bf16.mxu0 0
      %5339 = vmatmul.mubr.bf16.gmra.mrb[0].mxu0 %v3960
      %v5340 = vpop.f32.mrb[0].mxu0
      %v5341 = vadd.f32 %v4588, %v5340
      %v5342 = vpop.f32.mrb[0].mxu0
      %v5343 = vadd.f32 %v4590, %v5342
      %v5344 = vpop.f32.mrb[0].mxu0
      %v5345 = vadd.f32 %v4592, %v5344
      %v5346 = vpop.f32.mrb[0].mxu0
      %v5347 = vadd.f32 %v4594, %v5346
      %5348 = vmatprep.mubr.bf16.mxu0 0
      %5349 = vmatmul.mubr.bf16.gmra.mrb[0].mxu0 %v3963
      %v5350 = vpop.f32.mrb[0].mxu0
      %v5351 = vadd.f32 %v4598, %v5350
      %v5352 = vpop.f32.mrb[0].mxu0
      %v5353 = vadd.f32 %v4600, %v5352
      %v5354 = vpop.f32.mrb[0].mxu0
      %v5355 = vadd.f32 %v4602, %v5354
      %v5356 = vpop.f32.mrb[0].mxu0
      %v5357 = vadd.f32 %v4604, %v5356
      %5358 = vmatprep.mubr.bf16.mxu0 0
      %5359 = vmatmul.mubr.bf16.gmra.mrb[0].mxu0 %v3966
      %v5360 = vpop.f32.mrb[0].mxu0
      %v5361 = vadd.f32 %v4608, %v5360
      %v5362 = vpop.f32.mrb[0].mxu0
      %v5363 = vadd.f32 %v4610, %v5362
      %v5364 = vpop.f32.mrb[0].mxu0
      %v5365 = vadd.f32 %v4612, %v5364
      %v5366 = vpop.f32.mrb[0].mxu0
      %v5367 = vadd.f32 %v4614, %v5366
      %5368 = vmatprep.mubr.bf16.mxu0 0
      %5369 = vmatmul.mubr.bf16.gmra.mrb[0].mxu0 %v3969
      %v5370 = vpop.f32.mrb[0].mxu0
      %v5371 = vadd.f32 %v4618, %v5370
      %v5372 = vpop.f32.mrb[0].mxu0
      %v5373 = vadd.f32 %v4620, %v5372
      %v5374 = vpop.f32.mrb[0].mxu0
      %v5375 = vadd.f32 %v4622, %v5374
      %v5376 = vpop.f32.mrb[0].mxu0
      %v5377 = vadd.f32 %v4624, %v5376
      %5378 = vmatprep.mubr.bf16.mxu0 0
      %5379 = vmatmul.mubr.bf16.gmra.mrb[0].mxu0 %v3972
      %v5380 = vpop.f32.mrb[0].mxu0
      %v5381 = vadd.f32 %v4628, %v5380
      %v5382 = vpop.f32.mrb[0].mxu0
      %v5383 = vadd.f32 %v4630, %v5382
      %v5384 = vpop.f32.mrb[0].mxu0
      %v5385 = vadd.f32 %v4632, %v5384
      %v5386 = vpop.f32.mrb[0].mxu0
      %v5387 = vadd.f32 %v4634, %v5386
      %5388 = vmatprep.mubr.bf16.mxu0 0
      %5389 = vmatmul.mubr.bf16.gmra.mrb[0].mxu0 %v3975
      %v5390 = vpop.f32.mrb[0].mxu0
      %v5391 = vadd.f32 %v4638, %v5390
      %v5392 = vpop.f32.mrb[0].mxu0
      %v5393 = vadd.f32 %v4640, %v5392
      %v5394 = vpop.f32.mrb[0].mxu0
      %v5395 = vadd.f32 %v4642, %v5394
      %v5396 = vpop.f32.mrb[0].mxu0
      %v5397 = vadd.f32 %v4644, %v5396
      %5398 = vmatprep.mubr.bf16.mxu0 0
      %5399 = vmatmul.mubr.bf16.gmra.mrb[0].mxu0 %v3978
      %v5400 = vpop.f32.mrb[0].mxu0
      %v5401 = vadd.f32 %v4648, %v5400
      %v5402 = vpop.f32.mrb[0].mxu0
      %v5403 = vadd.f32 %v4650, %v5402
      %v5404 = vpop.f32.mrb[0].mxu0
      %v5405 = vadd.f32 %v4652, %v5404
      %v5406 = vpop.f32.mrb[0].mxu0
      %v5407 = vadd.f32 %v4654, %v5406
      %5408 = vmatprep.mubr.bf16.mxu0 0
      %5409 = vmatmul.mubr.bf16.gmra.mrb[0].mxu0 %v3981
      %v5410 = vpop.f32.mrb[0].mxu0
      %v5411 = vadd.f32 %v4658, %v5410
      %v5412 = vpop.f32.mrb[0].mxu0
      %v5413 = vadd.f32 %v4660, %v5412
      %v5414 = vpop.f32.mrb[0].mxu0
      %v5415 = vadd.f32 %v4662, %v5414
      %v5416 = vpop.f32.mrb[0].mxu0
      %v5417 = vadd.f32 %v4664, %v5416
      %5418 = vmatprep.mubr.bf16.mxu0 0
      %5419 = vmatmul.mubr.bf16.gmra.mrb[0].mxu0 %v3984
      %v5420 = vpop.f32.mrb[0].mxu0
      %v5421 = vadd.f32 %v4668, %v5420
      %v5422 = vpop.f32.mrb[0].mxu0
      %v5423 = vadd.f32 %v4670, %v5422
      %v5424 = vpop.f32.mrb[0].mxu0
      %v5425 = vadd.f32 %v4672, %v5424
      %v5426 = vpop.f32.mrb[0].mxu0
      %v5427 = vadd.f32 %v4674, %v5426
      %5428 = vmatprep.mubr.bf16.mxu0 0
      %5429 = vmatmul.mubr.bf16.gmra.mrb[0].mxu0 %v3987
      %v5430 = vpop.f32.mrb[0].mxu0
      %v5431 = vadd.f32 %v4678, %v5430
      %v5432 = vpop.f32.mrb[0].mxu0
      %v5433 = vadd.f32 %v4680, %v5432
      %v5434 = vpop.f32.mrb[0].mxu0
      %v5435 = vadd.f32 %v4682, %v5434
      %v5436 = vpop.f32.mrb[0].mxu0
      %v5437 = vadd.f32 %v4684, %v5436
      %5438 = vmatprep.mubr.bf16.mxu0 0
      %5439 = vmatmul.mubr.bf16.gmra.mrb[0].mxu0 %v3990
      %v5440 = vpop.f32.mrb[0].mxu0
      %v5441 = vadd.f32 %v4688, %v5440
      %v5442 = vpop.f32.mrb[0].mxu0
      %v5443 = vadd.f32 %v4690, %v5442
      %v5444 = vpop.f32.mrb[0].mxu0
      %v5445 = vadd.f32 %v4692, %v5444
      %v5446 = vpop.f32.mrb[0].mxu0
      %v5447 = vadd.f32 %v4694, %v5446
      %5448 = vmatprep.mubr.bf16.mxu0 0
      %5449 = vmatmul.mubr.bf16.gmra.mrb[0].mxu0 %v3993
      %v5450 = vpop.f32.mrb[0].mxu0
      %v5451 = vadd.f32 %v4698, %v5450
      %v5452 = vpop.f32.mrb[0].mxu0
      %v5453 = vadd.f32 %v4700, %v5452
      %v5454 = vpop.f32.mrb[0].mxu0
      %v5455 = vadd.f32 %v4702, %v5454
      %v5456 = vpop.f32.mrb[0].mxu0
      %v5457 = vadd.f32 %v4704, %v5456
      %5458 = vmatprep.mubr.bf16.mxu0 0
      %5459 = vmatmul.mubr.bf16.gmra.mrb[0].mxu0 %v3996
      %v5460 = vpop.f32.mrb[0].mxu0
      %v5461 = vadd.f32 %v4708, %v5460
      %v5462 = vpop.f32.mrb[0].mxu0
      %v5463 = vadd.f32 %v4710, %v5462
      %v5464 = vpop.f32.mrb[0].mxu0
      %v5465 = vadd.f32 %v4712, %v5464
      %v5466 = vpop.f32.mrb[0].mxu0
      %v5467 = vadd.f32 %v4714, %v5466
      %5468 = vmatprep.mubr.bf16.mxu0 0
      %5469 = vmatmul.mubr.bf16.gmra.mrb[0].mxu0 %v3999
      %v5470 = vpop.f32.mrb[0].mxu0
      %v5471 = vadd.f32 %v4718, %v5470
      %v5472 = vpop.f32.mrb[0].mxu0
      %v5473 = vadd.f32 %v4720, %v5472
      %v5474 = vpop.f32.mrb[0].mxu0
      %v5475 = vadd.f32 %v4722, %v5474
      %v5476 = vpop.f32.mrb[0].mxu0
      %v5477 = vadd.f32 %v4724, %v5476
      %5478 = vmatprep.mubr.bf16.mxu0 0
      %5479 = vmatmul.mubr.bf16.gmra.mrb[0].mxu0 %v4002
      %v5480 = vpop.f32.mrb[0].mxu0
      %v5481 = vadd.f32 %v4728, %v5480
      %v5482 = vpop.f32.mrb[0].mxu0
      %v5483 = vadd.f32 %v4730, %v5482
      %v5484 = vpop.f32.mrb[0].mxu0
      %v5485 = vadd.f32 %v4732, %v5484
      %v5486 = vpop.f32.mrb[0].mxu0
      %v5487 = vadd.f32 %v4734, %v5486
      %5488 = vmatprep.mubr.bf16.mxu0 0
      %5489 = vmatmul.mubr.bf16.gmra.mrb[0].mxu0 %v4005
      %v5490 = vpop.f32.mrb[0].mxu0
      %v5491 = vadd.f32 %v4738, %v5490
      %v5492 = vpop.f32.mrb[0].mxu0
      %v5493 = vadd.f32 %v4740, %v5492
      %v5494 = vpop.f32.mrb[0].mxu0
      %v5495 = vadd.f32 %v4742, %v5494
      %v5496 = vpop.f32.mrb[0].mxu0
      %v5497 = vadd.f32 %v4744, %v5496
      %5498 = vmatprep.mubr.bf16.mxu0 0
      %5499 = vmatmul.mubr.bf16.gmra.mrb[0].mxu0 %v4008
      %v5500 = vpop.f32.mrb[0].mxu0
      %v5501 = vadd.f32 %v4748, %v5500
      %v5502 = vpop.f32.mrb[0].mxu0
      %v5503 = vadd.f32 %v4750, %v5502
      %v5504 = vpop.f32.mrb[0].mxu0
      %v5505 = vadd.f32 %v4752, %v5504
      %v5506 = vpop.f32.mrb[0].mxu0
      %v5507 = vadd.f32 %v4754, %v5506
      %5508 = vmatprep.mubr.bf16.mxu0 0
      %5509 = vmatmul.mubr.bf16.gmra.mrb[0].mxu0 %v4011
      %v5510 = vpop.f32.mrb[0].mxu0
      %v5511 = vadd.f32 %v4758, %v5510
      %v5512 = vpop.f32.mrb[0].mxu0
      %v5513 = vadd.f32 %v4760, %v5512
      %v5514 = vpop.f32.mrb[0].mxu0
      %v5515 = vadd.f32 %v4762, %v5514
      %v5516 = vpop.f32.mrb[0].mxu0
      %v5517 = vadd.f32 %v4764, %v5516
      %5518 = vdwg.mxu0
      %v5519 = vpack.c.bf16 %v4805, %v4801
      %v5520 = vpack.c.bf16 %v4807, %v4803
      %v5521 = vpack.c.bf16 %v4815, %v4811
      %v5522 = vpack.c.bf16 %v4817, %v4813
      %v5523 = vpack.c.bf16 %v4825, %v4821
      %v5524 = vpack.c.bf16 %v4827, %v4823
      %v5525 = vpack.c.bf16 %v4835, %v4831
      %v5526 = vpack.c.bf16 %v4837, %v4833
      %v5527 = vpack.c.bf16 %v4845, %v4841
      %v5528 = vpack.c.bf16 %v4847, %v4843
      %v5529 = vpack.c.bf16 %v4855, %v4851
      %v5530 = vpack.c.bf16 %v4857, %v4853
      %v5531 = vpack.c.bf16 %v4865, %v4861
      %v5532 = vpack.c.bf16 %v4867, %v4863
      %v5533 = vpack.c.bf16 %v4875, %v4871
      %v5534 = vpack.c.bf16 %v4877, %v4873
      %v5535 = vpack.c.bf16 %v4885, %v4881
      %v5536 = vpack.c.bf16 %v4887, %v4883
      %v5537 = vpack.c.bf16 %v4895, %v4891
      %v5538 = vpack.c.bf16 %v4897, %v4893
      %v5539 = vpack.c.bf16 %v4905, %v4901
      %v5540 = vpack.c.bf16 %v4907, %v4903
      %v5541 = vpack.c.bf16 %v4915, %v4911
      %v5542 = vpack.c.bf16 %v4917, %v4913
      %v5543 = vpack.c.bf16 %v4925, %v4921
      %v5544 = vpack.c.bf16 %v4927, %v4923
      %v5545 = vpack.c.bf16 %v4935, %v4931
      %v5546 = vpack.c.bf16 %v4937, %v4933
      %v5547 = vpack.c.bf16 %v4945, %v4941
      %v5548 = vpack.c.bf16 %v4947, %v4943
      %v5549 = vpack.c.bf16 %v4955, %v4951
      %v5550 = vpack.c.bf16 %v4957, %v4953
      %v5551 = vpack.c.bf16 %v4965, %v4961
      %v5552 = vpack.c.bf16 %v4967, %v4963
      %v5553 = vpack.c.bf16 %v4975, %v4971
      %v5554 = vpack.c.bf16 %v4977, %v4973
      %v5555 = vpack.c.bf16 %v4985, %v4981
      %v5556 = vpack.c.bf16 %v4987, %v4983
      %v5557 = vpack.c.bf16 %v4995, %v4991
      %v5558 = vpack.c.bf16 %v4997, %v4993
      %v5559 = vpack.c.bf16 %v5005, %v5001
      %v5560 = vpack.c.bf16 %v5007, %v5003
      %v5561 = vpack.c.bf16 %v5015, %v5011
      %v5562 = vpack.c.bf16 %v5017, %v5013
      %v5563 = vpack.c.bf16 %v5025, %v5021
      %v5564 = vpack.c.bf16 %v5027, %v5023
      %v5565 = vpack.c.bf16 %v5035, %v5031
      %v5566 = vpack.c.bf16 %v5037, %v5033
      %v5567 = vpack.c.bf16 %v5045, %v5041
      %v5568 = vpack.c.bf16 %v5047, %v5043
      %v5569 = vpack.c.bf16 %v5055, %v5051
      %v5570 = vpack.c.bf16 %v5057, %v5053
      %v5571 = vpack.c.bf16 %v5065, %v5061
      %v5572 = vpack.c.bf16 %v5067, %v5063
      %v5573 = vpack.c.bf16 %v5075, %v5071
      %v5574 = vpack.c.bf16 %v5077, %v5073
      %v5575 = vpack.c.bf16 %v5085, %v5081
      %v5576 = vpack.c.bf16 %v5087, %v5083
      %v5577 = vpack.c.bf16 %v5095, %v5091
      %v5578 = vpack.c.bf16 %v5097, %v5093
      %v5579 = vpack.c.bf16 %v5105, %v5101
      %v5580 = vpack.c.bf16 %v5107, %v5103
      %v5581 = vpack.c.bf16 %v5115, %v5111
      %v5582 = vpack.c.bf16 %v5117, %v5113
      %v5583 = vpack.c.bf16 %v5125, %v5121
      %v5584 = vpack.c.bf16 %v5127, %v5123
      %v5585 = vpack.c.bf16 %v5135, %v5131
      %v5586 = vpack.c.bf16 %v5137, %v5133
      %v5587 = vpack.c.bf16 %v5145, %v5141
      %v5588 = vpack.c.bf16 %v5147, %v5143
      %v5589 = vpack.c.bf16 %v5155, %v5151
      %v5590 = vpack.c.bf16 %v5157, %v5153
      %v5591 = vpack.c.bf16 %v5165, %v5161
      %v5592 = vpack.c.bf16 %v5167, %v5163
      %v5593 = vpack.c.bf16 %v5175, %v5171
      %v5594 = vpack.c.bf16 %v5177, %v5173
      %v5595 = vpack.c.bf16 %v5185, %v5181
      %v5596 = vpack.c.bf16 %v5187, %v5183
      %v5597 = vpack.c.bf16 %v5195, %v5191
      %v5598 = vpack.c.bf16 %v5197, %v5193
      %v5599 = vpack.c.bf16 %v5205, %v5201
      %v5600 = vpack.c.bf16 %v5207, %v5203
      %v5601 = vpack.c.bf16 %v5215, %v5211
      %v5602 = vpack.c.bf16 %v5217, %v5213
      %v5603 = vpack.c.bf16 %v5225, %v5221
      %v5604 = vpack.c.bf16 %v5227, %v5223
      %v5605 = vpack.c.bf16 %v5235, %v5231
      %v5606 = vpack.c.bf16 %v5237, %v5233
      %v5607 = vpack.c.bf16 %v5245, %v5241
      %v5608 = vpack.c.bf16 %v5247, %v5243
      %v5609 = vpack.c.bf16 %v5255, %v5251
      %v5610 = vpack.c.bf16 %v5257, %v5253
      %v5611 = vpack.c.bf16 %v5265, %v5261
      %v5612 = vpack.c.bf16 %v5267, %v5263
      %v5613 = vpack.c.bf16 %v5275, %v5271
      %v5614 = vpack.c.bf16 %v5277, %v5273
      %v5615 = vpack.c.bf16 %v5285, %v5281
      %v5616 = vpack.c.bf16 %v5287, %v5283
      %v5617 = vpack.c.bf16 %v5295, %v5291
      %v5618 = vpack.c.bf16 %v5297, %v5293
      %v5619 = vpack.c.bf16 %v5305, %v5301
      %v5620 = vpack.c.bf16 %v5307, %v5303
      %v5621 = vpack.c.bf16 %v5315, %v5311
      %v5622 = vpack.c.bf16 %v5317, %v5313
      %v5623 = vpack.c.bf16 %v5325, %v5321
      %v5624 = vpack.c.bf16 %v5327, %v5323
      %v5625 = vpack.c.bf16 %v5335, %v5331
      %v5626 = vpack.c.bf16 %v5337, %v5333
      %v5627 = vpack.c.bf16 %v5345, %v5341
      %v5628 = vpack.c.bf16 %v5347, %v5343
      %v5629 = vpack.c.bf16 %v5355, %v5351
      %v5630 = vpack.c.bf16 %v5357, %v5353
      %v5631 = vpack.c.bf16 %v5365, %v5361
      %v5632 = vpack.c.bf16 %v5367, %v5363
      %v5633 = vpack.c.bf16 %v5375, %v5371
      %v5634 = vpack.c.bf16 %v5377, %v5373
      %v5635 = vpack.c.bf16 %v5385, %v5381
      %v5636 = vpack.c.bf16 %v5387, %v5383
      %v5637 = vpack.c.bf16 %v5395, %v5391
      %v5638 = vpack.c.bf16 %v5397, %v5393
      %v5639 = vpack.c.bf16 %v5405, %v5401
      %v5640 = vpack.c.bf16 %v5407, %v5403
      %v5641 = vpack.c.bf16 %v5415, %v5411
      %v5642 = vpack.c.bf16 %v5417, %v5413
      %v5643 = vpack.c.bf16 %v5425, %v5421
      %v5644 = vpack.c.bf16 %v5427, %v5423
      %v5645 = vpack.c.bf16 %v5435, %v5431
      %v5646 = vpack.c.bf16 %v5437, %v5433
      %v5647 = vpack.c.bf16 %v5445, %v5441
      %v5648 = vpack.c.bf16 %v5447, %v5443
      %v5649 = vpack.c.bf16 %v5455, %v5451
      %v5650 = vpack.c.bf16 %v5457, %v5453
      %v5651 = vpack.c.bf16 %v5465, %v5461
      %v5652 = vpack.c.bf16 %v5467, %v5463
      %v5653 = vpack.c.bf16 %v5475, %v5471
      %v5654 = vpack.c.bf16 %v5477, %v5473
      %v5655 = vpack.c.bf16 %v5485, %v5481
      %v5656 = vpack.c.bf16 %v5487, %v5483
      %v5657 = vpack.c.bf16 %v5495, %v5491
      %v5658 = vpack.c.bf16 %v5497, %v5493
      %v5659 = vpack.c.bf16 %v5505, %v5501
      %v5660 = vpack.c.bf16 %v5507, %v5503
      %v5661 = vpack.c.bf16 %v5515, %v5511
      %v5662 = vpack.c.bf16 %v5517, %v5513
      %v5663 = vld [vmem:[%s4] sm:$0x1]
      %v5665 = vlaneseq
      %v5666 = vshrl.u32 %v5665, 7
      %v5667 = vsub.s32 0, %v5666
      %v5668 = vrot.slane %v5663, %v5667
      %v5670 = vld [vmem:[%s3] sm:$0xf]
      %v5671 = vld [vmem:[%s3 + $0x4] sm:$0xf]
      %v5672 = vld [vmem:[%s3 + $0x8] sm:$0xf]
      %v5673 = vld [vmem:[%s3 + $0xc] sm:$0xf]
      %v5674 = vld [vmem:[%s3 + $0x10] sm:$0xf]
      %v5675 = vld [vmem:[%s3 + $0x14] sm:$0xf]
      %v5676 = vld [vmem:[%s3 + $0x18] sm:$0xf]
      %v5677 = vld [vmem:[%s3 + $0x1c] sm:$0xf]
      %v5678 = vld [vmem:[%s3 + $0x20] sm:$0xf]
      %v5679 = vld [vmem:[%s3 + $0x24] sm:$0xf]
      %v5680 = vld [vmem:[%s3 + $0x28] sm:$0xf]
      %v5681 = vld [vmem:[%s3 + $0x2c] sm:$0xf]
      %v5682 = vld [vmem:[%s3 + $0x30] sm:$0xf]
      %v5683 = vld [vmem:[%s3 + $0x34] sm:$0xf]
      %v5684 = vld [vmem:[%s3 + $0x38] sm:$0xf]
      %v5685 = vld [vmem:[%s3 + $0x3c] sm:$0xf]
      %v5686 = vld [vmem:[%s3 + $0x40] sm:$0xf]
      %v5687 = vld [vmem:[%s3 + $0x44] sm:$0xf]
      %v5688 = vld [vmem:[%s3 + $0x48] sm:$0xf]
      %v5689 = vld [vmem:[%s3 + $0x4c] sm:$0xf]
      %v5690 = vld [vmem:[%s3 + $0x50] sm:$0xf]
      %v5691 = vld [vmem:[%s3 + $0x54] sm:$0xf]
      %v5692 = vld [vmem:[%s3 + $0x58] sm:$0xf]
      %v5693 = vld [vmem:[%s3 + $0x5c] sm:$0xf]
      %v5718 = vunpack.c.l.b16 %v5670
      %v5719 = vunpack.c.l.b16 %v5671
      %v5720 = vunpack.c.l.b16 %v5672
      %v5721 = vunpack.c.l.b16 %v5673
      %v5722 = vunpack.c.l.b16 %v5674
      %v5723 = vunpack.c.l.b16 %v5675
      %v5724 = vunpack.c.l.b16 %v5676
      %v5725 = vunpack.c.l.b16 %v5677
      %v5726 = vunpack.c.l.b16 %v5678
      %v5727 = vunpack.c.l.b16 %v5679
      %v5728 = vunpack.c.l.b16 %v5680
      %v5729 = vunpack.c.l.b16 %v5681
      %v5730 = vunpack.c.l.b16 %v5682
      %v5731 = vunpack.c.l.b16 %v5683
      %v5732 = vunpack.c.l.b16 %v5684
      %v5733 = vunpack.c.l.b16 %v5685
      %v5734 = vunpack.c.l.b16 %v5686
      %v5735 = vunpack.c.l.b16 %v5687
      %v5736 = vunpack.c.l.b16 %v5688
      %v5737 = vunpack.c.l.b16 %v5689
      %v5738 = vunpack.c.l.b16 %v5690
      %v5739 = vunpack.c.l.b16 %v5691
      %v5740 = vunpack.c.l.b16 %v5692
      %v5741 = vunpack.c.l.b16 %v5693
      %v5742 = vpack.c.b16 %v5719, %v5718
      %v5743 = vpack.c.b16 %v5721, %v5720
      %v5744 = vpack.c.b16 %v5723, %v5722
      %v5745 = vpack.c.b16 %v5725, %v5724
      %v5746 = vpack.c.b16 %v5727, %v5726
      %v5747 = vpack.c.b16 %v5729, %v5728
      %v5748 = vpack.c.b16 %v5731, %v5730
      %v5749 = vpack.c.b16 %v5733, %v5732
      %v5750 = vpack.c.b16 %v5735, %v5734
      %v5751 = vpack.c.b16 %v5737, %v5736
      %v5752 = vpack.c.b16 %v5739, %v5738
      %v5753 = vpack.c.b16 %v5741, %v5740
      %vm5766 = vcmask 523264
      %v5768 = vsel %vm5766, %v5520, 0
      %v5771 = vsel %vm5766, %v5522, 0
      %v5774 = vsel %vm5766, %v5524, 0
      %v5777 = vsel %vm5766, %v5526, 0
      %v5780 = vsel %vm5766, %v5528, 0
      %v5783 = vsel %vm5766, %v5530, 0
      %v5786 = vsel %vm5766, %v5532, 0
      %v5789 = vsel %vm5766, %v5534, 0
      %5791 = vmatprep.subr.bf16.mxu0 0
      %5792 = vmatpush1.bf16.msra.mxu0 %v5742
      %5793 = vmatprep.subr.bf16.mxu0 0
      %5794 = vmatpush1.bf16.msra.mxu0 %v5743
      %5795 = vmatprep.subr.bf16.mxu0 0
      %5796 = vmatpush1.bf16.msra.mxu0 %v5744
      %5797 = vmatprep.subr.bf16.mxu0 0
      %5798 = vmatpush1.bf16.msra.mxu0 %v5745
      %5799 = vmatprep.subr.bf16.mxu0 0
      %5800 = vmatpush1.bf16.msra.mxu0 %v5746
      %5801 = vmatprep.subr.bf16.mxu0 0
      %5802 = vmatpush1.bf16.msra.mxu0 %v5747
      %5803 = vmatprep.subr.bf16.mxu0 0
      %5804 = vmatpush1.bf16.msra.mxu0 %v5748
      %5805 = vmatprep.subr.bf16.mxu0 0
      %5806 = vmatpush1.bf16.msra.mxu0 %v5749
      %5807 = vmatprep.subr.bf16.mxu0 0
      %5808 = vmatpush1.bf16.msra.mxu0 %v5750
      %5809 = vmatprep.subr.bf16.mxu0 0
      %5810 = vmatpush1.bf16.msra.mxu0 %v5751
      %5811 = vmatprep.subr.bf16.mxu0 0
      %5812 = vmatpush1.bf16.msra.mxu0 %v5752
      %5813 = vmatprep.subr.bf16.mxu0 0
      %5814 = vmatpush1.bf16.msra.mxu0 %v5753
      %5815 = vmatprep.subr.bf16.mxu0 0
      %5816 = vmatpush1.bf16.msra.mxu0 0
      %5817 = vmatprep.subr.bf16.mxu0 0
      %5818 = vmatpush1.bf16.msra.mxu0 0
      %5819 = vmatprep.subr.bf16.mxu0 0
      %5820 = vmatpush1.bf16.msra.mxu0 0
      %5821 = vmatprep.subr.bf16.mxu0 0
      %5822 = vmatpush1.bf16.msra.mxu0 0
      %5823 = vmatprep.mubr.bf16.mxu0 %v5768
      %5824 = vmatmul.mubr.bf16.gmra.mrb[0].mxu0 %v5519
      %v5825 = vpop.f32.mrb[0].mxu0
      %v5826 = vadd.f32 0.0, %v5825
      %v5827 = vpop.f32.mrb[0].mxu0
      %v5828 = vpop.f32.mrb[0].mxu0
      %v5829 = vadd.f32 0.0, %v5828
      %v5830 = vpop.f32.mrb[0].mxu0
      %5831 = vmatprep.mubr.bf16.mxu0 %v5771
      %5832 = vmatmul.mubr.bf16.gmra.mrb[0].mxu0 %v5521
      %v5833 = vpop.f32.mrb[0].mxu0
      %v5834 = vadd.f32 0.0, %v5833
      %v5835 = vpop.f32.mrb[0].mxu0
      %v5836 = vpop.f32.mrb[0].mxu0
      %v5837 = vadd.f32 0.0, %v5836
      %v5838 = vpop.f32.mrb[0].mxu0
      %5839 = vmatprep.mubr.bf16.mxu0 %v5774
      %5840 = vmatmul.mubr.bf16.gmra.mrb[0].mxu0 %v5523
      %v5841 = vpop.f32.mrb[0].mxu0
      %v5842 = vadd.f32 0.0, %v5841
      %v5843 = vpop.f32.mrb[0].mxu0
      %v5844 = vpop.f32.mrb[0].mxu0
      %v5845 = vadd.f32 0.0, %v5844
      %v5846 = vpop.f32.mrb[0].mxu0
      %5847 = vmatprep.mubr.bf16.mxu0 %v5777
      %5848 = vmatmul.mubr.bf16.gmra.mrb[0].mxu0 %v5525
      %v5849 = vpop.f32.mrb[0].mxu0
      %v5850 = vadd.f32 0.0, %v5849
      %v5851 = vpop.f32.mrb[0].mxu0
      %v5852 = vpop.f32.mrb[0].mxu0
      %v5853 = vadd.f32 0.0, %v5852
      %v5854 = vpop.f32.mrb[0].mxu0
      %5855 = vmatprep.mubr.bf16.mxu0 %v5780
      %5856 = vmatmul.mubr.bf16.gmra.mrb[0].mxu0 %v5527
      %v5857 = vpop.f32.mrb[0].mxu0
      %v5858 = vadd.f32 0.0, %v5857
      %v5859 = vpop.f32.mrb[0].mxu0
      %v5860 = vpop.f32.mrb[0].mxu0
      %v5861 = vadd.f32 0.0, %v5860
      %v5862 = vpop.f32.mrb[0].mxu0
      %5863 = vmatprep.mubr.bf16.mxu0 %v5783
      %5864 = vmatmul.mubr.bf16.gmra.mrb[0].mxu0 %v5529
      %v5865 = vpop.f32.mrb[0].mxu0
      %v5866 = vadd.f32 0.0, %v5865
      %v5867 = vpop.f32.mrb[0].mxu0
      %v5868 = vpop.f32.mrb[0].mxu0
      %v5869 = vadd.f32 0.0, %v5868
      %v5870 = vpop.f32.mrb[0].mxu0
      %5871 = vmatprep.mubr.bf16.mxu0 %v5786
      %5872 = vmatmul.mubr.bf16.gmra.mrb[0].mxu0 %v5531
      %v5873 = vpop.f32.mrb[0].mxu0
      %v5874 = vadd.f32 0.0, %v5873
      %v5875 = vpop.f32.mrb[0].mxu0
      %v5876 = vpop.f32.mrb[0].mxu0
      %v5877 = vadd.f32 0.0, %v5876
      %v5878 = vpop.f32.mrb[0].mxu0
      %5879 = vmatprep.mubr.bf16.mxu0 %v5789
      %5880 = vmatmul.mubr.bf16.gmra.mrb[0].mxu0 %v5533
      %v5881 = vpop.f32.mrb[0].mxu0
      %v5882 = vadd.f32 0.0, %v5881
      %v5883 = vpop.f32.mrb[0].mxu0
      %v5884 = vpop.f32.mrb[0].mxu0
      %v5885 = vadd.f32 0.0, %v5884
      %v5886 = vpop.f32.mrb[0].mxu0
      %5887 = vdwg.mxu0
      %v5888 = vadd.f32 %v5668, %v5826
      %v5889 = vadd.f32 %v5668, %v5829
      %v5890 = vadd.f32 %v5668, %v5834
      %v5891 = vadd.f32 %v5668, %v5837
      %v5892 = vadd.f32 %v5668, %v5842
      %v5893 = vadd.f32 %v5668, %v5845
      %v5894 = vadd.f32 %v5668, %v5850
      %v5895 = vadd.f32 %v5668, %v5853
      %v5896 = vadd.f32 %v5668, %v5858
      %v5897 = vadd.f32 %v5668, %v5861
      %v5898 = vadd.f32 %v5668, %v5866
      %v5899 = vadd.f32 %v5668, %v5869
      %v5900 = vadd.f32 %v5668, %v5874
      %v5901 = vadd.f32 %v5668, %v5877
      %v5902 = vadd.f32 %v5668, %v5882
      %v5903 = vadd.f32 %v5668, %v5885
      %s5904 = scalar_lea.vmem %s3, 96
      %v5905 = vld [vmem:[%s5904] sm:$0xf]
      %v5906 = vld [vmem:[%s5904 + $0x4] sm:$0xf]
      %v5907 = vld [vmem:[%s5904 + $0x8] sm:$0xf]
      %v5908 = vld [vmem:[%s5904 + $0xc] sm:$0xf]
      %v5909 = vld [vmem:[%s5904 + $0x10] sm:$0xf]
      %v5910 = vld [vmem:[%s5904 + $0x14] sm:$0xf]
      %v5911 = vld [vmem:[%s5904 + $0x18] sm:$0xf]
      %v5912 = vld [vmem:[%s5904 + $0x1c] sm:$0xf]
      %v5913 = vld [vmem:[%s5904 + $0x20] sm:$0xf]
      %v5914 = vld [vmem:[%s5904 + $0x24] sm:$0xf]
      %v5915 = vld [vmem:[%s5904 + $0x28] sm:$0xf]
      %v5916 = vld [vmem:[%s5904 + $0x2c] sm:$0xf]
      %v5917 = vld [vmem:[%s5904 + $0x30] sm:$0xf]
      %v5918 = vld [vmem:[%s5904 + $0x34] sm:$0xf]
      %v5919 = vld [vmem:[%s5904 + $0x38] sm:$0xf]
      %v5920 = vld [vmem:[%s5904 + $0x3c] sm:$0xf]
      %v5921 = vld [vmem:[%s5904 + $0x40] sm:$0xf]
      %v5922 = vld [vmem:[%s5904 + $0x44] sm:$0xf]
      %v5923 = vld [vmem:[%s5904 + $0x48] sm:$0xf]
      %v5924 = vld [vmem:[%s5904 + $0x4c] sm:$0xf]
      %v5925 = vld [vmem:[%s5904 + $0x50] sm:$0xf]
      %v5926 = vld [vmem:[%s5904 + $0x54] sm:$0xf]
      %v5927 = vld [vmem:[%s5904 + $0x58] sm:$0xf]
      %v5928 = vld [vmem:[%s5904 + $0x5c] sm:$0xf]
      %v5953 = vunpack.c.l.b16 %v5905
      %v5954 = vunpack.c.l.b16 %v5906
      %v5955 = vunpack.c.l.b16 %v5907
      %v5956 = vunpack.c.l.b16 %v5908
      %v5957 = vunpack.c.l.b16 %v5909
      %v5958 = vunpack.c.l.b16 %v5910
      %v5959 = vunpack.c.l.b16 %v5911
      %v5960 = vunpack.c.l.b16 %v5912
      %v5961 = vunpack.c.l.b16 %v5913
      %v5962 = vunpack.c.l.b16 %v5914
      %v5963 = vunpack.c.l.b16 %v5915
      %v5964 = vunpack.c.l.b16 %v5916
      %v5965 = vunpack.c.l.b16 %v5917
      %v5966 = vunpack.c.l.b16 %v5918
      %v5967 = vunpack.c.l.b16 %v5919
      %v5968 = vunpack.c.l.b16 %v5920
      %v5969 = vunpack.c.l.b16 %v5921
      %v5970 = vunpack.c.l.b16 %v5922
      %v5971 = vunpack.c.l.b16 %v5923
      %v5972 = vunpack.c.l.b16 %v5924
      %v5973 = vunpack.c.l.b16 %v5925
      %v5974 = vunpack.c.l.b16 %v5926
      %v5975 = vunpack.c.l.b16 %v5927
      %v5976 = vunpack.c.l.b16 %v5928
      %v5977 = vpack.c.b16 %v5954, %v5953
      %v5978 = vpack.c.b16 %v5956, %v5955
      %v5979 = vpack.c.b16 %v5958, %v5957
      %v5980 = vpack.c.b16 %v5960, %v5959
      %v5981 = vpack.c.b16 %v5962, %v5961
      %v5982 = vpack.c.b16 %v5964, %v5963
      %v5983 = vpack.c.b16 %v5966, %v5965
      %v5984 = vpack.c.b16 %v5968, %v5967
      %v5985 = vpack.c.b16 %v5970, %v5969
      %v5986 = vpack.c.b16 %v5972, %v5971
      %v5987 = vpack.c.b16 %v5974, %v5973
      %v5988 = vpack.c.b16 %v5976, %v5975
      %v6002 = vsel %vm5766, %v5536, 0
      %v6005 = vsel %vm5766, %v5538, 0
      %v6008 = vsel %vm5766, %v5540, 0
      %v6011 = vsel %vm5766, %v5542, 0
      %v6014 = vsel %vm5766, %v5544, 0
      %v6017 = vsel %vm5766, %v5546, 0
      %v6020 = vsel %vm5766, %v5548, 0
      %v6023 = vsel %vm5766, %v5550, 0
      %6025 = vmatprep.subr.bf16.mxu0 0
      %6026 = vmatpush1.bf16.msra.mxu0 %v5977
      %6027 = vmatprep.subr.bf16.mxu0 0
      %6028 = vmatpush1.bf16.msra.mxu0 %v5978
      %6029 = vmatprep.subr.bf16.mxu0 0
      %6030 = vmatpush1.bf16.msra.mxu0 %v5979
      %6031 = vmatprep.subr.bf16.mxu0 0
      %6032 = vmatpush1.bf16.msra.mxu0 %v5980
      %6033 = vmatprep.subr.bf16.mxu0 0
      %6034 = vmatpush1.bf16.msra.mxu0 %v5981
      %6035 = vmatprep.subr.bf16.mxu0 0
      %6036 = vmatpush1.bf16.msra.mxu0 %v5982
      %6037 = vmatprep.subr.bf16.mxu0 0
      %6038 = vmatpush1.bf16.msra.mxu0 %v5983
      %6039 = vmatprep.subr.bf16.mxu0 0
      %6040 = vmatpush1.bf16.msra.mxu0 %v5984
      %6041 = vmatprep.subr.bf16.mxu0 0
      %6042 = vmatpush1.bf16.msra.mxu0 %v5985
      %6043 = vmatprep.subr.bf16.mxu0 0
      %6044 = vmatpush1.bf16.msra.mxu0 %v5986
      %6045 = vmatprep.subr.bf16.mxu0 0
      %6046 = vmatpush1.bf16.msra.mxu0 %v5987
      %6047 = vmatprep.subr.bf16.mxu0 0
      %6048 = vmatpush1.bf16.msra.mxu0 %v5988
      %6049 = vmatprep.subr.bf16.mxu0 0
      %6050 = vmatpush1.bf16.msra.mxu0 0
      %6051 = vmatprep.subr.bf16.mxu0 0
      %6052 = vmatpush1.bf16.msra.mxu0 0
      %6053 = vmatprep.subr.bf16.mxu0 0
      %6054 = vmatpush1.bf16.msra.mxu0 0
      %6055 = vmatprep.subr.bf16.mxu0 0
      %6056 = vmatpush1.bf16.msra.mxu0 0
      %6057 = vmatprep.mubr.bf16.mxu0 %v6002
      %6058 = vmatmul.mubr.bf16.gmra.mrb[0].mxu0 %v5535
      %v6059 = vpop.f32.mrb[0].mxu0
      %v6060 = vadd.f32 0.0, %v6059
      %v6061 = vpop.f32.mrb[0].mxu0
      %v6062 = vpop.f32.mrb[0].mxu0
      %v6063 = vadd.f32 0.0, %v6062
      %v6064 = vpop.f32.mrb[0].mxu0
      %6065 = vmatprep.mubr.bf16.mxu0 %v6005
      %6066 = vmatmul.mubr.bf16.gmra.mrb[0].mxu0 %v5537
      %v6067 = vpop.f32.mrb[0].mxu0
      %v6068 = vadd.f32 0.0, %v6067
      %v6069 = vpop.f32.mrb[0].mxu0
      %v6070 = vpop.f32.mrb[0].mxu0
      %v6071 = vadd.f32 0.0, %v6070
      %v6072 = vpop.f32.mrb[0].mxu0
      %6073 = vmatprep.mubr.bf16.mxu0 %v6008
      %6074 = vmatmul.mubr.bf16.gmra.mrb[0].mxu0 %v5539
      %v6075 = vpop.f32.mrb[0].mxu0
      %v6076 = vadd.f32 0.0, %v6075
      %v6077 = vpop.f32.mrb[0].mxu0
      %v6078 = vpop.f32.mrb[0].mxu0
      %v6079 = vadd.f32 0.0, %v6078
      %v6080 = vpop.f32.mrb[0].mxu0
      %6081 = vmatprep.mubr.bf16.mxu0 %v6011
      %6082 = vmatmul.mubr.bf16.gmra.mrb[0].mxu0 %v5541
      %v6083 = vpop.f32.mrb[0].mxu0
      %v6084 = vadd.f32 0.0, %v6083
      %v6085 = vpop.f32.mrb[0].mxu0
      %v6086 = vpop.f32.mrb[0].mxu0
      %v6087 = vadd.f32 0.0, %v6086
      %v6088 = vpop.f32.mrb[0].mxu0
      %6089 = vmatprep.mubr.bf16.mxu0 %v6014
      %6090 = vmatmul.mubr.bf16.gmra.mrb[0].mxu0 %v5543
      %v6091 = vpop.f32.mrb[0].mxu0
      %v6092 = vadd.f32 0.0, %v6091
      %v6093 = vpop.f32.mrb[0].mxu0
      %v6094 = vpop.f32.mrb[0].mxu0
      %v6095 = vadd.f32 0.0, %v6094
      %v6096 = vpop.f32.mrb[0].mxu0
      %6097 = vmatprep.mubr.bf16.mxu0 %v6017
      %6098 = vmatmul.mubr.bf16.gmra.mrb[0].mxu0 %v5545
      %v6099 = vpop.f32.mrb[0].mxu0
      %v6100 = vadd.f32 0.0, %v6099
      %v6101 = vpop.f32.mrb[0].mxu0
      %v6102 = vpop.f32.mrb[0].mxu0
      %v6103 = vadd.f32 0.0, %v6102
      %v6104 = vpop.f32.mrb[0].mxu0
      %6105 = vmatprep.mubr.bf16.mxu0 %v6020
      %6106 = vmatmul.mubr.bf16.gmra.mrb[0].mxu0 %v5547
      %v6107 = vpop.f32.mrb[0].mxu0
      %v6108 = vadd.f32 0.0, %v6107
      %v6109 = vpop.f32.mrb[0].mxu0
      %v6110 = vpop.f32.mrb[0].mxu0
      %v6111 = vadd.f32 0.0, %v6110
      %v6112 = vpop.f32.mrb[0].mxu0
      %6113 = vmatprep.mubr.bf16.mxu0 %v6023
      %6114 = vmatmul.mubr.bf16.gmra.mrb[0].mxu0 %v5549
      %v6115 = vpop.f32.mrb[0].mxu0
      %v6116 = vadd.f32 0.0, %v6115
      %v6117 = vpop.f32.mrb[0].mxu0
      %v6118 = vpop.f32.mrb[0].mxu0
      %v6119 = vadd.f32 0.0, %v6118
      %v6120 = vpop.f32.mrb[0].mxu0
      %6121 = vdwg.mxu0
      %v6122 = vadd.f32 %v5888, %v6060
      %v6123 = vadd.f32 %v5889, %v6063
      %v6124 = vadd.f32 %v5890, %v6068
      %v6125 = vadd.f32 %v5891, %v6071
      %v6126 = vadd.f32 %v5892, %v6076
      %v6127 = vadd.f32 %v5893, %v6079
      %v6128 = vadd.f32 %v5894, %v6084
      %v6129 = vadd.f32 %v5895, %v6087
      %v6130 = vadd.f32 %v5896, %v6092
      %v6131 = vadd.f32 %v5897, %v6095
      %v6132 = vadd.f32 %v5898, %v6100
      %v6133 = vadd.f32 %v5899, %v6103
      %v6134 = vadd.f32 %v5900, %v6108
      %v6135 = vadd.f32 %v5901, %v6111
      %v6136 = vadd.f32 %v5902, %v6116
      %v6137 = vadd.f32 %v5903, %v6119
      %s6138 = scalar_lea.vmem %s3, 192
      %v6139 = vld [vmem:[%s6138] sm:$0xf]
      %v6140 = vld [vmem:[%s6138 + $0x4] sm:$0xf]
      %v6141 = vld [vmem:[%s6138 + $0x8] sm:$0xf]
      %v6142 = vld [vmem:[%s6138 + $0xc] sm:$0xf]
      %v6143 = vld [vmem:[%s6138 + $0x10] sm:$0xf]
      %v6144 = vld [vmem:[%s6138 + $0x14] sm:$0xf]
      %v6145 = vld [vmem:[%s6138 + $0x18] sm:$0xf]
      %v6146 = vld [vmem:[%s6138 + $0x1c] sm:$0xf]
      %v6147 = vld [vmem:[%s6138 + $0x20] sm:$0xf]
      %v6148 = vld [vmem:[%s6138 + $0x24] sm:$0xf]
      %v6149 = vld [vmem:[%s6138 + $0x28] sm:$0xf]
      %v6150 = vld [vmem:[%s6138 + $0x2c] sm:$0xf]
      %v6151 = vld [vmem:[%s6138 + $0x30] sm:$0xf]
      %v6152 = vld [vmem:[%s6138 + $0x34] sm:$0xf]
      %v6153 = vld [vmem:[%s6138 + $0x38] sm:$0xf]
      %v6154 = vld [vmem:[%s6138 + $0x3c] sm:$0xf]
      %v6155 = vld [vmem:[%s6138 + $0x40] sm:$0xf]
      %v6156 = vld [vmem:[%s6138 + $0x44] sm:$0xf]
      %v6157 = vld [vmem:[%s6138 + $0x48] sm:$0xf]
      %v6158 = vld [vmem:[%s6138 + $0x4c] sm:$0xf]
      %v6159 = vld [vmem:[%s6138 + $0x50] sm:$0xf]
      %v6160 = vld [vmem:[%s6138 + $0x54] sm:$0xf]
      %v6161 = vld [vmem:[%s6138 + $0x58] sm:$0xf]
      %v6162 = vld [vmem:[%s6138 + $0x5c] sm:$0xf]
      %v6187 = vunpack.c.l.b16 %v6139
      %v6188 = vunpack.c.l.b16 %v6140
      %v6189 = vunpack.c.l.b16 %v6141
      %v6190 = vunpack.c.l.b16 %v6142
      %v6191 = vunpack.c.l.b16 %v6143
      %v6192 = vunpack.c.l.b16 %v6144
      %v6193 = vunpack.c.l.b16 %v6145
      %v6194 = vunpack.c.l.b16 %v6146
      %v6195 = vunpack.c.l.b16 %v6147
      %v6196 = vunpack.c.l.b16 %v6148
      %v6197 = vunpack.c.l.b16 %v6149
      %v6198 = vunpack.c.l.b16 %v6150
      %v6199 = vunpack.c.l.b16 %v6151
      %v6200 = vunpack.c.l.b16 %v6152
      %v6201 = vunpack.c.l.b16 %v6153
      %v6202 = vunpack.c.l.b16 %v6154
      %v6203 = vunpack.c.l.b16 %v6155
      %v6204 = vunpack.c.l.b16 %v6156
      %v6205 = vunpack.c.l.b16 %v6157
      %v6206 = vunpack.c.l.b16 %v6158
      %v6207 = vunpack.c.l.b16 %v6159
      %v6208 = vunpack.c.l.b16 %v6160
      %v6209 = vunpack.c.l.b16 %v6161
      %v6210 = vunpack.c.l.b16 %v6162
      %v6211 = vpack.c.b16 %v6188, %v6187
      %v6212 = vpack.c.b16 %v6190, %v6189
      %v6213 = vpack.c.b16 %v6192, %v6191
      %v6214 = vpack.c.b16 %v6194, %v6193
      %v6215 = vpack.c.b16 %v6196, %v6195
      %v6216 = vpack.c.b16 %v6198, %v6197
      %v6217 = vpack.c.b16 %v6200, %v6199
      %v6218 = vpack.c.b16 %v6202, %v6201
      %v6219 = vpack.c.b16 %v6204, %v6203
      %v6220 = vpack.c.b16 %v6206, %v6205
      %v6221 = vpack.c.b16 %v6208, %v6207
      %v6222 = vpack.c.b16 %v6210, %v6209
      %v6236 = vsel %vm5766, %v5552, 0
      %v6239 = vsel %vm5766, %v5554, 0
      %v6242 = vsel %vm5766, %v5556, 0
      %v6245 = vsel %vm5766, %v5558, 0
      %v6248 = vsel %vm5766, %v5560, 0
      %v6251 = vsel %vm5766, %v5562, 0
      %v6254 = vsel %vm5766, %v5564, 0
      %v6257 = vsel %vm5766, %v5566, 0
      %6259 = vmatprep.subr.bf16.mxu0 0
      %6260 = vmatpush1.bf16.msra.mxu0 %v6211
      %6261 = vmatprep.subr.bf16.mxu0 0
      %6262 = vmatpush1.bf16.msra.mxu0 %v6212
      %6263 = vmatprep.subr.bf16.mxu0 0
      %6264 = vmatpush1.bf16.msra.mxu0 %v6213
      %6265 = vmatprep.subr.bf16.mxu0 0
      %6266 = vmatpush1.bf16.msra.mxu0 %v6214
      %6267 = vmatprep.subr.bf16.mxu0 0
      %6268 = vmatpush1.bf16.msra.mxu0 %v6215
      %6269 = vmatprep.subr.bf16.mxu0 0
      %6270 = vmatpush1.bf16.msra.mxu0 %v6216
      %6271 = vmatprep.subr.bf16.mxu0 0
      %6272 = vmatpush1.bf16.msra.mxu0 %v6217
      %6273 = vmatprep.subr.bf16.mxu0 0
      %6274 = vmatpush1.bf16.msra.mxu0 %v6218
      %6275 = vmatprep.subr.bf16.mxu0 0
      %6276 = vmatpush1.bf16.msra.mxu0 %v6219
      %6277 = vmatprep.subr.bf16.mxu0 0
      %6278 = vmatpush1.bf16.msra.mxu0 %v6220
      %6279 = vmatprep.subr.bf16.mxu0 0
      %6280 = vmatpush1.bf16.msra.mxu0 %v6221
      %6281 = vmatprep.subr.bf16.mxu0 0
      %6282 = vmatpush1.bf16.msra.mxu0 %v6222
      %6283 = vmatprep.subr.bf16.mxu0 0
      %6284 = vmatpush1.bf16.msra.mxu0 0
      %6285 = vmatprep.subr.bf16.mxu0 0
      %6286 = vmatpush1.bf16.msra.mxu0 0
      %6287 = vmatprep.subr.bf16.mxu0 0
      %6288 = vmatpush1.bf16.msra.mxu0 0
      %6289 = vmatprep.subr.bf16.mxu0 0
      %6290 = vmatpush1.bf16.msra.mxu0 0
      %6291 = vmatprep.mubr.bf16.mxu0 %v6236
      %6292 = vmatmul.mubr.bf16.gmra.mrb[0].mxu0 %v5551
      %v6293 = vpop.f32.mrb[0].mxu0
      %v6294 = vadd.f32 0.0, %v6293
      %v6295 = vpop.f32.mrb[0].mxu0
      %v6296 = vpop.f32.mrb[0].mxu0
      %v6297 = vadd.f32 0.0, %v6296
      %v6298 = vpop.f32.mrb[0].mxu0
      %6299 = vmatprep.mubr.bf16.mxu0 %v6239
      %6300 = vmatmul.mubr.bf16.gmra.mrb[0].mxu0 %v5553
      %v6301 = vpop.f32.mrb[0].mxu0
      %v6302 = vadd.f32 0.0, %v6301
      %v6303 = vpop.f32.mrb[0].mxu0
      %v6304 = vpop.f32.mrb[0].mxu0
      %v6305 = vadd.f32 0.0, %v6304
      %v6306 = vpop.f32.mrb[0].mxu0
      %6307 = vmatprep.mubr.bf16.mxu0 %v6242
      %6308 = vmatmul.mubr.bf16.gmra.mrb[0].mxu0 %v5555
      %v6309 = vpop.f32.mrb[0].mxu0
      %v6310 = vadd.f32 0.0, %v6309
      %v6311 = vpop.f32.mrb[0].mxu0
      %v6312 = vpop.f32.mrb[0].mxu0
      %v6313 = vadd.f32 0.0, %v6312
      %v6314 = vpop.f32.mrb[0].mxu0
      %6315 = vmatprep.mubr.bf16.mxu0 %v6245
      %6316 = vmatmul.mubr.bf16.gmra.mrb[0].mxu0 %v5557
      %v6317 = vpop.f32.mrb[0].mxu0
      %v6318 = vadd.f32 0.0, %v6317
      %v6319 = vpop.f32.mrb[0].mxu0
      %v6320 = vpop.f32.mrb[0].mxu0
      %v6321 = vadd.f32 0.0, %v6320
      %v6322 = vpop.f32.mrb[0].mxu0
      %6323 = vmatprep.mubr.bf16.mxu0 %v6248
      %6324 = vmatmul.mubr.bf16.gmra.mrb[0].mxu0 %v5559
      %v6325 = vpop.f32.mrb[0].mxu0
      %v6326 = vadd.f32 0.0, %v6325
      %v6327 = vpop.f32.mrb[0].mxu0
      %v6328 = vpop.f32.mrb[0].mxu0
      %v6329 = vadd.f32 0.0, %v6328
      %v6330 = vpop.f32.mrb[0].mxu0
      %6331 = vmatprep.mubr.bf16.mxu0 %v6251
      %6332 = vmatmul.mubr.bf16.gmra.mrb[0].mxu0 %v5561
      %v6333 = vpop.f32.mrb[0].mxu0
      %v6334 = vadd.f32 0.0, %v6333
      %v6335 = vpop.f32.mrb[0].mxu0
      %v6336 = vpop.f32.mrb[0].mxu0
      %v6337 = vadd.f32 0.0, %v6336
      %v6338 = vpop.f32.mrb[0].mxu0
      %6339 = vmatprep.mubr.bf16.mxu0 %v6254
      %6340 = vmatmul.mubr.bf16.gmra.mrb[0].mxu0 %v5563
      %v6341 = vpop.f32.mrb[0].mxu0
      %v6342 = vadd.f32 0.0, %v6341
      %v6343 = vpop.f32.mrb[0].mxu0
      %v6344 = vpop.f32.mrb[0].mxu0
      %v6345 = vadd.f32 0.0, %v6344
      %v6346 = vpop.f32.mrb[0].mxu0
      %6347 = vmatprep.mubr.bf16.mxu0 %v6257
      %6348 = vmatmul.mubr.bf16.gmra.mrb[0].mxu0 %v5565
      %v6349 = vpop.f32.mrb[0].mxu0
      %v6350 = vadd.f32 0.0, %v6349
      %v6351 = vpop.f32.mrb[0].mxu0
      %v6352 = vpop.f32.mrb[0].mxu0
      %v6353 = vadd.f32 0.0, %v6352
      %v6354 = vpop.f32.mrb[0].mxu0
      %6355 = vdwg.mxu0
      %v6356 = vadd.f32 %v6122, %v6294
      %v6357 = vadd.f32 %v6123, %v6297
      %v6358 = vadd.f32 %v6124, %v6302
      %v6359 = vadd.f32 %v6125, %v6305
      %v6360 = vadd.f32 %v6126, %v6310
      %v6361 = vadd.f32 %v6127, %v6313
      %v6362 = vadd.f32 %v6128, %v6318
      %v6363 = vadd.f32 %v6129, %v6321
      %v6364 = vadd.f32 %v6130, %v6326
      %v6365 = vadd.f32 %v6131, %v6329
      %v6366 = vadd.f32 %v6132, %v6334
      %v6367 = vadd.f32 %v6133, %v6337
      %v6368 = vadd.f32 %v6134, %v6342
      %v6369 = vadd.f32 %v6135, %v6345
      %v6370 = vadd.f32 %v6136, %v6350
      %v6371 = vadd.f32 %v6137, %v6353
      %s6372 = scalar_lea.vmem %s3, 288
      %v6373 = vld [vmem:[%s6372] sm:$0xf]
      %v6374 = vld [vmem:[%s6372 + $0x4] sm:$0xf]
      %v6375 = vld [vmem:[%s6372 + $0x8] sm:$0xf]
      %v6376 = vld [vmem:[%s6372 + $0xc] sm:$0xf]
      %v6377 = vld [vmem:[%s6372 + $0x10] sm:$0xf]
      %v6378 = vld [vmem:[%s6372 + $0x14] sm:$0xf]
      %v6379 = vld [vmem:[%s6372 + $0x18] sm:$0xf]
      %v6380 = vld [vmem:[%s6372 + $0x1c] sm:$0xf]
      %v6381 = vld [vmem:[%s6372 + $0x20] sm:$0xf]
      %v6382 = vld [vmem:[%s6372 + $0x24] sm:$0xf]
      %v6383 = vld [vmem:[%s6372 + $0x28] sm:$0xf]
      %v6384 = vld [vmem:[%s6372 + $0x2c] sm:$0xf]
      %v6385 = vld [vmem:[%s6372 + $0x30] sm:$0xf]
      %v6386 = vld [vmem:[%s6372 + $0x34] sm:$0xf]
      %v6387 = vld [vmem:[%s6372 + $0x38] sm:$0xf]
      %v6388 = vld [vmem:[%s6372 + $0x3c] sm:$0xf]
      %v6389 = vld [vmem:[%s6372 + $0x40] sm:$0xf]
      %v6390 = vld [vmem:[%s6372 + $0x44] sm:$0xf]
      %v6391 = vld [vmem:[%s6372 + $0x48] sm:$0xf]
      %v6392 = vld [vmem:[%s6372 + $0x4c] sm:$0xf]
      %v6393 = vld [vmem:[%s6372 + $0x50] sm:$0xf]
      %v6394 = vld [vmem:[%s6372 + $0x54] sm:$0xf]
      %v6395 = vld [vmem:[%s6372 + $0x58] sm:$0xf]
      %v6396 = vld [vmem:[%s6372 + $0x5c] sm:$0xf]
      %v6421 = vunpack.c.l.b16 %v6373
      %v6422 = vunpack.c.l.b16 %v6374
      %v6423 = vunpack.c.l.b16 %v6375
      %v6424 = vunpack.c.l.b16 %v6376
      %v6425 = vunpack.c.l.b16 %v6377
      %v6426 = vunpack.c.l.b16 %v6378
      %v6427 = vunpack.c.l.b16 %v6379
      %v6428 = vunpack.c.l.b16 %v6380
      %v6429 = vunpack.c.l.b16 %v6381
      %v6430 = vunpack.c.l.b16 %v6382
      %v6431 = vunpack.c.l.b16 %v6383
      %v6432 = vunpack.c.l.b16 %v6384
      %v6433 = vunpack.c.l.b16 %v6385
      %v6434 = vunpack.c.l.b16 %v6386
      %v6435 = vunpack.c.l.b16 %v6387
      %v6436 = vunpack.c.l.b16 %v6388
      %v6437 = vunpack.c.l.b16 %v6389
      %v6438 = vunpack.c.l.b16 %v6390
      %v6439 = vunpack.c.l.b16 %v6391
      %v6440 = vunpack.c.l.b16 %v6392
      %v6441 = vunpack.c.l.b16 %v6393
      %v6442 = vunpack.c.l.b16 %v6394
      %v6443 = vunpack.c.l.b16 %v6395
      %v6444 = vunpack.c.l.b16 %v6396
      %v6445 = vpack.c.b16 %v6422, %v6421
      %v6446 = vpack.c.b16 %v6424, %v6423
      %v6447 = vpack.c.b16 %v6426, %v6425
      %v6448 = vpack.c.b16 %v6428, %v6427
      %v6449 = vpack.c.b16 %v6430, %v6429
      %v6450 = vpack.c.b16 %v6432, %v6431
      %v6451 = vpack.c.b16 %v6434, %v6433
      %v6452 = vpack.c.b16 %v6436, %v6435
      %v6453 = vpack.c.b16 %v6438, %v6437
      %v6454 = vpack.c.b16 %v6440, %v6439
      %v6455 = vpack.c.b16 %v6442, %v6441
      %v6456 = vpack.c.b16 %v6444, %v6443
      %v6470 = vsel %vm5766, %v5568, 0
      %v6473 = vsel %vm5766, %v5570, 0
      %v6476 = vsel %vm5766, %v5572, 0
      %v6479 = vsel %vm5766, %v5574, 0
      %v6482 = vsel %vm5766, %v5576, 0
      %v6485 = vsel %vm5766, %v5578, 0
      %v6488 = vsel %vm5766, %v5580, 0
      %v6491 = vsel %vm5766, %v5582, 0
      %6493 = vmatprep.subr.bf16.mxu0 0
      %6494 = vmatpush1.bf16.msra.mxu0 %v6445
      %6495 = vmatprep.subr.bf16.mxu0 0
      %6496 = vmatpush1.bf16.msra.mxu0 %v6446
      %6497 = vmatprep.subr.bf16.mxu0 0
      %6498 = vmatpush1.bf16.msra.mxu0 %v6447
      %6499 = vmatprep.subr.bf16.mxu0 0
      %6500 = vmatpush1.bf16.msra.mxu0 %v6448
      %6501 = vmatprep.subr.bf16.mxu0 0
      %6502 = vmatpush1.bf16.msra.mxu0 %v6449
      %6503 = vmatprep.subr.bf16.mxu0 0
      %6504 = vmatpush1.bf16.msra.mxu0 %v6450
      %6505 = vmatprep.subr.bf16.mxu0 0
      %6506 = vmatpush1.bf16.msra.mxu0 %v6451
      %6507 = vmatprep.subr.bf16.mxu0 0
      %6508 = vmatpush1.bf16.msra.mxu0 %v6452
      %6509 = vmatprep.subr.bf16.mxu0 0
      %6510 = vmatpush1.bf16.msra.mxu0 %v6453
      %6511 = vmatprep.subr.bf16.mxu0 0
      %6512 = vmatpush1.bf16.msra.mxu0 %v6454
      %6513 = vmatprep.subr.bf16.mxu0 0
      %6514 = vmatpush1.bf16.msra.mxu0 %v6455
      %6515 = vmatprep.subr.bf16.mxu0 0
      %6516 = vmatpush1.bf16.msra.mxu0 %v6456
      %6517 = vmatprep.subr.bf16.mxu0 0
      %6518 = vmatpush1.bf16.msra.mxu0 0
      %6519 = vmatprep.subr.bf16.mxu0 0
      %6520 = vmatpush1.bf16.msra.mxu0 0
      %6521 = vmatprep.subr.bf16.mxu0 0
      %6522 = vmatpush1.bf16.msra.mxu0 0
      %6523 = vmatprep.subr.bf16.mxu0 0
      %6524 = vmatpush1.bf16.msra.mxu0 0
      %6525 = vmatprep.mubr.bf16.mxu0 %v6470
      %6526 = vmatmul.mubr.bf16.gmra.mrb[0].mxu0 %v5567
      %v6527 = vpop.f32.mrb[0].mxu0
      %v6528 = vadd.f32 0.0, %v6527
      %v6529 = vpop.f32.mrb[0].mxu0
      %v6530 = vpop.f32.mrb[0].mxu0
      %v6531 = vadd.f32 0.0, %v6530
      %v6532 = vpop.f32.mrb[0].mxu0
      %6533 = vmatprep.mubr.bf16.mxu0 %v6473
      %6534 = vmatmul.mubr.bf16.gmra.mrb[0].mxu0 %v5569
      %v6535 = vpop.f32.mrb[0].mxu0
      %v6536 = vadd.f32 0.0, %v6535
      %v6537 = vpop.f32.mrb[0].mxu0
      %v6538 = vpop.f32.mrb[0].mxu0
      %v6539 = vadd.f32 0.0, %v6538
      %v6540 = vpop.f32.mrb[0].mxu0
      %6541 = vmatprep.mubr.bf16.mxu0 %v6476
      %6542 = vmatmul.mubr.bf16.gmra.mrb[0].mxu0 %v5571
      %v6543 = vpop.f32.mrb[0].mxu0
      %v6544 = vadd.f32 0.0, %v6543
      %v6545 = vpop.f32.mrb[0].mxu0
      %v6546 = vpop.f32.mrb[0].mxu0
      %v6547 = vadd.f32 0.0, %v6546
      %v6548 = vpop.f32.mrb[0].mxu0
      %6549 = vmatprep.mubr.bf16.mxu0 %v6479
      %6550 = vmatmul.mubr.bf16.gmra.mrb[0].mxu0 %v5573
      %v6551 = vpop.f32.mrb[0].mxu0
      %v6552 = vadd.f32 0.0, %v6551
      %v6553 = vpop.f32.mrb[0].mxu0
      %v6554 = vpop.f32.mrb[0].mxu0
      %v6555 = vadd.f32 0.0, %v6554
      %v6556 = vpop.f32.mrb[0].mxu0
      %6557 = vmatprep.mubr.bf16.mxu0 %v6482
      %6558 = vmatmul.mubr.bf16.gmra.mrb[0].mxu0 %v5575
      %v6559 = vpop.f32.mrb[0].mxu0
      %v6560 = vadd.f32 0.0, %v6559
      %v6561 = vpop.f32.mrb[0].mxu0
      %v6562 = vpop.f32.mrb[0].mxu0
      %v6563 = vadd.f32 0.0, %v6562
      %v6564 = vpop.f32.mrb[0].mxu0
      %6565 = vmatprep.mubr.bf16.mxu0 %v6485
      %6566 = vmatmul.mubr.bf16.gmra.mrb[0].mxu0 %v5577
      %v6567 = vpop.f32.mrb[0].mxu0
      %v6568 = vadd.f32 0.0, %v6567
      %v6569 = vpop.f32.mrb[0].mxu0
      %v6570 = vpop.f32.mrb[0].mxu0
      %v6571 = vadd.f32 0.0, %v6570
      %v6572 = vpop.f32.mrb[0].mxu0
      %6573 = vmatprep.mubr.bf16.mxu0 %v6488
      %6574 = vmatmul.mubr.bf16.gmra.mrb[0].mxu0 %v5579
      %v6575 = vpop.f32.mrb[0].mxu0
      %v6576 = vadd.f32 0.0, %v6575
      %v6577 = vpop.f32.mrb[0].mxu0
      %v6578 = vpop.f32.mrb[0].mxu0
      %v6579 = vadd.f32 0.0, %v6578
      %v6580 = vpop.f32.mrb[0].mxu0
      %6581 = vmatprep.mubr.bf16.mxu0 %v6491
      %6582 = vmatmul.mubr.bf16.gmra.mrb[0].mxu0 %v5581
      %v6583 = vpop.f32.mrb[0].mxu0
      %v6584 = vadd.f32 0.0, %v6583
      %v6585 = vpop.f32.mrb[0].mxu0
      %v6586 = vpop.f32.mrb[0].mxu0
      %v6587 = vadd.f32 0.0, %v6586
      %v6588 = vpop.f32.mrb[0].mxu0
      %6589 = vdwg.mxu0
      %v6590 = vadd.f32 %v6356, %v6528
      %v6591 = vadd.f32 %v6357, %v6531
      %v6592 = vadd.f32 %v6358, %v6536
      %v6593 = vadd.f32 %v6359, %v6539
      %v6594 = vadd.f32 %v6360, %v6544
      %v6595 = vadd.f32 %v6361, %v6547
      %v6596 = vadd.f32 %v6362, %v6552
      %v6597 = vadd.f32 %v6363, %v6555
      %v6598 = vadd.f32 %v6364, %v6560
      %v6599 = vadd.f32 %v6365, %v6563
      %v6600 = vadd.f32 %v6366, %v6568
      %v6601 = vadd.f32 %v6367, %v6571
      %v6602 = vadd.f32 %v6368, %v6576
      %v6603 = vadd.f32 %v6369, %v6579
      %v6604 = vadd.f32 %v6370, %v6584
      %v6605 = vadd.f32 %v6371, %v6587
      %s6606 = scalar_lea.vmem %s3, 384
      %v6607 = vld [vmem:[%s6606] sm:$0xf]
      %v6608 = vld [vmem:[%s6606 + $0x4] sm:$0xf]
      %v6609 = vld [vmem:[%s6606 + $0x8] sm:$0xf]
      %v6610 = vld [vmem:[%s6606 + $0xc] sm:$0xf]
      %v6611 = vld [vmem:[%s6606 + $0x10] sm:$0xf]
      %v6612 = vld [vmem:[%s6606 + $0x14] sm:$0xf]
      %v6613 = vld [vmem:[%s6606 + $0x18] sm:$0xf]
      %v6614 = vld [vmem:[%s6606 + $0x1c] sm:$0xf]
      %v6615 = vld [vmem:[%s6606 + $0x20] sm:$0xf]
      %v6616 = vld [vmem:[%s6606 + $0x24] sm:$0xf]
      %v6617 = vld [vmem:[%s6606 + $0x28] sm:$0xf]
      %v6618 = vld [vmem:[%s6606 + $0x2c] sm:$0xf]
      %v6619 = vld [vmem:[%s6606 + $0x30] sm:$0xf]
      %v6620 = vld [vmem:[%s6606 + $0x34] sm:$0xf]
      %v6621 = vld [vmem:[%s6606 + $0x38] sm:$0xf]
      %v6622 = vld [vmem:[%s6606 + $0x3c] sm:$0xf]
      %v6623 = vld [vmem:[%s6606 + $0x40] sm:$0xf]
      %v6624 = vld [vmem:[%s6606 + $0x44] sm:$0xf]
      %v6625 = vld [vmem:[%s6606 + $0x48] sm:$0xf]
      %v6626 = vld [vmem:[%s6606 + $0x4c] sm:$0xf]
      %v6627 = vld [vmem:[%s6606 + $0x50] sm:$0xf]
      %v6628 = vld [vmem:[%s6606 + $0x54] sm:$0xf]
      %v6629 = vld [vmem:[%s6606 + $0x58] sm:$0xf]
      %v6630 = vld [vmem:[%s6606 + $0x5c] sm:$0xf]
      %v6655 = vunpack.c.l.b16 %v6607
      %v6656 = vunpack.c.l.b16 %v6608
      %v6657 = vunpack.c.l.b16 %v6609
      %v6658 = vunpack.c.l.b16 %v6610
      %v6659 = vunpack.c.l.b16 %v6611
      %v6660 = vunpack.c.l.b16 %v6612
      %v6661 = vunpack.c.l.b16 %v6613
      %v6662 = vunpack.c.l.b16 %v6614
      %v6663 = vunpack.c.l.b16 %v6615
      %v6664 = vunpack.c.l.b16 %v6616
      %v6665 = vunpack.c.l.b16 %v6617
      %v6666 = vunpack.c.l.b16 %v6618
      %v6667 = vunpack.c.l.b16 %v6619
      %v6668 = vunpack.c.l.b16 %v6620
      %v6669 = vunpack.c.l.b16 %v6621
      %v6670 = vunpack.c.l.b16 %v6622
      %v6671 = vunpack.c.l.b16 %v6623
      %v6672 = vunpack.c.l.b16 %v6624
      %v6673 = vunpack.c.l.b16 %v6625
      %v6674 = vunpack.c.l.b16 %v6626
      %v6675 = vunpack.c.l.b16 %v6627
      %v6676 = vunpack.c.l.b16 %v6628
      %v6677 = vunpack.c.l.b16 %v6629
      %v6678 = vunpack.c.l.b16 %v6630
      %v6679 = vpack.c.b16 %v6656, %v6655
      %v6680 = vpack.c.b16 %v6658, %v6657
      %v6681 = vpack.c.b16 %v6660, %v6659
      %v6682 = vpack.c.b16 %v6662, %v6661
      %v6683 = vpack.c.b16 %v6664, %v6663
      %v6684 = vpack.c.b16 %v6666, %v6665
      %v6685 = vpack.c.b16 %v6668, %v6667
      %v6686 = vpack.c.b16 %v6670, %v6669
      %v6687 = vpack.c.b16 %v6672, %v6671
      %v6688 = vpack.c.b16 %v6674, %v6673
      %v6689 = vpack.c.b16 %v6676, %v6675
      %v6690 = vpack.c.b16 %v6678, %v6677
      %v6704 = vsel %vm5766, %v5584, 0
      %v6707 = vsel %vm5766, %v5586, 0
      %v6710 = vsel %vm5766, %v5588, 0
      %v6713 = vsel %vm5766, %v5590, 0
      %v6716 = vsel %vm5766, %v5592, 0
      %v6719 = vsel %vm5766, %v5594, 0
      %v6722 = vsel %vm5766, %v5596, 0
      %v6725 = vsel %vm5766, %v5598, 0
      %6727 = vmatprep.subr.bf16.mxu0 0
      %6728 = vmatpush1.bf16.msra.mxu0 %v6679
      %6729 = vmatprep.subr.bf16.mxu0 0
      %6730 = vmatpush1.bf16.msra.mxu0 %v6680
      %6731 = vmatprep.subr.bf16.mxu0 0
      %6732 = vmatpush1.bf16.msra.mxu0 %v6681
      %6733 = vmatprep.subr.bf16.mxu0 0
      %6734 = vmatpush1.bf16.msra.mxu0 %v6682
      %6735 = vmatprep.subr.bf16.mxu0 0
      %6736 = vmatpush1.bf16.msra.mxu0 %v6683
      %6737 = vmatprep.subr.bf16.mxu0 0
      %6738 = vmatpush1.bf16.msra.mxu0 %v6684
      %6739 = vmatprep.subr.bf16.mxu0 0
      %6740 = vmatpush1.bf16.msra.mxu0 %v6685
      %6741 = vmatprep.subr.bf16.mxu0 0
      %6742 = vmatpush1.bf16.msra.mxu0 %v6686
      %6743 = vmatprep.subr.bf16.mxu0 0
      %6744 = vmatpush1.bf16.msra.mxu0 %v6687
      %6745 = vmatprep.subr.bf16.mxu0 0
      %6746 = vmatpush1.bf16.msra.mxu0 %v6688
      %6747 = vmatprep.subr.bf16.mxu0 0
      %6748 = vmatpush1.bf16.msra.mxu0 %v6689
      %6749 = vmatprep.subr.bf16.mxu0 0
      %6750 = vmatpush1.bf16.msra.mxu0 %v6690
      %6751 = vmatprep.subr.bf16.mxu0 0
      %6752 = vmatpush1.bf16.msra.mxu0 0
      %6753 = vmatprep.subr.bf16.mxu0 0
      %6754 = vmatpush1.bf16.msra.mxu0 0
      %6755 = vmatprep.subr.bf16.mxu0 0
      %6756 = vmatpush1.bf16.msra.mxu0 0
      %6757 = vmatprep.subr.bf16.mxu0 0
      %6758 = vmatpush1.bf16.msra.mxu0 0
      %6759 = vmatprep.mubr.bf16.mxu0 %v6704
      %6760 = vmatmul.mubr.bf16.gmra.mrb[0].mxu0 %v5583
      %v6761 = vpop.f32.mrb[0].mxu0
      %v6762 = vadd.f32 0.0, %v6761
      %v6763 = vpop.f32.mrb[0].mxu0
      %v6764 = vpop.f32.mrb[0].mxu0
      %v6765 = vadd.f32 0.0, %v6764
      %v6766 = vpop.f32.mrb[0].mxu0
      %6767 = vmatprep.mubr.bf16.mxu0 %v6707
      %6768 = vmatmul.mubr.bf16.gmra.mrb[0].mxu0 %v5585
      %v6769 = vpop.f32.mrb[0].mxu0
      %v6770 = vadd.f32 0.0, %v6769
      %v6771 = vpop.f32.mrb[0].mxu0
      %v6772 = vpop.f32.mrb[0].mxu0
      %v6773 = vadd.f32 0.0, %v6772
      %v6774 = vpop.f32.mrb[0].mxu0
      %6775 = vmatprep.mubr.bf16.mxu0 %v6710
      %6776 = vmatmul.mubr.bf16.gmra.mrb[0].mxu0 %v5587
      %v6777 = vpop.f32.mrb[0].mxu0
      %v6778 = vadd.f32 0.0, %v6777
      %v6779 = vpop.f32.mrb[0].mxu0
      %v6780 = vpop.f32.mrb[0].mxu0
      %v6781 = vadd.f32 0.0, %v6780
      %v6782 = vpop.f32.mrb[0].mxu0
      %6783 = vmatprep.mubr.bf16.mxu0 %v6713
      %6784 = vmatmul.mubr.bf16.gmra.mrb[0].mxu0 %v5589
      %v6785 = vpop.f32.mrb[0].mxu0
      %v6786 = vadd.f32 0.0, %v6785
      %v6787 = vpop.f32.mrb[0].mxu0
      %v6788 = vpop.f32.mrb[0].mxu0
      %v6789 = vadd.f32 0.0, %v6788
      %v6790 = vpop.f32.mrb[0].mxu0
      %6791 = vmatprep.mubr.bf16.mxu0 %v6716
      %6792 = vmatmul.mubr.bf16.gmra.mrb[0].mxu0 %v5591
      %v6793 = vpop.f32.mrb[0].mxu0
      %v6794 = vadd.f32 0.0, %v6793
      %v6795 = vpop.f32.mrb[0].mxu0
      %v6796 = vpop.f32.mrb[0].mxu0
      %v6797 = vadd.f32 0.0, %v6796
      %v6798 = vpop.f32.mrb[0].mxu0
      %6799 = vmatprep.mubr.bf16.mxu0 %v6719
      %6800 = vmatmul.mubr.bf16.gmra.mrb[0].mxu0 %v5593
      %v6801 = vpop.f32.mrb[0].mxu0
      %v6802 = vadd.f32 0.0, %v6801
      %v6803 = vpop.f32.mrb[0].mxu0
      %v6804 = vpop.f32.mrb[0].mxu0
      %v6805 = vadd.f32 0.0, %v6804
      %v6806 = vpop.f32.mrb[0].mxu0
      %6807 = vmatprep.mubr.bf16.mxu0 %v6722
      %6808 = vmatmul.mubr.bf16.gmra.mrb[0].mxu0 %v5595
      %v6809 = vpop.f32.mrb[0].mxu0
      %v6810 = vadd.f32 0.0, %v6809
      %v6811 = vpop.f32.mrb[0].mxu0
      %v6812 = vpop.f32.mrb[0].mxu0
      %v6813 = vadd.f32 0.0, %v6812
      %v6814 = vpop.f32.mrb[0].mxu0
      %6815 = vmatprep.mubr.bf16.mxu0 %v6725
      %6816 = vmatmul.mubr.bf16.gmra.mrb[0].mxu0 %v5597
      %v6817 = vpop.f32.mrb[0].mxu0
      %v6818 = vadd.f32 0.0, %v6817
      %v6819 = vpop.f32.mrb[0].mxu0
      %v6820 = vpop.f32.mrb[0].mxu0
      %v6821 = vadd.f32 0.0, %v6820
      %v6822 = vpop.f32.mrb[0].mxu0
      %6823 = vdwg.mxu0
      %v6824 = vadd.f32 %v6590, %v6762
      %v6825 = vadd.f32 %v6591, %v6765
      %v6826 = vadd.f32 %v6592, %v6770
      %v6827 = vadd.f32 %v6593, %v6773
      %v6828 = vadd.f32 %v6594, %v6778
      %v6829 = vadd.f32 %v6595, %v6781
      %v6830 = vadd.f32 %v6596, %v6786
      %v6831 = vadd.f32 %v6597, %v6789
      %v6832 = vadd.f32 %v6598, %v6794
      %v6833 = vadd.f32 %v6599, %v6797
      %v6834 = vadd.f32 %v6600, %v6802
      %v6835 = vadd.f32 %v6601, %v6805
      %v6836 = vadd.f32 %v6602, %v6810
      %v6837 = vadd.f32 %v6603, %v6813
      %v6838 = vadd.f32 %v6604, %v6818
      %v6839 = vadd.f32 %v6605, %v6821
      %s6840 = scalar_lea.vmem %s3, 480
      %v6841 = vld [vmem:[%s6840] sm:$0xf]
      %v6842 = vld [vmem:[%s6840 + $0x4] sm:$0xf]
      %v6843 = vld [vmem:[%s6840 + $0x8] sm:$0xf]
      %v6844 = vld [vmem:[%s6840 + $0xc] sm:$0xf]
      %v6845 = vld [vmem:[%s6840 + $0x10] sm:$0xf]
      %v6846 = vld [vmem:[%s6840 + $0x14] sm:$0xf]
      %v6847 = vld [vmem:[%s6840 + $0x18] sm:$0xf]
      %v6848 = vld [vmem:[%s6840 + $0x1c] sm:$0xf]
      %v6849 = vld [vmem:[%s6840 + $0x20] sm:$0xf]
      %v6850 = vld [vmem:[%s6840 + $0x24] sm:$0xf]
      %v6851 = vld [vmem:[%s6840 + $0x28] sm:$0xf]
      %v6852 = vld [vmem:[%s6840 + $0x2c] sm:$0xf]
      %v6853 = vld [vmem:[%s6840 + $0x30] sm:$0xf]
      %v6854 = vld [vmem:[%s6840 + $0x34] sm:$0xf]
      %v6855 = vld [vmem:[%s6840 + $0x38] sm:$0xf]
      %v6856 = vld [vmem:[%s6840 + $0x3c] sm:$0xf]
      %v6857 = vld [vmem:[%s6840 + $0x40] sm:$0xf]
      %v6858 = vld [vmem:[%s6840 + $0x44] sm:$0xf]
      %v6859 = vld [vmem:[%s6840 + $0x48] sm:$0xf]
      %v6860 = vld [vmem:[%s6840 + $0x4c] sm:$0xf]
      %v6861 = vld [vmem:[%s6840 + $0x50] sm:$0xf]
      %v6862 = vld [vmem:[%s6840 + $0x54] sm:$0xf]
      %v6863 = vld [vmem:[%s6840 + $0x58] sm:$0xf]
      %v6864 = vld [vmem:[%s6840 + $0x5c] sm:$0xf]
      %v6889 = vunpack.c.l.b16 %v6841
      %v6890 = vunpack.c.l.b16 %v6842
      %v6891 = vunpack.c.l.b16 %v6843
      %v6892 = vunpack.c.l.b16 %v6844
      %v6893 = vunpack.c.l.b16 %v6845
      %v6894 = vunpack.c.l.b16 %v6846
      %v6895 = vunpack.c.l.b16 %v6847
      %v6896 = vunpack.c.l.b16 %v6848
      %v6897 = vunpack.c.l.b16 %v6849
      %v6898 = vunpack.c.l.b16 %v6850
      %v6899 = vunpack.c.l.b16 %v6851
      %v6900 = vunpack.c.l.b16 %v6852
      %v6901 = vunpack.c.l.b16 %v6853
      %v6902 = vunpack.c.l.b16 %v6854
      %v6903 = vunpack.c.l.b16 %v6855
      %v6904 = vunpack.c.l.b16 %v6856
      %v6905 = vunpack.c.l.b16 %v6857
      %v6906 = vunpack.c.l.b16 %v6858
      %v6907 = vunpack.c.l.b16 %v6859
      %v6908 = vunpack.c.l.b16 %v6860
      %v6909 = vunpack.c.l.b16 %v6861
      %v6910 = vunpack.c.l.b16 %v6862
      %v6911 = vunpack.c.l.b16 %v6863
      %v6912 = vunpack.c.l.b16 %v6864
      %v6913 = vpack.c.b16 %v6890, %v6889
      %v6914 = vpack.c.b16 %v6892, %v6891
      %v6915 = vpack.c.b16 %v6894, %v6893
      %v6916 = vpack.c.b16 %v6896, %v6895
      %v6917 = vpack.c.b16 %v6898, %v6897
      %v6918 = vpack.c.b16 %v6900, %v6899
      %v6919 = vpack.c.b16 %v6902, %v6901
      %v6920 = vpack.c.b16 %v6904, %v6903
      %v6921 = vpack.c.b16 %v6906, %v6905
      %v6922 = vpack.c.b16 %v6908, %v6907
      %v6923 = vpack.c.b16 %v6910, %v6909
      %v6924 = vpack.c.b16 %v6912, %v6911
      %v6938 = vsel %vm5766, %v5600, 0
      %v6941 = vsel %vm5766, %v5602, 0
      %v6944 = vsel %vm5766, %v5604, 0
      %v6947 = vsel %vm5766, %v5606, 0
      %v6950 = vsel %vm5766, %v5608, 0
      %v6953 = vsel %vm5766, %v5610, 0
      %v6956 = vsel %vm5766, %v5612, 0
      %v6959 = vsel %vm5766, %v5614, 0
      %6961 = vmatprep.subr.bf16.mxu0 0
      %6962 = vmatpush1.bf16.msra.mxu0 %v6913
      %6963 = vmatprep.subr.bf16.mxu0 0
      %6964 = vmatpush1.bf16.msra.mxu0 %v6914
      %6965 = vmatprep.subr.bf16.mxu0 0
      %6966 = vmatpush1.bf16.msra.mxu0 %v6915
      %6967 = vmatprep.subr.bf16.mxu0 0
      %6968 = vmatpush1.bf16.msra.mxu0 %v6916
      %6969 = vmatprep.subr.bf16.mxu0 0
      %6970 = vmatpush1.bf16.msra.mxu0 %v6917
      %6971 = vmatprep.subr.bf16.mxu0 0
      %6972 = vmatpush1.bf16.msra.mxu0 %v6918
      %6973 = vmatprep.subr.bf16.mxu0 0
      %6974 = vmatpush1.bf16.msra.mxu0 %v6919
      %6975 = vmatprep.subr.bf16.mxu0 0
      %6976 = vmatpush1.bf16.msra.mxu0 %v6920
      %6977 = vmatprep.subr.bf16.mxu0 0
      %6978 = vmatpush1.bf16.msra.mxu0 %v6921
      %6979 = vmatprep.subr.bf16.mxu0 0
      %6980 = vmatpush1.bf16.msra.mxu0 %v6922
      %6981 = vmatprep.subr.bf16.mxu0 0
      %6982 = vmatpush1.bf16.msra.mxu0 %v6923
      %6983 = vmatprep.subr.bf16.mxu0 0
      %6984 = vmatpush1.bf16.msra.mxu0 %v6924
      %6985 = vmatprep.subr.bf16.mxu0 0
      %6986 = vmatpush1.bf16.msra.mxu0 0
      %6987 = vmatprep.subr.bf16.mxu0 0
      %6988 = vmatpush1.bf16.msra.mxu0 0
      %6989 = vmatprep.subr.bf16.mxu0 0
      %6990 = vmatpush1.bf16.msra.mxu0 0
      %6991 = vmatprep.subr.bf16.mxu0 0
      %6992 = vmatpush1.bf16.msra.mxu0 0
      %6993 = vmatprep.mubr.bf16.mxu0 %v6938
      %6994 = vmatmul.mubr.bf16.gmra.mrb[0].mxu0 %v5599
      %v6995 = vpop.f32.mrb[0].mxu0
      %v6996 = vadd.f32 0.0, %v6995
      %v6997 = vpop.f32.mrb[0].mxu0
      %v6998 = vpop.f32.mrb[0].mxu0
      %v6999 = vadd.f32 0.0, %v6998
      %v7000 = vpop.f32.mrb[0].mxu0
      %7001 = vmatprep.mubr.bf16.mxu0 %v6941
      %7002 = vmatmul.mubr.bf16.gmra.mrb[0].mxu0 %v5601
      %v7003 = vpop.f32.mrb[0].mxu0
      %v7004 = vadd.f32 0.0, %v7003
      %v7005 = vpop.f32.mrb[0].mxu0
      %v7006 = vpop.f32.mrb[0].mxu0
      %v7007 = vadd.f32 0.0, %v7006
      %v7008 = vpop.f32.mrb[0].mxu0
      %7009 = vmatprep.mubr.bf16.mxu0 %v6944
      %7010 = vmatmul.mubr.bf16.gmra.mrb[0].mxu0 %v5603
      %v7011 = vpop.f32.mrb[0].mxu0
      %v7012 = vadd.f32 0.0, %v7011
      %v7013 = vpop.f32.mrb[0].mxu0
      %v7014 = vpop.f32.mrb[0].mxu0
      %v7015 = vadd.f32 0.0, %v7014
      %v7016 = vpop.f32.mrb[0].mxu0
      %7017 = vmatprep.mubr.bf16.mxu0 %v6947
      %7018 = vmatmul.mubr.bf16.gmra.mrb[0].mxu0 %v5605
      %v7019 = vpop.f32.mrb[0].mxu0
      %v7020 = vadd.f32 0.0, %v7019
      %v7021 = vpop.f32.mrb[0].mxu0
      %v7022 = vpop.f32.mrb[0].mxu0
      %v7023 = vadd.f32 0.0, %v7022
      %v7024 = vpop.f32.mrb[0].mxu0
      %7025 = vmatprep.mubr.bf16.mxu0 %v6950
      %7026 = vmatmul.mubr.bf16.gmra.mrb[0].mxu0 %v5607
      %v7027 = vpop.f32.mrb[0].mxu0
      %v7028 = vadd.f32 0.0, %v7027
      %v7029 = vpop.f32.mrb[0].mxu0
      %v7030 = vpop.f32.mrb[0].mxu0
      %v7031 = vadd.f32 0.0, %v7030
      %v7032 = vpop.f32.mrb[0].mxu0
      %7033 = vmatprep.mubr.bf16.mxu0 %v6953
      %7034 = vmatmul.mubr.bf16.gmra.mrb[0].mxu0 %v5609
      %v7035 = vpop.f32.mrb[0].mxu0
      %v7036 = vadd.f32 0.0, %v7035
      %v7037 = vpop.f32.mrb[0].mxu0
      %v7038 = vpop.f32.mrb[0].mxu0
      %v7039 = vadd.f32 0.0, %v7038
      %v7040 = vpop.f32.mrb[0].mxu0
      %7041 = vmatprep.mubr.bf16.mxu0 %v6956
      %7042 = vmatmul.mubr.bf16.gmra.mrb[0].mxu0 %v5611
      %v7043 = vpop.f32.mrb[0].mxu0
      %v7044 = vadd.f32 0.0, %v7043
      %v7045 = vpop.f32.mrb[0].mxu0
      %v7046 = vpop.f32.mrb[0].mxu0
      %v7047 = vadd.f32 0.0, %v7046
      %v7048 = vpop.f32.mrb[0].mxu0
      %7049 = vmatprep.mubr.bf16.mxu0 %v6959
      %7050 = vmatmul.mubr.bf16.gmra.mrb[0].mxu0 %v5613
      %v7051 = vpop.f32.mrb[0].mxu0
      %v7052 = vadd.f32 0.0, %v7051
      %v7053 = vpop.f32.mrb[0].mxu0
      %v7054 = vpop.f32.mrb[0].mxu0
      %v7055 = vadd.f32 0.0, %v7054
      %v7056 = vpop.f32.mrb[0].mxu0
      %7057 = vdwg.mxu0
      %v7058 = vadd.f32 %v6824, %v6996
      %v7059 = vadd.f32 %v6825, %v6999
      %v7060 = vadd.f32 %v6826, %v7004
      %v7061 = vadd.f32 %v6827, %v7007
      %v7062 = vadd.f32 %v6828, %v7012
      %v7063 = vadd.f32 %v6829, %v7015
      %v7064 = vadd.f32 %v6830, %v7020
      %v7065 = vadd.f32 %v6831, %v7023
      %v7066 = vadd.f32 %v6832, %v7028
      %v7067 = vadd.f32 %v6833, %v7031
      %v7068 = vadd.f32 %v6834, %v7036
      %v7069 = vadd.f32 %v6835, %v7039
      %v7070 = vadd.f32 %v6836, %v7044
      %v7071 = vadd.f32 %v6837, %v7047
      %v7072 = vadd.f32 %v6838, %v7052
      %v7073 = vadd.f32 %v6839, %v7055
      %s7074 = scalar_lea.vmem %s3, 576
      %v7075 = vld [vmem:[%s7074] sm:$0xf]
      %v7076 = vld [vmem:[%s7074 + $0x4] sm:$0xf]
      %v7077 = vld [vmem:[%s7074 + $0x8] sm:$0xf]
      %v7078 = vld [vmem:[%s7074 + $0xc] sm:$0xf]
      %v7079 = vld [vmem:[%s7074 + $0x10] sm:$0xf]
      %v7080 = vld [vmem:[%s7074 + $0x14] sm:$0xf]
      %v7081 = vld [vmem:[%s7074 + $0x18] sm:$0xf]
      %v7082 = vld [vmem:[%s7074 + $0x1c] sm:$0xf]
      %v7083 = vld [vmem:[%s7074 + $0x20] sm:$0xf]
      %v7084 = vld [vmem:[%s7074 + $0x24] sm:$0xf]
      %v7085 = vld [vmem:[%s7074 + $0x28] sm:$0xf]
      %v7086 = vld [vmem:[%s7074 + $0x2c] sm:$0xf]
      %v7087 = vld [vmem:[%s7074 + $0x30] sm:$0xf]
      %v7088 = vld [vmem:[%s7074 + $0x34] sm:$0xf]
      %v7089 = vld [vmem:[%s7074 + $0x38] sm:$0xf]
      %v7090 = vld [vmem:[%s7074 + $0x3c] sm:$0xf]
      %v7091 = vld [vmem:[%s7074 + $0x40] sm:$0xf]
      %v7092 = vld [vmem:[%s7074 + $0x44] sm:$0xf]
      %v7093 = vld [vmem:[%s7074 + $0x48] sm:$0xf]
      %v7094 = vld [vmem:[%s7074 + $0x4c] sm:$0xf]
      %v7095 = vld [vmem:[%s7074 + $0x50] sm:$0xf]
      %v7096 = vld [vmem:[%s7074 + $0x54] sm:$0xf]
      %v7097 = vld [vmem:[%s7074 + $0x58] sm:$0xf]
      %v7098 = vld [vmem:[%s7074 + $0x5c] sm:$0xf]
      %v7123 = vunpack.c.l.b16 %v7075
      %v7124 = vunpack.c.l.b16 %v7076
      %v7125 = vunpack.c.l.b16 %v7077
      %v7126 = vunpack.c.l.b16 %v7078
      %v7127 = vunpack.c.l.b16 %v7079
      %v7128 = vunpack.c.l.b16 %v7080
      %v7129 = vunpack.c.l.b16 %v7081
      %v7130 = vunpack.c.l.b16 %v7082
      %v7131 = vunpack.c.l.b16 %v7083
      %v7132 = vunpack.c.l.b16 %v7084
      %v7133 = vunpack.c.l.b16 %v7085
      %v7134 = vunpack.c.l.b16 %v7086
      %v7135 = vunpack.c.l.b16 %v7087
      %v7136 = vunpack.c.l.b16 %v7088
      %v7137 = vunpack.c.l.b16 %v7089
      %v7138 = vunpack.c.l.b16 %v7090
      %v7139 = vunpack.c.l.b16 %v7091
      %v7140 = vunpack.c.l.b16 %v7092
      %v7141 = vunpack.c.l.b16 %v7093
      %v7142 = vunpack.c.l.b16 %v7094
      %v7143 = vunpack.c.l.b16 %v7095
      %v7144 = vunpack.c.l.b16 %v7096
      %v7145 = vunpack.c.l.b16 %v7097
      %v7146 = vunpack.c.l.b16 %v7098
      %v7147 = vpack.c.b16 %v7124, %v7123
      %v7148 = vpack.c.b16 %v7126, %v7125
      %v7149 = vpack.c.b16 %v7128, %v7127
      %v7150 = vpack.c.b16 %v7130, %v7129
      %v7151 = vpack.c.b16 %v7132, %v7131
      %v7152 = vpack.c.b16 %v7134, %v7133
      %v7153 = vpack.c.b16 %v7136, %v7135
      %v7154 = vpack.c.b16 %v7138, %v7137
      %v7155 = vpack.c.b16 %v7140, %v7139
      %v7156 = vpack.c.b16 %v7142, %v7141
      %v7157 = vpack.c.b16 %v7144, %v7143
      %v7158 = vpack.c.b16 %v7146, %v7145
      %v7172 = vsel %vm5766, %v5616, 0
      %v7175 = vsel %vm5766, %v5618, 0
      %v7178 = vsel %vm5766, %v5620, 0
      %v7181 = vsel %vm5766, %v5622, 0
      %v7184 = vsel %vm5766, %v5624, 0
      %v7187 = vsel %vm5766, %v5626, 0
      %v7190 = vsel %vm5766, %v5628, 0
      %v7193 = vsel %vm5766, %v5630, 0
      %7195 = vmatprep.subr.bf16.mxu0 0
      %7196 = vmatpush1.bf16.msra.mxu0 %v7147
      %7197 = vmatprep.subr.bf16.mxu0 0
      %7198 = vmatpush1.bf16.msra.mxu0 %v7148
      %7199 = vmatprep.subr.bf16.mxu0 0
      %7200 = vmatpush1.bf16.msra.mxu0 %v7149
      %7201 = vmatprep.subr.bf16.mxu0 0
      %7202 = vmatpush1.bf16.msra.mxu0 %v7150
      %7203 = vmatprep.subr.bf16.mxu0 0
      %7204 = vmatpush1.bf16.msra.mxu0 %v7151
      %7205 = vmatprep.subr.bf16.mxu0 0
      %7206 = vmatpush1.bf16.msra.mxu0 %v7152
      %7207 = vmatprep.subr.bf16.mxu0 0
      %7208 = vmatpush1.bf16.msra.mxu0 %v7153
      %7209 = vmatprep.subr.bf16.mxu0 0
      %7210 = vmatpush1.bf16.msra.mxu0 %v7154
      %7211 = vmatprep.subr.bf16.mxu0 0
      %7212 = vmatpush1.bf16.msra.mxu0 %v7155
      %7213 = vmatprep.subr.bf16.mxu0 0
      %7214 = vmatpush1.bf16.msra.mxu0 %v7156
      %7215 = vmatprep.subr.bf16.mxu0 0
      %7216 = vmatpush1.bf16.msra.mxu0 %v7157
      %7217 = vmatprep.subr.bf16.mxu0 0
      %7218 = vmatpush1.bf16.msra.mxu0 %v7158
      %7219 = vmatprep.subr.bf16.mxu0 0
      %7220 = vmatpush1.bf16.msra.mxu0 0
      %7221 = vmatprep.subr.bf16.mxu0 0
      %7222 = vmatpush1.bf16.msra.mxu0 0
      %7223 = vmatprep.subr.bf16.mxu0 0
      %7224 = vmatpush1.bf16.msra.mxu0 0
      %7225 = vmatprep.subr.bf16.mxu0 0
      %7226 = vmatpush1.bf16.msra.mxu0 0
      %7227 = vmatprep.mubr.bf16.mxu0 %v7172
      %7228 = vmatmul.mubr.bf16.gmra.mrb[0].mxu0 %v5615
      %v7229 = vpop.f32.mrb[0].mxu0
      %v7230 = vadd.f32 0.0, %v7229
      %v7231 = vpop.f32.mrb[0].mxu0
      %v7232 = vpop.f32.mrb[0].mxu0
      %v7233 = vadd.f32 0.0, %v7232
      %v7234 = vpop.f32.mrb[0].mxu0
      %7235 = vmatprep.mubr.bf16.mxu0 %v7175
      %7236 = vmatmul.mubr.bf16.gmra.mrb[0].mxu0 %v5617
      %v7237 = vpop.f32.mrb[0].mxu0
      %v7238 = vadd.f32 0.0, %v7237
      %v7239 = vpop.f32.mrb[0].mxu0
      %v7240 = vpop.f32.mrb[0].mxu0
      %v7241 = vadd.f32 0.0, %v7240
      %v7242 = vpop.f32.mrb[0].mxu0
      %7243 = vmatprep.mubr.bf16.mxu0 %v7178
      %7244 = vmatmul.mubr.bf16.gmra.mrb[0].mxu0 %v5619
      %v7245 = vpop.f32.mrb[0].mxu0
      %v7246 = vadd.f32 0.0, %v7245
      %v7247 = vpop.f32.mrb[0].mxu0
      %v7248 = vpop.f32.mrb[0].mxu0
      %v7249 = vadd.f32 0.0, %v7248
      %v7250 = vpop.f32.mrb[0].mxu0
      %7251 = vmatprep.mubr.bf16.mxu0 %v7181
      %7252 = vmatmul.mubr.bf16.gmra.mrb[0].mxu0 %v5621
      %v7253 = vpop.f32.mrb[0].mxu0
      %v7254 = vadd.f32 0.0, %v7253
      %v7255 = vpop.f32.mrb[0].mxu0
      %v7256 = vpop.f32.mrb[0].mxu0
      %v7257 = vadd.f32 0.0, %v7256
      %v7258 = vpop.f32.mrb[0].mxu0
      %7259 = vmatprep.mubr.bf16.mxu0 %v7184
      %7260 = vmatmul.mubr.bf16.gmra.mrb[0].mxu0 %v5623
      %v7261 = vpop.f32.mrb[0].mxu0
      %v7262 = vadd.f32 0.0, %v7261
      %v7263 = vpop.f32.mrb[0].mxu0
      %v7264 = vpop.f32.mrb[0].mxu0
      %v7265 = vadd.f32 0.0, %v7264
      %v7266 = vpop.f32.mrb[0].mxu0
      %7267 = vmatprep.mubr.bf16.mxu0 %v7187
      %7268 = vmatmul.mubr.bf16.gmra.mrb[0].mxu0 %v5625
      %v7269 = vpop.f32.mrb[0].mxu0
      %v7270 = vadd.f32 0.0, %v7269
      %v7271 = vpop.f32.mrb[0].mxu0
      %v7272 = vpop.f32.mrb[0].mxu0
      %v7273 = vadd.f32 0.0, %v7272
      %v7274 = vpop.f32.mrb[0].mxu0
      %7275 = vmatprep.mubr.bf16.mxu0 %v7190
      %7276 = vmatmul.mubr.bf16.gmra.mrb[0].mxu0 %v5627
      %v7277 = vpop.f32.mrb[0].mxu0
      %v7278 = vadd.f32 0.0, %v7277
      %v7279 = vpop.f32.mrb[0].mxu0
      %v7280 = vpop.f32.mrb[0].mxu0
      %v7281 = vadd.f32 0.0, %v7280
      %v7282 = vpop.f32.mrb[0].mxu0
      %7283 = vmatprep.mubr.bf16.mxu0 %v7193
      %7284 = vmatmul.mubr.bf16.gmra.mrb[0].mxu0 %v5629
      %v7285 = vpop.f32.mrb[0].mxu0
      %v7286 = vadd.f32 0.0, %v7285
      %v7287 = vpop.f32.mrb[0].mxu0
      %v7288 = vpop.f32.mrb[0].mxu0
      %v7289 = vadd.f32 0.0, %v7288
      %v7290 = vpop.f32.mrb[0].mxu0
      %7291 = vdwg.mxu0
      %v7292 = vadd.f32 %v7058, %v7230
      %v7293 = vadd.f32 %v7059, %v7233
      %v7294 = vadd.f32 %v7060, %v7238
      %v7295 = vadd.f32 %v7061, %v7241
      %v7296 = vadd.f32 %v7062, %v7246
      %v7297 = vadd.f32 %v7063, %v7249
      %v7298 = vadd.f32 %v7064, %v7254
      %v7299 = vadd.f32 %v7065, %v7257
      %v7300 = vadd.f32 %v7066, %v7262
      %v7301 = vadd.f32 %v7067, %v7265
      %v7302 = vadd.f32 %v7068, %v7270
      %v7303 = vadd.f32 %v7069, %v7273
      %v7304 = vadd.f32 %v7070, %v7278
      %v7305 = vadd.f32 %v7071, %v7281
      %v7306 = vadd.f32 %v7072, %v7286
      %v7307 = vadd.f32 %v7073, %v7289
      %s7308 = scalar_lea.vmem %s3, 672
      %v7309 = vld [vmem:[%s7308] sm:$0xf]
      %v7310 = vld [vmem:[%s7308 + $0x4] sm:$0xf]
      %v7311 = vld [vmem:[%s7308 + $0x8] sm:$0xf]
      %v7312 = vld [vmem:[%s7308 + $0xc] sm:$0xf]
      %v7313 = vld [vmem:[%s7308 + $0x10] sm:$0xf]
      %v7314 = vld [vmem:[%s7308 + $0x14] sm:$0xf]
      %v7315 = vld [vmem:[%s7308 + $0x18] sm:$0xf]
      %v7316 = vld [vmem:[%s7308 + $0x1c] sm:$0xf]
      %v7317 = vld [vmem:[%s7308 + $0x20] sm:$0xf]
      %v7318 = vld [vmem:[%s7308 + $0x24] sm:$0xf]
      %v7319 = vld [vmem:[%s7308 + $0x28] sm:$0xf]
      %v7320 = vld [vmem:[%s7308 + $0x2c] sm:$0xf]
      %v7321 = vld [vmem:[%s7308 + $0x30] sm:$0xf]
      %v7322 = vld [vmem:[%s7308 + $0x34] sm:$0xf]
      %v7323 = vld [vmem:[%s7308 + $0x38] sm:$0xf]
      %v7324 = vld [vmem:[%s7308 + $0x3c] sm:$0xf]
      %v7325 = vld [vmem:[%s7308 + $0x40] sm:$0xf]
      %v7326 = vld [vmem:[%s7308 + $0x44] sm:$0xf]
      %v7327 = vld [vmem:[%s7308 + $0x48] sm:$0xf]
      %v7328 = vld [vmem:[%s7308 + $0x4c] sm:$0xf]
      %v7329 = vld [vmem:[%s7308 + $0x50] sm:$0xf]
      %v7330 = vld [vmem:[%s7308 + $0x54] sm:$0xf]
      %v7331 = vld [vmem:[%s7308 + $0x58] sm:$0xf]
      %v7332 = vld [vmem:[%s7308 + $0x5c] sm:$0xf]
      %v7357 = vunpack.c.l.b16 %v7309
      %v7358 = vunpack.c.l.b16 %v7310
      %v7359 = vunpack.c.l.b16 %v7311
      %v7360 = vunpack.c.l.b16 %v7312
      %v7361 = vunpack.c.l.b16 %v7313
      %v7362 = vunpack.c.l.b16 %v7314
      %v7363 = vunpack.c.l.b16 %v7315
      %v7364 = vunpack.c.l.b16 %v7316
      %v7365 = vunpack.c.l.b16 %v7317
      %v7366 = vunpack.c.l.b16 %v7318
      %v7367 = vunpack.c.l.b16 %v7319
      %v7368 = vunpack.c.l.b16 %v7320
      %v7369 = vunpack.c.l.b16 %v7321
      %v7370 = vunpack.c.l.b16 %v7322
      %v7371 = vunpack.c.l.b16 %v7323
      %v7372 = vunpack.c.l.b16 %v7324
      %v7373 = vunpack.c.l.b16 %v7325
      %v7374 = vunpack.c.l.b16 %v7326
      %v7375 = vunpack.c.l.b16 %v7327
      %v7376 = vunpack.c.l.b16 %v7328
      %v7377 = vunpack.c.l.b16 %v7329
      %v7378 = vunpack.c.l.b16 %v7330
      %v7379 = vunpack.c.l.b16 %v7331
      %v7380 = vunpack.c.l.b16 %v7332
      %v7381 = vpack.c.b16 %v7358, %v7357
      %v7382 = vpack.c.b16 %v7360, %v7359
      %v7383 = vpack.c.b16 %v7362, %v7361
      %v7384 = vpack.c.b16 %v7364, %v7363
      %v7385 = vpack.c.b16 %v7366, %v7365
      %v7386 = vpack.c.b16 %v7368, %v7367
      %v7387 = vpack.c.b16 %v7370, %v7369
      %v7388 = vpack.c.b16 %v7372, %v7371
      %v7389 = vpack.c.b16 %v7374, %v7373
      %v7390 = vpack.c.b16 %v7376, %v7375
      %v7391 = vpack.c.b16 %v7378, %v7377
      %v7392 = vpack.c.b16 %v7380, %v7379
      %v7406 = vsel %vm5766, %v5632, 0
      %v7409 = vsel %vm5766, %v5634, 0
      %v7412 = vsel %vm5766, %v5636, 0
      %v7415 = vsel %vm5766, %v5638, 0
      %v7418 = vsel %vm5766, %v5640, 0
      %v7421 = vsel %vm5766, %v5642, 0
      %v7424 = vsel %vm5766, %v5644, 0
      %v7427 = vsel %vm5766, %v5646, 0
      %7429 = vmatprep.subr.bf16.mxu0 0
      %7430 = vmatpush1.bf16.msra.mxu0 %v7381
      %7431 = vmatprep.subr.bf16.mxu0 0
      %7432 = vmatpush1.bf16.msra.mxu0 %v7382
      %7433 = vmatprep.subr.bf16.mxu0 0
      %7434 = vmatpush1.bf16.msra.mxu0 %v7383
      %7435 = vmatprep.subr.bf16.mxu0 0
      %7436 = vmatpush1.bf16.msra.mxu0 %v7384
      %7437 = vmatprep.subr.bf16.mxu0 0
      %7438 = vmatpush1.bf16.msra.mxu0 %v7385
      %7439 = vmatprep.subr.bf16.mxu0 0
      %7440 = vmatpush1.bf16.msra.mxu0 %v7386
      %7441 = vmatprep.subr.bf16.mxu0 0
      %7442 = vmatpush1.bf16.msra.mxu0 %v7387
      %7443 = vmatprep.subr.bf16.mxu0 0
      %7444 = vmatpush1.bf16.msra.mxu0 %v7388
      %7445 = vmatprep.subr.bf16.mxu0 0
      %7446 = vmatpush1.bf16.msra.mxu0 %v7389
      %7447 = vmatprep.subr.bf16.mxu0 0
      %7448 = vmatpush1.bf16.msra.mxu0 %v7390
      %7449 = vmatprep.subr.bf16.mxu0 0
      %7450 = vmatpush1.bf16.msra.mxu0 %v7391
      %7451 = vmatprep.subr.bf16.mxu0 0
      %7452 = vmatpush1.bf16.msra.mxu0 %v7392
      %7453 = vmatprep.subr.bf16.mxu0 0
      %7454 = vmatpush1.bf16.msra.mxu0 0
      %7455 = vmatprep.subr.bf16.mxu0 0
      %7456 = vmatpush1.bf16.msra.mxu0 0
      %7457 = vmatprep.subr.bf16.mxu0 0
      %7458 = vmatpush1.bf16.msra.mxu0 0
      %7459 = vmatprep.subr.bf16.mxu0 0
      %7460 = vmatpush1.bf16.msra.mxu0 0
      %7461 = vmatprep.mubr.bf16.mxu0 %v7406
      %7462 = vmatmul.mubr.bf16.gmra.mrb[0].mxu0 %v5631
      %v7463 = vpop.f32.mrb[0].mxu0
      %v7464 = vadd.f32 0.0, %v7463
      %v7465 = vpop.f32.mrb[0].mxu0
      %v7466 = vpop.f32.mrb[0].mxu0
      %v7467 = vadd.f32 0.0, %v7466
      %v7468 = vpop.f32.mrb[0].mxu0
      %7469 = vmatprep.mubr.bf16.mxu0 %v7409
      %7470 = vmatmul.mubr.bf16.gmra.mrb[0].mxu0 %v5633
      %v7471 = vpop.f32.mrb[0].mxu0
      %v7472 = vadd.f32 0.0, %v7471
      %v7473 = vpop.f32.mrb[0].mxu0
      %v7474 = vpop.f32.mrb[0].mxu0
      %v7475 = vadd.f32 0.0, %v7474
      %v7476 = vpop.f32.mrb[0].mxu0
      %7477 = vmatprep.mubr.bf16.mxu0 %v7412
      %7478 = vmatmul.mubr.bf16.gmra.mrb[0].mxu0 %v5635
      %v7479 = vpop.f32.mrb[0].mxu0
      %v7480 = vadd.f32 0.0, %v7479
      %v7481 = vpop.f32.mrb[0].mxu0
      %v7482 = vpop.f32.mrb[0].mxu0
      %v7483 = vadd.f32 0.0, %v7482
      %v7484 = vpop.f32.mrb[0].mxu0
      %7485 = vmatprep.mubr.bf16.mxu0 %v7415
      %7486 = vmatmul.mubr.bf16.gmra.mrb[0].mxu0 %v5637
      %v7487 = vpop.f32.mrb[0].mxu0
      %v7488 = vadd.f32 0.0, %v7487
      %v7489 = vpop.f32.mrb[0].mxu0
      %v7490 = vpop.f32.mrb[0].mxu0
      %v7491 = vadd.f32 0.0, %v7490
      %v7492 = vpop.f32.mrb[0].mxu0
      %7493 = vmatprep.mubr.bf16.mxu0 %v7418
      %7494 = vmatmul.mubr.bf16.gmra.mrb[0].mxu0 %v5639
      %v7495 = vpop.f32.mrb[0].mxu0
      %v7496 = vadd.f32 0.0, %v7495
      %v7497 = vpop.f32.mrb[0].mxu0
      %v7498 = vpop.f32.mrb[0].mxu0
      %v7499 = vadd.f32 0.0, %v7498
      %v7500 = vpop.f32.mrb[0].mxu0
      %7501 = vmatprep.mubr.bf16.mxu0 %v7421
      %7502 = vmatmul.mubr.bf16.gmra.mrb[0].mxu0 %v5641
      %v7503 = vpop.f32.mrb[0].mxu0
      %v7504 = vadd.f32 0.0, %v7503
      %v7505 = vpop.f32.mrb[0].mxu0
      %v7506 = vpop.f32.mrb[0].mxu0
      %v7507 = vadd.f32 0.0, %v7506
      %v7508 = vpop.f32.mrb[0].mxu0
      %7509 = vmatprep.mubr.bf16.mxu0 %v7424
      %7510 = vmatmul.mubr.bf16.gmra.mrb[0].mxu0 %v5643
      %v7511 = vpop.f32.mrb[0].mxu0
      %v7512 = vadd.f32 0.0, %v7511
      %v7513 = vpop.f32.mrb[0].mxu0
      %v7514 = vpop.f32.mrb[0].mxu0
      %v7515 = vadd.f32 0.0, %v7514
      %v7516 = vpop.f32.mrb[0].mxu0
      %7517 = vmatprep.mubr.bf16.mxu0 %v7427
      %7518 = vmatmul.mubr.bf16.gmra.mrb[0].mxu0 %v5645
      %v7519 = vpop.f32.mrb[0].mxu0
      %v7520 = vadd.f32 0.0, %v7519
      %v7521 = vpop.f32.mrb[0].mxu0
      %v7522 = vpop.f32.mrb[0].mxu0
      %v7523 = vadd.f32 0.0, %v7522
      %v7524 = vpop.f32.mrb[0].mxu0
      %7525 = vdwg.mxu0
      %v7526 = vadd.f32 %v7292, %v7464
      %v7527 = vadd.f32 %v7293, %v7467
      %v7528 = vadd.f32 %v7294, %v7472
      %v7529 = vadd.f32 %v7295, %v7475
      %v7530 = vadd.f32 %v7296, %v7480
      %v7531 = vadd.f32 %v7297, %v7483
      %v7532 = vadd.f32 %v7298, %v7488
      %v7533 = vadd.f32 %v7299, %v7491
      %v7534 = vadd.f32 %v7300, %v7496
      %v7535 = vadd.f32 %v7301, %v7499
      %v7536 = vadd.f32 %v7302, %v7504
      %v7537 = vadd.f32 %v7303, %v7507
      %v7538 = vadd.f32 %v7304, %v7512
      %v7539 = vadd.f32 %v7305, %v7515
      %v7540 = vadd.f32 %v7306, %v7520
      %v7541 = vadd.f32 %v7307, %v7523
      %s7542 = scalar_lea.vmem %s3, 768
      %v7543 = vld [vmem:[%s7542] sm:$0xf]
      %v7544 = vld [vmem:[%s7542 + $0x4] sm:$0xf]
      %v7545 = vld [vmem:[%s7542 + $0x8] sm:$0xf]
      %v7546 = vld [vmem:[%s7542 + $0xc] sm:$0xf]
      %v7547 = vld [vmem:[%s7542 + $0x10] sm:$0xf]
      %v7548 = vld [vmem:[%s7542 + $0x14] sm:$0xf]
      %v7549 = vld [vmem:[%s7542 + $0x18] sm:$0xf]
      %v7550 = vld [vmem:[%s7542 + $0x1c] sm:$0xf]
      %v7551 = vld [vmem:[%s7542 + $0x20] sm:$0xf]
      %v7552 = vld [vmem:[%s7542 + $0x24] sm:$0xf]
      %v7553 = vld [vmem:[%s7542 + $0x28] sm:$0xf]
      %v7554 = vld [vmem:[%s7542 + $0x2c] sm:$0xf]
      %v7555 = vld [vmem:[%s7542 + $0x30] sm:$0xf]
      %v7556 = vld [vmem:[%s7542 + $0x34] sm:$0xf]
      %v7557 = vld [vmem:[%s7542 + $0x38] sm:$0xf]
      %v7558 = vld [vmem:[%s7542 + $0x3c] sm:$0xf]
      %v7559 = vld [vmem:[%s7542 + $0x40] sm:$0xf]
      %v7560 = vld [vmem:[%s7542 + $0x44] sm:$0xf]
      %v7561 = vld [vmem:[%s7542 + $0x48] sm:$0xf]
      %v7562 = vld [vmem:[%s7542 + $0x4c] sm:$0xf]
      %v7563 = vld [vmem:[%s7542 + $0x50] sm:$0xf]
      %v7564 = vld [vmem:[%s7542 + $0x54] sm:$0xf]
      %v7565 = vld [vmem:[%s7542 + $0x58] sm:$0xf]
      %v7566 = vld [vmem:[%s7542 + $0x5c] sm:$0xf]
      %v7591 = vunpack.c.l.b16 %v7543
      %v7592 = vunpack.c.l.b16 %v7544
      %v7593 = vunpack.c.l.b16 %v7545
      %v7594 = vunpack.c.l.b16 %v7546
      %v7595 = vunpack.c.l.b16 %v7547
      %v7596 = vunpack.c.l.b16 %v7548
      %v7597 = vunpack.c.l.b16 %v7549
      %v7598 = vunpack.c.l.b16 %v7550
      %v7599 = vunpack.c.l.b16 %v7551
      %v7600 = vunpack.c.l.b16 %v7552
      %v7601 = vunpack.c.l.b16 %v7553
      %v7602 = vunpack.c.l.b16 %v7554
      %v7603 = vunpack.c.l.b16 %v7555
      %v7604 = vunpack.c.l.b16 %v7556
      %v7605 = vunpack.c.l.b16 %v7557
      %v7606 = vunpack.c.l.b16 %v7558
      %v7607 = vunpack.c.l.b16 %v7559
      %v7608 = vunpack.c.l.b16 %v7560
      %v7609 = vunpack.c.l.b16 %v7561
      %v7610 = vunpack.c.l.b16 %v7562
      %v7611 = vunpack.c.l.b16 %v7563
      %v7612 = vunpack.c.l.b16 %v7564
      %v7613 = vunpack.c.l.b16 %v7565
      %v7614 = vunpack.c.l.b16 %v7566
      %v7615 = vpack.c.b16 %v7592, %v7591
      %v7616 = vpack.c.b16 %v7594, %v7593
      %v7617 = vpack.c.b16 %v7596, %v7595
      %v7618 = vpack.c.b16 %v7598, %v7597
      %v7619 = vpack.c.b16 %v7600, %v7599
      %v7620 = vpack.c.b16 %v7602, %v7601
      %v7621 = vpack.c.b16 %v7604, %v7603
      %v7622 = vpack.c.b16 %v7606, %v7605
      %v7623 = vpack.c.b16 %v7608, %v7607
      %v7624 = vpack.c.b16 %v7610, %v7609
      %v7625 = vpack.c.b16 %v7612, %v7611
      %v7626 = vpack.c.b16 %v7614, %v7613
      %v7640 = vsel %vm5766, %v5648, 0
      %v7643 = vsel %vm5766, %v5650, 0
      %v7646 = vsel %vm5766, %v5652, 0
      %v7649 = vsel %vm5766, %v5654, 0
      %v7652 = vsel %vm5766, %v5656, 0
      %v7655 = vsel %vm5766, %v5658, 0
      %v7658 = vsel %vm5766, %v5660, 0
      %v7661 = vsel %vm5766, %v5662, 0
      %7663 = vmatprep.subr.bf16.mxu0 0
      %7664 = vmatpush1.bf16.msra.mxu0 %v7615
      %7665 = vmatprep.subr.bf16.mxu0 0
      %7666 = vmatpush1.bf16.msra.mxu0 %v7616
      %7667 = vmatprep.subr.bf16.mxu0 0
      %7668 = vmatpush1.bf16.msra.mxu0 %v7617
      %7669 = vmatprep.subr.bf16.mxu0 0
      %7670 = vmatpush1.bf16.msra.mxu0 %v7618
      %7671 = vmatprep.subr.bf16.mxu0 0
      %7672 = vmatpush1.bf16.msra.mxu0 %v7619
      %7673 = vmatprep.subr.bf16.mxu0 0
      %7674 = vmatpush1.bf16.msra.mxu0 %v7620
      %7675 = vmatprep.subr.bf16.mxu0 0
      %7676 = vmatpush1.bf16.msra.mxu0 %v7621
      %7677 = vmatprep.subr.bf16.mxu0 0
      %7678 = vmatpush1.bf16.msra.mxu0 %v7622
      %7679 = vmatprep.subr.bf16.mxu0 0
      %7680 = vmatpush1.bf16.msra.mxu0 %v7623
      %7681 = vmatprep.subr.bf16.mxu0 0
      %7682 = vmatpush1.bf16.msra.mxu0 %v7624
      %7683 = vmatprep.subr.bf16.mxu0 0
      %7684 = vmatpush1.bf16.msra.mxu0 %v7625
      %7685 = vmatprep.subr.bf16.mxu0 0
      %7686 = vmatpush1.bf16.msra.mxu0 %v7626
      %7687 = vmatprep.subr.bf16.mxu0 0
      %7688 = vmatpush1.bf16.msra.mxu0 0
      %7689 = vmatprep.subr.bf16.mxu0 0
      %7690 = vmatpush1.bf16.msra.mxu0 0
      %7691 = vmatprep.subr.bf16.mxu0 0
      %7692 = vmatpush1.bf16.msra.mxu0 0
      %7693 = vmatprep.subr.bf16.mxu0 0
      %7694 = vmatpush1.bf16.msra.mxu0 0
      %7695 = vmatprep.mubr.bf16.mxu0 %v7640
      %7696 = vmatmul.mubr.bf16.gmra.mrb[0].mxu0 %v5647
      %v7697 = vpop.f32.mrb[0].mxu0
      %v7698 = vadd.f32 0.0, %v7697
      %v7699 = vpop.f32.mrb[0].mxu0
      %v7700 = vpop.f32.mrb[0].mxu0
      %v7701 = vadd.f32 0.0, %v7700
      %v7702 = vpop.f32.mrb[0].mxu0
      %7703 = vmatprep.mubr.bf16.mxu0 %v7643
      %7704 = vmatmul.mubr.bf16.gmra.mrb[0].mxu0 %v5649
      %v7705 = vpop.f32.mrb[0].mxu0
      %v7706 = vadd.f32 0.0, %v7705
      %v7707 = vpop.f32.mrb[0].mxu0
      %v7708 = vpop.f32.mrb[0].mxu0
      %v7709 = vadd.f32 0.0, %v7708
      %v7710 = vpop.f32.mrb[0].mxu0
      %7711 = vmatprep.mubr.bf16.mxu0 %v7646
      %7712 = vmatmul.mubr.bf16.gmra.mrb[0].mxu0 %v5651
      %v7713 = vpop.f32.mrb[0].mxu0
      %v7714 = vadd.f32 0.0, %v7713
      %v7715 = vpop.f32.mrb[0].mxu0
      %v7716 = vpop.f32.mrb[0].mxu0
      %v7717 = vadd.f32 0.0, %v7716
      %v7718 = vpop.f32.mrb[0].mxu0
      %7719 = vmatprep.mubr.bf16.mxu0 %v7649
      %7720 = vmatmul.mubr.bf16.gmra.mrb[0].mxu0 %v5653
      %v7721 = vpop.f32.mrb[0].mxu0
      %v7722 = vadd.f32 0.0, %v7721
      %v7723 = vpop.f32.mrb[0].mxu0
      %v7724 = vpop.f32.mrb[0].mxu0
      %v7725 = vadd.f32 0.0, %v7724
      %v7726 = vpop.f32.mrb[0].mxu0
      %7727 = vmatprep.mubr.bf16.mxu0 %v7652
      %7728 = vmatmul.mubr.bf16.gmra.mrb[0].mxu0 %v5655
      %v7729 = vpop.f32.mrb[0].mxu0
      %v7730 = vadd.f32 0.0, %v7729
      %v7731 = vpop.f32.mrb[0].mxu0
      %v7732 = vpop.f32.mrb[0].mxu0
      %v7733 = vadd.f32 0.0, %v7732
      %v7734 = vpop.f32.mrb[0].mxu0
      %7735 = vmatprep.mubr.bf16.mxu0 %v7655
      %7736 = vmatmul.mubr.bf16.gmra.mrb[0].mxu0 %v5657
      %v7737 = vpop.f32.mrb[0].mxu0
      %v7738 = vadd.f32 0.0, %v7737
      %v7739 = vpop.f32.mrb[0].mxu0
      %v7740 = vpop.f32.mrb[0].mxu0
      %v7741 = vadd.f32 0.0, %v7740
      %v7742 = vpop.f32.mrb[0].mxu0
      %7743 = vmatprep.mubr.bf16.mxu0 %v7658
      %7744 = vmatmul.mubr.bf16.gmra.mrb[0].mxu0 %v5659
      %v7745 = vpop.f32.mrb[0].mxu0
      %v7746 = vadd.f32 0.0, %v7745
      %v7747 = vpop.f32.mrb[0].mxu0
      %v7748 = vpop.f32.mrb[0].mxu0
      %v7749 = vadd.f32 0.0, %v7748
      %v7750 = vpop.f32.mrb[0].mxu0
      %7751 = vmatprep.mubr.bf16.mxu0 %v7661
      %7752 = vmatmul.mubr.bf16.gmra.mrb[0].mxu0 %v5661
      %v7753 = vpop.f32.mrb[0].mxu0
      %v7754 = vadd.f32 0.0, %v7753
      %v7755 = vpop.f32.mrb[0].mxu0
      %v7756 = vpop.f32.mrb[0].mxu0
      %v7757 = vadd.f32 0.0, %v7756
      %v7758 = vpop.f32.mrb[0].mxu0
      %7759 = vdwg.mxu0
      %v7760 = vadd.f32 %v7526, %v7698
      %v7761 = vadd.f32 %v7527, %v7701
      %v7762 = vadd.f32 %v7528, %v7706
      %v7763 = vadd.f32 %v7529, %v7709
      %v7764 = vadd.f32 %v7530, %v7714
      %v7765 = vadd.f32 %v7531, %v7717
      %v7766 = vadd.f32 %v7532, %v7722
      %v7767 = vadd.f32 %v7533, %v7725
      %v7768 = vadd.f32 %v7534, %v7730
      %v7769 = vadd.f32 %v7535, %v7733
      %v7770 = vadd.f32 %v7536, %v7738
      %v7771 = vadd.f32 %v7537, %v7741
      %v7772 = vadd.f32 %v7538, %v7746
      %v7773 = vadd.f32 %v7539, %v7749
      %v7774 = vadd.f32 %v7540, %v7754
      %v7775 = vadd.f32 %v7541, %v7757
      %vm7776 = vcmp.ge.f32.partialorder %v7760, 0.0
      %vm7777 = vcmp.ge.f32.partialorder %v7761, 0.0
      %vm7778 = vcmp.ge.f32.partialorder %v7762, 0.0
      %vm7779 = vcmp.ge.f32.partialorder %v7763, 0.0
      %vm7780 = vcmp.ge.f32.partialorder %v7764, 0.0
      %vm7781 = vcmp.ge.f32.partialorder %v7765, 0.0
      %vm7782 = vcmp.ge.f32.partialorder %v7766, 0.0
      %vm7783 = vcmp.ge.f32.partialorder %v7767, 0.0
      %vm7784 = vcmp.ge.f32.partialorder %v7768, 0.0
      %vm7785 = vcmp.ge.f32.partialorder %v7769, 0.0
      %vm7786 = vcmp.ge.f32.partialorder %v7770, 0.0
      %vm7787 = vcmp.ge.f32.partialorder %v7771, 0.0
      %vm7788 = vcmp.ge.f32.partialorder %v7772, 0.0
      %vm7789 = vcmp.ge.f32.partialorder %v7773, 0.0
      %vm7790 = vcmp.ge.f32.partialorder %v7774, 0.0
      %vm7791 = vcmp.ge.f32.partialorder %v7775, 0.0
      %v7792 = vmul.f32 %v7760, 0.1
      %v7793 = vmul.f32 %v7761, 0.1
      %v7794 = vmul.f32 %v7762, 0.1
      %v7795 = vmul.f32 %v7763, 0.1
      %v7796 = vmul.f32 %v7764, 0.1
      %v7797 = vmul.f32 %v7765, 0.1
      %v7798 = vmul.f32 %v7766, 0.1
      %v7799 = vmul.f32 %v7767, 0.1
      %v7800 = vmul.f32 %v7768, 0.1
      %v7801 = vmul.f32 %v7769, 0.1
      %v7802 = vmul.f32 %v7770, 0.1
      %v7803 = vmul.f32 %v7771, 0.1
      %v7804 = vmul.f32 %v7772, 0.1
      %v7805 = vmul.f32 %v7773, 0.1
      %v7806 = vmul.f32 %v7774, 0.1
      %v7807 = vmul.f32 %v7775, 0.1
      %v7808 = vsel %vm7776, %v7760, %v7792
      %v7809 = vsel %vm7777, %v7761, %v7793
      %v7810 = vsel %vm7778, %v7762, %v7794
      %v7811 = vsel %vm7779, %v7763, %v7795
      %v7812 = vsel %vm7780, %v7764, %v7796
      %v7813 = vsel %vm7781, %v7765, %v7797
      %v7814 = vsel %vm7782, %v7766, %v7798
      %v7815 = vsel %vm7783, %v7767, %v7799
      %v7816 = vsel %vm7784, %v7768, %v7800
      %v7817 = vsel %vm7785, %v7769, %v7801
      %v7818 = vsel %vm7786, %v7770, %v7802
      %v7819 = vsel %vm7787, %v7771, %v7803
      %v7820 = vsel %vm7788, %v7772, %v7804
      %v7821 = vsel %vm7789, %v7773, %v7805
      %v7822 = vsel %vm7790, %v7774, %v7806
      %v7823 = vsel %vm7791, %v7775, %v7807
      %v7824 = vpack.c.bf16 %v7809, %v7808
      %v7825 = vpack.c.bf16 %v7811, %v7810
      %v7826 = vpack.c.bf16 %v7813, %v7812
      %v7827 = vpack.c.bf16 %v7815, %v7814
      %v7828 = vpack.c.bf16 %v7817, %v7816
      %v7829 = vpack.c.bf16 %v7819, %v7818
      %v7830 = vpack.c.bf16 %v7821, %v7820
      %v7831 = vpack.c.bf16 %v7823, %v7822
      %v7832 = vld [vmem:[%s5] sm:$0xf]
      %v7833 = vld [vmem:[%s5 + $0x4] sm:$0xf]
      %v7834 = vld [vmem:[%s5 + $0x8] sm:$0xf]
      %v7835 = vld [vmem:[%s5 + $0xc] sm:$0xf]
      %v7840 = vunpack.c.l.b16 %v7832
      %v7841 = vunpack.c.l.b16 %v7833
      %v7842 = vunpack.c.l.b16 %v7834
      %v7843 = vunpack.c.l.b16 %v7835
      %v7844 = vpack.c.b16 %v7841, %v7840
      %v7845 = vpack.c.b16 %v7843, %v7842
      %7848 = vmatprep.subr.bf16.mxu0 0
      %7849 = vmatpush1.bf16.msra.mxu0 %v7824
      %7850 = vmatprep.subr.bf16.mxu0 0
      %7851 = vmatpush1.bf16.msra.mxu0 %v7825
      %7852 = vmatprep.subr.bf16.mxu0 0
      %7853 = vmatpush1.bf16.msra.mxu0 %v7826
      %7854 = vmatprep.subr.bf16.mxu0 0
      %7855 = vmatpush1.bf16.msra.mxu0 %v7827
      %7856 = vmatprep.subr.bf16.mxu0 0
      %7857 = vmatpush1.bf16.msra.mxu0 %v7828
      %7858 = vmatprep.subr.bf16.mxu0 0
      %7859 = vmatpush1.bf16.msra.mxu0 %v7829
      %7860 = vmatprep.subr.bf16.mxu0 0
      %7861 = vmatpush1.bf16.msra.mxu0 %v7830
      %7862 = vmatprep.subr.bf16.mxu0 0
      %7863 = vmatpush1.bf16.msra.mxu0 %v7831
      %7864 = vmatprep.subr.bf16.mxu0 0
      %7865 = vmatpush1.bf16.msra.mxu0 0
      %7866 = vmatprep.subr.bf16.mxu0 0
      %7867 = vmatpush1.bf16.msra.mxu0 0
      %7868 = vmatprep.subr.bf16.mxu0 0
      %7869 = vmatpush1.bf16.msra.mxu0 0
      %7870 = vmatprep.subr.bf16.mxu0 0
      %7871 = vmatpush1.bf16.msra.mxu0 0
      %7872 = vmatprep.subr.bf16.mxu0 0
      %7873 = vmatpush1.bf16.msra.mxu0 0
      %7874 = vmatprep.subr.bf16.mxu0 0
      %7875 = vmatpush1.bf16.msra.mxu0 0
      %7876 = vmatprep.subr.bf16.mxu0 0
      %7877 = vmatpush1.bf16.msra.mxu0 0
      %7878 = vmatprep.subr.bf16.mxu0 0
      %7879 = vmatpush1.bf16.msra.mxu0 0
      %7880 = vmatprep.mubr.bf16.mxu0 0
      %7881 = vmatmul.mubr.bf16.gmra.mrb[0].mxu0 %v7844
      %v7882 = vpop.f32.mrb[0].mxu0
      %v7883 = vadd.f32 0.0, %v7882
      %v7884 = vpop.f32.mrb[0].mxu0
      %v7885 = vpop.f32.mrb[0].mxu0
      %v7886 = vadd.f32 0.0, %v7885
      %v7887 = vpop.f32.mrb[0].mxu0
      %7888 = vmatprep.mubr.bf16.mxu0 0
      %7889 = vmatmul.mubr.bf16.gmra.mrb[0].mxu0 %v7845
      %v7890 = vpop.f32.mrb[0].mxu0
      %v7891 = vadd.f32 0.0, %v7890
      %v7892 = vpop.f32.mrb[0].mxu0
      %v7893 = vpop.f32.mrb[0].mxu0
      %v7894 = vadd.f32 0.0, %v7893
      %v7895 = vpop.f32.mrb[0].mxu0
      %7896 = vdwg.mxu0
      %s7897 = scalar_lea.vmem %s5, 16
      %v7898 = vld [vmem:[%s7897] sm:$0xf]
      %v7899 = vld [vmem:[%s7897 + $0x4] sm:$0xf]
      %v7900 = vld [vmem:[%s7897 + $0x8] sm:$0xf]
      %v7901 = vld [vmem:[%s7897 + $0xc] sm:$0xf]
      %v7906 = vunpack.c.l.b16 %v7898
      %v7907 = vunpack.c.l.b16 %v7899
      %v7908 = vunpack.c.l.b16 %v7900
      %v7909 = vunpack.c.l.b16 %v7901
      %v7910 = vpack.c.b16 %v7907, %v7906
      %v7911 = vpack.c.b16 %v7909, %v7908
      %7914 = vmatprep.subr.bf16.mxu0 0
      %7915 = vmatpush1.bf16.msra.mxu0 %v7824
      %7916 = vmatprep.subr.bf16.mxu0 0
      %7917 = vmatpush1.bf16.msra.mxu0 %v7825
      %7918 = vmatprep.subr.bf16.mxu0 0
      %7919 = vmatpush1.bf16.msra.mxu0 %v7826
      %7920 = vmatprep.subr.bf16.mxu0 0
      %7921 = vmatpush1.bf16.msra.mxu0 %v7827
      %7922 = vmatprep.subr.bf16.mxu0 0
      %7923 = vmatpush1.bf16.msra.mxu0 %v7828
      %7924 = vmatprep.subr.bf16.mxu0 0
      %7925 = vmatpush1.bf16.msra.mxu0 %v7829
      %7926 = vmatprep.subr.bf16.mxu0 0
      %7927 = vmatpush1.bf16.msra.mxu0 %v7830
      %7928 = vmatprep.subr.bf16.mxu0 0
      %7929 = vmatpush1.bf16.msra.mxu0 %v7831
      %7930 = vmatprep.subr.bf16.mxu0 0
      %7931 = vmatpush1.bf16.msra.mxu0 0
      %7932 = vmatprep.subr.bf16.mxu0 0
      %7933 = vmatpush1.bf16.msra.mxu0 0
      %7934 = vmatprep.subr.bf16.mxu0 0
      %7935 = vmatpush1.bf16.msra.mxu0 0
      %7936 = vmatprep.subr.bf16.mxu0 0
      %7937 = vmatpush1.bf16.msra.mxu0 0
      %7938 = vmatprep.subr.bf16.mxu0 0
      %7939 = vmatpush1.bf16.msra.mxu0 0
      %7940 = vmatprep.subr.bf16.mxu0 0
      %7941 = vmatpush1.bf16.msra.mxu0 0
      %7942 = vmatprep.subr.bf16.mxu0 0
      %7943 = vmatpush1.bf16.msra.mxu0 0
      %7944 = vmatprep.subr.bf16.mxu0 0
      %7945 = vmatpush1.bf16.msra.mxu0 0
      %7946 = vmatprep.mubr.bf16.mxu0 0
      %7947 = vmatmul.mubr.bf16.gmra.mrb[0].mxu0 %v7910
      %v7948 = vpop.f32.mrb[0].mxu0
      %v7949 = vadd.f32 0.0, %v7948
      %v7950 = vpop.f32.mrb[0].mxu0
      %v7951 = vpop.f32.mrb[0].mxu0
      %v7952 = vadd.f32 0.0, %v7951
      %v7953 = vpop.f32.mrb[0].mxu0
      %7954 = vmatprep.mubr.bf16.mxu0 0
      %7955 = vmatmul.mubr.bf16.gmra.mrb[0].mxu0 %v7911
      %v7956 = vpop.f32.mrb[0].mxu0
      %v7957 = vadd.f32 0.0, %v7956
      %v7958 = vpop.f32.mrb[0].mxu0
      %v7959 = vpop.f32.mrb[0].mxu0
      %v7960 = vadd.f32 0.0, %v7959
      %v7961 = vpop.f32.mrb[0].mxu0
      %7962 = vdwg.mxu0
      %v7963 = vmax.f32 %v7883, %v7949
      %v7964 = vmax.f32 %v7886, %v7952
      %v7965 = vmax.f32 %v7891, %v7957
      %v7966 = vmax.f32 %v7894, %v7960
      %s7967 = scalar_lea.vmem %s5, 32
      %v7968 = vld [vmem:[%s7967] sm:$0xf]
      %v7969 = vld [vmem:[%s7967 + $0x4] sm:$0xf]
      %v7970 = vld [vmem:[%s7967 + $0x8] sm:$0xf]
      %v7971 = vld [vmem:[%s7967 + $0xc] sm:$0xf]
      %v7976 = vunpack.c.l.b16 %v7968
      %v7977 = vunpack.c.l.b16 %v7969
      %v7978 = vunpack.c.l.b16 %v7970
      %v7979 = vunpack.c.l.b16 %v7971
      %v7980 = vpack.c.b16 %v7977, %v7976
      %v7981 = vpack.c.b16 %v7979, %v7978
      %7984 = vmatprep.subr.bf16.mxu0 0
      %7985 = vmatpush1.bf16.msra.mxu0 %v7824
      %7986 = vmatprep.subr.bf16.mxu0 0
      %7987 = vmatpush1.bf16.msra.mxu0 %v7825
      %7988 = vmatprep.subr.bf16.mxu0 0
      %7989 = vmatpush1.bf16.msra.mxu0 %v7826
      %7990 = vmatprep.subr.bf16.mxu0 0
      %7991 = vmatpush1.bf16.msra.mxu0 %v7827
      %7992 = vmatprep.subr.bf16.mxu0 0
      %7993 = vmatpush1.bf16.msra.mxu0 %v7828
      %7994 = vmatprep.subr.bf16.mxu0 0
      %7995 = vmatpush1.bf16.msra.mxu0 %v7829
      %7996 = vmatprep.subr.bf16.mxu0 0
      %7997 = vmatpush1.bf16.msra.mxu0 %v7830
      %7998 = vmatprep.subr.bf16.mxu0 0
      %7999 = vmatpush1.bf16.msra.mxu0 %v7831
      %8000 = vmatprep.subr.bf16.mxu0 0
      %8001 = vmatpush1.bf16.msra.mxu0 0
      %8002 = vmatprep.subr.bf16.mxu0 0
      %8003 = vmatpush1.bf16.msra.mxu0 0
      %8004 = vmatprep.subr.bf16.mxu0 0
      %8005 = vmatpush1.bf16.msra.mxu0 0
      %8006 = vmatprep.subr.bf16.mxu0 0
      %8007 = vmatpush1.bf16.msra.mxu0 0
      %8008 = vmatprep.subr.bf16.mxu0 0
      %8009 = vmatpush1.bf16.msra.mxu0 0
      %8010 = vmatprep.subr.bf16.mxu0 0
      %8011 = vmatpush1.bf16.msra.mxu0 0
      %8012 = vmatprep.subr.bf16.mxu0 0
      %8013 = vmatpush1.bf16.msra.mxu0 0
      %8014 = vmatprep.subr.bf16.mxu0 0
      %8015 = vmatpush1.bf16.msra.mxu0 0
      %8016 = vmatprep.mubr.bf16.mxu0 0
      %8017 = vmatmul.mubr.bf16.gmra.mrb[0].mxu0 %v7980
      %v8018 = vpop.f32.mrb[0].mxu0
      %v8019 = vadd.f32 0.0, %v8018
      %v8020 = vpop.f32.mrb[0].mxu0
      %v8021 = vpop.f32.mrb[0].mxu0
      %v8022 = vadd.f32 0.0, %v8021
      %v8023 = vpop.f32.mrb[0].mxu0
      %8024 = vmatprep.mubr.bf16.mxu0 0
      %8025 = vmatmul.mubr.bf16.gmra.mrb[0].mxu0 %v7981
      %v8026 = vpop.f32.mrb[0].mxu0
      %v8027 = vadd.f32 0.0, %v8026
      %v8028 = vpop.f32.mrb[0].mxu0
      %v8029 = vpop.f32.mrb[0].mxu0
      %v8030 = vadd.f32 0.0, %v8029
      %v8031 = vpop.f32.mrb[0].mxu0
      %8032 = vdwg.mxu0
      %v8033 = vmax.f32 %v7963, %v8019
      %v8034 = vmax.f32 %v7964, %v8022
      %v8035 = vmax.f32 %v7965, %v8027
      %v8036 = vmax.f32 %v7966, %v8030
      %s8037 = scalar_lea.vmem %s5, 48
      %v8038 = vld [vmem:[%s8037] sm:$0xf]
      %v8039 = vld [vmem:[%s8037 + $0x4] sm:$0xf]
      %v8040 = vld [vmem:[%s8037 + $0x8] sm:$0xf]
      %v8041 = vld [vmem:[%s8037 + $0xc] sm:$0xf]
      %v8046 = vunpack.c.l.b16 %v8038
      %v8047 = vunpack.c.l.b16 %v8039
      %v8048 = vunpack.c.l.b16 %v8040
      %v8049 = vunpack.c.l.b16 %v8041
      %v8050 = vpack.c.b16 %v8047, %v8046
      %v8051 = vpack.c.b16 %v8049, %v8048
      %8054 = vmatprep.subr.bf16.mxu0 0
      %8055 = vmatpush1.bf16.msra.mxu0 %v7824
      %8056 = vmatprep.subr.bf16.mxu0 0
      %8057 = vmatpush1.bf16.msra.mxu0 %v7825
      %8058 = vmatprep.subr.bf16.mxu0 0
      %8059 = vmatpush1.bf16.msra.mxu0 %v7826
      %8060 = vmatprep.subr.bf16.mxu0 0
      %8061 = vmatpush1.bf16.msra.mxu0 %v7827
      %8062 = vmatprep.subr.bf16.mxu0 0
      %8063 = vmatpush1.bf16.msra.mxu0 %v7828
      %8064 = vmatprep.subr.bf16.mxu0 0
      %8065 = vmatpush1.bf16.msra.mxu0 %v7829
      %8066 = vmatprep.subr.bf16.mxu0 0
      %8067 = vmatpush1.bf16.msra.mxu0 %v7830
      %8068 = vmatprep.subr.bf16.mxu0 0
      %8069 = vmatpush1.bf16.msra.mxu0 %v7831
      %8070 = vmatprep.subr.bf16.mxu0 0
      %8071 = vmatpush1.bf16.msra.mxu0 0
      %8072 = vmatprep.subr.bf16.mxu0 0
      %8073 = vmatpush1.bf16.msra.mxu0 0
      %8074 = vmatprep.subr.bf16.mxu0 0
      %8075 = vmatpush1.bf16.msra.mxu0 0
      %8076 = vmatprep.subr.bf16.mxu0 0
      %8077 = vmatpush1.bf16.msra.mxu0 0
      %8078 = vmatprep.subr.bf16.mxu0 0
      %8079 = vmatpush1.bf16.msra.mxu0 0
      %8080 = vmatprep.subr.bf16.mxu0 0
      %8081 = vmatpush1.bf16.msra.mxu0 0
      %8082 = vmatprep.subr.bf16.mxu0 0
      %8083 = vmatpush1.bf16.msra.mxu0 0
      %8084 = vmatprep.subr.bf16.mxu0 0
      %8085 = vmatpush1.bf16.msra.mxu0 0
      %8086 = vmatprep.mubr.bf16.mxu0 0
      %8087 = vmatmul.mubr.bf16.gmra.mrb[0].mxu0 %v8050
      %v8088 = vpop.f32.mrb[0].mxu0
      %v8089 = vadd.f32 0.0, %v8088
      %v8090 = vpop.f32.mrb[0].mxu0
      %v8091 = vpop.f32.mrb[0].mxu0
      %v8092 = vadd.f32 0.0, %v8091
      %v8093 = vpop.f32.mrb[0].mxu0
      %8094 = vmatprep.mubr.bf16.mxu0 0
      %8095 = vmatmul.mubr.bf16.gmra.mrb[0].mxu0 %v8051
      %v8096 = vpop.f32.mrb[0].mxu0
      %v8097 = vadd.f32 0.0, %v8096
      %v8098 = vpop.f32.mrb[0].mxu0
      %v8099 = vpop.f32.mrb[0].mxu0
      %v8100 = vadd.f32 0.0, %v8099
      %v8101 = vpop.f32.mrb[0].mxu0
      %8102 = vdwg.mxu0
      %v8103 = vmax.f32 %v8033, %v8089
      %v8104 = vmax.f32 %v8034, %v8092
      %v8105 = vmax.f32 %v8035, %v8097
      %v8106 = vmax.f32 %v8036, %v8100
      %v8107 = vpack.c.bf16 %v8104, %v8103
      %v8108 = vpack.c.bf16 %v8106, %v8105
      %v8109 = vld [vmem:[%s6] sm:$0xf]
      %v8110 = vld [vmem:[%s6 + $0x4] sm:$0xf]
      %v8113 = vunpack.c.l.b16 %v8109
      %v8114 = vunpack.c.l.b16 %v8110
      %v8115 = vpack.c.b16 %v8114, %v8113
      %v8117 = vsel %vm3796, %v8115, 0
      %8119 = vmatprep.subr.bf16.mxu0 0
      %8120 = vmatpush1.bf16.msra.mxu0 %v8107
      %8121 = vmatprep.subr.bf16.mxu0 0
      %8122 = vmatpush1.bf16.msra.mxu0 %v8108
      %8123 = vmatprep.subr.bf16.mxu0 0
      %8124 = vmatpush1.bf16.msra.mxu0 0
      %8125 = vmatprep.subr.bf16.mxu0 0
      %8126 = vmatpush1.bf16.msra.mxu0 0
      %8127 = vmatprep.subr.bf16.mxu0 0
      %8128 = vmatpush1.bf16.msra.mxu0 0
      %8129 = vmatprep.subr.bf16.mxu0 0
      %8130 = vmatpush1.bf16.msra.mxu0 0
      %8131 = vmatprep.subr.bf16.mxu0 0
      %8132 = vmatpush1.bf16.msra.mxu0 0
      %8133 = vmatprep.subr.bf16.mxu0 0
      %8134 = vmatpush1.bf16.msra.mxu0 0
      %8135 = vmatprep.subr.bf16.mxu0 0
      %8136 = vmatpush1.bf16.msra.mxu0 0
      %8137 = vmatprep.subr.bf16.mxu0 0
      %8138 = vmatpush1.bf16.msra.mxu0 0
      %8139 = vmatprep.subr.bf16.mxu0 0
      %8140 = vmatpush1.bf16.msra.mxu0 0
      %8141 = vmatprep.subr.bf16.mxu0 0
      %8142 = vmatpush1.bf16.msra.mxu0 0
      %8143 = vmatprep.subr.bf16.mxu0 0
      %8144 = vmatpush1.bf16.msra.mxu0 0
      %8145 = vmatprep.subr.bf16.mxu0 0
      %8146 = vmatpush1.bf16.msra.mxu0 0
      %8147 = vmatprep.subr.bf16.mxu0 0
      %8148 = vmatpush1.bf16.msra.mxu0 0
      %8149 = vmatprep.subr.bf16.mxu0 0
      %8150 = vmatpush1.bf16.msra.mxu0 0
      %8151 = vmatprep.mubr.bf16.mxu0 0
      %8152 = vmatmul.mubr.bf16.gmra.mrb[0].mxu0 %v8117
      %v8153 = vpop.f32.mrb[0].mxu0
      %v8154 = vadd.f32 0.0, %v8153
      %v8155 = vpop.f32.mrb[0].mxu0
      %v8156 = vpop.f32.mrb[0].mxu0
      %v8157 = vadd.f32 0.0, %v8156
      %v8158 = vpop.f32.mrb[0].mxu0
      %8159 = vdwg.mxu0
      %v8160 = vpack.c.bf16 %v8157, %v8154
      %v8161 = vld [vmem:[%s7] sm:$0xf]
      %v8162 = vld [vmem:[%s7 + $0x4] sm:$0xf]
      %v8163 = vld [vmem:[%s7 + $0x8] sm:$0xf]
      %v8164 = vld [vmem:[%s7 + $0xc] sm:$0xf]
      %v8165 = vld [vmem:[%s7 + $0x10] sm:$0xf]
      %v8166 = vld [vmem:[%s7 + $0x14] sm:$0xf]
      %v8167 = vld [vmem:[%s7 + $0x18] sm:$0xf]
      %v8168 = vld [vmem:[%s7 + $0x1c] sm:$0xf]
      %v8169 = vld [vmem:[%s7 + $0x20] sm:$0xf]
      %v8170 = vld [vmem:[%s7 + $0x24] sm:$0xf]
      %v8171 = vld [vmem:[%s7 + $0x28] sm:$0xf]
      %v8172 = vld [vmem:[%s7 + $0x2c] sm:$0xf]
      %v8173 = vld [vmem:[%s7 + $0x30] sm:$0xf]
      %v8174 = vld [vmem:[%s7 + $0x34] sm:$0xf]
      %v8175 = vld [vmem:[%s7 + $0x38] sm:$0xf]
      %v8176 = vld [vmem:[%s7 + $0x3c] sm:$0xf]
      %v8193 = vunpack.c.l.b16 %v8161
      %v8194 = vunpack.c.l.b16 %v8162
      %v8195 = vunpack.c.l.b16 %v8163
      %v8196 = vunpack.c.l.b16 %v8164
      %v8197 = vunpack.c.l.b16 %v8165
      %v8198 = vunpack.c.l.b16 %v8166
      %v8199 = vunpack.c.l.b16 %v8167
      %v8200 = vunpack.c.l.b16 %v8168
      %v8201 = vunpack.c.l.b16 %v8169
      %v8202 = vunpack.c.l.b16 %v8170
      %v8203 = vunpack.c.l.b16 %v8171
      %v8204 = vunpack.c.l.b16 %v8172
      %v8205 = vunpack.c.l.b16 %v8173
      %v8206 = vunpack.c.l.b16 %v8174
      %v8207 = vunpack.c.l.b16 %v8175
      %v8208 = vunpack.c.l.b16 %v8176
      %v8209 = vpack.c.b16 %v8194, %v8193
      %v8210 = vpack.c.b16 %v8196, %v8195
      %v8211 = vpack.c.b16 %v8198, %v8197
      %v8212 = vpack.c.b16 %v8200, %v8199
      %v8213 = vpack.c.b16 %v8202, %v8201
      %v8214 = vpack.c.b16 %v8204, %v8203
      %v8215 = vpack.c.b16 %v8206, %v8205
      %v8216 = vpack.c.b16 %v8208, %v8207
      %8225 = vmatprep.subr.bf16.mxu0 0
      %8226 = vmatpush1.bf16.msra.mxu0 %v8209
      %8227 = vmatprep.subr.bf16.mxu0 0
      %8228 = vmatpush1.bf16.msra.mxu0 %v8210
      %8229 = vmatprep.subr.bf16.mxu0 0
      %8230 = vmatpush1.bf16.msra.mxu0 %v8211
      %8231 = vmatprep.subr.bf16.mxu0 0
      %8232 = vmatpush1.bf16.msra.mxu0 %v8212
      %8233 = vmatprep.subr.bf16.mxu0 0
      %8234 = vmatpush1.bf16.msra.mxu0 %v8213
      %8235 = vmatprep.subr.bf16.mxu0 0
      %8236 = vmatpush1.bf16.msra.mxu0 %v8214
      %8237 = vmatprep.subr.bf16.mxu0 0
      %8238 = vmatpush1.bf16.msra.mxu0 %v8215
      %8239 = vmatprep.subr.bf16.mxu0 0
      %8240 = vmatpush1.bf16.msra.mxu0 %v8216
      %8241 = vmatprep.subr.bf16.mxu0 0
      %8242 = vmatpush1.bf16.msra.mxu0 0
      %8243 = vmatprep.subr.bf16.mxu0 0
      %8244 = vmatpush1.bf16.msra.mxu0 0
      %8245 = vmatprep.subr.bf16.mxu0 0
      %8246 = vmatpush1.bf16.msra.mxu0 0
      %8247 = vmatprep.subr.bf16.mxu0 0
      %8248 = vmatpush1.bf16.msra.mxu0 0
      %8249 = vmatprep.subr.bf16.mxu0 0
      %8250 = vmatpush1.bf16.msra.mxu0 0
      %8251 = vmatprep.subr.bf16.mxu0 0
      %8252 = vmatpush1.bf16.msra.mxu0 0
      %8253 = vmatprep.subr.bf16.mxu0 0
      %8254 = vmatpush1.bf16.msra.mxu0 0
      %8255 = vmatprep.subr.bf16.mxu0 0
      %8256 = vmatpush1.bf16.msra.mxu0 0
      %8257 = vmatprep.mubr.bf16.mxu0 0
      %8258 = vmatmul.mubr.bf16.gmra.mrb[0].mxu0 %v8160
      %v8259 = vpop.f32.mrb[0].mxu0
      %v8260 = vadd.f32 0.0, %v8259
      %v8261 = vpop.f32.mrb[0].mxu0
      %v8262 = vpop.f32.mrb[0].mxu0
      %v8263 = vadd.f32 0.0, %v8262
      %v8264 = vpop.f32.mrb[0].mxu0
      %8265 = vdwg.mxu0
      %s8266 = scalar_lea.vmem %s7, 64
      %v8267 = vld [vmem:[%s8266] sm:$0xf]
      %v8268 = vld [vmem:[%s8266 + $0x4] sm:$0xf]
      %v8269 = vld [vmem:[%s8266 + $0x8] sm:$0xf]
      %v8270 = vld [vmem:[%s8266 + $0xc] sm:$0xf]
      %v8271 = vld [vmem:[%s8266 + $0x10] sm:$0xf]
      %v8272 = vld [vmem:[%s8266 + $0x14] sm:$0xf]
      %v8273 = vld [vmem:[%s8266 + $0x18] sm:$0xf]
      %v8274 = vld [vmem:[%s8266 + $0x1c] sm:$0xf]
      %v8275 = vld [vmem:[%s8266 + $0x20] sm:$0xf]
      %v8276 = vld [vmem:[%s8266 + $0x24] sm:$0xf]
      %v8277 = vld [vmem:[%s8266 + $0x28] sm:$0xf]
      %v8278 = vld [vmem:[%s8266 + $0x2c] sm:$0xf]
      %v8279 = vld [vmem:[%s8266 + $0x30] sm:$0xf]
      %v8280 = vld [vmem:[%s8266 + $0x34] sm:$0xf]
      %v8281 = vld [vmem:[%s8266 + $0x38] sm:$0xf]
      %v8282 = vld [vmem:[%s8266 + $0x3c] sm:$0xf]
      %v8299 = vunpack.c.l.b16 %v8267
      %v8300 = vunpack.c.l.b16 %v8268
      %v8301 = vunpack.c.l.b16 %v8269
      %v8302 = vunpack.c.l.b16 %v8270
      %v8303 = vunpack.c.l.b16 %v8271
      %v8304 = vunpack.c.l.b16 %v8272
      %v8305 = vunpack.c.l.b16 %v8273
      %v8306 = vunpack.c.l.b16 %v8274
      %v8307 = vunpack.c.l.b16 %v8275
      %v8308 = vunpack.c.l.b16 %v8276
      %v8309 = vunpack.c.l.b16 %v8277
      %v8310 = vunpack.c.l.b16 %v8278
      %v8311 = vunpack.c.l.b16 %v8279
      %v8312 = vunpack.c.l.b16 %v8280
      %v8313 = vunpack.c.l.b16 %v8281
      %v8314 = vunpack.c.l.b16 %v8282
      %v8315 = vpack.c.b16 %v8300, %v8299
      %v8316 = vpack.c.b16 %v8302, %v8301
      %v8317 = vpack.c.b16 %v8304, %v8303
      %v8318 = vpack.c.b16 %v8306, %v8305
      %v8319 = vpack.c.b16 %v8308, %v8307
      %v8320 = vpack.c.b16 %v8310, %v8309
      %v8321 = vpack.c.b16 %v8312, %v8311
      %v8322 = vpack.c.b16 %v8314, %v8313
      %8331 = vmatprep.subr.bf16.mxu0 0
      %8332 = vmatpush1.bf16.msra.mxu0 %v8315
      %8333 = vmatprep.subr.bf16.mxu0 0
      %8334 = vmatpush1.bf16.msra.mxu0 %v8316
      %8335 = vmatprep.subr.bf16.mxu0 0
      %8336 = vmatpush1.bf16.msra.mxu0 %v8317
      %8337 = vmatprep.subr.bf16.mxu0 0
      %8338 = vmatpush1.bf16.msra.mxu0 %v8318
      %8339 = vmatprep.subr.bf16.mxu0 0
      %8340 = vmatpush1.bf16.msra.mxu0 %v8319
      %8341 = vmatprep.subr.bf16.mxu0 0
      %8342 = vmatpush1.bf16.msra.mxu0 %v8320
      %8343 = vmatprep.subr.bf16.mxu0 0
      %8344 = vmatpush1.bf16.msra.mxu0 %v8321
      %8345 = vmatprep.subr.bf16.mxu0 0
      %8346 = vmatpush1.bf16.msra.mxu0 %v8322
      %8347 = vmatprep.subr.bf16.mxu0 0
      %8348 = vmatpush1.bf16.msra.mxu0 0
      %8349 = vmatprep.subr.bf16.mxu0 0
      %8350 = vmatpush1.bf16.msra.mxu0 0
      %8351 = vmatprep.subr.bf16.mxu0 0
      %8352 = vmatpush1.bf16.msra.mxu0 0
      %8353 = vmatprep.subr.bf16.mxu0 0
      %8354 = vmatpush1.bf16.msra.mxu0 0
      %8355 = vmatprep.subr.bf16.mxu0 0
      %8356 = vmatpush1.bf16.msra.mxu0 0
      %8357 = vmatprep.subr.bf16.mxu0 0
      %8358 = vmatpush1.bf16.msra.mxu0 0
      %8359 = vmatprep.subr.bf16.mxu0 0
      %8360 = vmatpush1.bf16.msra.mxu0 0
      %8361 = vmatprep.subr.bf16.mxu0 0
      %8362 = vmatpush1.bf16.msra.mxu0 0
      %8363 = vmatprep.mubr.bf16.mxu0 0
      %8364 = vmatmul.mubr.bf16.gmra.mrb[0].mxu0 %v8160
      %v8365 = vpop.f32.mrb[0].mxu0
      %v8366 = vadd.f32 0.0, %v8365
      %v8367 = vpop.f32.mrb[0].mxu0
      %v8368 = vpop.f32.mrb[0].mxu0
      %v8369 = vadd.f32 0.0, %v8368
      %v8370 = vpop.f32.mrb[0].mxu0
      %8371 = vdwg.mxu0
      %v8372 = vmax.f32 %v8260, %v8366
      %v8373 = vmax.f32 %v8263, %v8369
      %s8374 = scalar_lea.vmem %s6, 8
      %v8375 = vld [vmem:[%s8374] sm:$0xf]
      %v8376 = vld [vmem:[%s8374 + $0x4] sm:$0xf]
      %v8379 = vunpack.c.l.b16 %v8375
      %v8380 = vunpack.c.l.b16 %v8376
      %v8381 = vpack.c.b16 %v8380, %v8379
      %v8383 = vsel %vm3796, %v8381, 0
      %8385 = vmatprep.subr.bf16.mxu0 0
      %8386 = vmatpush1.bf16.msra.mxu0 %v8107
      %8387 = vmatprep.subr.bf16.mxu0 0
      %8388 = vmatpush1.bf16.msra.mxu0 %v8108
      %8389 = vmatprep.subr.bf16.mxu0 0
      %8390 = vmatpush1.bf16.msra.mxu0 0
      %8391 = vmatprep.subr.bf16.mxu0 0
      %8392 = vmatpush1.bf16.msra.mxu0 0
      %8393 = vmatprep.subr.bf16.mxu0 0
      %8394 = vmatpush1.bf16.msra.mxu0 0
      %8395 = vmatprep.subr.bf16.mxu0 0
      %8396 = vmatpush1.bf16.msra.mxu0 0
      %8397 = vmatprep.subr.bf16.mxu0 0
      %8398 = vmatpush1.bf16.msra.mxu0 0
      %8399 = vmatprep.subr.bf16.mxu0 0
      %8400 = vmatpush1.bf16.msra.mxu0 0
      %8401 = vmatprep.subr.bf16.mxu0 0
      %8402 = vmatpush1.bf16.msra.mxu0 0
      %8403 = vmatprep.subr.bf16.mxu0 0
      %8404 = vmatpush1.bf16.msra.mxu0 0
      %8405 = vmatprep.subr.bf16.mxu0 0
      %8406 = vmatpush1.bf16.msra.mxu0 0
      %8407 = vmatprep.subr.bf16.mxu0 0
      %8408 = vmatpush1.bf16.msra.mxu0 0
      %8409 = vmatprep.subr.bf16.mxu0 0
      %8410 = vmatpush1.bf16.msra.mxu0 0
      %8411 = vmatprep.subr.bf16.mxu0 0
      %8412 = vmatpush1.bf16.msra.mxu0 0
      %8413 = vmatprep.subr.bf16.mxu0 0
      %8414 = vmatpush1.bf16.msra.mxu0 0
      %8415 = vmatprep.subr.bf16.mxu0 0
      %8416 = vmatpush1.bf16.msra.mxu0 0
      %8417 = vmatprep.mubr.bf16.mxu0 0
      %8418 = vmatmul.mubr.bf16.gmra.mrb[0].mxu0 %v8383
      %v8419 = vpop.f32.mrb[0].mxu0
      %v8420 = vadd.f32 0.0, %v8419
      %v8421 = vpop.f32.mrb[0].mxu0
      %v8422 = vpop.f32.mrb[0].mxu0
      %v8423 = vadd.f32 0.0, %v8422
      %v8424 = vpop.f32.mrb[0].mxu0
      %8425 = vdwg.mxu0
      %v8426 = vpack.c.bf16 %v8423, %v8420
      %s8427 = scalar_lea.vmem %s7, 128
      %v8428 = vld [vmem:[%s8427] sm:$0xf]
      %v8429 = vld [vmem:[%s8427 + $0x4] sm:$0xf]
      %v8430 = vld [vmem:[%s8427 + $0x8] sm:$0xf]
      %v8431 = vld [vmem:[%s8427 + $0xc] sm:$0xf]
      %v8432 = vld [vmem:[%s8427 + $0x10] sm:$0xf]
      %v8433 = vld [vmem:[%s8427 + $0x14] sm:$0xf]
      %v8434 = vld [vmem:[%s8427 + $0x18] sm:$0xf]
      %v8435 = vld [vmem:[%s8427 + $0x1c] sm:$0xf]
      %v8436 = vld [vmem:[%s8427 + $0x20] sm:$0xf]
      %v8437 = vld [vmem:[%s8427 + $0x24] sm:$0xf]
      %v8438 = vld [vmem:[%s8427 + $0x28] sm:$0xf]
      %v8439 = vld [vmem:[%s8427 + $0x2c] sm:$0xf]
      %v8440 = vld [vmem:[%s8427 + $0x30] sm:$0xf]
      %v8441 = vld [vmem:[%s8427 + $0x34] sm:$0xf]
      %v8442 = vld [vmem:[%s8427 + $0x38] sm:$0xf]
      %v8443 = vld [vmem:[%s8427 + $0x3c] sm:$0xf]
      %v8460 = vunpack.c.l.b16 %v8428
      %v8461 = vunpack.c.l.b16 %v8429
      %v8462 = vunpack.c.l.b16 %v8430
      %v8463 = vunpack.c.l.b16 %v8431
      %v8464 = vunpack.c.l.b16 %v8432
      %v8465 = vunpack.c.l.b16 %v8433
      %v8466 = vunpack.c.l.b16 %v8434
      %v8467 = vunpack.c.l.b16 %v8435
      %v8468 = vunpack.c.l.b16 %v8436
      %v8469 = vunpack.c.l.b16 %v8437
      %v8470 = vunpack.c.l.b16 %v8438
      %v8471 = vunpack.c.l.b16 %v8439
      %v8472 = vunpack.c.l.b16 %v8440
      %v8473 = vunpack.c.l.b16 %v8441
      %v8474 = vunpack.c.l.b16 %v8442
      %v8475 = vunpack.c.l.b16 %v8443
      %v8476 = vpack.c.b16 %v8461, %v8460
      %v8477 = vpack.c.b16 %v8463, %v8462
      %v8478 = vpack.c.b16 %v8465, %v8464
      %v8479 = vpack.c.b16 %v8467, %v8466
      %v8480 = vpack.c.b16 %v8469, %v8468
      %v8481 = vpack.c.b16 %v8471, %v8470
      %v8482 = vpack.c.b16 %v8473, %v8472
      %v8483 = vpack.c.b16 %v8475, %v8474
      %8492 = vmatprep.subr.bf16.mxu0 0
      %8493 = vmatpush1.bf16.msra.mxu0 %v8476
      %8494 = vmatprep.subr.bf16.mxu0 0
      %8495 = vmatpush1.bf16.msra.mxu0 %v8477
      %8496 = vmatprep.subr.bf16.mxu0 0
      %8497 = vmatpush1.bf16.msra.mxu0 %v8478
      %8498 = vmatprep.subr.bf16.mxu0 0
      %8499 = vmatpush1.bf16.msra.mxu0 %v8479
      %8500 = vmatprep.subr.bf16.mxu0 0
      %8501 = vmatpush1.bf16.msra.mxu0 %v8480
      %8502 = vmatprep.subr.bf16.mxu0 0
      %8503 = vmatpush1.bf16.msra.mxu0 %v8481
      %8504 = vmatprep.subr.bf16.mxu0 0
      %8505 = vmatpush1.bf16.msra.mxu0 %v8482
      %8506 = vmatprep.subr.bf16.mxu0 0
      %8507 = vmatpush1.bf16.msra.mxu0 %v8483
      %8508 = vmatprep.subr.bf16.mxu0 0
      %8509 = vmatpush1.bf16.msra.mxu0 0
      %8510 = vmatprep.subr.bf16.mxu0 0
      %8511 = vmatpush1.bf16.msra.mxu0 0
      %8512 = vmatprep.subr.bf16.mxu0 0
      %8513 = vmatpush1.bf16.msra.mxu0 0
      %8514 = vmatprep.subr.bf16.mxu0 0
      %8515 = vmatpush1.bf16.msra.mxu0 0
      %8516 = vmatprep.subr.bf16.mxu0 0
      %8517 = vmatpush1.bf16.msra.mxu0 0
      %8518 = vmatprep.subr.bf16.mxu0 0
      %8519 = vmatpush1.bf16.msra.mxu0 0
      %8520 = vmatprep.subr.bf16.mxu0 0
      %8521 = vmatpush1.bf16.msra.mxu0 0
      %8522 = vmatprep.subr.bf16.mxu0 0
      %8523 = vmatpush1.bf16.msra.mxu0 0
      %8524 = vmatprep.mubr.bf16.mxu0 0
      %8525 = vmatmul.mubr.bf16.gmra.mrb[0].mxu0 %v8426
      %v8526 = vpop.f32.mrb[0].mxu0
      %v8527 = vadd.f32 0.0, %v8526
      %v8528 = vpop.f32.mrb[0].mxu0
      %v8529 = vpop.f32.mrb[0].mxu0
      %v8530 = vadd.f32 0.0, %v8529
      %v8531 = vpop.f32.mrb[0].mxu0
      %8532 = vdwg.mxu0
      %s8533 = scalar_lea.vmem %s7, 192
      %v8534 = vld [vmem:[%s8533] sm:$0xf]
      %v8535 = vld [vmem:[%s8533 + $0x4] sm:$0xf]
      %v8536 = vld [vmem:[%s8533 + $0x8] sm:$0xf]
      %v8537 = vld [vmem:[%s8533 + $0xc] sm:$0xf]
      %v8538 = vld [vmem:[%s8533 + $0x10] sm:$0xf]
      %v8539 = vld [vmem:[%s8533 + $0x14] sm:$0xf]
      %v8540 = vld [vmem:[%s8533 + $0x18] sm:$0xf]
      %v8541 = vld [vmem:[%s8533 + $0x1c] sm:$0xf]
      %v8542 = vld [vmem:[%s8533 + $0x20] sm:$0xf]
      %v8543 = vld [vmem:[%s8533 + $0x24] sm:$0xf]
      %v8544 = vld [vmem:[%s8533 + $0x28] sm:$0xf]
      %v8545 = vld [vmem:[%s8533 + $0x2c] sm:$0xf]
      %v8546 = vld [vmem:[%s8533 + $0x30] sm:$0xf]
      %v8547 = vld [vmem:[%s8533 + $0x34] sm:$0xf]
      %v8548 = vld [vmem:[%s8533 + $0x38] sm:$0xf]
      %v8549 = vld [vmem:[%s8533 + $0x3c] sm:$0xf]
      %v8566 = vunpack.c.l.b16 %v8534
      %v8567 = vunpack.c.l.b16 %v8535
      %v8568 = vunpack.c.l.b16 %v8536
      %v8569 = vunpack.c.l.b16 %v8537
      %v8570 = vunpack.c.l.b16 %v8538
      %v8571 = vunpack.c.l.b16 %v8539
      %v8572 = vunpack.c.l.b16 %v8540
      %v8573 = vunpack.c.l.b16 %v8541
      %v8574 = vunpack.c.l.b16 %v8542
      %v8575 = vunpack.c.l.b16 %v8543
      %v8576 = vunpack.c.l.b16 %v8544
      %v8577 = vunpack.c.l.b16 %v8545
      %v8578 = vunpack.c.l.b16 %v8546
      %v8579 = vunpack.c.l.b16 %v8547
      %v8580 = vunpack.c.l.b16 %v8548
      %v8581 = vunpack.c.l.b16 %v8549
      %v8582 = vpack.c.b16 %v8567, %v8566
      %v8583 = vpack.c.b16 %v8569, %v8568
      %v8584 = vpack.c.b16 %v8571, %v8570
      %v8585 = vpack.c.b16 %v8573, %v8572
      %v8586 = vpack.c.b16 %v8575, %v8574
      %v8587 = vpack.c.b16 %v8577, %v8576
      %v8588 = vpack.c.b16 %v8579, %v8578
      %v8589 = vpack.c.b16 %v8581, %v8580
      %8598 = vmatprep.subr.bf16.mxu0 0
      %8599 = vmatpush1.bf16.msra.mxu0 %v8582
      %8600 = vmatprep.subr.bf16.mxu0 0
      %8601 = vmatpush1.bf16.msra.mxu0 %v8583
      %8602 = vmatprep.subr.bf16.mxu0 0
      %8603 = vmatpush1.bf16.msra.mxu0 %v8584
      %8604 = vmatprep.subr.bf16.mxu0 0
      %8605 = vmatpush1.bf16.msra.mxu0 %v8585
      %8606 = vmatprep.subr.bf16.mxu0 0
      %8607 = vmatpush1.bf16.msra.mxu0 %v8586
      %8608 = vmatprep.subr.bf16.mxu0 0
      %8609 = vmatpush1.bf16.msra.mxu0 %v8587
      %8610 = vmatprep.subr.bf16.mxu0 0
      %8611 = vmatpush1.bf16.msra.mxu0 %v8588
      %8612 = vmatprep.subr.bf16.mxu0 0
      %8613 = vmatpush1.bf16.msra.mxu0 %v8589
      %8614 = vmatprep.subr.bf16.mxu0 0
      %8615 = vmatpush1.bf16.msra.mxu0 0
      %8616 = vmatprep.subr.bf16.mxu0 0
      %8617 = vmatpush1.bf16.msra.mxu0 0
      %8618 = vmatprep.subr.bf16.mxu0 0
      %8619 = vmatpush1.bf16.msra.mxu0 0
      %8620 = vmatprep.subr.bf16.mxu0 0
      %8621 = vmatpush1.bf16.msra.mxu0 0
      %8622 = vmatprep.subr.bf16.mxu0 0
      %8623 = vmatpush1.bf16.msra.mxu0 0
      %8624 = vmatprep.subr.bf16.mxu0 0
      %8625 = vmatpush1.bf16.msra.mxu0 0
      %8626 = vmatprep.subr.bf16.mxu0 0
      %8627 = vmatpush1.bf16.msra.mxu0 0
      %8628 = vmatprep.subr.bf16.mxu0 0
      %8629 = vmatpush1.bf16.msra.mxu0 0
      %8630 = vmatprep.mubr.bf16.mxu0 0
      %8631 = vmatmul.mubr.bf16.gmra.mrb[0].mxu0 %v8426
      %v8632 = vpop.f32.mrb[0].mxu0
      %v8633 = vadd.f32 0.0, %v8632
      %v8634 = vpop.f32.mrb[0].mxu0
      %v8635 = vpop.f32.mrb[0].mxu0
      %v8636 = vadd.f32 0.0, %v8635
      %v8637 = vpop.f32.mrb[0].mxu0
      %8638 = vdwg.mxu0
      %v8639 = vmax.f32 %v8527, %v8633
      %v8640 = vmax.f32 %v8530, %v8636
      %v8641 = vadd.f32 %v8372, %v8639
      %v8642 = vadd.f32 %v8373, %v8640
      %8643 = vst [vmem:[%s310] sm:$0xff] %v8641
      %8644 = vst [vmem:[%s310 + $0x8] sm:$0xff] %v8642
      %s8645 = smul.u32 2, %s19
      %p8646 = scmp.lt.s32.totalorder %s8645, 3
      %s8647 = scalar_select %p8646, %s8645, 3
      %s8648 = smul.addr %s8647, 8
      %s8649 = scalar_lea.vmem %s8, %s8648
      // Predicated region
      $region53: #{voxnet_forward.1} parent=51 // pred_check
        %p8650 = pneg %p210
      $region54: #{voxnet_forward.1} parent=51 // pred_check_branch
        %8652 = sbr.rel (%p8650) target = $region56
      $region55: #{voxnet_forward.1} parent=51 // pred_region
        %s8653 = smul.u32 2, %s19
      $region56: #{voxnet_forward.1} parent=51 // pred_fallthru
        _
    $region52: #{voxnet_forward.1} parent=5 // pred_fallthru
      _
    %p8654 = scmp.le.s32.totalorder 2, %s14
    // Predicated region
    $region57: #{voxnet_forward.1} parent=5 // pred_check
      %p8655 = pneg %p8654
    $region58: #{voxnet_forward.1} parent=5 // pred_check_branch
      %8657 = sbr.rel (%p8655) target = $region60
    $region59: #{voxnet_forward.1} parent=5 // pred_region
      %s8658 = ssub.s32 %s14, 2
      // Predicated region
      $region61: #{voxnet_forward.1} parent=59 // pred_check
        %p8659 = pneg %p216
      $region62: #{voxnet_forward.1} parent=59 // pred_check_branch
        %8661 = sbr.rel (%p8659) target = $region64
      $region63: #{voxnet_forward.1} parent=59 // pred_region
        %s8662 = smul.u32 2, %s20
        %p8663 = scmp.lt.s32.totalorder %s8662, 3
        %s8664 = scalar_select %p8663, %s8662, 3
        %s8665 = smul.addr %s8664, 8
        %s8666 = scalar_lea.vmem %s8, %s8665
      $region64: #{voxnet_forward.1} parent=59 // pred_fallthru
        _
    $region60: #{voxnet_forward.1} parent=5 // pred_fallthru
      _
  $region6: #{voxnet_forward.1} parent=0 // loop_footer
    %s18 = sadd.s32 1, %s14
  $region7: #{voxnet_forward.1} parent=0 // loop_footer_branch
    %13 = sbr.rel target = $region3
  $region8: #{voxnet_forward.1} parent=0 // loop_exit
    _

</llo_original>
